<compile_context>
chip_gen: v6e
topology: v6e:2x2x1
jax: 0.10.0
libtpu: 0.0.40
codegen_flags: <defaults>
</compile_context>

<pallas_src>
import functools

import jax
import jax.numpy as jnp
from jax.experimental import pallas as pl
from jax.experimental.pallas import tpu as pltpu

TEXT_EMBEDDING_DIM = 300

# 32 MiB scoped VMEM: well under v7x's 64 MiB physical VMEM, and far above the
# largest double-buffered tile footprint used below (~3 MiB).
_VMEM_LIMIT = 32 * 1024 * 1024


# ----------------------------------------------------------------------------
# Pallas kernel: fused  act(X @ W + b)  — bf16 MXU matmul, f32 accumulate/bias
# ----------------------------------------------------------------------------
def _linear_act_kernel(x_ref, w_ref, b_ref, o_ref, *, act):
    # bf16 x bf16 -> f32 on the MXU
    y = jnp.dot(x_ref[...], w_ref[...], preferred_element_type=jnp.float32)
    y = y + b_ref[...]                        # f32 bias
    if act == "leaky_relu":
        y = jnp.where(y > 0, y, 0.2 * y)      # LeakyReLU(0.2) in f32
    o_ref[...] = y.astype(o_ref.dtype)


def _pick_tm(M, K):
    # Small-K layers (conv0 K=27, conv1 K=576) amortize per-grid-step overhead
    # with big row tiles; keep tiles moderate when K ~ 2k (conv3).
    tm = 1024 if K <= 1024 else 512
    return min(tm, M)


def fused_linear(x, w, b, act="none", out_dtype=jnp.bfloat16):
    """y = act(x @ w + b).  x/w bf16 MXU operands, f32 accumulate + bias.

    Grid = (row tiles, col tiles), both 'parallel', so v7x's two TensorCores
    get work even when one axis collapses to a single block.  Partial edge
    blocks (M or N not divisible by the tile) are handled by pl.cdiv grids.
    """
    M, K = x.shape
    Kw, N = w.shape
    assert K == Kw, (K, Kw)
    tm = _pick_tm(M, K)
    tn = N if N <= 256 else 256
    grid = (pl.cdiv(M, tm), pl.cdiv(N, tn))
    return pl.pallas_call(
        functools.partial(_linear_act_kernel, act=act),
        out_shape=jax.ShapeDtypeStruct((M, N), out_dtype),
        grid=grid,
        in_specs=[
            pl.BlockSpec((tm, K), lambda i, j: (i, 0)),
            pl.BlockSpec((K, tn), lambda i, j: (0, j)),
            pl.BlockSpec((1, tn), lambda i, j: (0, j)),
        ],
        out_specs=pl.BlockSpec((tm, tn), lambda i, j: (i, j)),
        compiler_params=pltpu.CompilerParams(
            dimension_semantics=("parallel", "parallel"),
            vmem_limit_bytes=_VMEM_LIMIT,
        ),
    )(x, w, b)


# ----------------------------------------------------------------------------
# Pallas kernel: classifier head  sigmoid(features . w + b)  (VPU dot-reduce)
# ----------------------------------------------------------------------------
def _classifier_kernel(f_ref, w_ref, b_ref, o_ref):
    f = f_ref[...].astype(jnp.float32)            # (B, F)
    w = w_ref[...].astype(jnp.float32)            # (1, F), broadcast over rows
    y = jnp.sum(f * w, axis=-1, keepdims=True) + b_ref[...]
    # numerically stable sigmoid (no overflow for very negative logits)
    e = jnp.exp(-jnp.abs(y))
    o_ref[...] = jnp.where(y >= 0.0, 1.0 / (1.0 + e), e / (1.0 + e)).astype(o_ref.dtype)


def classifier_head(features, w_row, b):
    B = features.shape[0]
    return pl.pallas_call(
        _classifier_kernel,
        out_shape=jax.ShapeDtypeStruct((B, 1), jnp.float32),
        compiler_params=pltpu.CompilerParams(vmem_limit_bytes=_VMEM_LIMIT),
    )(features, w_row, b)


# ----------------------------------------------------------------------------
# Conv2d(kernel=3, stride=2, pad=1) as im2col (bf16 glue) + fused Pallas GEMM
# ----------------------------------------------------------------------------
def _im2col_k3s2p1(x_nhwc):
    """3x3 / stride-2 / pad-1 patch extraction (XLA glue), kept in bf16."""
    B, H, W, C = x_nhwc.shape
    Ho, Wo = H // 2, W // 2
    xp = jnp.pad(x_nhwc, ((0, 0), (1, 1), (1, 1), (0, 0)))
    cols = []
    for ky in range(3):
        for kx in range(3):
            cols.append(xp[:, ky:ky + 2 * Ho:2, kx:kx + 2 * Wo:2, :])  # (B,Ho,Wo,C)
    patches = jnp.concatenate(cols, axis=-1)        # K ordered (ky, kx, cin)
    # TODO(synk): fuse the patch build into the Pallas kernel (parity-plane
    # gather in VMEM) to eliminate the remaining im2col round trip to HBM.
    return patches.reshape(B * Ho * Wo, 9 * C), (B, Ho, Wo)


def conv2d_s2_leaky(x_nhwc, w2, b2):
    """Conv2d(k=3,s=2,p=1) fused with LeakyReLU(0.2); GEMM runs on the MXU."""
    patches, (B, Ho, Wo) = _im2col_k3s2p1(x_nhwc)
    cout = w2.shape[1]
    y = fused_linear(patches, w2, b2, act="leaky_relu", out_dtype=jnp.bfloat16)
    return y.reshape(B, Ho, Wo, cout)


# ----------------------------------------------------------------------------
# Parameters (deterministic, synthetic — shapes match the PyTorch module)
# ----------------------------------------------------------------------------
def init_params(key):
    """Weights are stored pre-reshaped / pre-permuted into the layouts the
    kernels consume: bf16 GEMM operands, f32 biases (one-time init cost)."""
    ks = jax.random.split(key, 6)
    p = {}
    # text_embedding: Linear(300 -> 256), stored as W^T i.e. (in, out)
    p["te_w"] = (0.02 * jax.random.normal(ks[0], (TEXT_EMBEDDING_DIM, 256))).astype(jnp.bfloat16)
    p["te_b"] = jnp.zeros((1, 256), jnp.float32)
    # conv stack (3->64->128->256->512), k=3 s=2 p=1.  A PyTorch OIHW weight maps
    # to these GEMM weights via w.transpose(2, 3, 1, 0).reshape(9*cin, cout).
    chans = [3, 64, 128, 256, 512]
    for i in range(4):
        cin, cout = chans[i], chans[i + 1]
        w_hwio = 0.02 * jax.random.normal(ks[1 + i], (3, 3, cin, cout), jnp.float32)
        p[f"conv{i}_w"] = w_hwio.reshape(9 * cin, cout).astype(jnp.bfloat16)
        p[f"conv{i}_b"] = jnp.zeros((1, cout), jnp.float32)
    # classifier: Linear(512*4*4 + 256 -> 1).  Permute the image-feature rows
    # once from PyTorch's NCHW flatten order (c,h,w) to the NHWC flatten order
    # (h,w,c) produced by the conv path, so no activation transpose is needed.
    w_full = 0.02 * jax.random.normal(ks[5], (512 * 4 * 4 + 256,), jnp.float32)
    w_img = w_full[: 512 * 16].reshape(512, 4, 4).transpose(1, 2, 0).reshape(-1)
    p["cls_w"] = jnp.concatenate([w_img, w_full[512 * 16:]]).reshape(1, -1).astype(jnp.bfloat16)
    p["cls_b"] = jnp.zeros((1, 1), jnp.float32)
    return p


# ----------------------------------------------------------------------------
# Full forward pass
# ----------------------------------------------------------------------------
@jax.jit
def discriminator_forward(params, img_nchw, text_embedding):
    # PyTorch NCHW input -> NHWC bf16 (lane-dense channels, bf16 MXU operands)
    x = jnp.transpose(img_nchw, (0, 2, 3, 1)).astype(jnp.bfloat16)

    # text branch: Linear(300 -> 256)
    t = fused_linear(text_embedding.astype(jnp.bfloat16),
                     params["te_w"], params["te_b"], act="none")

    # image branch: 4 x [Conv2d(k3,s2,p1) + LeakyReLU(0.2)]
    for i in range(4):
        x = conv2d_s2_leaky(x, params[f"conv{i}_w"], params[f"conv{i}_b"])
        # Dropout2d(0.25) is identity at inference (eval mode) — no-op here.
        # TODO(synk): training-mode channel dropout (RNG channel mask) not implemented.

    # flatten in NHWC order (cls_w rows were permuted at init to match, so no
    # activation transpose here), then concat with the text features.
    B = x.shape[0]
    img_features = x.reshape(B, -1)                          # (B, 512*4*4) bf16
    features = jnp.concatenate([img_features, t], axis=-1)   # (B, 8448)     bf16

    # classifier: Linear(8448 -> 1) + Sigmoid, as a VPU dot-reduce kernel
    return classifier_head(features, params["cls_w"], params["cls_b"])  # (B,1) f32


if __name__ == "__main__":
    key = jax.random.PRNGKey(0)
    k_param, k_img, k_txt = jax.random.split(key, 3)

    params = init_params(k_param)

    batch = 2
    # spatial size must be 64x64 so the conv stack yields 512*4*4 features
    img = jax.random.normal(k_img, (batch, 3, 64, 64), jnp.float32)        # NCHW
    text = jax.random.normal(k_txt, (batch, TEXT_EMBEDDING_DIM), jnp.float32)

    out = discriminator_forward(params, img, text)
    out = jax.block_until_ready(out)

    assert out.shape == (batch, 1), out.shape
    assert bool(jnp.all((out >= 0.0) & (out <= 1.0))), "sigmoid output out of range"
    print("KERNEL_OK")
</pallas_src>

<mosaic_0001>
module attributes {stable_mosaic.version = 11 : i64} {
  func.func @_linear_act_kernel(%arg0: i32, %arg1: i32, %arg2: memref<1024x27xbf16, #tpu.memory_space<vmem>>, %arg3: memref<27x64xbf16, #tpu.memory_space<vmem>>, %arg4: memref<1x64xf32, #tpu.memory_space<vmem>>, %arg5: memref<1024x64xbf16, #tpu.memory_space<vmem>>) attributes {dimension_semantics = [#tpu.dimension_semantics<parallel>, #tpu.dimension_semantics<parallel>], iteration_bounds = array<i64: 2, 1>, scalar_prefetch = 0 : i64, scratch_operands = 0 : i64, tpu.core_type = #tpu.core_type<tc>, window_params = [{transform_indices = @transform_0, window_bounds = array<i64: 1024, 27>}, {transform_indices = @transform_1, window_bounds = array<i64: 27, 64>}, {transform_indices = @transform_2, window_bounds = array<i64: 1, 64>}, {transform_indices = @transform_3, window_bounds = array<i64: 1024, 64>}]} {
    %c0 = arith.constant 0 : index
    %c0_0 = arith.constant 0 : index
    %0 = vector.load %arg2[%c0, %c0_0] : memref<1024x27xbf16, #tpu.memory_space<vmem>>, vector<1024x27xbf16>
    %c0_1 = arith.constant 0 : index
    %c0_2 = arith.constant 0 : index
    %1 = vector.load %arg3[%c0_1, %c0_2] : memref<27x64xbf16, #tpu.memory_space<vmem>>, vector<27x64xbf16>
    %cst = arith.constant dense<0.000000e+00> : vector<1024x64xf32>
    %2 = tpu.matmul %0, %1, %cst {dimension_numbers = #tpu.dot_dimension_numbers<[1], [0], [0], [1], [0, 0, 1, 1], [], []>} : vector<1024x27xbf16>, vector<27x64xbf16>, vector<1024x64xf32> -> vector<1024x64xf32>
    %c0_3 = arith.constant 0 : index
    %c0_4 = arith.constant 0 : index
    %3 = vector.load %arg4[%c0_3, %c0_4] : memref<1x64xf32, #tpu.memory_space<vmem>>, vector<1x64xf32>
    %4 = vector.broadcast %3 : vector<1x64xf32> to vector<1024x64xf32>
    %5 = arith.addf %2, %4 : vector<1024x64xf32>
    %cst_5 = arith.constant 0.000000e+00 : f32
    %6 = vector.broadcast %cst_5 : f32 to vector<1024x64xf32>
    %7 = arith.cmpf ogt, %5, %6 : vector<1024x64xf32>
    %cst_6 = arith.constant 2.000000e-01 : f32
    %8 = vector.broadcast %cst_6 : f32 to vector<1024x64xf32>
    %9 = arith.mulf %8, %5 : vector<1024x64xf32>
    %10 = arith.select %7, %5, %9 : vector<1024x64xi1>, vector<1024x64xf32>
    %11 = arith.truncf %10 : vector<1024x64xf32> to vector<1024x64xbf16>
    %c0_7 = arith.constant 0 : index
    %c0_8 = arith.constant 0 : index
    %12 = vector.load %arg5[%c0_7, %c0_8] : memref<1024x64xbf16, #tpu.memory_space<vmem>>, vector<1024x64xbf16>
    tpu.vector_store %arg5[%c0_7, %c0_8], %11 {strides = array<i32>} : memref<1024x64xbf16, #tpu.memory_space<vmem>>, vector<1024x64xbf16>,
    return
  }
  func.func @transform_0(%arg0: i32, %arg1: i32) -> (i32, i32) {
    %c0_i32 = arith.constant 0 : i32
    %c0_i32_0 = arith.constant 0 : i32
    return %arg0, %c0_i32 : i32, i32
  }
  func.func @transform_1(%arg0: i32, %arg1: i32) -> (i32, i32) {
    %c0_i32 = arith.constant 0 : i32
    %c0_i32_0 = arith.constant 0 : i32
    return %c0_i32, %arg1 : i32, i32
  }
  func.func @transform_2(%arg0: i32, %arg1: i32) -> (i32, i32) {
    %c0_i32 = arith.constant 0 : i32
    %c0_i32_0 = arith.constant 0 : i32
    return %c0_i32, %arg1 : i32, i32
  }
  func.func @transform_3(%arg0: i32, %arg1: i32) -> (i32, i32) {
    %c0_i32 = arith.constant 0 : i32
    return %arg0, %arg1 : i32, i32
  }
}

module attributes {stable_mosaic.version = 11 : i64} {
  func.func @_linear_act_kernel(%arg0: i32, %arg1: i32, %arg2: memref<512x576xbf16, #tpu.memory_space<vmem>>, %arg3: memref<576x128xbf16, #tpu.memory_space<vmem>>, %arg4: memref<1x128xf32, #tpu.memory_space<vmem>>, %arg5: memref<512x128xbf16, #tpu.memory_space<vmem>>) attributes {dimension_semantics = [#tpu.dimension_semantics<parallel>, #tpu.dimension_semantics<parallel>], iteration_bounds = array<i64: 1, 1>, scalar_prefetch = 0 : i64, scratch_operands = 0 : i64, tpu.core_type = #tpu.core_type<tc>, window_params = [{transform_indices = @transform_0, window_bounds = array<i64: 512, 576>}, {transform_indices = @transform_1, window_bounds = array<i64: 576, 128>}, {transform_indices = @transform_2, window_bounds = array<i64: 1, 128>}, {transform_indices = @transform_3, window_bounds = array<i64: 512, 128>}]} {
    %c0 = arith.constant 0 : index
    %c0_0 = arith.constant 0 : index
    %0 = vector.load %arg2[%c0, %c0_0] : memref<512x576xbf16, #tpu.memory_space<vmem>>, vector<512x576xbf16>
    %c0_1 = arith.constant 0 : index
    %c0_2 = arith.constant 0 : index
    %1 = vector.load %arg3[%c0_1, %c0_2] : memref<576x128xbf16, #tpu.memory_space<vmem>>, vector<576x128xbf16>
    %cst = arith.constant dense<0.000000e+00> : vector<512x128xf32>
    %2 = tpu.matmul %0, %1, %cst {dimension_numbers = #tpu.dot_dimension_numbers<[1], [0], [0], [1], [0, 0, 1, 1], [], []>} : vector<512x576xbf16>, vector<576x128xbf16>, vector<512x128xf32> -> vector<512x128xf32>
    %c0_3 = arith.constant 0 : index
    %c0_4 = arith.constant 0 : index
    %3 = vector.load %arg4[%c0_3, %c0_4] : memref<1x128xf32, #tpu.memory_space<vmem>>, vector<1x128xf32>
    %4 = vector.broadcast %3 : vector<1x128xf32> to vector<512x128xf32>
    %5 = arith.addf %2, %4 : vector<512x128xf32>
    %cst_5 = arith.constant 0.000000e+00 : f32
    %6 = vector.broadcast %cst_5 : f32 to vector<512x128xf32>
    %7 = arith.cmpf ogt, %5, %6 : vector<512x128xf32>
    %cst_6 = arith.constant 2.000000e-01 : f32
    %8 = vector.broadcast %cst_6 : f32 to vector<512x128xf32>
    %9 = arith.mulf %8, %5 : vector<512x128xf32>
    %10 = arith.select %7, %5, %9 : vector<512x128xi1>, vector<512x128xf32>
    %11 = arith.truncf %10 : vector<512x128xf32> to vector<512x128xbf16>
    %c0_7 = arith.constant 0 : index
    %c0_8 = arith.constant 0 : index
    %12 = vector.load %arg5[%c0_7, %c0_8] : memref<512x128xbf16, #tpu.memory_space<vmem>>, vector<512x128xbf16>
    tpu.vector_store %arg5[%c0_7, %c0_8], %11 {strides = array<i32>} : memref<512x128xbf16, #tpu.memory_space<vmem>>, vector<512x128xbf16>,
    return
  }
  func.func @transform_0(%arg0: i32, %arg1: i32) -> (i32, i32) {
    %c0_i32 = arith.constant 0 : i32
    %c0_i32_0 = arith.constant 0 : i32
    return %arg0, %c0_i32 : i32, i32
  }
  func.func @transform_1(%arg0: i32, %arg1: i32) -> (i32, i32) {
    %c0_i32 = arith.constant 0 : i32
    %c0_i32_0 = arith.constant 0 : i32
    return %c0_i32, %arg1 : i32, i32
  }
  func.func @transform_2(%arg0: i32, %arg1: i32) -> (i32, i32) {
    %c0_i32 = arith.constant 0 : i32
    %c0_i32_0 = arith.constant 0 : i32
    return %c0_i32, %arg1 : i32, i32
  }
  func.func @transform_3(%arg0: i32, %arg1: i32) -> (i32, i32) {
    %c0_i32 = arith.constant 0 : i32
    return %arg0, %arg1 : i32, i32
  }
}

module attributes {stable_mosaic.version = 11 : i64} {
  func.func @_linear_act_kernel(%arg0: i32, %arg1: i32, %arg2: memref<128x1152xbf16, #tpu.memory_space<vmem>>, %arg3: memref<1152x256xbf16, #tpu.memory_space<vmem>>, %arg4: memref<1x256xf32, #tpu.memory_space<vmem>>, %arg5: memref<128x256xbf16, #tpu.memory_space<vmem>>) attributes {dimension_semantics = [#tpu.dimension_semantics<parallel>, #tpu.dimension_semantics<parallel>], iteration_bounds = array<i64: 1, 1>, scalar_prefetch = 0 : i64, scratch_operands = 0 : i64, tpu.core_type = #tpu.core_type<tc>, window_params = [{transform_indices = @transform_0, window_bounds = array<i64: 128, 1152>}, {transform_indices = @transform_1, window_bounds = array<i64: 1152, 256>}, {transform_indices = @transform_2, window_bounds = array<i64: 1, 256>}, {transform_indices = @transform_3, window_bounds = array<i64: 128, 256>}]} {
    %c0 = arith.constant 0 : index
    %c0_0 = arith.constant 0 : index
    %0 = vector.load %arg2[%c0, %c0_0] : memref<128x1152xbf16, #tpu.memory_space<vmem>>, vector<128x1152xbf16>
    %c0_1 = arith.constant 0 : index
    %c0_2 = arith.constant 0 : index
    %1 = vector.load %arg3[%c0_1, %c0_2] : memref<1152x256xbf16, #tpu.memory_space<vmem>>, vector<1152x256xbf16>
    %cst = arith.constant dense<0.000000e+00> : vector<128x256xf32>
    %2 = tpu.matmul %0, %1, %cst {dimension_numbers = #tpu.dot_dimension_numbers<[1], [0], [0], [1], [0, 0, 1, 1], [], []>} : vector<128x1152xbf16>, vector<1152x256xbf16>, vector<128x256xf32> -> vector<128x256xf32>
    %c0_3 = arith.constant 0 : index
    %c0_4 = arith.constant 0 : index
    %3 = vector.load %arg4[%c0_3, %c0_4] : memref<1x256xf32, #tpu.memory_space<vmem>>, vector<1x256xf32>
    %4 = vector.broadcast %3 : vector<1x256xf32> to vector<128x256xf32>
    %5 = arith.addf %2, %4 : vector<128x256xf32>
    %cst_5 = arith.constant 0.000000e+00 : f32
    %6 = vector.broadcast %cst_5 : f32 to vector<128x256xf32>
    %7 = arith.cmpf ogt, %5, %6 : vector<128x256xf32>
    %cst_6 = arith.constant 2.000000e-01 : f32
    %8 = vector.broadcast %cst_6 : f32 to vector<128x256xf32>
    %9 = arith.mulf %8, %5 : vector<128x256xf32>
    %10 = arith.select %7, %5, %9 : vector<128x256xi1>, vector<128x256xf32>
    %11 = arith.truncf %10 : vector<128x256xf32> to vector<128x256xbf16>
    %c0_7 = arith.constant 0 : index
    %c0_8 = arith.constant 0 : index
    %12 = vector.load %arg5[%c0_7, %c0_8] : memref<128x256xbf16, #tpu.memory_space<vmem>>, vector<128x256xbf16>
    tpu.vector_store %arg5[%c0_7, %c0_8], %11 {strides = array<i32>} : memref<128x256xbf16, #tpu.memory_space<vmem>>, vector<128x256xbf16>,
    return
  }
  func.func @transform_0(%arg0: i32, %arg1: i32) -> (i32, i32) {
    %c0_i32 = arith.constant 0 : i32
    %c0_i32_0 = arith.constant 0 : i32
    return %arg0, %c0_i32 : i32, i32
  }
  func.func @transform_1(%arg0: i32, %arg1: i32) -> (i32, i32) {
    %c0_i32 = arith.constant 0 : i32
    %c0_i32_0 = arith.constant 0 : i32
    return %c0_i32, %arg1 : i32, i32
  }
  func.func @transform_2(%arg0: i32, %arg1: i32) -> (i32, i32) {
    %c0_i32 = arith.constant 0 : i32
    %c0_i32_0 = arith.constant 0 : i32
    return %c0_i32, %arg1 : i32, i32
  }
  func.func @transform_3(%arg0: i32, %arg1: i32) -> (i32, i32) {
    %c0_i32 = arith.constant 0 : i32
    return %arg0, %arg1 : i32, i32
  }
}

module attributes {stable_mosaic.version = 11 : i64} {
  func.func @_linear_act_kernel(%arg0: i32, %arg1: i32, %arg2: memref<32x2304xbf16, #tpu.memory_space<vmem>>, %arg3: memref<2304x256xbf16, #tpu.memory_space<vmem>>, %arg4: memref<1x256xf32, #tpu.memory_space<vmem>>, %arg5: memref<32x256xbf16, #tpu.memory_space<vmem>>) attributes {dimension_semantics = [#tpu.dimension_semantics<parallel>, #tpu.dimension_semantics<parallel>], iteration_bounds = array<i64: 1, 2>, scalar_prefetch = 0 : i64, scratch_operands = 0 : i64, tpu.core_type = #tpu.core_type<tc>, window_params = [{transform_indices = @transform_0, window_bounds = array<i64: 32, 2304>}, {transform_indices = @transform_1, window_bounds = array<i64: 2304, 256>}, {transform_indices = @transform_2, window_bounds = array<i64: 1, 256>}, {transform_indices = @transform_3, window_bounds = array<i64: 32, 256>}]} {
    %c0 = arith.constant 0 : index
    %c0_0 = arith.constant 0 : index
    %0 = vector.load %arg2[%c0, %c0_0] : memref<32x2304xbf16, #tpu.memory_space<vmem>>, vector<32x2304xbf16>
    %c0_1 = arith.constant 0 : index
    %c0_2 = arith.constant 0 : index
    %1 = vector.load %arg3[%c0_1, %c0_2] : memref<2304x256xbf16, #tpu.memory_space<vmem>>, vector<2304x256xbf16>
    %cst = arith.constant dense<0.000000e+00> : vector<32x256xf32>
    %2 = tpu.matmul %0, %1, %cst {dimension_numbers = #tpu.dot_dimension_numbers<[1], [0], [0], [1], [0, 0, 1, 1], [], []>} : vector<32x2304xbf16>, vector<2304x256xbf16>, vector<32x256xf32> -> vector<32x256xf32>
    %c0_3 = arith.constant 0 : index
    %c0_4 = arith.constant 0 : index
    %3 = vector.load %arg4[%c0_3, %c0_4] : memref<1x256xf32, #tpu.memory_space<vmem>>, vector<1x256xf32>
    %4 = vector.broadcast %3 : vector<1x256xf32> to vector<32x256xf32>
    %5 = arith.addf %2, %4 : vector<32x256xf32>
    %cst_5 = arith.constant 0.000000e+00 : f32
    %6 = vector.broadcast %cst_5 : f32 to vector<32x256xf32>
    %7 = arith.cmpf ogt, %5, %6 : vector<32x256xf32>
    %cst_6 = arith.constant 2.000000e-01 : f32
    %8 = vector.broadcast %cst_6 : f32 to vector<32x256xf32>
    %9 = arith.mulf %8, %5 : vector<32x256xf32>
    %10 = arith.select %7, %5, %9 : vector<32x256xi1>, vector<32x256xf32>
    %11 = arith.truncf %10 : vector<32x256xf32> to vector<32x256xbf16>
    %c0_7 = arith.constant 0 : index
    %c0_8 = arith.constant 0 : index
    %12 = vector.load %arg5[%c0_7, %c0_8] : memref<32x256xbf16, #tpu.memory_space<vmem>>, vector<32x256xbf16>
    tpu.vector_store %arg5[%c0_7, %c0_8], %11 {strides = array<i32>} : memref<32x256xbf16, #tpu.memory_space<vmem>>, vector<32x256xbf16>,
    return
  }
  func.func @transform_0(%arg0: i32, %arg1: i32) -> (i32, i32) {
    %c0_i32 = arith.constant 0 : i32
    %c0_i32_0 = arith.constant 0 : i32
    return %arg0, %c0_i32 : i32, i32
  }
  func.func @transform_1(%arg0: i32, %arg1: i32) -> (i32, i32) {
    %c0_i32 = arith.constant 0 : i32
    %c0_i32_0 = arith.constant 0 : i32
    return %c0_i32, %arg1 : i32, i32
  }
  func.func @transform_2(%arg0: i32, %arg1: i32) -> (i32, i32) {
    %c0_i32 = arith.constant 0 : i32
    %c0_i32_0 = arith.constant 0 : i32
    return %c0_i32, %arg1 : i32, i32
  }
  func.func @transform_3(%arg0: i32, %arg1: i32) -> (i32, i32) {
    %c0_i32 = arith.constant 0 : i32
    return %arg0, %arg1 : i32, i32
  }
}

module attributes {stable_mosaic.version = 11 : i64} {
  func.func @_linear_act_kernel(%arg0: i32, %arg1: i32, %arg2: memref<2x300xbf16, #tpu.memory_space<vmem>>, %arg3: memref<300x256xbf16, #tpu.memory_space<vmem>>, %arg4: memref<1x256xf32, #tpu.memory_space<vmem>>, %arg5: memref<2x256xbf16, #tpu.memory_space<vmem>>) attributes {dimension_semantics = [#tpu.dimension_semantics<parallel>, #tpu.dimension_semantics<parallel>], iteration_bounds = array<i64: 1, 1>, scalar_prefetch = 0 : i64, scratch_operands = 0 : i64, tpu.core_type = #tpu.core_type<tc>, window_params = [{transform_indices = @transform_0, window_bounds = array<i64: 2, 300>}, {transform_indices = @transform_1, window_bounds = array<i64: 300, 256>}, {transform_indices = @transform_2, window_bounds = array<i64: 1, 256>}, {transform_indices = @transform_3, window_bounds = array<i64: 2, 256>}]} {
    %c0 = arith.constant 0 : index
    %c0_0 = arith.constant 0 : index
    %0 = vector.load %arg2[%c0, %c0_0] : memref<2x300xbf16, #tpu.memory_space<vmem>>, vector<2x300xbf16>
    %c0_1 = arith.constant 0 : index
    %c0_2 = arith.constant 0 : index
    %1 = vector.load %arg3[%c0_1, %c0_2] : memref<300x256xbf16, #tpu.memory_space<vmem>>, vector<300x256xbf16>
    %cst = arith.constant dense<0.000000e+00> : vector<2x256xf32>
    %2 = tpu.matmul %0, %1, %cst {dimension_numbers = #tpu.dot_dimension_numbers<[1], [0], [0], [1], [0, 0, 1, 1], [], []>} : vector<2x300xbf16>, vector<300x256xbf16>, vector<2x256xf32> -> vector<2x256xf32>
    %c0_3 = arith.constant 0 : index
    %c0_4 = arith.constant 0 : index
    %3 = vector.load %arg4[%c0_3, %c0_4] : memref<1x256xf32, #tpu.memory_space<vmem>>, vector<1x256xf32>
    %4 = vector.broadcast %3 : vector<1x256xf32> to vector<2x256xf32>
    %5 = arith.addf %2, %4 : vector<2x256xf32>
    %6 = arith.truncf %5 : vector<2x256xf32> to vector<2x256xbf16>
    %c0_5 = arith.constant 0 : index
    %c0_6 = arith.constant 0 : index
    %7 = vector.load %arg5[%c0_5, %c0_6] : memref<2x256xbf16, #tpu.memory_space<vmem>>, vector<2x256xbf16>
    tpu.vector_store %arg5[%c0_5, %c0_6], %6 {strides = array<i32>} : memref<2x256xbf16, #tpu.memory_space<vmem>>, vector<2x256xbf16>,
    return
  }
  func.func @transform_0(%arg0: i32, %arg1: i32) -> (i32, i32) {
    %c0_i32 = arith.constant 0 : i32
    %c0_i32_0 = arith.constant 0 : i32
    return %arg0, %c0_i32 : i32, i32
  }
  func.func @transform_1(%arg0: i32, %arg1: i32) -> (i32, i32) {
    %c0_i32 = arith.constant 0 : i32
    %c0_i32_0 = arith.constant 0 : i32
    return %c0_i32, %arg1 : i32, i32
  }
  func.func @transform_2(%arg0: i32, %arg1: i32) -> (i32, i32) {
    %c0_i32 = arith.constant 0 : i32
    %c0_i32_0 = arith.constant 0 : i32
    return %c0_i32, %arg1 : i32, i32
  }
  func.func @transform_3(%arg0: i32, %arg1: i32) -> (i32, i32) {
    %c0_i32 = arith.constant 0 : i32
    return %arg0, %arg1 : i32, i32
  }
}

module attributes {stable_mosaic.version = 11 : i64} {
  func.func @_classifier_kernel(%arg0: memref<2x8448xbf16, #tpu.memory_space<vmem>>, %arg1: memref<1x8448xbf16, #tpu.memory_space<vmem>>, %arg2: memref<1x1xf32, #tpu.memory_space<vmem>>, %arg3: memref<2x1xf32, #tpu.memory_space<vmem>>) attributes {dimension_semantics = [], scalar_prefetch = 0 : i64, scratch_operands = 0 : i64, tpu.core_type = #tpu.core_type<tc>} {
    %c0 = arith.constant 0 : index
    %c0_0 = arith.constant 0 : index
    %0 = vector.load %arg0[%c0, %c0_0] : memref<2x8448xbf16, #tpu.memory_space<vmem>>, vector<2x8448xbf16>
    %1 = arith.extf %0 : vector<2x8448xbf16> to vector<2x8448xf32>
    %c0_1 = arith.constant 0 : index
    %c0_2 = arith.constant 0 : index
    %2 = vector.load %arg1[%c0_1, %c0_2] : memref<1x8448xbf16, #tpu.memory_space<vmem>>, vector<1x8448xbf16>
    %3 = arith.extf %2 : vector<1x8448xbf16> to vector<1x8448xf32>
    %4 = vector.broadcast %3 : vector<1x8448xf32> to vector<2x8448xf32>
    %5 = arith.mulf %1, %4 : vector<2x8448xf32>
    %cst = arith.constant dense<0.000000e+00> : vector<2xf32>
    %6 = vector.multi_reduction <add>, %5, %cst [1] : vector<2x8448xf32> to vector<2xf32>
    %7 = vector.shape_cast %6 : vector<2xf32> to vector<2x1xf32>
    %c0_3 = arith.constant 0 : index
    %c0_4 = arith.constant 0 : index
    %8 = vector.load %arg2[%c0_3, %c0_4] : memref<1x1xf32, #tpu.memory_space<vmem>>, vector<1x1xf32>
    %9 = vector.broadcast %8 : vector<1x1xf32> to vector<2x1xf32>
    %10 = arith.addf %7, %9 : vector<2x1xf32>
    %11 = math.absf %10 : vector<2x1xf32>
    %cst_5 = arith.constant 0.000000e+00 : f32
    %12 = vector.broadcast %cst_5 : f32 to vector<2x1xf32>
    %13 = arith.subf %12, %11 : vector<2x1xf32>
    %14 = math.exp %13 : vector<2x1xf32>
    %cst_6 = arith.constant 0.000000e+00 : f32
    %15 = vector.broadcast %cst_6 : f32 to vector<2x1xf32>
    %16 = arith.cmpf oge, %10, %15 : vector<2x1xf32>
    %cst_7 = arith.constant 1.000000e+00 : f32
    %17 = vector.broadcast %cst_7 : f32 to vector<2x1xf32>
    %18 = arith.addf %17, %14 : vector<2x1xf32>
    %cst_8 = arith.constant 1.000000e+00 : f32
    %19 = vector.broadcast %cst_8 : f32 to vector<2x1xf32>
    %20 = arith.divf %19, %18 : vector<2x1xf32>
    %cst_9 = arith.constant 1.000000e+00 : f32
    %21 = vector.broadcast %cst_9 : f32 to vector<2x1xf32>
    %22 = arith.addf %21, %14 : vector<2x1xf32>
    %23 = arith.divf %14, %22 : vector<2x1xf32>
    %24 = arith.select %16, %20, %23 : vector<2x1xi1>, vector<2x1xf32>
    %c0_10 = arith.constant 0 : index
    %c0_11 = arith.constant 0 : index
    %25 = vector.load %arg3[%c0_10, %c0_11] : memref<2x1xf32, #tpu.memory_space<vmem>>, vector<2x1xf32>
    tpu.vector_store %arg3[%c0_10, %c0_11], %24 {strides = array<i32>} : memref<2x1xf32, #tpu.memory_space<vmem>>, vector<2x1xf32>,
    return
  }
}

</mosaic_0001>

<llo_original>
// kernel: discriminator_forward.7
$region0: #{discriminator_forward.7}
  #allocation0 [shape = 'u32[]', space=smem, size = 0x4, offset = 0x4, fixed_abs, tag = 'smem constant byte address 0x4 - core index']
  #allocation1 [shape = 'u32[144,128]{1,0:T(1,128)}', space=vmem, size = 0x12000, scoped, tag = 'internal scratch']
  %s0 = inlined_call_operand.vmem [shape: bf16[2048,27], index: 0, kind: input, shape index: {}]
  %s1 = inlined_call_operand.vmem [shape: bf16[27,64], index: 1, kind: input, shape index: {}]
  %s2 = inlined_call_operand.vmem [shape: f32[1,64], index: 2, kind: input, shape index: {}]
  %s3 = inlined_call_operand.vmem [shape: bf16[2048,64], index: 3, kind: output, shape index: {}]
  %s4 = sld [smem:[#allocation0]]
  $region45: #{discriminator_forward.7} parent=0
    _
  %s6 = ssub.s32 1, %s4
  %s7 = scalar_select 0, %s6, %s4
  loop: start=0, step=1, limit=4
  $region2: #{discriminator_forward.7} parent=0 // loop_pre_header
    _
  $region3: #{discriminator_forward.7} parent=0 // loop_header
    %s9 = sphi 0, %s13
    %p10 = scmp.ge.s32.totalorder %s9, 4
    %s16 = sphi 0, %s28
    %s17 = sphi 0, %s24
    %s18 = sphi 0, %s16
    %s19 = sphi 0, %s17
    %s20 = sphi 0, %s18
    %s21 = sphi 0, %s19
    %s31 = sphi 0, %s33
    %s34 = sphi 0, %s31
    %s35 = sphi 0, %s34
    %s51 = sphi 0, %s35
    %s57 = sphi 0, %s59
    %s60 = sphi 0, %s57
    %s61 = sphi 0, %s60
    %s77 = sphi 0, %s61
    %s83 = sphi 0, %s85
    %s86 = sphi 0, %s83
    %s87 = sphi 0, %s86
    %s103 = sphi 0, %s87
    %s111 = sphi 0, %s113
    %s114 = sphi 0, %s111
    %s115 = sphi 0, %s114
    %s131 = sphi 0, %s115
  $region4: #{discriminator_forward.7} parent=0 // loop_header_branch
    %12 = sbr.rel (%p10) target = $region8
  $region5: #{discriminator_forward.7} parent=0 // loop_body
    %s14 = ssub.s32 %s9, 1
    %s15 = ssub.s32 %s9, 2
    %s22 = sadd.s32 1, %s17
    %p23 = scmp.ge.s32.totalorder %s22, 1
    %s24 = scalar_select %p23, 0, %s22
    %s25 = sadd.s32 1, %s16
    %s26 = scalar_select %p23, %s25, %s16
    %p27 = scmp.ge.s32.totalorder %s26, 2
    %s28 = scalar_select %p27, 0, %s26
    %s29 = ssub.s32 %s16, %s28
    %p30 = scmp.eq.s32.totalorder %s29, 0
    %s32 = sadd.s32 %s31, 1
    %s33 = scalar_select %p30, %s31, %s32
    %p36 = pneg %p30
    %p37 = scmp.eq.s32.totalorder %s9, 1
    %p38 = por %p36, %p37
    %p39 = scmp.ne.s32.totalorder %s31, %s34
    %p40 = scmp.eq.s32.totalorder %s9, 0
    %p41 = por %p39, %p40
    %p42 = scmp.ne.s32.totalorder %s31, %s34
    %p43 = scmp.eq.s32.totalorder %s14, 1
    %p44 = por %p42, %p43
    %p45 = scmp.ne.s32.totalorder %s34, %s35
    %p46 = scmp.eq.s32.totalorder %s14, 0
    %p47 = por %p45, %p46
    %p48 = scmp.ne.s32.totalorder %s34, %s35
    %p49 = scmp.eq.s32.totalorder %s15, 1
    %p50 = por %p48, %p49
    %p52 = scmp.ne.s32.totalorder %s35, %s51
    %p53 = scmp.eq.s32.totalorder %s15, 0
    %p54 = por %p52, %p53
    %s55 = ssub.s32 %s17, %s24
    %p56 = scmp.eq.s32.totalorder %s55, 0
    %s58 = sadd.s32 %s57, 1
    %s59 = scalar_select %p56, %s57, %s58
    %p62 = pneg %p56
    %p63 = scmp.eq.s32.totalorder %s9, 1
    %p64 = por %p62, %p63
    %p65 = scmp.ne.s32.totalorder %s57, %s60
    %p66 = scmp.eq.s32.totalorder %s9, 0
    %p67 = por %p65, %p66
    %p68 = scmp.ne.s32.totalorder %s57, %s60
    %p69 = scmp.eq.s32.totalorder %s14, 1
    %p70 = por %p68, %p69
    %p71 = scmp.ne.s32.totalorder %s60, %s61
    %p72 = scmp.eq.s32.totalorder %s14, 0
    %p73 = por %p71, %p72
    %p74 = scmp.ne.s32.totalorder %s60, %s61
    %p75 = scmp.eq.s32.totalorder %s15, 1
    %p76 = por %p74, %p75
    %p78 = scmp.ne.s32.totalorder %s61, %s77
    %p79 = scmp.eq.s32.totalorder %s15, 0
    %p80 = por %p78, %p79
    %s81 = ssub.s32 %s17, %s24
    %p82 = scmp.eq.s32.totalorder %s81, 0
    %s84 = sadd.s32 %s83, 1
    %s85 = scalar_select %p82, %s83, %s84
    %p88 = pneg %p82
    %p89 = scmp.eq.s32.totalorder %s9, 1
    %p90 = por %p88, %p89
    %p91 = scmp.ne.s32.totalorder %s83, %s86
    %p92 = scmp.eq.s32.totalorder %s9, 0
    %p93 = por %p91, %p92
    %p94 = scmp.ne.s32.totalorder %s83, %s86
    %p95 = scmp.eq.s32.totalorder %s14, 1
    %p96 = por %p94, %p95
    %p97 = scmp.ne.s32.totalorder %s86, %s87
    %p98 = scmp.eq.s32.totalorder %s14, 0
    %p99 = por %p97, %p98
    %p100 = scmp.ne.s32.totalorder %s86, %s87
    %p101 = scmp.eq.s32.totalorder %s15, 1
    %p102 = por %p100, %p101
    %p104 = scmp.ne.s32.totalorder %s87, %s103
    %p105 = scmp.eq.s32.totalorder %s15, 0
    %p106 = por %p104, %p105
    %s107 = ssub.s32 %s16, %s28
    %s108 = ssub.s32 %s17, %s24
    %s109 = sor.u32 %s107, %s108
    %p110 = scmp.eq.s32.totalorder %s109, 0
    %s112 = sadd.s32 %s111, 1
    %s113 = scalar_select %p110, %s111, %s112
    %p116 = pneg %p110
    %p117 = scmp.eq.s32.totalorder %s9, 1
    %p118 = por %p116, %p117
    %p119 = scmp.ne.s32.totalorder %s111, %s114
    %p120 = scmp.eq.s32.totalorder %s9, 0
    %p121 = por %p119, %p120
    %p122 = scmp.ne.s32.totalorder %s111, %s114
    %p123 = scmp.eq.s32.totalorder %s14, 1
    %p124 = por %p122, %p123
    %p125 = scmp.ne.s32.totalorder %s114, %s115
    %p126 = scmp.eq.s32.totalorder %s14, 0
    %p127 = por %p125, %p126
    %p128 = scmp.ne.s32.totalorder %s114, %s115
    %p129 = scmp.eq.s32.totalorder %s15, 1
    %p130 = por %p128, %p129
    %p132 = scmp.ne.s32.totalorder %s115, %s131
    %p133 = scmp.eq.s32.totalorder %s15, 0
    %p134 = por %p132, %p133
    %p135 = scmp.le.s32.totalorder 1, %s9
    %p136 = scmp.lt.s32.totalorder %s9, 3
    %p137 = pnand %p135, %p136
    %p138 = pneg %p137
    // Predicated region
    $region9: #{discriminator_forward.7} parent=5 // pred_check
      _
    $region10: #{discriminator_forward.7} parent=5 // pred_check_branch
      %140 = sbr.rel (%p137) target = $region12
    $region11: #{discriminator_forward.7} parent=5 // pred_region
      %s141 = ssub.s32 %s9, 1
      // Predicated region
      $region13: #{discriminator_forward.7} parent=11 // pred_check
        %p142 = pneg %p73
      $region14: #{discriminator_forward.7} parent=11 // pred_check_branch
        %144 = sbr.rel (%p142) target = $region16
      $region15: #{discriminator_forward.7} parent=11 // pred_region
        %p145 = scmp.lt.s32.totalorder %s19, 0
        %s146 = scalar_select %p145, %s19, 0
        %s147 = smul.addr %s146, 4
        %s148 = scalar_lea.vmem %s1, %s147
      $region16: #{discriminator_forward.7} parent=11 // pred_fallthru
        _
      // Predicated region
      $region17: #{discriminator_forward.7} parent=11 // pred_check
        %p149 = pneg %p99
      $region18: #{discriminator_forward.7} parent=11 // pred_check_branch
        %151 = sbr.rel (%p149) target = $region20
      $region19: #{discriminator_forward.7} parent=11 // pred_region
        %p152 = scmp.lt.s32.totalorder %s19, 0
        %s153 = scalar_select %p152, %s19, 0
        %s154 = scalar_lea.vmem %s2, %s153
      $region20: #{discriminator_forward.7} parent=11 // pred_fallthru
        _
    $region12: #{discriminator_forward.7} parent=5 // pred_fallthru
      _
    %p155 = scmp.lt.s32.totalorder %s9, 2
    // Predicated region
    $region21: #{discriminator_forward.7} parent=5 // pred_check
      %p156 = pneg %p155
    $region22: #{discriminator_forward.7} parent=5 // pred_check_branch
      %158 = sbr.rel (%p156) target = $region24
    $region23: #{discriminator_forward.7} parent=5 // pred_region
      // Predicated region
      $region25: #{discriminator_forward.7} parent=23 // pred_check
        %p159 = pneg %p41
      $region26: #{discriminator_forward.7} parent=23 // pred_check_branch
        %161 = sbr.rel (%p159) target = $region28
      $region27: #{discriminator_forward.7} parent=23 // pred_region
        %s162 = smul.u32 128, %s16
        %p163 = scmp.lt.s32.totalorder %s162, 255
        %s164 = scalar_select %p163, %s162, 255
        %s165 = smul.addr %s164, 4
        %s166 = scalar_lea.vmem %s0, %s165
        %s167 = smul.u32 128, %s16
      $region28: #{discriminator_forward.7} parent=23 // pred_fallthru
        _
    $region24: #{discriminator_forward.7} parent=5 // pred_fallthru
      _
    %p168 = scmp.le.s32.totalorder 1, %s9
    %p169 = scmp.lt.s32.totalorder %s9, 3
    %p170 = pnand %p168, %p169
    %p171 = pneg %p170
    // Predicated region
    $region29: #{discriminator_forward.7} parent=5 // pred_check
      _
    $region30: #{discriminator_forward.7} parent=5 // pred_check_branch
      %173 = sbr.rel (%p170) target = $region32
    $region31: #{discriminator_forward.7} parent=5 // pred_region
      %s174 = ssub.s32 %s9, 1
      %s175 = smul.u32 128, %s18
      %p176 = scmp.lt.s32.totalorder %s175, 255
      %s177 = scalar_select %p176, %s175, 255
      %s178 = smul.addr %s177, 4
      %s179 = scalar_lea.vmem %s0, %s178
      %p180 = pneg %p47
      %p181 = pneg %p44
      %p182 = scmp.lt.s32.totalorder %s19, 0
      %s183 = scalar_select %p182, %s19, 0
      %s184 = smul.addr %s183, 4
      %s185 = scalar_lea.vmem %s1, %s184
      %p186 = pneg %p73
      %p187 = pneg %p70
      %p188 = scmp.lt.s32.totalorder %s19, 0
      %s189 = scalar_select %p188, %s19, 0
      %s190 = scalar_lea.vmem %s2, %s189
      %p191 = pneg %p99
      %p192 = pneg %p96
      %p193 = pneg %p127
      %p194 = pneg %p124
      %s195 = smul.u32 128, %s18
      %p196 = scmp.lt.s32.totalorder %s195, 255
      %s197 = scalar_select %p196, %s195, 255
      %p198 = scmp.lt.s32.totalorder %s19, 0
      %s199 = scalar_select %p198, %s19, 0
      %s200 = sadd.s32 %s199, %s197
      %s201 = smul.addr %s200, 4
      %s202 = scalar_lea.vmem %s3, %s201
      %s203 = smul.u32 128, %s18
      %p204 = scmp.lt.s32.totalorder %s203, 255
      %s205 = scalar_select %p204, %s203, 255
      %s206 = smul.addr %s205, 4
      %s207 = scalar_lea.vmem %s0, %s206
      %s208 = smul.u32 128, %s18
      %p209 = scmp.lt.s32.totalorder %s19, 0
      %s210 = scalar_select %p209, %s19, 0
      %s211 = smul.addr %s210, 4
      %s212 = scalar_lea.vmem %s1, %s211
      %p213 = scmp.lt.s32.totalorder %s19, 0
      %s214 = scalar_select %p213, %s19, 0
      %s215 = scalar_lea.vmem %s2, %s214
      %s216 = smul.u32 128, %s18
      %p217 = scmp.lt.s32.totalorder %s216, 255
      %s218 = scalar_select %p217, %s216, 255
      %p219 = scmp.lt.s32.totalorder %s19, 0
      %s220 = scalar_select %p219, %s19, 0
      %s221 = sadd.s32 %s220, %s218
      %s222 = smul.addr %s221, 4
      %s223 = scalar_lea.vmem %s3, %s222
      %s224 = smul.u32 128, %s18
      %v226 = vld [vmem:[%s207] sm:$0xf]
      %v227 = vld [vmem:[%s207 + $0x4] sm:$0xf]
      %v228 = vld [vmem:[%s207 + $0x8] sm:$0xf]
      %v229 = vld [vmem:[%s207 + $0xc] sm:$0xf]
      %v230 = vld [vmem:[%s207 + $0x10] sm:$0xf]
      %v231 = vld [vmem:[%s207 + $0x14] sm:$0xf]
      %v232 = vld [vmem:[%s207 + $0x18] sm:$0xf]
      %v233 = vld [vmem:[%s207 + $0x1c] sm:$0xf]
      %v234 = vld [vmem:[%s207 + $0x20] sm:$0xf]
      %v235 = vld [vmem:[%s207 + $0x24] sm:$0xf]
      %v236 = vld [vmem:[%s207 + $0x28] sm:$0xf]
      %v237 = vld [vmem:[%s207 + $0x2c] sm:$0xf]
      %v238 = vld [vmem:[%s207 + $0x30] sm:$0xf]
      %v239 = vld [vmem:[%s207 + $0x34] sm:$0xf]
      %v240 = vld [vmem:[%s207 + $0x38] sm:$0xf]
      %v241 = vld [vmem:[%s207 + $0x3c] sm:$0xf]
      %v242 = vld [vmem:[%s207 + $0x40] sm:$0xf]
      %v243 = vld [vmem:[%s207 + $0x44] sm:$0xf]
      %v244 = vld [vmem:[%s207 + $0x48] sm:$0xf]
      %v245 = vld [vmem:[%s207 + $0x4c] sm:$0xf]
      %v246 = vld [vmem:[%s207 + $0x50] sm:$0xf]
      %v247 = vld [vmem:[%s207 + $0x54] sm:$0xf]
      %v248 = vld [vmem:[%s207 + $0x58] sm:$0xf]
      %v249 = vld [vmem:[%s207 + $0x5c] sm:$0xf]
      %v250 = vld [vmem:[%s207 + $0x60] sm:$0xf]
      %v251 = vld [vmem:[%s207 + $0x64] sm:$0xf]
      %v252 = vld [vmem:[%s207 + $0x68] sm:$0xf]
      %v253 = vld [vmem:[%s207 + $0x6c] sm:$0xf]
      %v254 = vld [vmem:[%s207 + $0x70] sm:$0xf]
      %v255 = vld [vmem:[%s207 + $0x74] sm:$0xf]
      %v256 = vld [vmem:[%s207 + $0x78] sm:$0xf]
      %v257 = vld [vmem:[%s207 + $0x7c] sm:$0xf]
      %v258 = vld [vmem:[%s207 + $0x80] sm:$0xf]
      %v259 = vld [vmem:[%s207 + $0x84] sm:$0xf]
      %v260 = vld [vmem:[%s207 + $0x88] sm:$0xf]
      %v261 = vld [vmem:[%s207 + $0x8c] sm:$0xf]
      %v262 = vld [vmem:[%s207 + $0x90] sm:$0xf]
      %v263 = vld [vmem:[%s207 + $0x94] sm:$0xf]
      %v264 = vld [vmem:[%s207 + $0x98] sm:$0xf]
      %v265 = vld [vmem:[%s207 + $0x9c] sm:$0xf]
      %v266 = vld [vmem:[%s207 + $0xa0] sm:$0xf]
      %v267 = vld [vmem:[%s207 + $0xa4] sm:$0xf]
      %v268 = vld [vmem:[%s207 + $0xa8] sm:$0xf]
      %v269 = vld [vmem:[%s207 + $0xac] sm:$0xf]
      %v270 = vld [vmem:[%s207 + $0xb0] sm:$0xf]
      %v271 = vld [vmem:[%s207 + $0xb4] sm:$0xf]
      %v272 = vld [vmem:[%s207 + $0xb8] sm:$0xf]
      %v273 = vld [vmem:[%s207 + $0xbc] sm:$0xf]
      %v274 = vld [vmem:[%s207 + $0xc0] sm:$0xf]
      %v275 = vld [vmem:[%s207 + $0xc4] sm:$0xf]
      %v276 = vld [vmem:[%s207 + $0xc8] sm:$0xf]
      %v277 = vld [vmem:[%s207 + $0xcc] sm:$0xf]
      %v278 = vld [vmem:[%s207 + $0xd0] sm:$0xf]
      %v279 = vld [vmem:[%s207 + $0xd4] sm:$0xf]
      %v280 = vld [vmem:[%s207 + $0xd8] sm:$0xf]
      %v281 = vld [vmem:[%s207 + $0xdc] sm:$0xf]
      %v282 = vld [vmem:[%s207 + $0xe0] sm:$0xf]
      %v283 = vld [vmem:[%s207 + $0xe4] sm:$0xf]
      %v284 = vld [vmem:[%s207 + $0xe8] sm:$0xf]
      %v285 = vld [vmem:[%s207 + $0xec] sm:$0xf]
      %v286 = vld [vmem:[%s207 + $0xf0] sm:$0xf]
      %v287 = vld [vmem:[%s207 + $0xf4] sm:$0xf]
      %v288 = vld [vmem:[%s207 + $0xf8] sm:$0xf]
      %v289 = vld [vmem:[%s207 + $0xfc] sm:$0xf]
      %v290 = vld [vmem:[%s207 + $0x100] sm:$0xf]
      %v291 = vld [vmem:[%s207 + $0x104] sm:$0xf]
      %v292 = vld [vmem:[%s207 + $0x108] sm:$0xf]
      %v293 = vld [vmem:[%s207 + $0x10c] sm:$0xf]
      %v294 = vld [vmem:[%s207 + $0x110] sm:$0xf]
      %v295 = vld [vmem:[%s207 + $0x114] sm:$0xf]
      %v296 = vld [vmem:[%s207 + $0x118] sm:$0xf]
      %v297 = vld [vmem:[%s207 + $0x11c] sm:$0xf]
      %v298 = vld [vmem:[%s207 + $0x120] sm:$0xf]
      %v299 = vld [vmem:[%s207 + $0x124] sm:$0xf]
      %v300 = vld [vmem:[%s207 + $0x128] sm:$0xf]
      %v301 = vld [vmem:[%s207 + $0x12c] sm:$0xf]
      %v302 = vld [vmem:[%s207 + $0x130] sm:$0xf]
      %v303 = vld [vmem:[%s207 + $0x134] sm:$0xf]
      %v304 = vld [vmem:[%s207 + $0x138] sm:$0xf]
      %v305 = vld [vmem:[%s207 + $0x13c] sm:$0xf]
      %v306 = vld [vmem:[%s207 + $0x140] sm:$0xf]
      %v307 = vld [vmem:[%s207 + $0x144] sm:$0xf]
      %v308 = vld [vmem:[%s207 + $0x148] sm:$0xf]
      %v309 = vld [vmem:[%s207 + $0x14c] sm:$0xf]
      %v310 = vld [vmem:[%s207 + $0x150] sm:$0xf]
      %v311 = vld [vmem:[%s207 + $0x154] sm:$0xf]
      %v312 = vld [vmem:[%s207 + $0x158] sm:$0xf]
      %v313 = vld [vmem:[%s207 + $0x15c] sm:$0xf]
      %v314 = vld [vmem:[%s207 + $0x160] sm:$0xf]
      %v315 = vld [vmem:[%s207 + $0x164] sm:$0xf]
      %v316 = vld [vmem:[%s207 + $0x168] sm:$0xf]
      %v317 = vld [vmem:[%s207 + $0x16c] sm:$0xf]
      %v318 = vld [vmem:[%s207 + $0x170] sm:$0xf]
      %v319 = vld [vmem:[%s207 + $0x174] sm:$0xf]
      %v320 = vld [vmem:[%s207 + $0x178] sm:$0xf]
      %v321 = vld [vmem:[%s207 + $0x17c] sm:$0xf]
      %v322 = vld [vmem:[%s207 + $0x180] sm:$0xf]
      %v323 = vld [vmem:[%s207 + $0x184] sm:$0xf]
      %v324 = vld [vmem:[%s207 + $0x188] sm:$0xf]
      %v325 = vld [vmem:[%s207 + $0x18c] sm:$0xf]
      %v326 = vld [vmem:[%s207 + $0x190] sm:$0xf]
      %v327 = vld [vmem:[%s207 + $0x194] sm:$0xf]
      %v328 = vld [vmem:[%s207 + $0x198] sm:$0xf]
      %v329 = vld [vmem:[%s207 + $0x19c] sm:$0xf]
      %v330 = vld [vmem:[%s207 + $0x1a0] sm:$0xf]
      %v331 = vld [vmem:[%s207 + $0x1a4] sm:$0xf]
      %v332 = vld [vmem:[%s207 + $0x1a8] sm:$0xf]
      %v333 = vld [vmem:[%s207 + $0x1ac] sm:$0xf]
      %v334 = vld [vmem:[%s207 + $0x1b0] sm:$0xf]
      %v335 = vld [vmem:[%s207 + $0x1b4] sm:$0xf]
      %v336 = vld [vmem:[%s207 + $0x1b8] sm:$0xf]
      %v337 = vld [vmem:[%s207 + $0x1bc] sm:$0xf]
      %v338 = vld [vmem:[%s207 + $0x1c0] sm:$0xf]
      %v339 = vld [vmem:[%s207 + $0x1c4] sm:$0xf]
      %v340 = vld [vmem:[%s207 + $0x1c8] sm:$0xf]
      %v341 = vld [vmem:[%s207 + $0x1cc] sm:$0xf]
      %v342 = vld [vmem:[%s207 + $0x1d0] sm:$0xf]
      %v343 = vld [vmem:[%s207 + $0x1d4] sm:$0xf]
      %v344 = vld [vmem:[%s207 + $0x1d8] sm:$0xf]
      %v345 = vld [vmem:[%s207 + $0x1dc] sm:$0xf]
      %v346 = vld [vmem:[%s207 + $0x1e0] sm:$0xf]
      %v347 = vld [vmem:[%s207 + $0x1e4] sm:$0xf]
      %v348 = vld [vmem:[%s207 + $0x1e8] sm:$0xf]
      %v349 = vld [vmem:[%s207 + $0x1ec] sm:$0xf]
      %v350 = vld [vmem:[%s207 + $0x1f0] sm:$0xf]
      %v351 = vld [vmem:[%s207 + $0x1f4] sm:$0xf]
      %v352 = vld [vmem:[%s207 + $0x1f8] sm:$0xf]
      %v353 = vld [vmem:[%s207 + $0x1fc] sm:$0xf]
      %v354 = vld [vmem:[%s212] sm:$0xf]
      %v355 = vld [vmem:[%s212 + $0x4] sm:$0xf]
      %v356 = vld [vmem:[%s212 + $0x8] sm:$0xf]
      %v357 = vld [vmem:[%s212 + $0xc] sm:$0x3]
      %v358 = vld [vmem:[%s215] sm:$0x1]
      %v360 = vlaneseq
      %v361 = vshrl.u32 %v360, 7
      %v362 = vsub.s32 0, %v361
      %v363 = vrot.slane %v358, %v362
      %v493 = vunpack.c.l.b16 %v226
      %v494 = vunpack.c.l.b16 %v227
      %v495 = vunpack.c.l.b16 %v228
      %v496 = vunpack.c.l.b16 %v229
      %v497 = vunpack.c.l.b16 %v230
      %v498 = vunpack.c.l.b16 %v231
      %v499 = vunpack.c.l.b16 %v232
      %v500 = vunpack.c.l.b16 %v233
      %v501 = vunpack.c.l.b16 %v234
      %v502 = vunpack.c.l.b16 %v235
      %v503 = vunpack.c.l.b16 %v236
      %v504 = vunpack.c.l.b16 %v237
      %v505 = vunpack.c.l.b16 %v238
      %v506 = vunpack.c.l.b16 %v239
      %v507 = vunpack.c.l.b16 %v240
      %v508 = vunpack.c.l.b16 %v241
      %v509 = vunpack.c.l.b16 %v242
      %v510 = vunpack.c.l.b16 %v243
      %v511 = vunpack.c.l.b16 %v244
      %v512 = vunpack.c.l.b16 %v245
      %v513 = vunpack.c.l.b16 %v246
      %v514 = vunpack.c.l.b16 %v247
      %v515 = vunpack.c.l.b16 %v248
      %v516 = vunpack.c.l.b16 %v249
      %v517 = vunpack.c.l.b16 %v250
      %v518 = vunpack.c.l.b16 %v251
      %v519 = vunpack.c.l.b16 %v252
      %v520 = vunpack.c.l.b16 %v253
      %v521 = vunpack.c.l.b16 %v254
      %v522 = vunpack.c.l.b16 %v255
      %v523 = vunpack.c.l.b16 %v256
      %v524 = vunpack.c.l.b16 %v257
      %v525 = vunpack.c.l.b16 %v258
      %v526 = vunpack.c.l.b16 %v259
      %v527 = vunpack.c.l.b16 %v260
      %v528 = vunpack.c.l.b16 %v261
      %v529 = vunpack.c.l.b16 %v262
      %v530 = vunpack.c.l.b16 %v263
      %v531 = vunpack.c.l.b16 %v264
      %v532 = vunpack.c.l.b16 %v265
      %v533 = vunpack.c.l.b16 %v266
      %v534 = vunpack.c.l.b16 %v267
      %v535 = vunpack.c.l.b16 %v268
      %v536 = vunpack.c.l.b16 %v269
      %v537 = vunpack.c.l.b16 %v270
      %v538 = vunpack.c.l.b16 %v271
      %v539 = vunpack.c.l.b16 %v272
      %v540 = vunpack.c.l.b16 %v273
      %v541 = vunpack.c.l.b16 %v274
      %v542 = vunpack.c.l.b16 %v275
      %v543 = vunpack.c.l.b16 %v276
      %v544 = vunpack.c.l.b16 %v277
      %v545 = vunpack.c.l.b16 %v278
      %v546 = vunpack.c.l.b16 %v279
      %v547 = vunpack.c.l.b16 %v280
      %v548 = vunpack.c.l.b16 %v281
      %v549 = vunpack.c.l.b16 %v282
      %v550 = vunpack.c.l.b16 %v283
      %v551 = vunpack.c.l.b16 %v284
      %v552 = vunpack.c.l.b16 %v285
      %v553 = vunpack.c.l.b16 %v286
      %v554 = vunpack.c.l.b16 %v287
      %v555 = vunpack.c.l.b16 %v288
      %v556 = vunpack.c.l.b16 %v289
      %v557 = vunpack.c.l.b16 %v290
      %v558 = vunpack.c.l.b16 %v291
      %v559 = vunpack.c.l.b16 %v292
      %v560 = vunpack.c.l.b16 %v293
      %v561 = vunpack.c.l.b16 %v294
      %v562 = vunpack.c.l.b16 %v295
      %v563 = vunpack.c.l.b16 %v296
      %v564 = vunpack.c.l.b16 %v297
      %v565 = vunpack.c.l.b16 %v298
      %v566 = vunpack.c.l.b16 %v299
      %v567 = vunpack.c.l.b16 %v300
      %v568 = vunpack.c.l.b16 %v301
      %v569 = vunpack.c.l.b16 %v302
      %v570 = vunpack.c.l.b16 %v303
      %v571 = vunpack.c.l.b16 %v304
      %v572 = vunpack.c.l.b16 %v305
      %v573 = vunpack.c.l.b16 %v306
      %v574 = vunpack.c.l.b16 %v307
      %v575 = vunpack.c.l.b16 %v308
      %v576 = vunpack.c.l.b16 %v309
      %v577 = vunpack.c.l.b16 %v310
      %v578 = vunpack.c.l.b16 %v311
      %v579 = vunpack.c.l.b16 %v312
      %v580 = vunpack.c.l.b16 %v313
      %v581 = vunpack.c.l.b16 %v314
      %v582 = vunpack.c.l.b16 %v315
      %v583 = vunpack.c.l.b16 %v316
      %v584 = vunpack.c.l.b16 %v317
      %v585 = vunpack.c.l.b16 %v318
      %v586 = vunpack.c.l.b16 %v319
      %v587 = vunpack.c.l.b16 %v320
      %v588 = vunpack.c.l.b16 %v321
      %v589 = vunpack.c.l.b16 %v322
      %v590 = vunpack.c.l.b16 %v323
      %v591 = vunpack.c.l.b16 %v324
      %v592 = vunpack.c.l.b16 %v325
      %v593 = vunpack.c.l.b16 %v326
      %v594 = vunpack.c.l.b16 %v327
      %v595 = vunpack.c.l.b16 %v328
      %v596 = vunpack.c.l.b16 %v329
      %v597 = vunpack.c.l.b16 %v330
      %v598 = vunpack.c.l.b16 %v331
      %v599 = vunpack.c.l.b16 %v332
      %v600 = vunpack.c.l.b16 %v333
      %v601 = vunpack.c.l.b16 %v334
      %v602 = vunpack.c.l.b16 %v335
      %v603 = vunpack.c.l.b16 %v336
      %v604 = vunpack.c.l.b16 %v337
      %v605 = vunpack.c.l.b16 %v338
      %v606 = vunpack.c.l.b16 %v339
      %v607 = vunpack.c.l.b16 %v340
      %v608 = vunpack.c.l.b16 %v341
      %v609 = vunpack.c.l.b16 %v342
      %v610 = vunpack.c.l.b16 %v343
      %v611 = vunpack.c.l.b16 %v344
      %v612 = vunpack.c.l.b16 %v345
      %v613 = vunpack.c.l.b16 %v346
      %v614 = vunpack.c.l.b16 %v347
      %v615 = vunpack.c.l.b16 %v348
      %v616 = vunpack.c.l.b16 %v349
      %v617 = vunpack.c.l.b16 %v350
      %v618 = vunpack.c.l.b16 %v351
      %v619 = vunpack.c.l.b16 %v352
      %v620 = vunpack.c.l.b16 %v353
      %v621 = vpack.c.b16 %v494, %v493
      %v622 = vpack.c.b16 %v496, %v495
      %v623 = vpack.c.b16 %v498, %v497
      %v624 = vpack.c.b16 %v500, %v499
      %v625 = vpack.c.b16 %v502, %v501
      %v626 = vpack.c.b16 %v504, %v503
      %v627 = vpack.c.b16 %v506, %v505
      %v628 = vpack.c.b16 %v508, %v507
      %v629 = vpack.c.b16 %v510, %v509
      %v630 = vpack.c.b16 %v512, %v511
      %v631 = vpack.c.b16 %v514, %v513
      %v632 = vpack.c.b16 %v516, %v515
      %v633 = vpack.c.b16 %v518, %v517
      %v634 = vpack.c.b16 %v520, %v519
      %v635 = vpack.c.b16 %v522, %v521
      %v636 = vpack.c.b16 %v524, %v523
      %v637 = vpack.c.b16 %v526, %v525
      %v638 = vpack.c.b16 %v528, %v527
      %v639 = vpack.c.b16 %v530, %v529
      %v640 = vpack.c.b16 %v532, %v531
      %v641 = vpack.c.b16 %v534, %v533
      %v642 = vpack.c.b16 %v536, %v535
      %v643 = vpack.c.b16 %v538, %v537
      %v644 = vpack.c.b16 %v540, %v539
      %v645 = vpack.c.b16 %v542, %v541
      %v646 = vpack.c.b16 %v544, %v543
      %v647 = vpack.c.b16 %v546, %v545
      %v648 = vpack.c.b16 %v548, %v547
      %v649 = vpack.c.b16 %v550, %v549
      %v650 = vpack.c.b16 %v552, %v551
      %v651 = vpack.c.b16 %v554, %v553
      %v652 = vpack.c.b16 %v556, %v555
      %v653 = vpack.c.b16 %v558, %v557
      %v654 = vpack.c.b16 %v560, %v559
      %v655 = vpack.c.b16 %v562, %v561
      %v656 = vpack.c.b16 %v564, %v563
      %v657 = vpack.c.b16 %v566, %v565
      %v658 = vpack.c.b16 %v568, %v567
      %v659 = vpack.c.b16 %v570, %v569
      %v660 = vpack.c.b16 %v572, %v571
      %v661 = vpack.c.b16 %v574, %v573
      %v662 = vpack.c.b16 %v576, %v575
      %v663 = vpack.c.b16 %v578, %v577
      %v664 = vpack.c.b16 %v580, %v579
      %v665 = vpack.c.b16 %v582, %v581
      %v666 = vpack.c.b16 %v584, %v583
      %v667 = vpack.c.b16 %v586, %v585
      %v668 = vpack.c.b16 %v588, %v587
      %v669 = vpack.c.b16 %v590, %v589
      %v670 = vpack.c.b16 %v592, %v591
      %v671 = vpack.c.b16 %v594, %v593
      %v672 = vpack.c.b16 %v596, %v595
      %v673 = vpack.c.b16 %v598, %v597
      %v674 = vpack.c.b16 %v600, %v599
      %v675 = vpack.c.b16 %v602, %v601
      %v676 = vpack.c.b16 %v604, %v603
      %v677 = vpack.c.b16 %v606, %v605
      %v678 = vpack.c.b16 %v608, %v607
      %v679 = vpack.c.b16 %v610, %v609
      %v680 = vpack.c.b16 %v612, %v611
      %v681 = vpack.c.b16 %v614, %v613
      %v682 = vpack.c.b16 %v616, %v615
      %v683 = vpack.c.b16 %v618, %v617
      %v684 = vpack.c.b16 %v620, %v619
      %v689 = vunpack.c.l.b16 %v354
      %v690 = vunpack.c.l.b16 %v355
      %v691 = vunpack.c.l.b16 %v356
      %v692 = vunpack.c.l.b16 %v357
      %v693 = vpack.c.b16 %v690, %v689
      %v694 = vpack.c.b16 %v692, %v691
      %vm696 = vcmask 220160
      %v698 = vsel %vm696, %v621, 0
      %v701 = vsel %vm696, %v622, 0
      %v704 = vsel %vm696, %v623, 0
      %v707 = vsel %vm696, %v624, 0
      %v710 = vsel %vm696, %v625, 0
      %v713 = vsel %vm696, %v626, 0
      %v716 = vsel %vm696, %v627, 0
      %v719 = vsel %vm696, %v628, 0
      %v722 = vsel %vm696, %v629, 0
      %v725 = vsel %vm696, %v630, 0
      %v728 = vsel %vm696, %v631, 0
      %v731 = vsel %vm696, %v632, 0
      %v734 = vsel %vm696, %v633, 0
      %v737 = vsel %vm696, %v634, 0
      %v740 = vsel %vm696, %v635, 0
      %v743 = vsel %vm696, %v636, 0
      %v746 = vsel %vm696, %v637, 0
      %v749 = vsel %vm696, %v638, 0
      %v752 = vsel %vm696, %v639, 0
      %v755 = vsel %vm696, %v640, 0
      %v758 = vsel %vm696, %v641, 0
      %v761 = vsel %vm696, %v642, 0
      %v764 = vsel %vm696, %v643, 0
      %v767 = vsel %vm696, %v644, 0
      %v770 = vsel %vm696, %v645, 0
      %v773 = vsel %vm696, %v646, 0
      %v776 = vsel %vm696, %v647, 0
      %v779 = vsel %vm696, %v648, 0
      %v782 = vsel %vm696, %v649, 0
      %v785 = vsel %vm696, %v650, 0
      %v788 = vsel %vm696, %v651, 0
      %v791 = vsel %vm696, %v652, 0
      %v794 = vsel %vm696, %v653, 0
      %v797 = vsel %vm696, %v654, 0
      %v800 = vsel %vm696, %v655, 0
      %v803 = vsel %vm696, %v656, 0
      %v806 = vsel %vm696, %v657, 0
      %v809 = vsel %vm696, %v658, 0
      %v812 = vsel %vm696, %v659, 0
      %v815 = vsel %vm696, %v660, 0
      %v818 = vsel %vm696, %v661, 0
      %v821 = vsel %vm696, %v662, 0
      %v824 = vsel %vm696, %v663, 0
      %v827 = vsel %vm696, %v664, 0
      %v830 = vsel %vm696, %v665, 0
      %v833 = vsel %vm696, %v666, 0
      %v836 = vsel %vm696, %v667, 0
      %v839 = vsel %vm696, %v668, 0
      %v842 = vsel %vm696, %v669, 0
      %v845 = vsel %vm696, %v670, 0
      %v848 = vsel %vm696, %v671, 0
      %v851 = vsel %vm696, %v672, 0
      %v854 = vsel %vm696, %v673, 0
      %v857 = vsel %vm696, %v674, 0
      %v860 = vsel %vm696, %v675, 0
      %v863 = vsel %vm696, %v676, 0
      %v866 = vsel %vm696, %v677, 0
      %v869 = vsel %vm696, %v678, 0
      %v872 = vsel %vm696, %v679, 0
      %v875 = vsel %vm696, %v680, 0
      %v878 = vsel %vm696, %v681, 0
      %v881 = vsel %vm696, %v682, 0
      %v884 = vsel %vm696, %v683, 0
      %v887 = vsel %vm696, %v684, 0
      %vm889 = vcmask 1044480
      %vm890 = vcmask 1045504
      %v891 = vsel %vm889, 4294967295, 65535
      %v892 = vsel %vm890, %v891, 0
      %v894 = vand.u32 %v694, %v892
      %896 = vmatprep.subr.bf16.mxu0 0
      %897 = vmatpush1.bf16.msra.mxu0 0
      %898 = vmatprep.subr.bf16.mxu0 0
      %899 = vmatpush1.bf16.msra.mxu0 0
      %900 = vmatprep.subr.bf16.mxu0 0
      %901 = vmatpush1.bf16.msra.mxu0 0
      %902 = vmatprep.subr.bf16.mxu0 0
      %903 = vmatpush1.bf16.msra.mxu0 0
      %904 = vmatprep.subr.bf16.mxu0 0
      %905 = vmatpush1.bf16.msra.mxu0 0
      %906 = vmatprep.subr.bf16.mxu0 0
      %907 = vmatpush1.bf16.msra.mxu0 0
      %908 = vmatprep.subr.bf16.mxu0 0
      %909 = vmatpush1.bf16.msra.mxu0 %v894
      %910 = vmatprep.subr.bf16.mxu0 0
      %911 = vmatpush1.bf16.msra.mxu0 %v693
      %912 = vmatprep.subr.bf16.mxu0 0
      %913 = vmatpush2.bf16.msra.mxu0 0
      %914 = vmatprep.subr.bf16.mxu0 0
      %915 = vmatpush2.bf16.msra.mxu0 0
      %916 = vmatprep.subr.bf16.mxu0 0
      %917 = vmatpush2.bf16.msra.mxu0 0
      %918 = vmatprep.subr.bf16.mxu0 0
      %919 = vmatpush2.bf16.msra.mxu0 0
      %920 = vmatprep.subr.bf16.mxu0 0
      %921 = vmatpush2.bf16.msra.mxu0 0
      %922 = vmatprep.subr.bf16.mxu0 0
      %923 = vmatpush2.bf16.msra.mxu0 0
      %924 = vmatprep.subr.bf16.mxu0 0
      %925 = vmatpush2.bf16.msra.mxu0 0
      %926 = vmatprep.subr.bf16.mxu0 0
      %927 = vmatpush2.bf16.msra.mxu0 0
      %928 = vmatprep.mubr.bf16.mxu0 0
      %929 = vmatmul.mubr.bf16.gmra.mxu0 %v698
      %v930 = vpop.f32.mrf.mxu0
      %v931 = vadd.f32 %v363, %v930
      %v932 = vpop.f32.mrf.mxu0
      %v933 = vpop.f32.mrf.mxu0
      %v934 = vadd.f32 %v363, %v933
      %v935 = vpop.f32.mrf.mxu0
      %936 = vmatprep.mubr.bf16.mxu0 0
      %937 = vmatmul.mubr.bf16.gmra.mxu0 %v701
      %v938 = vpop.f32.mrf.mxu0
      %v939 = vadd.f32 %v363, %v938
      %v940 = vpop.f32.mrf.mxu0
      %v941 = vpop.f32.mrf.mxu0
      %v942 = vadd.f32 %v363, %v941
      %v943 = vpop.f32.mrf.mxu0
      %944 = vmatprep.mubr.bf16.mxu0 0
      %945 = vmatmul.mubr.bf16.gmra.mxu0 %v704
      %v946 = vpop.f32.mrf.mxu0
      %v947 = vadd.f32 %v363, %v946
      %v948 = vpop.f32.mrf.mxu0
      %v949 = vpop.f32.mrf.mxu0
      %v950 = vadd.f32 %v363, %v949
      %v951 = vpop.f32.mrf.mxu0
      %952 = vmatprep.mubr.bf16.mxu0 0
      %953 = vmatmul.mubr.bf16.gmra.mxu0 %v707
      %v954 = vpop.f32.mrf.mxu0
      %v955 = vadd.f32 %v363, %v954
      %v956 = vpop.f32.mrf.mxu0
      %v957 = vpop.f32.mrf.mxu0
      %v958 = vadd.f32 %v363, %v957
      %v959 = vpop.f32.mrf.mxu0
      %960 = vmatprep.mubr.bf16.mxu0 0
      %961 = vmatmul.mubr.bf16.gmra.mxu0 %v710
      %v962 = vpop.f32.mrf.mxu0
      %v963 = vadd.f32 %v363, %v962
      %v964 = vpop.f32.mrf.mxu0
      %v965 = vpop.f32.mrf.mxu0
      %v966 = vadd.f32 %v363, %v965
      %v967 = vpop.f32.mrf.mxu0
      %968 = vmatprep.mubr.bf16.mxu0 0
      %969 = vmatmul.mubr.bf16.gmra.mxu0 %v713
      %v970 = vpop.f32.mrf.mxu0
      %v971 = vadd.f32 %v363, %v970
      %v972 = vpop.f32.mrf.mxu0
      %v973 = vpop.f32.mrf.mxu0
      %v974 = vadd.f32 %v363, %v973
      %v975 = vpop.f32.mrf.mxu0
      %976 = vmatprep.mubr.bf16.mxu0 0
      %977 = vmatmul.mubr.bf16.gmra.mxu0 %v716
      %v978 = vpop.f32.mrf.mxu0
      %v979 = vadd.f32 %v363, %v978
      %v980 = vpop.f32.mrf.mxu0
      %v981 = vpop.f32.mrf.mxu0
      %v982 = vadd.f32 %v363, %v981
      %v983 = vpop.f32.mrf.mxu0
      %984 = vmatprep.mubr.bf16.mxu0 0
      %985 = vmatmul.mubr.bf16.gmra.mxu0 %v719
      %v986 = vpop.f32.mrf.mxu0
      %v987 = vadd.f32 %v363, %v986
      %v988 = vpop.f32.mrf.mxu0
      %v989 = vpop.f32.mrf.mxu0
      %v990 = vadd.f32 %v363, %v989
      %v991 = vpop.f32.mrf.mxu0
      %992 = vmatprep.mubr.bf16.mxu0 0
      %993 = vmatmul.mubr.bf16.gmra.mxu0 %v722
      %v994 = vpop.f32.mrf.mxu0
      %v995 = vadd.f32 %v363, %v994
      %v996 = vpop.f32.mrf.mxu0
      %v997 = vpop.f32.mrf.mxu0
      %v998 = vadd.f32 %v363, %v997
      %v999 = vpop.f32.mrf.mxu0
      %1000 = vmatprep.mubr.bf16.mxu0 0
      %1001 = vmatmul.mubr.bf16.gmra.mxu0 %v725
      %v1002 = vpop.f32.mrf.mxu0
      %v1003 = vadd.f32 %v363, %v1002
      %v1004 = vpop.f32.mrf.mxu0
      %v1005 = vpop.f32.mrf.mxu0
      %v1006 = vadd.f32 %v363, %v1005
      %v1007 = vpop.f32.mrf.mxu0
      %1008 = vmatprep.mubr.bf16.mxu0 0
      %1009 = vmatmul.mubr.bf16.gmra.mxu0 %v728
      %v1010 = vpop.f32.mrf.mxu0
      %v1011 = vadd.f32 %v363, %v1010
      %v1012 = vpop.f32.mrf.mxu0
      %v1013 = vpop.f32.mrf.mxu0
      %v1014 = vadd.f32 %v363, %v1013
      %v1015 = vpop.f32.mrf.mxu0
      %1016 = vmatprep.mubr.bf16.mxu0 0
      %1017 = vmatmul.mubr.bf16.gmra.mxu0 %v731
      %v1018 = vpop.f32.mrf.mxu0
      %v1019 = vadd.f32 %v363, %v1018
      %v1020 = vpop.f32.mrf.mxu0
      %v1021 = vpop.f32.mrf.mxu0
      %v1022 = vadd.f32 %v363, %v1021
      %v1023 = vpop.f32.mrf.mxu0
      %1024 = vmatprep.mubr.bf16.mxu0 0
      %1025 = vmatmul.mubr.bf16.gmra.mxu0 %v734
      %v1026 = vpop.f32.mrf.mxu0
      %v1027 = vadd.f32 %v363, %v1026
      %v1028 = vpop.f32.mrf.mxu0
      %v1029 = vpop.f32.mrf.mxu0
      %v1030 = vadd.f32 %v363, %v1029
      %v1031 = vpop.f32.mrf.mxu0
      %1032 = vmatprep.mubr.bf16.mxu0 0
      %1033 = vmatmul.mubr.bf16.gmra.mxu0 %v737
      %v1034 = vpop.f32.mrf.mxu0
      %v1035 = vadd.f32 %v363, %v1034
      %v1036 = vpop.f32.mrf.mxu0
      %v1037 = vpop.f32.mrf.mxu0
      %v1038 = vadd.f32 %v363, %v1037
      %v1039 = vpop.f32.mrf.mxu0
      %1040 = vmatprep.mubr.bf16.mxu0 0
      %1041 = vmatmul.mubr.bf16.gmra.mxu0 %v740
      %v1042 = vpop.f32.mrf.mxu0
      %v1043 = vadd.f32 %v363, %v1042
      %v1044 = vpop.f32.mrf.mxu0
      %v1045 = vpop.f32.mrf.mxu0
      %v1046 = vadd.f32 %v363, %v1045
      %v1047 = vpop.f32.mrf.mxu0
      %1048 = vmatprep.mubr.bf16.mxu0 0
      %1049 = vmatmul.mubr.bf16.gmra.mxu0 %v743
      %v1050 = vpop.f32.mrf.mxu0
      %v1051 = vadd.f32 %v363, %v1050
      %v1052 = vpop.f32.mrf.mxu0
      %v1053 = vpop.f32.mrf.mxu0
      %v1054 = vadd.f32 %v363, %v1053
      %v1055 = vpop.f32.mrf.mxu0
      %1056 = vmatprep.mubr.bf16.mxu0 0
      %1057 = vmatmul.mubr.bf16.gmra.mxu0 %v746
      %v1058 = vpop.f32.mrf.mxu0
      %v1059 = vadd.f32 %v363, %v1058
      %v1060 = vpop.f32.mrf.mxu0
      %v1061 = vpop.f32.mrf.mxu0
      %v1062 = vadd.f32 %v363, %v1061
      %v1063 = vpop.f32.mrf.mxu0
      %1064 = vmatprep.mubr.bf16.mxu0 0
      %1065 = vmatmul.mubr.bf16.gmra.mxu0 %v749
      %v1066 = vpop.f32.mrf.mxu0
      %v1067 = vadd.f32 %v363, %v1066
      %v1068 = vpop.f32.mrf.mxu0
      %v1069 = vpop.f32.mrf.mxu0
      %v1070 = vadd.f32 %v363, %v1069
      %v1071 = vpop.f32.mrf.mxu0
      %1072 = vmatprep.mubr.bf16.mxu0 0
      %1073 = vmatmul.mubr.bf16.gmra.mxu0 %v752
      %v1074 = vpop.f32.mrf.mxu0
      %v1075 = vadd.f32 %v363, %v1074
      %v1076 = vpop.f32.mrf.mxu0
      %v1077 = vpop.f32.mrf.mxu0
      %v1078 = vadd.f32 %v363, %v1077
      %v1079 = vpop.f32.mrf.mxu0
      %1080 = vmatprep.mubr.bf16.mxu0 0
      %1081 = vmatmul.mubr.bf16.gmra.mxu0 %v755
      %v1082 = vpop.f32.mrf.mxu0
      %v1083 = vadd.f32 %v363, %v1082
      %v1084 = vpop.f32.mrf.mxu0
      %v1085 = vpop.f32.mrf.mxu0
      %v1086 = vadd.f32 %v363, %v1085
      %v1087 = vpop.f32.mrf.mxu0
      %1088 = vmatprep.mubr.bf16.mxu0 0
      %1089 = vmatmul.mubr.bf16.gmra.mxu0 %v758
      %v1090 = vpop.f32.mrf.mxu0
      %v1091 = vadd.f32 %v363, %v1090
      %v1092 = vpop.f32.mrf.mxu0
      %v1093 = vpop.f32.mrf.mxu0
      %v1094 = vadd.f32 %v363, %v1093
      %v1095 = vpop.f32.mrf.mxu0
      %1096 = vmatprep.mubr.bf16.mxu0 0
      %1097 = vmatmul.mubr.bf16.gmra.mxu0 %v761
      %v1098 = vpop.f32.mrf.mxu0
      %v1099 = vadd.f32 %v363, %v1098
      %v1100 = vpop.f32.mrf.mxu0
      %v1101 = vpop.f32.mrf.mxu0
      %v1102 = vadd.f32 %v363, %v1101
      %v1103 = vpop.f32.mrf.mxu0
      %1104 = vmatprep.mubr.bf16.mxu0 0
      %1105 = vmatmul.mubr.bf16.gmra.mxu0 %v764
      %v1106 = vpop.f32.mrf.mxu0
      %v1107 = vadd.f32 %v363, %v1106
      %v1108 = vpop.f32.mrf.mxu0
      %v1109 = vpop.f32.mrf.mxu0
      %v1110 = vadd.f32 %v363, %v1109
      %v1111 = vpop.f32.mrf.mxu0
      %1112 = vmatprep.mubr.bf16.mxu0 0
      %1113 = vmatmul.mubr.bf16.gmra.mxu0 %v767
      %v1114 = vpop.f32.mrf.mxu0
      %v1115 = vadd.f32 %v363, %v1114
      %v1116 = vpop.f32.mrf.mxu0
      %v1117 = vpop.f32.mrf.mxu0
      %v1118 = vadd.f32 %v363, %v1117
      %v1119 = vpop.f32.mrf.mxu0
      %1120 = vmatprep.mubr.bf16.mxu0 0
      %1121 = vmatmul.mubr.bf16.gmra.mxu0 %v770
      %v1122 = vpop.f32.mrf.mxu0
      %v1123 = vadd.f32 %v363, %v1122
      %v1124 = vpop.f32.mrf.mxu0
      %v1125 = vpop.f32.mrf.mxu0
      %v1126 = vadd.f32 %v363, %v1125
      %v1127 = vpop.f32.mrf.mxu0
      %1128 = vmatprep.mubr.bf16.mxu0 0
      %1129 = vmatmul.mubr.bf16.gmra.mxu0 %v773
      %v1130 = vpop.f32.mrf.mxu0
      %v1131 = vadd.f32 %v363, %v1130
      %v1132 = vpop.f32.mrf.mxu0
      %v1133 = vpop.f32.mrf.mxu0
      %v1134 = vadd.f32 %v363, %v1133
      %v1135 = vpop.f32.mrf.mxu0
      %1136 = vmatprep.mubr.bf16.mxu0 0
      %1137 = vmatmul.mubr.bf16.gmra.mxu0 %v776
      %v1138 = vpop.f32.mrf.mxu0
      %v1139 = vadd.f32 %v363, %v1138
      %v1140 = vpop.f32.mrf.mxu0
      %v1141 = vpop.f32.mrf.mxu0
      %v1142 = vadd.f32 %v363, %v1141
      %v1143 = vpop.f32.mrf.mxu0
      %1144 = vmatprep.mubr.bf16.mxu0 0
      %1145 = vmatmul.mubr.bf16.gmra.mxu0 %v779
      %v1146 = vpop.f32.mrf.mxu0
      %v1147 = vadd.f32 %v363, %v1146
      %v1148 = vpop.f32.mrf.mxu0
      %v1149 = vpop.f32.mrf.mxu0
      %v1150 = vadd.f32 %v363, %v1149
      %v1151 = vpop.f32.mrf.mxu0
      %1152 = vmatprep.mubr.bf16.mxu0 0
      %1153 = vmatmul.mubr.bf16.gmra.mxu0 %v782
      %v1154 = vpop.f32.mrf.mxu0
      %v1155 = vadd.f32 %v363, %v1154
      %v1156 = vpop.f32.mrf.mxu0
      %v1157 = vpop.f32.mrf.mxu0
      %v1158 = vadd.f32 %v363, %v1157
      %v1159 = vpop.f32.mrf.mxu0
      %1160 = vmatprep.mubr.bf16.mxu0 0
      %1161 = vmatmul.mubr.bf16.gmra.mxu0 %v785
      %v1162 = vpop.f32.mrf.mxu0
      %v1163 = vadd.f32 %v363, %v1162
      %v1164 = vpop.f32.mrf.mxu0
      %v1165 = vpop.f32.mrf.mxu0
      %v1166 = vadd.f32 %v363, %v1165
      %v1167 = vpop.f32.mrf.mxu0
      %1168 = vmatprep.mubr.bf16.mxu0 0
      %1169 = vmatmul.mubr.bf16.gmra.mxu0 %v788
      %v1170 = vpop.f32.mrf.mxu0
      %v1171 = vadd.f32 %v363, %v1170
      %v1172 = vpop.f32.mrf.mxu0
      %v1173 = vpop.f32.mrf.mxu0
      %v1174 = vadd.f32 %v363, %v1173
      %v1175 = vpop.f32.mrf.mxu0
      %1176 = vmatprep.mubr.bf16.mxu0 0
      %1177 = vmatmul.mubr.bf16.gmra.mxu0 %v791
      %v1178 = vpop.f32.mrf.mxu0
      %v1179 = vadd.f32 %v363, %v1178
      %v1180 = vpop.f32.mrf.mxu0
      %v1181 = vpop.f32.mrf.mxu0
      %v1182 = vadd.f32 %v363, %v1181
      %v1183 = vpop.f32.mrf.mxu0
      %1184 = vmatprep.mubr.bf16.mxu0 0
      %1185 = vmatmul.mubr.bf16.gmra.mxu0 %v794
      %v1186 = vpop.f32.mrf.mxu0
      %v1187 = vadd.f32 %v363, %v1186
      %v1188 = vpop.f32.mrf.mxu0
      %v1189 = vpop.f32.mrf.mxu0
      %v1190 = vadd.f32 %v363, %v1189
      %v1191 = vpop.f32.mrf.mxu0
      %1192 = vmatprep.mubr.bf16.mxu0 0
      %1193 = vmatmul.mubr.bf16.gmra.mxu0 %v797
      %v1194 = vpop.f32.mrf.mxu0
      %v1195 = vadd.f32 %v363, %v1194
      %v1196 = vpop.f32.mrf.mxu0
      %v1197 = vpop.f32.mrf.mxu0
      %v1198 = vadd.f32 %v363, %v1197
      %v1199 = vpop.f32.mrf.mxu0
      %1200 = vmatprep.mubr.bf16.mxu0 0
      %1201 = vmatmul.mubr.bf16.gmra.mxu0 %v800
      %v1202 = vpop.f32.mrf.mxu0
      %v1203 = vadd.f32 %v363, %v1202
      %v1204 = vpop.f32.mrf.mxu0
      %v1205 = vpop.f32.mrf.mxu0
      %v1206 = vadd.f32 %v363, %v1205
      %v1207 = vpop.f32.mrf.mxu0
      %1208 = vmatprep.mubr.bf16.mxu0 0
      %1209 = vmatmul.mubr.bf16.gmra.mxu0 %v803
      %v1210 = vpop.f32.mrf.mxu0
      %v1211 = vadd.f32 %v363, %v1210
      %v1212 = vpop.f32.mrf.mxu0
      %v1213 = vpop.f32.mrf.mxu0
      %v1214 = vadd.f32 %v363, %v1213
      %v1215 = vpop.f32.mrf.mxu0
      %1216 = vmatprep.mubr.bf16.mxu0 0
      %1217 = vmatmul.mubr.bf16.gmra.mxu0 %v806
      %v1218 = vpop.f32.mrf.mxu0
      %v1219 = vadd.f32 %v363, %v1218
      %v1220 = vpop.f32.mrf.mxu0
      %v1221 = vpop.f32.mrf.mxu0
      %v1222 = vadd.f32 %v363, %v1221
      %v1223 = vpop.f32.mrf.mxu0
      %1224 = vmatprep.mubr.bf16.mxu0 0
      %1225 = vmatmul.mubr.bf16.gmra.mxu0 %v809
      %v1226 = vpop.f32.mrf.mxu0
      %v1227 = vadd.f32 %v363, %v1226
      %v1228 = vpop.f32.mrf.mxu0
      %v1229 = vpop.f32.mrf.mxu0
      %v1230 = vadd.f32 %v363, %v1229
      %v1231 = vpop.f32.mrf.mxu0
      %1232 = vmatprep.mubr.bf16.mxu0 0
      %1233 = vmatmul.mubr.bf16.gmra.mxu0 %v812
      %v1234 = vpop.f32.mrf.mxu0
      %v1235 = vadd.f32 %v363, %v1234
      %v1236 = vpop.f32.mrf.mxu0
      %v1237 = vpop.f32.mrf.mxu0
      %v1238 = vadd.f32 %v363, %v1237
      %v1239 = vpop.f32.mrf.mxu0
      %1240 = vmatprep.mubr.bf16.mxu0 0
      %1241 = vmatmul.mubr.bf16.gmra.mxu0 %v815
      %v1242 = vpop.f32.mrf.mxu0
      %v1243 = vadd.f32 %v363, %v1242
      %v1244 = vpop.f32.mrf.mxu0
      %v1245 = vpop.f32.mrf.mxu0
      %v1246 = vadd.f32 %v363, %v1245
      %v1247 = vpop.f32.mrf.mxu0
      %1248 = vmatprep.mubr.bf16.mxu0 0
      %1249 = vmatmul.mubr.bf16.gmra.mxu0 %v818
      %v1250 = vpop.f32.mrf.mxu0
      %v1251 = vadd.f32 %v363, %v1250
      %v1252 = vpop.f32.mrf.mxu0
      %v1253 = vpop.f32.mrf.mxu0
      %v1254 = vadd.f32 %v363, %v1253
      %v1255 = vpop.f32.mrf.mxu0
      %1256 = vmatprep.mubr.bf16.mxu0 0
      %1257 = vmatmul.mubr.bf16.gmra.mxu0 %v821
      %v1258 = vpop.f32.mrf.mxu0
      %v1259 = vadd.f32 %v363, %v1258
      %v1260 = vpop.f32.mrf.mxu0
      %v1261 = vpop.f32.mrf.mxu0
      %v1262 = vadd.f32 %v363, %v1261
      %v1263 = vpop.f32.mrf.mxu0
      %1264 = vmatprep.mubr.bf16.mxu0 0
      %1265 = vmatmul.mubr.bf16.gmra.mxu0 %v824
      %v1266 = vpop.f32.mrf.mxu0
      %v1267 = vadd.f32 %v363, %v1266
      %v1268 = vpop.f32.mrf.mxu0
      %v1269 = vpop.f32.mrf.mxu0
      %v1270 = vadd.f32 %v363, %v1269
      %v1271 = vpop.f32.mrf.mxu0
      %1272 = vmatprep.mubr.bf16.mxu0 0
      %1273 = vmatmul.mubr.bf16.gmra.mxu0 %v827
      %v1274 = vpop.f32.mrf.mxu0
      %v1275 = vadd.f32 %v363, %v1274
      %v1276 = vpop.f32.mrf.mxu0
      %v1277 = vpop.f32.mrf.mxu0
      %v1278 = vadd.f32 %v363, %v1277
      %v1279 = vpop.f32.mrf.mxu0
      %1280 = vmatprep.mubr.bf16.mxu0 0
      %1281 = vmatmul.mubr.bf16.gmra.mxu0 %v830
      %v1282 = vpop.f32.mrf.mxu0
      %v1283 = vadd.f32 %v363, %v1282
      %v1284 = vpop.f32.mrf.mxu0
      %v1285 = vpop.f32.mrf.mxu0
      %v1286 = vadd.f32 %v363, %v1285
      %v1287 = vpop.f32.mrf.mxu0
      %1288 = vmatprep.mubr.bf16.mxu0 0
      %1289 = vmatmul.mubr.bf16.gmra.mxu0 %v833
      %v1290 = vpop.f32.mrf.mxu0
      %v1291 = vadd.f32 %v363, %v1290
      %v1292 = vpop.f32.mrf.mxu0
      %v1293 = vpop.f32.mrf.mxu0
      %v1294 = vadd.f32 %v363, %v1293
      %v1295 = vpop.f32.mrf.mxu0
      %1296 = vmatprep.mubr.bf16.mxu0 0
      %1297 = vmatmul.mubr.bf16.gmra.mxu0 %v836
      %v1298 = vpop.f32.mrf.mxu0
      %v1299 = vadd.f32 %v363, %v1298
      %v1300 = vpop.f32.mrf.mxu0
      %v1301 = vpop.f32.mrf.mxu0
      %v1302 = vadd.f32 %v363, %v1301
      %v1303 = vpop.f32.mrf.mxu0
      %1304 = vmatprep.mubr.bf16.mxu0 0
      %1305 = vmatmul.mubr.bf16.gmra.mxu0 %v839
      %v1306 = vpop.f32.mrf.mxu0
      %v1307 = vadd.f32 %v363, %v1306
      %v1308 = vpop.f32.mrf.mxu0
      %v1309 = vpop.f32.mrf.mxu0
      %v1310 = vadd.f32 %v363, %v1309
      %v1311 = vpop.f32.mrf.mxu0
      %1312 = vmatprep.mubr.bf16.mxu0 0
      %1313 = vmatmul.mubr.bf16.gmra.mxu0 %v842
      %v1314 = vpop.f32.mrf.mxu0
      %v1315 = vadd.f32 %v363, %v1314
      %v1316 = vpop.f32.mrf.mxu0
      %v1317 = vpop.f32.mrf.mxu0
      %v1318 = vadd.f32 %v363, %v1317
      %v1319 = vpop.f32.mrf.mxu0
      %1320 = vmatprep.mubr.bf16.mxu0 0
      %1321 = vmatmul.mubr.bf16.gmra.mxu0 %v845
      %v1322 = vpop.f32.mrf.mxu0
      %v1323 = vadd.f32 %v363, %v1322
      %v1324 = vpop.f32.mrf.mxu0
      %v1325 = vpop.f32.mrf.mxu0
      %v1326 = vadd.f32 %v363, %v1325
      %v1327 = vpop.f32.mrf.mxu0
      %1328 = vmatprep.mubr.bf16.mxu0 0
      %1329 = vmatmul.mubr.bf16.gmra.mxu0 %v848
      %v1330 = vpop.f32.mrf.mxu0
      %v1331 = vadd.f32 %v363, %v1330
      %v1332 = vpop.f32.mrf.mxu0
      %v1333 = vpop.f32.mrf.mxu0
      %v1334 = vadd.f32 %v363, %v1333
      %v1335 = vpop.f32.mrf.mxu0
      %1336 = vmatprep.mubr.bf16.mxu0 0
      %1337 = vmatmul.mubr.bf16.gmra.mxu0 %v851
      %v1338 = vpop.f32.mrf.mxu0
      %v1339 = vadd.f32 %v363, %v1338
      %v1340 = vpop.f32.mrf.mxu0
      %v1341 = vpop.f32.mrf.mxu0
      %v1342 = vadd.f32 %v363, %v1341
      %v1343 = vpop.f32.mrf.mxu0
      %1344 = vmatprep.mubr.bf16.mxu0 0
      %1345 = vmatmul.mubr.bf16.gmra.mxu0 %v854
      %v1346 = vpop.f32.mrf.mxu0
      %v1347 = vadd.f32 %v363, %v1346
      %v1348 = vpop.f32.mrf.mxu0
      %v1349 = vpop.f32.mrf.mxu0
      %v1350 = vadd.f32 %v363, %v1349
      %v1351 = vpop.f32.mrf.mxu0
      %1352 = vmatprep.mubr.bf16.mxu0 0
      %1353 = vmatmul.mubr.bf16.gmra.mxu0 %v857
      %v1354 = vpop.f32.mrf.mxu0
      %v1355 = vadd.f32 %v363, %v1354
      %v1356 = vpop.f32.mrf.mxu0
      %v1357 = vpop.f32.mrf.mxu0
      %v1358 = vadd.f32 %v363, %v1357
      %v1359 = vpop.f32.mrf.mxu0
      %1360 = vmatprep.mubr.bf16.mxu0 0
      %1361 = vmatmul.mubr.bf16.gmra.mxu0 %v860
      %v1362 = vpop.f32.mrf.mxu0
      %v1363 = vadd.f32 %v363, %v1362
      %v1364 = vpop.f32.mrf.mxu0
      %v1365 = vpop.f32.mrf.mxu0
      %v1366 = vadd.f32 %v363, %v1365
      %v1367 = vpop.f32.mrf.mxu0
      %1368 = vmatprep.mubr.bf16.mxu0 0
      %1369 = vmatmul.mubr.bf16.gmra.mxu0 %v863
      %v1370 = vpop.f32.mrf.mxu0
      %v1371 = vadd.f32 %v363, %v1370
      %v1372 = vpop.f32.mrf.mxu0
      %v1373 = vpop.f32.mrf.mxu0
      %v1374 = vadd.f32 %v363, %v1373
      %v1375 = vpop.f32.mrf.mxu0
      %1376 = vmatprep.mubr.bf16.mxu0 0
      %1377 = vmatmul.mubr.bf16.gmra.mxu0 %v866
      %v1378 = vpop.f32.mrf.mxu0
      %v1379 = vadd.f32 %v363, %v1378
      %v1380 = vpop.f32.mrf.mxu0
      %v1381 = vpop.f32.mrf.mxu0
      %v1382 = vadd.f32 %v363, %v1381
      %v1383 = vpop.f32.mrf.mxu0
      %1384 = vmatprep.mubr.bf16.mxu0 0
      %1385 = vmatmul.mubr.bf16.gmra.mxu0 %v869
      %v1386 = vpop.f32.mrf.mxu0
      %v1387 = vadd.f32 %v363, %v1386
      %v1388 = vpop.f32.mrf.mxu0
      %v1389 = vpop.f32.mrf.mxu0
      %v1390 = vadd.f32 %v363, %v1389
      %v1391 = vpop.f32.mrf.mxu0
      %1392 = vmatprep.mubr.bf16.mxu0 0
      %1393 = vmatmul.mubr.bf16.gmra.mxu0 %v872
      %v1394 = vpop.f32.mrf.mxu0
      %v1395 = vadd.f32 %v363, %v1394
      %v1396 = vpop.f32.mrf.mxu0
      %v1397 = vpop.f32.mrf.mxu0
      %v1398 = vadd.f32 %v363, %v1397
      %v1399 = vpop.f32.mrf.mxu0
      %1400 = vmatprep.mubr.bf16.mxu0 0
      %1401 = vmatmul.mubr.bf16.gmra.mxu0 %v875
      %v1402 = vpop.f32.mrf.mxu0
      %v1403 = vadd.f32 %v363, %v1402
      %v1404 = vpop.f32.mrf.mxu0
      %v1405 = vpop.f32.mrf.mxu0
      %v1406 = vadd.f32 %v363, %v1405
      %v1407 = vpop.f32.mrf.mxu0
      %1408 = vmatprep.mubr.bf16.mxu0 0
      %1409 = vmatmul.mubr.bf16.gmra.mxu0 %v878
      %v1410 = vpop.f32.mrf.mxu0
      %v1411 = vadd.f32 %v363, %v1410
      %v1412 = vpop.f32.mrf.mxu0
      %v1413 = vpop.f32.mrf.mxu0
      %v1414 = vadd.f32 %v363, %v1413
      %v1415 = vpop.f32.mrf.mxu0
      %1416 = vmatprep.mubr.bf16.mxu0 0
      %1417 = vmatmul.mubr.bf16.gmra.mxu0 %v881
      %v1418 = vpop.f32.mrf.mxu0
      %v1419 = vadd.f32 %v363, %v1418
      %v1420 = vpop.f32.mrf.mxu0
      %v1421 = vpop.f32.mrf.mxu0
      %v1422 = vadd.f32 %v363, %v1421
      %v1423 = vpop.f32.mrf.mxu0
      %1424 = vmatprep.mubr.bf16.mxu0 0
      %1425 = vmatmul.mubr.bf16.gmra.mxu0 %v884
      %v1426 = vpop.f32.mrf.mxu0
      %v1427 = vadd.f32 %v363, %v1426
      %v1428 = vpop.f32.mrf.mxu0
      %v1429 = vpop.f32.mrf.mxu0
      %v1430 = vadd.f32 %v363, %v1429
      %v1431 = vpop.f32.mrf.mxu0
      %1432 = vmatprep.mubr.bf16.mxu0 0
      %1433 = vmatmul.mubr.bf16.gmra.mxu0 %v887
      %v1434 = vpop.f32.mrf.mxu0
      %v1435 = vadd.f32 %v363, %v1434
      %v1436 = vpop.f32.mrf.mxu0
      %v1437 = vpop.f32.mrf.mxu0
      %v1438 = vadd.f32 %v363, %v1437
      %v1439 = vpop.f32.mrf.mxu0
      %1440 = vdwg.mxu0
      %vm1441 = vcmp.gt.f32.partialorder %v931, 0.0
      %vm1442 = vcmp.gt.f32.partialorder %v934, 0.0
      %vm1443 = vcmp.gt.f32.partialorder %v939, 0.0
      %vm1444 = vcmp.gt.f32.partialorder %v942, 0.0
      %vm1445 = vcmp.gt.f32.partialorder %v947, 0.0
      %vm1446 = vcmp.gt.f32.partialorder %v950, 0.0
      %vm1447 = vcmp.gt.f32.partialorder %v955, 0.0
      %vm1448 = vcmp.gt.f32.partialorder %v958, 0.0
      %vm1449 = vcmp.gt.f32.partialorder %v963, 0.0
      %vm1450 = vcmp.gt.f32.partialorder %v966, 0.0
      %vm1451 = vcmp.gt.f32.partialorder %v971, 0.0
      %vm1452 = vcmp.gt.f32.partialorder %v974, 0.0
      %vm1453 = vcmp.gt.f32.partialorder %v979, 0.0
      %vm1454 = vcmp.gt.f32.partialorder %v982, 0.0
      %vm1455 = vcmp.gt.f32.partialorder %v987, 0.0
      %vm1456 = vcmp.gt.f32.partialorder %v990, 0.0
      %vm1457 = vcmp.gt.f32.partialorder %v995, 0.0
      %vm1458 = vcmp.gt.f32.partialorder %v998, 0.0
      %vm1459 = vcmp.gt.f32.partialorder %v1003, 0.0
      %vm1460 = vcmp.gt.f32.partialorder %v1006, 0.0
      %vm1461 = vcmp.gt.f32.partialorder %v1011, 0.0
      %vm1462 = vcmp.gt.f32.partialorder %v1014, 0.0
      %vm1463 = vcmp.gt.f32.partialorder %v1019, 0.0
      %vm1464 = vcmp.gt.f32.partialorder %v1022, 0.0
      %vm1465 = vcmp.gt.f32.partialorder %v1027, 0.0
      %vm1466 = vcmp.gt.f32.partialorder %v1030, 0.0
      %vm1467 = vcmp.gt.f32.partialorder %v1035, 0.0
      %vm1468 = vcmp.gt.f32.partialorder %v1038, 0.0
      %vm1469 = vcmp.gt.f32.partialorder %v1043, 0.0
      %vm1470 = vcmp.gt.f32.partialorder %v1046, 0.0
      %vm1471 = vcmp.gt.f32.partialorder %v1051, 0.0
      %vm1472 = vcmp.gt.f32.partialorder %v1054, 0.0
      %vm1473 = vcmp.gt.f32.partialorder %v1059, 0.0
      %vm1474 = vcmp.gt.f32.partialorder %v1062, 0.0
      %vm1475 = vcmp.gt.f32.partialorder %v1067, 0.0
      %vm1476 = vcmp.gt.f32.partialorder %v1070, 0.0
      %vm1477 = vcmp.gt.f32.partialorder %v1075, 0.0
      %vm1478 = vcmp.gt.f32.partialorder %v1078, 0.0
      %vm1479 = vcmp.gt.f32.partialorder %v1083, 0.0
      %vm1480 = vcmp.gt.f32.partialorder %v1086, 0.0
      %vm1481 = vcmp.gt.f32.partialorder %v1091, 0.0
      %vm1482 = vcmp.gt.f32.partialorder %v1094, 0.0
      %vm1483 = vcmp.gt.f32.partialorder %v1099, 0.0
      %vm1484 = vcmp.gt.f32.partialorder %v1102, 0.0
      %vm1485 = vcmp.gt.f32.partialorder %v1107, 0.0
      %vm1486 = vcmp.gt.f32.partialorder %v1110, 0.0
      %vm1487 = vcmp.gt.f32.partialorder %v1115, 0.0
      %vm1488 = vcmp.gt.f32.partialorder %v1118, 0.0
      %vm1489 = vcmp.gt.f32.partialorder %v1123, 0.0
      %vm1490 = vcmp.gt.f32.partialorder %v1126, 0.0
      %vm1491 = vcmp.gt.f32.partialorder %v1131, 0.0
      %vm1492 = vcmp.gt.f32.partialorder %v1134, 0.0
      %vm1493 = vcmp.gt.f32.partialorder %v1139, 0.0
      %vm1494 = vcmp.gt.f32.partialorder %v1142, 0.0
      %vm1495 = vcmp.gt.f32.partialorder %v1147, 0.0
      %vm1496 = vcmp.gt.f32.partialorder %v1150, 0.0
      %vm1497 = vcmp.gt.f32.partialorder %v1155, 0.0
      %vm1498 = vcmp.gt.f32.partialorder %v1158, 0.0
      %vm1499 = vcmp.gt.f32.partialorder %v1163, 0.0
      %vm1500 = vcmp.gt.f32.partialorder %v1166, 0.0
      %vm1501 = vcmp.gt.f32.partialorder %v1171, 0.0
      %vm1502 = vcmp.gt.f32.partialorder %v1174, 0.0
      %vm1503 = vcmp.gt.f32.partialorder %v1179, 0.0
      %vm1504 = vcmp.gt.f32.partialorder %v1182, 0.0
      %vm1505 = vcmp.gt.f32.partialorder %v1187, 0.0
      %vm1506 = vcmp.gt.f32.partialorder %v1190, 0.0
      %vm1507 = vcmp.gt.f32.partialorder %v1195, 0.0
      %vm1508 = vcmp.gt.f32.partialorder %v1198, 0.0
      %vm1509 = vcmp.gt.f32.partialorder %v1203, 0.0
      %vm1510 = vcmp.gt.f32.partialorder %v1206, 0.0
      %vm1511 = vcmp.gt.f32.partialorder %v1211, 0.0
      %vm1512 = vcmp.gt.f32.partialorder %v1214, 0.0
      %vm1513 = vcmp.gt.f32.partialorder %v1219, 0.0
      %vm1514 = vcmp.gt.f32.partialorder %v1222, 0.0
      %vm1515 = vcmp.gt.f32.partialorder %v1227, 0.0
      %vm1516 = vcmp.gt.f32.partialorder %v1230, 0.0
      %vm1517 = vcmp.gt.f32.partialorder %v1235, 0.0
      %vm1518 = vcmp.gt.f32.partialorder %v1238, 0.0
      %vm1519 = vcmp.gt.f32.partialorder %v1243, 0.0
      %vm1520 = vcmp.gt.f32.partialorder %v1246, 0.0
      %vm1521 = vcmp.gt.f32.partialorder %v1251, 0.0
      %vm1522 = vcmp.gt.f32.partialorder %v1254, 0.0
      %vm1523 = vcmp.gt.f32.partialorder %v1259, 0.0
      %vm1524 = vcmp.gt.f32.partialorder %v1262, 0.0
      %vm1525 = vcmp.gt.f32.partialorder %v1267, 0.0
      %vm1526 = vcmp.gt.f32.partialorder %v1270, 0.0
      %vm1527 = vcmp.gt.f32.partialorder %v1275, 0.0
      %vm1528 = vcmp.gt.f32.partialorder %v1278, 0.0
      %vm1529 = vcmp.gt.f32.partialorder %v1283, 0.0
      %vm1530 = vcmp.gt.f32.partialorder %v1286, 0.0
      %vm1531 = vcmp.gt.f32.partialorder %v1291, 0.0
      %vm1532 = vcmp.gt.f32.partialorder %v1294, 0.0
      %vm1533 = vcmp.gt.f32.partialorder %v1299, 0.0
      %vm1534 = vcmp.gt.f32.partialorder %v1302, 0.0
      %vm1535 = vcmp.gt.f32.partialorder %v1307, 0.0
      %vm1536 = vcmp.gt.f32.partialorder %v1310, 0.0
      %vm1537 = vcmp.gt.f32.partialorder %v1315, 0.0
      %vm1538 = vcmp.gt.f32.partialorder %v1318, 0.0
      %vm1539 = vcmp.gt.f32.partialorder %v1323, 0.0
      %vm1540 = vcmp.gt.f32.partialorder %v1326, 0.0
      %vm1541 = vcmp.gt.f32.partialorder %v1331, 0.0
      %vm1542 = vcmp.gt.f32.partialorder %v1334, 0.0
      %vm1543 = vcmp.gt.f32.partialorder %v1339, 0.0
      %vm1544 = vcmp.gt.f32.partialorder %v1342, 0.0
      %vm1545 = vcmp.gt.f32.partialorder %v1347, 0.0
      %vm1546 = vcmp.gt.f32.partialorder %v1350, 0.0
      %vm1547 = vcmp.gt.f32.partialorder %v1355, 0.0
      %vm1548 = vcmp.gt.f32.partialorder %v1358, 0.0
      %vm1549 = vcmp.gt.f32.partialorder %v1363, 0.0
      %vm1550 = vcmp.gt.f32.partialorder %v1366, 0.0
      %vm1551 = vcmp.gt.f32.partialorder %v1371, 0.0
      %vm1552 = vcmp.gt.f32.partialorder %v1374, 0.0
      %vm1553 = vcmp.gt.f32.partialorder %v1379, 0.0
      %vm1554 = vcmp.gt.f32.partialorder %v1382, 0.0
      %vm1555 = vcmp.gt.f32.partialorder %v1387, 0.0
      %vm1556 = vcmp.gt.f32.partialorder %v1390, 0.0
      %vm1557 = vcmp.gt.f32.partialorder %v1395, 0.0
      %vm1558 = vcmp.gt.f32.partialorder %v1398, 0.0
      %vm1559 = vcmp.gt.f32.partialorder %v1403, 0.0
      %vm1560 = vcmp.gt.f32.partialorder %v1406, 0.0
      %vm1561 = vcmp.gt.f32.partialorder %v1411, 0.0
      %vm1562 = vcmp.gt.f32.partialorder %v1414, 0.0
      %vm1563 = vcmp.gt.f32.partialorder %v1419, 0.0
      %vm1564 = vcmp.gt.f32.partialorder %v1422, 0.0
      %vm1565 = vcmp.gt.f32.partialorder %v1427, 0.0
      %vm1566 = vcmp.gt.f32.partialorder %v1430, 0.0
      %vm1567 = vcmp.gt.f32.partialorder %v1435, 0.0
      %vm1568 = vcmp.gt.f32.partialorder %v1438, 0.0
      %v1569 = vmul.f32 %v931, 0.2
      %v1570 = vmul.f32 %v934, 0.2
      %v1571 = vmul.f32 %v939, 0.2
      %v1572 = vmul.f32 %v942, 0.2
      %v1573 = vmul.f32 %v947, 0.2
      %v1574 = vmul.f32 %v950, 0.2
      %v1575 = vmul.f32 %v955, 0.2
      %v1576 = vmul.f32 %v958, 0.2
      %v1577 = vmul.f32 %v963, 0.2
      %v1578 = vmul.f32 %v966, 0.2
      %v1579 = vmul.f32 %v971, 0.2
      %v1580 = vmul.f32 %v974, 0.2
      %v1581 = vmul.f32 %v979, 0.2
      %v1582 = vmul.f32 %v982, 0.2
      %v1583 = vmul.f32 %v987, 0.2
      %v1584 = vmul.f32 %v990, 0.2
      %v1585 = vmul.f32 %v995, 0.2
      %v1586 = vmul.f32 %v998, 0.2
      %v1587 = vmul.f32 %v1003, 0.2
      %v1588 = vmul.f32 %v1006, 0.2
      %v1589 = vmul.f32 %v1011, 0.2
      %v1590 = vmul.f32 %v1014, 0.2
      %v1591 = vmul.f32 %v1019, 0.2
      %v1592 = vmul.f32 %v1022, 0.2
      %v1593 = vmul.f32 %v1027, 0.2
      %v1594 = vmul.f32 %v1030, 0.2
      %v1595 = vmul.f32 %v1035, 0.2
      %v1596 = vmul.f32 %v1038, 0.2
      %v1597 = vmul.f32 %v1043, 0.2
      %v1598 = vmul.f32 %v1046, 0.2
      %v1599 = vmul.f32 %v1051, 0.2
      %v1600 = vmul.f32 %v1054, 0.2
      %v1601 = vmul.f32 %v1059, 0.2
      %v1602 = vmul.f32 %v1062, 0.2
      %v1603 = vmul.f32 %v1067, 0.2
      %v1604 = vmul.f32 %v1070, 0.2
      %v1605 = vmul.f32 %v1075, 0.2
      %v1606 = vmul.f32 %v1078, 0.2
      %v1607 = vmul.f32 %v1083, 0.2
      %v1608 = vmul.f32 %v1086, 0.2
      %v1609 = vmul.f32 %v1091, 0.2
      %v1610 = vmul.f32 %v1094, 0.2
      %v1611 = vmul.f32 %v1099, 0.2
      %v1612 = vmul.f32 %v1102, 0.2
      %v1613 = vmul.f32 %v1107, 0.2
      %v1614 = vmul.f32 %v1110, 0.2
      %v1615 = vmul.f32 %v1115, 0.2
      %v1616 = vmul.f32 %v1118, 0.2
      %v1617 = vmul.f32 %v1123, 0.2
      %v1618 = vmul.f32 %v1126, 0.2
      %v1619 = vmul.f32 %v1131, 0.2
      %v1620 = vmul.f32 %v1134, 0.2
      %v1621 = vmul.f32 %v1139, 0.2
      %v1622 = vmul.f32 %v1142, 0.2
      %v1623 = vmul.f32 %v1147, 0.2
      %v1624 = vmul.f32 %v1150, 0.2
      %v1625 = vmul.f32 %v1155, 0.2
      %v1626 = vmul.f32 %v1158, 0.2
      %v1627 = vmul.f32 %v1163, 0.2
      %v1628 = vmul.f32 %v1166, 0.2
      %v1629 = vmul.f32 %v1171, 0.2
      %v1630 = vmul.f32 %v1174, 0.2
      %v1631 = vmul.f32 %v1179, 0.2
      %v1632 = vmul.f32 %v1182, 0.2
      %v1633 = vmul.f32 %v1187, 0.2
      %v1634 = vmul.f32 %v1190, 0.2
      %v1635 = vmul.f32 %v1195, 0.2
      %v1636 = vmul.f32 %v1198, 0.2
      %v1637 = vmul.f32 %v1203, 0.2
      %v1638 = vmul.f32 %v1206, 0.2
      %v1639 = vmul.f32 %v1211, 0.2
      %v1640 = vmul.f32 %v1214, 0.2
      %v1641 = vmul.f32 %v1219, 0.2
      %v1642 = vmul.f32 %v1222, 0.2
      %v1643 = vmul.f32 %v1227, 0.2
      %v1644 = vmul.f32 %v1230, 0.2
      %v1645 = vmul.f32 %v1235, 0.2
      %v1646 = vmul.f32 %v1238, 0.2
      %v1647 = vmul.f32 %v1243, 0.2
      %v1648 = vmul.f32 %v1246, 0.2
      %v1649 = vmul.f32 %v1251, 0.2
      %v1650 = vmul.f32 %v1254, 0.2
      %v1651 = vmul.f32 %v1259, 0.2
      %v1652 = vmul.f32 %v1262, 0.2
      %v1653 = vmul.f32 %v1267, 0.2
      %v1654 = vmul.f32 %v1270, 0.2
      %v1655 = vmul.f32 %v1275, 0.2
      %v1656 = vmul.f32 %v1278, 0.2
      %v1657 = vmul.f32 %v1283, 0.2
      %v1658 = vmul.f32 %v1286, 0.2
      %v1659 = vmul.f32 %v1291, 0.2
      %v1660 = vmul.f32 %v1294, 0.2
      %v1661 = vmul.f32 %v1299, 0.2
      %v1662 = vmul.f32 %v1302, 0.2
      %v1663 = vmul.f32 %v1307, 0.2
      %v1664 = vmul.f32 %v1310, 0.2
      %v1665 = vmul.f32 %v1315, 0.2
      %v1666 = vmul.f32 %v1318, 0.2
      %v1667 = vmul.f32 %v1323, 0.2
      %v1668 = vmul.f32 %v1326, 0.2
      %v1669 = vmul.f32 %v1331, 0.2
      %v1670 = vmul.f32 %v1334, 0.2
      %v1671 = vmul.f32 %v1339, 0.2
      %v1672 = vmul.f32 %v1342, 0.2
      %v1673 = vmul.f32 %v1347, 0.2
      %v1674 = vmul.f32 %v1350, 0.2
      %v1675 = vmul.f32 %v1355, 0.2
      %v1676 = vmul.f32 %v1358, 0.2
      %v1677 = vmul.f32 %v1363, 0.2
      %v1678 = vmul.f32 %v1366, 0.2
      %v1679 = vmul.f32 %v1371, 0.2
      %v1680 = vmul.f32 %v1374, 0.2
      %v1681 = vmul.f32 %v1379, 0.2
      %v1682 = vmul.f32 %v1382, 0.2
      %v1683 = vmul.f32 %v1387, 0.2
      %v1684 = vmul.f32 %v1390, 0.2
      %v1685 = vmul.f32 %v1395, 0.2
      %v1686 = vmul.f32 %v1398, 0.2
      %v1687 = vmul.f32 %v1403, 0.2
      %v1688 = vmul.f32 %v1406, 0.2
      %v1689 = vmul.f32 %v1411, 0.2
      %v1690 = vmul.f32 %v1414, 0.2
      %v1691 = vmul.f32 %v1419, 0.2
      %v1692 = vmul.f32 %v1422, 0.2
      %v1693 = vmul.f32 %v1427, 0.2
      %v1694 = vmul.f32 %v1430, 0.2
      %v1695 = vmul.f32 %v1435, 0.2
      %v1696 = vmul.f32 %v1438, 0.2
      %v1697 = vsel %vm1441, %v931, %v1569
      %v1698 = vsel %vm1442, %v934, %v1570
      %v1699 = vsel %vm1443, %v939, %v1571
      %v1700 = vsel %vm1444, %v942, %v1572
      %v1701 = vsel %vm1445, %v947, %v1573
      %v1702 = vsel %vm1446, %v950, %v1574
      %v1703 = vsel %vm1447, %v955, %v1575
      %v1704 = vsel %vm1448, %v958, %v1576
      %v1705 = vsel %vm1449, %v963, %v1577
      %v1706 = vsel %vm1450, %v966, %v1578
      %v1707 = vsel %vm1451, %v971, %v1579
      %v1708 = vsel %vm1452, %v974, %v1580
      %v1709 = vsel %vm1453, %v979, %v1581
      %v1710 = vsel %vm1454, %v982, %v1582
      %v1711 = vsel %vm1455, %v987, %v1583
      %v1712 = vsel %vm1456, %v990, %v1584
      %v1713 = vsel %vm1457, %v995, %v1585
      %v1714 = vsel %vm1458, %v998, %v1586
      %v1715 = vsel %vm1459, %v1003, %v1587
      %v1716 = vsel %vm1460, %v1006, %v1588
      %v1717 = vsel %vm1461, %v1011, %v1589
      %v1718 = vsel %vm1462, %v1014, %v1590
      %v1719 = vsel %vm1463, %v1019, %v1591
      %v1720 = vsel %vm1464, %v1022, %v1592
      %v1721 = vsel %vm1465, %v1027, %v1593
      %v1722 = vsel %vm1466, %v1030, %v1594
      %v1723 = vsel %vm1467, %v1035, %v1595
      %v1724 = vsel %vm1468, %v1038, %v1596
      %v1725 = vsel %vm1469, %v1043, %v1597
      %v1726 = vsel %vm1470, %v1046, %v1598
      %v1727 = vsel %vm1471, %v1051, %v1599
      %v1728 = vsel %vm1472, %v1054, %v1600
      %v1729 = vsel %vm1473, %v1059, %v1601
      %v1730 = vsel %vm1474, %v1062, %v1602
      %v1731 = vsel %vm1475, %v1067, %v1603
      %v1732 = vsel %vm1476, %v1070, %v1604
      %v1733 = vsel %vm1477, %v1075, %v1605
      %v1734 = vsel %vm1478, %v1078, %v1606
      %v1735 = vsel %vm1479, %v1083, %v1607
      %v1736 = vsel %vm1480, %v1086, %v1608
      %v1737 = vsel %vm1481, %v1091, %v1609
      %v1738 = vsel %vm1482, %v1094, %v1610
      %v1739 = vsel %vm1483, %v1099, %v1611
      %v1740 = vsel %vm1484, %v1102, %v1612
      %v1741 = vsel %vm1485, %v1107, %v1613
      %v1742 = vsel %vm1486, %v1110, %v1614
      %v1743 = vsel %vm1487, %v1115, %v1615
      %v1744 = vsel %vm1488, %v1118, %v1616
      %v1745 = vsel %vm1489, %v1123, %v1617
      %v1746 = vsel %vm1490, %v1126, %v1618
      %v1747 = vsel %vm1491, %v1131, %v1619
      %v1748 = vsel %vm1492, %v1134, %v1620
      %v1749 = vsel %vm1493, %v1139, %v1621
      %v1750 = vsel %vm1494, %v1142, %v1622
      %v1751 = vsel %vm1495, %v1147, %v1623
      %v1752 = vsel %vm1496, %v1150, %v1624
      %v1753 = vsel %vm1497, %v1155, %v1625
      %v1754 = vsel %vm1498, %v1158, %v1626
      %v1755 = vsel %vm1499, %v1163, %v1627
      %v1756 = vsel %vm1500, %v1166, %v1628
      %v1757 = vsel %vm1501, %v1171, %v1629
      %v1758 = vsel %vm1502, %v1174, %v1630
      %v1759 = vsel %vm1503, %v1179, %v1631
      %v1760 = vsel %vm1504, %v1182, %v1632
      %v1761 = vsel %vm1505, %v1187, %v1633
      %v1762 = vsel %vm1506, %v1190, %v1634
      %v1763 = vsel %vm1507, %v1195, %v1635
      %v1764 = vsel %vm1508, %v1198, %v1636
      %v1765 = vsel %vm1509, %v1203, %v1637
      %v1766 = vsel %vm1510, %v1206, %v1638
      %v1767 = vsel %vm1511, %v1211, %v1639
      %v1768 = vsel %vm1512, %v1214, %v1640
      %v1769 = vsel %vm1513, %v1219, %v1641
      %v1770 = vsel %vm1514, %v1222, %v1642
      %v1771 = vsel %vm1515, %v1227, %v1643
      %v1772 = vsel %vm1516, %v1230, %v1644
      %v1773 = vsel %vm1517, %v1235, %v1645
      %v1774 = vsel %vm1518, %v1238, %v1646
      %v1775 = vsel %vm1519, %v1243, %v1647
      %v1776 = vsel %vm1520, %v1246, %v1648
      %v1777 = vsel %vm1521, %v1251, %v1649
      %v1778 = vsel %vm1522, %v1254, %v1650
      %v1779 = vsel %vm1523, %v1259, %v1651
      %v1780 = vsel %vm1524, %v1262, %v1652
      %v1781 = vsel %vm1525, %v1267, %v1653
      %v1782 = vsel %vm1526, %v1270, %v1654
      %v1783 = vsel %vm1527, %v1275, %v1655
      %v1784 = vsel %vm1528, %v1278, %v1656
      %v1785 = vsel %vm1529, %v1283, %v1657
      %v1786 = vsel %vm1530, %v1286, %v1658
      %v1787 = vsel %vm1531, %v1291, %v1659
      %v1788 = vsel %vm1532, %v1294, %v1660
      %v1789 = vsel %vm1533, %v1299, %v1661
      %v1790 = vsel %vm1534, %v1302, %v1662
      %v1791 = vsel %vm1535, %v1307, %v1663
      %v1792 = vsel %vm1536, %v1310, %v1664
      %v1793 = vsel %vm1537, %v1315, %v1665
      %v1794 = vsel %vm1538, %v1318, %v1666
      %v1795 = vsel %vm1539, %v1323, %v1667
      %v1796 = vsel %vm1540, %v1326, %v1668
      %v1797 = vsel %vm1541, %v1331, %v1669
      %v1798 = vsel %vm1542, %v1334, %v1670
      %v1799 = vsel %vm1543, %v1339, %v1671
      %v1800 = vsel %vm1544, %v1342, %v1672
      %v1801 = vsel %vm1545, %v1347, %v1673
      %v1802 = vsel %vm1546, %v1350, %v1674
      %v1803 = vsel %vm1547, %v1355, %v1675
      %v1804 = vsel %vm1548, %v1358, %v1676
      %v1805 = vsel %vm1549, %v1363, %v1677
      %v1806 = vsel %vm1550, %v1366, %v1678
      %v1807 = vsel %vm1551, %v1371, %v1679
      %v1808 = vsel %vm1552, %v1374, %v1680
      %v1809 = vsel %vm1553, %v1379, %v1681
      %v1810 = vsel %vm1554, %v1382, %v1682
      %v1811 = vsel %vm1555, %v1387, %v1683
      %v1812 = vsel %vm1556, %v1390, %v1684
      %v1813 = vsel %vm1557, %v1395, %v1685
      %v1814 = vsel %vm1558, %v1398, %v1686
      %v1815 = vsel %vm1559, %v1403, %v1687
      %v1816 = vsel %vm1560, %v1406, %v1688
      %v1817 = vsel %vm1561, %v1411, %v1689
      %v1818 = vsel %vm1562, %v1414, %v1690
      %v1819 = vsel %vm1563, %v1419, %v1691
      %v1820 = vsel %vm1564, %v1422, %v1692
      %v1821 = vsel %vm1565, %v1427, %v1693
      %v1822 = vsel %vm1566, %v1430, %v1694
      %v1823 = vsel %vm1567, %v1435, %v1695
      %v1824 = vsel %vm1568, %v1438, %v1696
      %v1825 = vpack.c.bf16 %v1698, %v1697
      %v1826 = vpack.c.bf16 %v1700, %v1699
      %v1827 = vpack.c.bf16 %v1702, %v1701
      %v1828 = vpack.c.bf16 %v1704, %v1703
      %v1829 = vpack.c.bf16 %v1706, %v1705
      %v1830 = vpack.c.bf16 %v1708, %v1707
      %v1831 = vpack.c.bf16 %v1710, %v1709
      %v1832 = vpack.c.bf16 %v1712, %v1711
      %v1833 = vpack.c.bf16 %v1714, %v1713
      %v1834 = vpack.c.bf16 %v1716, %v1715
      %v1835 = vpack.c.bf16 %v1718, %v1717
      %v1836 = vpack.c.bf16 %v1720, %v1719
      %v1837 = vpack.c.bf16 %v1722, %v1721
      %v1838 = vpack.c.bf16 %v1724, %v1723
      %v1839 = vpack.c.bf16 %v1726, %v1725
      %v1840 = vpack.c.bf16 %v1728, %v1727
      %v1841 = vpack.c.bf16 %v1730, %v1729
      %v1842 = vpack.c.bf16 %v1732, %v1731
      %v1843 = vpack.c.bf16 %v1734, %v1733
      %v1844 = vpack.c.bf16 %v1736, %v1735
      %v1845 = vpack.c.bf16 %v1738, %v1737
      %v1846 = vpack.c.bf16 %v1740, %v1739
      %v1847 = vpack.c.bf16 %v1742, %v1741
      %v1848 = vpack.c.bf16 %v1744, %v1743
      %v1849 = vpack.c.bf16 %v1746, %v1745
      %v1850 = vpack.c.bf16 %v1748, %v1747
      %v1851 = vpack.c.bf16 %v1750, %v1749
      %v1852 = vpack.c.bf16 %v1752, %v1751
      %v1853 = vpack.c.bf16 %v1754, %v1753
      %v1854 = vpack.c.bf16 %v1756, %v1755
      %v1855 = vpack.c.bf16 %v1758, %v1757
      %v1856 = vpack.c.bf16 %v1760, %v1759
      %v1857 = vpack.c.bf16 %v1762, %v1761
      %v1858 = vpack.c.bf16 %v1764, %v1763
      %v1859 = vpack.c.bf16 %v1766, %v1765
      %v1860 = vpack.c.bf16 %v1768, %v1767
      %v1861 = vpack.c.bf16 %v1770, %v1769
      %v1862 = vpack.c.bf16 %v1772, %v1771
      %v1863 = vpack.c.bf16 %v1774, %v1773
      %v1864 = vpack.c.bf16 %v1776, %v1775
      %v1865 = vpack.c.bf16 %v1778, %v1777
      %v1866 = vpack.c.bf16 %v1780, %v1779
      %v1867 = vpack.c.bf16 %v1782, %v1781
      %v1868 = vpack.c.bf16 %v1784, %v1783
      %v1869 = vpack.c.bf16 %v1786, %v1785
      %v1870 = vpack.c.bf16 %v1788, %v1787
      %v1871 = vpack.c.bf16 %v1790, %v1789
      %v1872 = vpack.c.bf16 %v1792, %v1791
      %v1873 = vpack.c.bf16 %v1794, %v1793
      %v1874 = vpack.c.bf16 %v1796, %v1795
      %v1875 = vpack.c.bf16 %v1798, %v1797
      %v1876 = vpack.c.bf16 %v1800, %v1799
      %v1877 = vpack.c.bf16 %v1802, %v1801
      %v1878 = vpack.c.bf16 %v1804, %v1803
      %v1879 = vpack.c.bf16 %v1806, %v1805
      %v1880 = vpack.c.bf16 %v1808, %v1807
      %v1881 = vpack.c.bf16 %v1810, %v1809
      %v1882 = vpack.c.bf16 %v1812, %v1811
      %v1883 = vpack.c.bf16 %v1814, %v1813
      %v1884 = vpack.c.bf16 %v1816, %v1815
      %v1885 = vpack.c.bf16 %v1818, %v1817
      %v1886 = vpack.c.bf16 %v1820, %v1819
      %v1887 = vpack.c.bf16 %v1822, %v1821
      %v1888 = vpack.c.bf16 %v1824, %v1823
      %v1953 = vunpack.c.l.b16 %v1825
      %v1954 = vunpack.c.h.b16 %v1825
      %v1955 = vunpack.c.l.b16 %v1826
      %v1956 = vunpack.c.h.b16 %v1826
      %v1957 = vunpack.c.l.b16 %v1827
      %v1958 = vunpack.c.h.b16 %v1827
      %v1959 = vunpack.c.l.b16 %v1828
      %v1960 = vunpack.c.h.b16 %v1828
      %v1961 = vunpack.c.l.b16 %v1829
      %v1962 = vunpack.c.h.b16 %v1829
      %v1963 = vunpack.c.l.b16 %v1830
      %v1964 = vunpack.c.h.b16 %v1830
      %v1965 = vunpack.c.l.b16 %v1831
      %v1966 = vunpack.c.h.b16 %v1831
      %v1967 = vunpack.c.l.b16 %v1832
      %v1968 = vunpack.c.h.b16 %v1832
      %v1969 = vunpack.c.l.b16 %v1833
      %v1970 = vunpack.c.h.b16 %v1833
      %v1971 = vunpack.c.l.b16 %v1834
      %v1972 = vunpack.c.h.b16 %v1834
      %v1973 = vunpack.c.l.b16 %v1835
      %v1974 = vunpack.c.h.b16 %v1835
      %v1975 = vunpack.c.l.b16 %v1836
      %v1976 = vunpack.c.h.b16 %v1836
      %v1977 = vunpack.c.l.b16 %v1837
      %v1978 = vunpack.c.h.b16 %v1837
      %v1979 = vunpack.c.l.b16 %v1838
      %v1980 = vunpack.c.h.b16 %v1838
      %v1981 = vunpack.c.l.b16 %v1839
      %v1982 = vunpack.c.h.b16 %v1839
      %v1983 = vunpack.c.l.b16 %v1840
      %v1984 = vunpack.c.h.b16 %v1840
      %v1985 = vunpack.c.l.b16 %v1841
      %v1986 = vunpack.c.h.b16 %v1841
      %v1987 = vunpack.c.l.b16 %v1842
      %v1988 = vunpack.c.h.b16 %v1842
      %v1989 = vunpack.c.l.b16 %v1843
      %v1990 = vunpack.c.h.b16 %v1843
      %v1991 = vunpack.c.l.b16 %v1844
      %v1992 = vunpack.c.h.b16 %v1844
      %v1993 = vunpack.c.l.b16 %v1845
      %v1994 = vunpack.c.h.b16 %v1845
      %v1995 = vunpack.c.l.b16 %v1846
      %v1996 = vunpack.c.h.b16 %v1846
      %v1997 = vunpack.c.l.b16 %v1847
      %v1998 = vunpack.c.h.b16 %v1847
      %v1999 = vunpack.c.l.b16 %v1848
      %v2000 = vunpack.c.h.b16 %v1848
      %v2001 = vunpack.c.l.b16 %v1849
      %v2002 = vunpack.c.h.b16 %v1849
      %v2003 = vunpack.c.l.b16 %v1850
      %v2004 = vunpack.c.h.b16 %v1850
      %v2005 = vunpack.c.l.b16 %v1851
      %v2006 = vunpack.c.h.b16 %v1851
      %v2007 = vunpack.c.l.b16 %v1852
      %v2008 = vunpack.c.h.b16 %v1852
      %v2009 = vunpack.c.l.b16 %v1853
      %v2010 = vunpack.c.h.b16 %v1853
      %v2011 = vunpack.c.l.b16 %v1854
      %v2012 = vunpack.c.h.b16 %v1854
      %v2013 = vunpack.c.l.b16 %v1855
      %v2014 = vunpack.c.h.b16 %v1855
      %v2015 = vunpack.c.l.b16 %v1856
      %v2016 = vunpack.c.h.b16 %v1856
      %v2017 = vunpack.c.l.b16 %v1857
      %v2018 = vunpack.c.h.b16 %v1857
      %v2019 = vunpack.c.l.b16 %v1858
      %v2020 = vunpack.c.h.b16 %v1858
      %v2021 = vunpack.c.l.b16 %v1859
      %v2022 = vunpack.c.h.b16 %v1859
      %v2023 = vunpack.c.l.b16 %v1860
      %v2024 = vunpack.c.h.b16 %v1860
      %v2025 = vunpack.c.l.b16 %v1861
      %v2026 = vunpack.c.h.b16 %v1861
      %v2027 = vunpack.c.l.b16 %v1862
      %v2028 = vunpack.c.h.b16 %v1862
      %v2029 = vunpack.c.l.b16 %v1863
      %v2030 = vunpack.c.h.b16 %v1863
      %v2031 = vunpack.c.l.b16 %v1864
      %v2032 = vunpack.c.h.b16 %v1864
      %v2033 = vunpack.c.l.b16 %v1865
      %v2034 = vunpack.c.h.b16 %v1865
      %v2035 = vunpack.c.l.b16 %v1866
      %v2036 = vunpack.c.h.b16 %v1866
      %v2037 = vunpack.c.l.b16 %v1867
      %v2038 = vunpack.c.h.b16 %v1867
      %v2039 = vunpack.c.l.b16 %v1868
      %v2040 = vunpack.c.h.b16 %v1868
      %v2041 = vunpack.c.l.b16 %v1869
      %v2042 = vunpack.c.h.b16 %v1869
      %v2043 = vunpack.c.l.b16 %v1870
      %v2044 = vunpack.c.h.b16 %v1870
      %v2045 = vunpack.c.l.b16 %v1871
      %v2046 = vunpack.c.h.b16 %v1871
      %v2047 = vunpack.c.l.b16 %v1872
      %v2048 = vunpack.c.h.b16 %v1872
      %v2049 = vunpack.c.l.b16 %v1873
      %v2050 = vunpack.c.h.b16 %v1873
      %v2051 = vunpack.c.l.b16 %v1874
      %v2052 = vunpack.c.h.b16 %v1874
      %v2053 = vunpack.c.l.b16 %v1875
      %v2054 = vunpack.c.h.b16 %v1875
      %v2055 = vunpack.c.l.b16 %v1876
      %v2056 = vunpack.c.h.b16 %v1876
      %v2057 = vunpack.c.l.b16 %v1877
      %v2058 = vunpack.c.h.b16 %v1877
      %v2059 = vunpack.c.l.b16 %v1878
      %v2060 = vunpack.c.h.b16 %v1878
      %v2061 = vunpack.c.l.b16 %v1879
      %v2062 = vunpack.c.h.b16 %v1879
      %v2063 = vunpack.c.l.b16 %v1880
      %v2064 = vunpack.c.h.b16 %v1880
      %v2065 = vunpack.c.l.b16 %v1881
      %v2066 = vunpack.c.h.b16 %v1881
      %v2067 = vunpack.c.l.b16 %v1882
      %v2068 = vunpack.c.h.b16 %v1882
      %v2069 = vunpack.c.l.b16 %v1883
      %v2070 = vunpack.c.h.b16 %v1883
      %v2071 = vunpack.c.l.b16 %v1884
      %v2072 = vunpack.c.h.b16 %v1884
      %v2073 = vunpack.c.l.b16 %v1885
      %v2074 = vunpack.c.h.b16 %v1885
      %v2075 = vunpack.c.l.b16 %v1886
      %v2076 = vunpack.c.h.b16 %v1886
      %v2077 = vunpack.c.l.b16 %v1887
      %v2078 = vunpack.c.h.b16 %v1887
      %v2079 = vunpack.c.l.b16 %v1888
      %v2080 = vunpack.c.h.b16 %v1888
      %v2081 = vpack.c.b16 %v1953, %v1953
      %v2082 = vpack.c.b16 %v1954, %v1954
      %v2083 = vpack.c.b16 %v1955, %v1955
      %v2084 = vpack.c.b16 %v1956, %v1956
      %v2085 = vpack.c.b16 %v1957, %v1957
      %v2086 = vpack.c.b16 %v1958, %v1958
      %v2087 = vpack.c.b16 %v1959, %v1959
      %v2088 = vpack.c.b16 %v1960, %v1960
      %v2089 = vpack.c.b16 %v1961, %v1961
      %v2090 = vpack.c.b16 %v1962, %v1962
      %v2091 = vpack.c.b16 %v1963, %v1963
      %v2092 = vpack.c.b16 %v1964, %v1964
      %v2093 = vpack.c.b16 %v1965, %v1965
      %v2094 = vpack.c.b16 %v1966, %v1966
      %v2095 = vpack.c.b16 %v1967, %v1967
      %v2096 = vpack.c.b16 %v1968, %v1968
      %v2097 = vpack.c.b16 %v1969, %v1969
      %v2098 = vpack.c.b16 %v1970, %v1970
      %v2099 = vpack.c.b16 %v1971, %v1971
      %v2100 = vpack.c.b16 %v1972, %v1972
      %v2101 = vpack.c.b16 %v1973, %v1973
      %v2102 = vpack.c.b16 %v1974, %v1974
      %v2103 = vpack.c.b16 %v1975, %v1975
      %v2104 = vpack.c.b16 %v1976, %v1976
      %v2105 = vpack.c.b16 %v1977, %v1977
      %v2106 = vpack.c.b16 %v1978, %v1978
      %v2107 = vpack.c.b16 %v1979, %v1979
      %v2108 = vpack.c.b16 %v1980, %v1980
      %v2109 = vpack.c.b16 %v1981, %v1981
      %v2110 = vpack.c.b16 %v1982, %v1982
      %v2111 = vpack.c.b16 %v1983, %v1983
      %v2112 = vpack.c.b16 %v1984, %v1984
      %v2113 = vpack.c.b16 %v1985, %v1985
      %v2114 = vpack.c.b16 %v1986, %v1986
      %v2115 = vpack.c.b16 %v1987, %v1987
      %v2116 = vpack.c.b16 %v1988, %v1988
      %v2117 = vpack.c.b16 %v1989, %v1989
      %v2118 = vpack.c.b16 %v1990, %v1990
      %v2119 = vpack.c.b16 %v1991, %v1991
      %v2120 = vpack.c.b16 %v1992, %v1992
      %v2121 = vpack.c.b16 %v1993, %v1993
      %v2122 = vpack.c.b16 %v1994, %v1994
      %v2123 = vpack.c.b16 %v1995, %v1995
      %v2124 = vpack.c.b16 %v1996, %v1996
      %v2125 = vpack.c.b16 %v1997, %v1997
      %v2126 = vpack.c.b16 %v1998, %v1998
      %v2127 = vpack.c.b16 %v1999, %v1999
      %v2128 = vpack.c.b16 %v2000, %v2000
      %v2129 = vpack.c.b16 %v2001, %v2001
      %v2130 = vpack.c.b16 %v2002, %v2002
      %v2131 = vpack.c.b16 %v2003, %v2003
      %v2132 = vpack.c.b16 %v2004, %v2004
      %v2133 = vpack.c.b16 %v2005, %v2005
      %v2134 = vpack.c.b16 %v2006, %v2006
      %v2135 = vpack.c.b16 %v2007, %v2007
      %v2136 = vpack.c.b16 %v2008, %v2008
      %v2137 = vpack.c.b16 %v2009, %v2009
      %v2138 = vpack.c.b16 %v2010, %v2010
      %v2139 = vpack.c.b16 %v2011, %v2011
      %v2140 = vpack.c.b16 %v2012, %v2012
      %v2141 = vpack.c.b16 %v2013, %v2013
      %v2142 = vpack.c.b16 %v2014, %v2014
      %v2143 = vpack.c.b16 %v2015, %v2015
      %v2144 = vpack.c.b16 %v2016, %v2016
      %v2145 = vpack.c.b16 %v2017, %v2017
      %v2146 = vpack.c.b16 %v2018, %v2018
      %v2147 = vpack.c.b16 %v2019, %v2019
      %v2148 = vpack.c.b16 %v2020, %v2020
      %v2149 = vpack.c.b16 %v2021, %v2021
      %v2150 = vpack.c.b16 %v2022, %v2022
      %v2151 = vpack.c.b16 %v2023, %v2023
      %v2152 = vpack.c.b16 %v2024, %v2024
      %v2153 = vpack.c.b16 %v2025, %v2025
      %v2154 = vpack.c.b16 %v2026, %v2026
      %v2155 = vpack.c.b16 %v2027, %v2027
      %v2156 = vpack.c.b16 %v2028, %v2028
      %v2157 = vpack.c.b16 %v2029, %v2029
      %v2158 = vpack.c.b16 %v2030, %v2030
      %v2159 = vpack.c.b16 %v2031, %v2031
      %v2160 = vpack.c.b16 %v2032, %v2032
      %v2161 = vpack.c.b16 %v2033, %v2033
      %v2162 = vpack.c.b16 %v2034, %v2034
      %v2163 = vpack.c.b16 %v2035, %v2035
      %v2164 = vpack.c.b16 %v2036, %v2036
      %v2165 = vpack.c.b16 %v2037, %v2037
      %v2166 = vpack.c.b16 %v2038, %v2038
      %v2167 = vpack.c.b16 %v2039, %v2039
      %v2168 = vpack.c.b16 %v2040, %v2040
      %v2169 = vpack.c.b16 %v2041, %v2041
      %v2170 = vpack.c.b16 %v2042, %v2042
      %v2171 = vpack.c.b16 %v2043, %v2043
      %v2172 = vpack.c.b16 %v2044, %v2044
      %v2173 = vpack.c.b16 %v2045, %v2045
      %v2174 = vpack.c.b16 %v2046, %v2046
      %v2175 = vpack.c.b16 %v2047, %v2047
      %v2176 = vpack.c.b16 %v2048, %v2048
      %v2177 = vpack.c.b16 %v2049, %v2049
      %v2178 = vpack.c.b16 %v2050, %v2050
      %v2179 = vpack.c.b16 %v2051, %v2051
      %v2180 = vpack.c.b16 %v2052, %v2052
      %v2181 = vpack.c.b16 %v2053, %v2053
      %v2182 = vpack.c.b16 %v2054, %v2054
      %v2183 = vpack.c.b16 %v2055, %v2055
      %v2184 = vpack.c.b16 %v2056, %v2056
      %v2185 = vpack.c.b16 %v2057, %v2057
      %v2186 = vpack.c.b16 %v2058, %v2058
      %v2187 = vpack.c.b16 %v2059, %v2059
      %v2188 = vpack.c.b16 %v2060, %v2060
      %v2189 = vpack.c.b16 %v2061, %v2061
      %v2190 = vpack.c.b16 %v2062, %v2062
      %v2191 = vpack.c.b16 %v2063, %v2063
      %v2192 = vpack.c.b16 %v2064, %v2064
      %v2193 = vpack.c.b16 %v2065, %v2065
      %v2194 = vpack.c.b16 %v2066, %v2066
      %v2195 = vpack.c.b16 %v2067, %v2067
      %v2196 = vpack.c.b16 %v2068, %v2068
      %v2197 = vpack.c.b16 %v2069, %v2069
      %v2198 = vpack.c.b16 %v2070, %v2070
      %v2199 = vpack.c.b16 %v2071, %v2071
      %v2200 = vpack.c.b16 %v2072, %v2072
      %v2201 = vpack.c.b16 %v2073, %v2073
      %v2202 = vpack.c.b16 %v2074, %v2074
      %v2203 = vpack.c.b16 %v2075, %v2075
      %v2204 = vpack.c.b16 %v2076, %v2076
      %v2205 = vpack.c.b16 %v2077, %v2077
      %v2206 = vpack.c.b16 %v2078, %v2078
      %v2207 = vpack.c.b16 %v2079, %v2079
      %v2208 = vpack.c.b16 %v2080, %v2080
      %vm2337 = vcmask 519168
      %2338 = vst.msk [vmem:[%s223] sm:$0xf] %vm2337, %v2081
      %2339 = vst.msk [vmem:[%s223 + $0x4] sm:$0xf] %vm2337, %v2082
      %2340 = vst.msk [vmem:[%s223 + $0x8] sm:$0xf] %vm2337, %v2083
      %2341 = vst.msk [vmem:[%s223 + $0xc] sm:$0xf] %vm2337, %v2084
      %2342 = vst.msk [vmem:[%s223 + $0x10] sm:$0xf] %vm2337, %v2085
      %2343 = vst.msk [vmem:[%s223 + $0x14] sm:$0xf] %vm2337, %v2086
      %2344 = vst.msk [vmem:[%s223 + $0x18] sm:$0xf] %vm2337, %v2087
      %2345 = vst.msk [vmem:[%s223 + $0x1c] sm:$0xf] %vm2337, %v2088
      %2346 = vst.msk [vmem:[%s223 + $0x20] sm:$0xf] %vm2337, %v2089
      %2347 = vst.msk [vmem:[%s223 + $0x24] sm:$0xf] %vm2337, %v2090
      %2348 = vst.msk [vmem:[%s223 + $0x28] sm:$0xf] %vm2337, %v2091
      %2349 = vst.msk [vmem:[%s223 + $0x2c] sm:$0xf] %vm2337, %v2092
      %2350 = vst.msk [vmem:[%s223 + $0x30] sm:$0xf] %vm2337, %v2093
      %2351 = vst.msk [vmem:[%s223 + $0x34] sm:$0xf] %vm2337, %v2094
      %2352 = vst.msk [vmem:[%s223 + $0x38] sm:$0xf] %vm2337, %v2095
      %2353 = vst.msk [vmem:[%s223 + $0x3c] sm:$0xf] %vm2337, %v2096
      %2354 = vst.msk [vmem:[%s223 + $0x40] sm:$0xf] %vm2337, %v2097
      %2355 = vst.msk [vmem:[%s223 + $0x44] sm:$0xf] %vm2337, %v2098
      %2356 = vst.msk [vmem:[%s223 + $0x48] sm:$0xf] %vm2337, %v2099
      %2357 = vst.msk [vmem:[%s223 + $0x4c] sm:$0xf] %vm2337, %v2100
      %2358 = vst.msk [vmem:[%s223 + $0x50] sm:$0xf] %vm2337, %v2101
      %2359 = vst.msk [vmem:[%s223 + $0x54] sm:$0xf] %vm2337, %v2102
      %2360 = vst.msk [vmem:[%s223 + $0x58] sm:$0xf] %vm2337, %v2103
      %2361 = vst.msk [vmem:[%s223 + $0x5c] sm:$0xf] %vm2337, %v2104
      %2362 = vst.msk [vmem:[%s223 + $0x60] sm:$0xf] %vm2337, %v2105
      %2363 = vst.msk [vmem:[%s223 + $0x64] sm:$0xf] %vm2337, %v2106
      %2364 = vst.msk [vmem:[%s223 + $0x68] sm:$0xf] %vm2337, %v2107
      %2365 = vst.msk [vmem:[%s223 + $0x6c] sm:$0xf] %vm2337, %v2108
      %2366 = vst.msk [vmem:[%s223 + $0x70] sm:$0xf] %vm2337, %v2109
      %2367 = vst.msk [vmem:[%s223 + $0x74] sm:$0xf] %vm2337, %v2110
      %2368 = vst.msk [vmem:[%s223 + $0x78] sm:$0xf] %vm2337, %v2111
      %2369 = vst.msk [vmem:[%s223 + $0x7c] sm:$0xf] %vm2337, %v2112
      %2370 = vst.msk [vmem:[%s223 + $0x80] sm:$0xf] %vm2337, %v2113
      %2371 = vst.msk [vmem:[%s223 + $0x84] sm:$0xf] %vm2337, %v2114
      %2372 = vst.msk [vmem:[%s223 + $0x88] sm:$0xf] %vm2337, %v2115
      %2373 = vst.msk [vmem:[%s223 + $0x8c] sm:$0xf] %vm2337, %v2116
      %2374 = vst.msk [vmem:[%s223 + $0x90] sm:$0xf] %vm2337, %v2117
      %2375 = vst.msk [vmem:[%s223 + $0x94] sm:$0xf] %vm2337, %v2118
      %2376 = vst.msk [vmem:[%s223 + $0x98] sm:$0xf] %vm2337, %v2119
      %2377 = vst.msk [vmem:[%s223 + $0x9c] sm:$0xf] %vm2337, %v2120
      %2378 = vst.msk [vmem:[%s223 + $0xa0] sm:$0xf] %vm2337, %v2121
      %2379 = vst.msk [vmem:[%s223 + $0xa4] sm:$0xf] %vm2337, %v2122
      %2380 = vst.msk [vmem:[%s223 + $0xa8] sm:$0xf] %vm2337, %v2123
      %2381 = vst.msk [vmem:[%s223 + $0xac] sm:$0xf] %vm2337, %v2124
      %2382 = vst.msk [vmem:[%s223 + $0xb0] sm:$0xf] %vm2337, %v2125
      %2383 = vst.msk [vmem:[%s223 + $0xb4] sm:$0xf] %vm2337, %v2126
      %2384 = vst.msk [vmem:[%s223 + $0xb8] sm:$0xf] %vm2337, %v2127
      %2385 = vst.msk [vmem:[%s223 + $0xbc] sm:$0xf] %vm2337, %v2128
      %2386 = vst.msk [vmem:[%s223 + $0xc0] sm:$0xf] %vm2337, %v2129
      %2387 = vst.msk [vmem:[%s223 + $0xc4] sm:$0xf] %vm2337, %v2130
      %2388 = vst.msk [vmem:[%s223 + $0xc8] sm:$0xf] %vm2337, %v2131
      %2389 = vst.msk [vmem:[%s223 + $0xcc] sm:$0xf] %vm2337, %v2132
      %2390 = vst.msk [vmem:[%s223 + $0xd0] sm:$0xf] %vm2337, %v2133
      %2391 = vst.msk [vmem:[%s223 + $0xd4] sm:$0xf] %vm2337, %v2134
      %2392 = vst.msk [vmem:[%s223 + $0xd8] sm:$0xf] %vm2337, %v2135
      %2393 = vst.msk [vmem:[%s223 + $0xdc] sm:$0xf] %vm2337, %v2136
      %2394 = vst.msk [vmem:[%s223 + $0xe0] sm:$0xf] %vm2337, %v2137
      %2395 = vst.msk [vmem:[%s223 + $0xe4] sm:$0xf] %vm2337, %v2138
      %2396 = vst.msk [vmem:[%s223 + $0xe8] sm:$0xf] %vm2337, %v2139
      %2397 = vst.msk [vmem:[%s223 + $0xec] sm:$0xf] %vm2337, %v2140
      %2398 = vst.msk [vmem:[%s223 + $0xf0] sm:$0xf] %vm2337, %v2141
      %2399 = vst.msk [vmem:[%s223 + $0xf4] sm:$0xf] %vm2337, %v2142
      %2400 = vst.msk [vmem:[%s223 + $0xf8] sm:$0xf] %vm2337, %v2143
      %2401 = vst.msk [vmem:[%s223 + $0xfc] sm:$0xf] %vm2337, %v2144
      %2402 = vst.msk [vmem:[%s223 + $0x100] sm:$0xf] %vm2337, %v2145
      %2403 = vst.msk [vmem:[%s223 + $0x104] sm:$0xf] %vm2337, %v2146
      %2404 = vst.msk [vmem:[%s223 + $0x108] sm:$0xf] %vm2337, %v2147
      %2405 = vst.msk [vmem:[%s223 + $0x10c] sm:$0xf] %vm2337, %v2148
      %2406 = vst.msk [vmem:[%s223 + $0x110] sm:$0xf] %vm2337, %v2149
      %2407 = vst.msk [vmem:[%s223 + $0x114] sm:$0xf] %vm2337, %v2150
      %2408 = vst.msk [vmem:[%s223 + $0x118] sm:$0xf] %vm2337, %v2151
      %2409 = vst.msk [vmem:[%s223 + $0x11c] sm:$0xf] %vm2337, %v2152
      %2410 = vst.msk [vmem:[%s223 + $0x120] sm:$0xf] %vm2337, %v2153
      %2411 = vst.msk [vmem:[%s223 + $0x124] sm:$0xf] %vm2337, %v2154
      %2412 = vst.msk [vmem:[%s223 + $0x128] sm:$0xf] %vm2337, %v2155
      %2413 = vst.msk [vmem:[%s223 + $0x12c] sm:$0xf] %vm2337, %v2156
      %2414 = vst.msk [vmem:[%s223 + $0x130] sm:$0xf] %vm2337, %v2157
      %2415 = vst.msk [vmem:[%s223 + $0x134] sm:$0xf] %vm2337, %v2158
      %2416 = vst.msk [vmem:[%s223 + $0x138] sm:$0xf] %vm2337, %v2159
      %2417 = vst.msk [vmem:[%s223 + $0x13c] sm:$0xf] %vm2337, %v2160
      %2418 = vst.msk [vmem:[%s223 + $0x140] sm:$0xf] %vm2337, %v2161
      %2419 = vst.msk [vmem:[%s223 + $0x144] sm:$0xf] %vm2337, %v2162
      %2420 = vst.msk [vmem:[%s223 + $0x148] sm:$0xf] %vm2337, %v2163
      %2421 = vst.msk [vmem:[%s223 + $0x14c] sm:$0xf] %vm2337, %v2164
      %2422 = vst.msk [vmem:[%s223 + $0x150] sm:$0xf] %vm2337, %v2165
      %2423 = vst.msk [vmem:[%s223 + $0x154] sm:$0xf] %vm2337, %v2166
      %2424 = vst.msk [vmem:[%s223 + $0x158] sm:$0xf] %vm2337, %v2167
      %2425 = vst.msk [vmem:[%s223 + $0x15c] sm:$0xf] %vm2337, %v2168
      %2426 = vst.msk [vmem:[%s223 + $0x160] sm:$0xf] %vm2337, %v2169
      %2427 = vst.msk [vmem:[%s223 + $0x164] sm:$0xf] %vm2337, %v2170
      %2428 = vst.msk [vmem:[%s223 + $0x168] sm:$0xf] %vm2337, %v2171
      %2429 = vst.msk [vmem:[%s223 + $0x16c] sm:$0xf] %vm2337, %v2172
      %2430 = vst.msk [vmem:[%s223 + $0x170] sm:$0xf] %vm2337, %v2173
      %2431 = vst.msk [vmem:[%s223 + $0x174] sm:$0xf] %vm2337, %v2174
      %2432 = vst.msk [vmem:[%s223 + $0x178] sm:$0xf] %vm2337, %v2175
      %2433 = vst.msk [vmem:[%s223 + $0x17c] sm:$0xf] %vm2337, %v2176
      %2434 = vst.msk [vmem:[%s223 + $0x180] sm:$0xf] %vm2337, %v2177
      %2435 = vst.msk [vmem:[%s223 + $0x184] sm:$0xf] %vm2337, %v2178
      %2436 = vst.msk [vmem:[%s223 + $0x188] sm:$0xf] %vm2337, %v2179
      %2437 = vst.msk [vmem:[%s223 + $0x18c] sm:$0xf] %vm2337, %v2180
      %2438 = vst.msk [vmem:[%s223 + $0x190] sm:$0xf] %vm2337, %v2181
      %2439 = vst.msk [vmem:[%s223 + $0x194] sm:$0xf] %vm2337, %v2182
      %2440 = vst.msk [vmem:[%s223 + $0x198] sm:$0xf] %vm2337, %v2183
      %2441 = vst.msk [vmem:[%s223 + $0x19c] sm:$0xf] %vm2337, %v2184
      %2442 = vst.msk [vmem:[%s223 + $0x1a0] sm:$0xf] %vm2337, %v2185
      %2443 = vst.msk [vmem:[%s223 + $0x1a4] sm:$0xf] %vm2337, %v2186
      %2444 = vst.msk [vmem:[%s223 + $0x1a8] sm:$0xf] %vm2337, %v2187
      %2445 = vst.msk [vmem:[%s223 + $0x1ac] sm:$0xf] %vm2337, %v2188
      %2446 = vst.msk [vmem:[%s223 + $0x1b0] sm:$0xf] %vm2337, %v2189
      %2447 = vst.msk [vmem:[%s223 + $0x1b4] sm:$0xf] %vm2337, %v2190
      %2448 = vst.msk [vmem:[%s223 + $0x1b8] sm:$0xf] %vm2337, %v2191
      %2449 = vst.msk [vmem:[%s223 + $0x1bc] sm:$0xf] %vm2337, %v2192
      %2450 = vst.msk [vmem:[%s223 + $0x1c0] sm:$0xf] %vm2337, %v2193
      %2451 = vst.msk [vmem:[%s223 + $0x1c4] sm:$0xf] %vm2337, %v2194
      %2452 = vst.msk [vmem:[%s223 + $0x1c8] sm:$0xf] %vm2337, %v2195
      %2453 = vst.msk [vmem:[%s223 + $0x1cc] sm:$0xf] %vm2337, %v2196
      %2454 = vst.msk [vmem:[%s223 + $0x1d0] sm:$0xf] %vm2337, %v2197
      %2455 = vst.msk [vmem:[%s223 + $0x1d4] sm:$0xf] %vm2337, %v2198
      %2456 = vst.msk [vmem:[%s223 + $0x1d8] sm:$0xf] %vm2337, %v2199
      %2457 = vst.msk [vmem:[%s223 + $0x1dc] sm:$0xf] %vm2337, %v2200
      %2458 = vst.msk [vmem:[%s223 + $0x1e0] sm:$0xf] %vm2337, %v2201
      %2459 = vst.msk [vmem:[%s223 + $0x1e4] sm:$0xf] %vm2337, %v2202
      %2460 = vst.msk [vmem:[%s223 + $0x1e8] sm:$0xf] %vm2337, %v2203
      %2461 = vst.msk [vmem:[%s223 + $0x1ec] sm:$0xf] %vm2337, %v2204
      %2462 = vst.msk [vmem:[%s223 + $0x1f0] sm:$0xf] %vm2337, %v2205
      %2463 = vst.msk [vmem:[%s223 + $0x1f4] sm:$0xf] %vm2337, %v2206
      %2464 = vst.msk [vmem:[%s223 + $0x1f8] sm:$0xf] %vm2337, %v2207
      %2465 = vst.msk [vmem:[%s223 + $0x1fc] sm:$0xf] %vm2337, %v2208
      %s2466 = smul.u32 128, %s18
      %p2467 = scmp.lt.s32.totalorder %s2466, 255
      %s2468 = scalar_select %p2467, %s2466, 255
      %p2469 = scmp.lt.s32.totalorder %s19, 0
      %s2470 = scalar_select %p2469, %s19, 0
      %s2471 = sadd.s32 %s2470, %s2468
      %s2472 = smul.addr %s2471, 4
      %s2473 = scalar_lea.vmem %s3, %s2472
      // Predicated region
      $region33: #{discriminator_forward.7} parent=31 // pred_check
        %p2474 = pneg %p124
      $region34: #{discriminator_forward.7} parent=31 // pred_check_branch
        %2476 = sbr.rel (%p2474) target = $region36
      $region35: #{discriminator_forward.7} parent=31 // pred_region
        %s2477 = smul.u32 128, %s18
      $region36: #{discriminator_forward.7} parent=31 // pred_fallthru
        _
    $region32: #{discriminator_forward.7} parent=5 // pred_fallthru
      _
    %p2478 = scmp.le.s32.totalorder 2, %s9
    // Predicated region
    $region37: #{discriminator_forward.7} parent=5 // pred_check
      %p2479 = pneg %p2478
    $region38: #{discriminator_forward.7} parent=5 // pred_check_branch
      %2481 = sbr.rel (%p2479) target = $region40
    $region39: #{discriminator_forward.7} parent=5 // pred_region
      %s2482 = ssub.s32 %s9, 2
      // Predicated region
      $region41: #{discriminator_forward.7} parent=39 // pred_check
        %p2483 = pneg %p130
      $region42: #{discriminator_forward.7} parent=39 // pred_check_branch
        %2485 = sbr.rel (%p2483) target = $region44
      $region43: #{discriminator_forward.7} parent=39 // pred_region
        %s2486 = smul.u32 128, %s20
        %p2487 = scmp.lt.s32.totalorder %s2486, 255
        %s2488 = scalar_select %p2487, %s2486, 255
        %p2489 = scmp.lt.s32.totalorder %s21, 0
        %s2490 = scalar_select %p2489, %s21, 0
        %s2491 = sadd.s32 %s2490, %s2488
        %s2492 = smul.addr %s2491, 4
        %s2493 = scalar_lea.vmem %s3, %s2492
      $region44: #{discriminator_forward.7} parent=39 // pred_fallthru
        _
    $region40: #{discriminator_forward.7} parent=5 // pred_fallthru
      _
  $region6: #{discriminator_forward.7} parent=0 // loop_footer
    %s13 = sadd.s32 1, %s9
  $region7: #{discriminator_forward.7} parent=0 // loop_footer_branch
    %8 = sbr.rel target = $region3
  $region8: #{discriminator_forward.7} parent=0 // loop_exit
    _

// kernel: discriminator_forward.8
$region0: #{discriminator_forward.8}
  #allocation0 [shape = 'u32[]', space=smem, size = 0x4, offset = 0x4, fixed_abs, tag = 'smem constant byte address 0x4 - core index']
  #allocation1 [shape = 'u32[144,128]{1,0:T(1,128)}', space=vmem, size = 0x12000, scoped, tag = 'internal scratch']
  %s0 = inlined_call_operand.vmem [shape: bf16[512,576], index: 0, kind: input, shape index: {}]
  %s1 = inlined_call_operand.vmem [shape: bf16[576,128], index: 1, kind: input, shape index: {}]
  %s2 = inlined_call_operand.vmem [shape: f32[1,128], index: 2, kind: input, shape index: {}]
  %s3 = inlined_call_operand.vmem [shape: bf16[512,128], index: 3, kind: output, shape index: {}]
  %s4 = sld [smem:[#allocation0]]
  $region22: #{discriminator_forward.8} parent=0
    _
  %s6 = ssub.s32 1, %s4
  %s7 = scalar_select 0, %s6, %s4
  // Predicated region
  $region2: #{discriminator_forward.8} parent=0 // pred_check
    _
  $region3: #{discriminator_forward.8} parent=0 // pred_check_branch
    %9 = sbr.rel (0) target = $region5
  $region4: #{discriminator_forward.8} parent=0 // pred_region
    _
  $region5: #{discriminator_forward.8} parent=0 // pred_fallthru
    _
  // Predicated region
  $region6: #{discriminator_forward.8} parent=0 // pred_check
    _
  $region7: #{discriminator_forward.8} parent=0 // pred_check_branch
    %11 = sbr.rel (0) target = $region9
  $region8: #{discriminator_forward.8} parent=0 // pred_region
    _
  $region9: #{discriminator_forward.8} parent=0 // pred_fallthru
    _
  // Predicated region
  $region10: #{discriminator_forward.8} parent=0 // pred_check
    _
  $region11: #{discriminator_forward.8} parent=0 // pred_check_branch
    %13 = sbr.rel (0) target = $region13
  $region12: #{discriminator_forward.8} parent=0 // pred_region
    _
  $region13: #{discriminator_forward.8} parent=0 // pred_fallthru
    _
  %v15 = vld [vmem:[%s0] sm:$0xff]
  %v16 = vld [vmem:[%s0 + $0x8] sm:$0xff]
  %v17 = vld [vmem:[%s0 + $0x10] sm:$0xf]
  %v18 = vld [vmem:[%s0 + $0x14] sm:$0xff]
  %v19 = vld [vmem:[%s0 + $0x1c] sm:$0xff]
  %v20 = vld [vmem:[%s0 + $0x24] sm:$0xf]
  %v21 = vld [vmem:[%s0 + $0x28] sm:$0xff]
  %v22 = vld [vmem:[%s0 + $0x30] sm:$0xff]
  %v23 = vld [vmem:[%s0 + $0x38] sm:$0xf]
  %v24 = vld [vmem:[%s0 + $0x3c] sm:$0xff]
  %v25 = vld [vmem:[%s0 + $0x44] sm:$0xff]
  %v26 = vld [vmem:[%s0 + $0x4c] sm:$0xf]
  %v27 = vld [vmem:[%s0 + $0x50] sm:$0xff]
  %v28 = vld [vmem:[%s0 + $0x58] sm:$0xff]
  %v29 = vld [vmem:[%s0 + $0x60] sm:$0xf]
  %v30 = vld [vmem:[%s0 + $0x64] sm:$0xff]
  %v31 = vld [vmem:[%s0 + $0x6c] sm:$0xff]
  %v32 = vld [vmem:[%s0 + $0x74] sm:$0xf]
  %v33 = vld [vmem:[%s0 + $0x78] sm:$0xff]
  %v34 = vld [vmem:[%s0 + $0x80] sm:$0xff]
  %v35 = vld [vmem:[%s0 + $0x88] sm:$0xf]
  %v36 = vld [vmem:[%s0 + $0x8c] sm:$0xff]
  %v37 = vld [vmem:[%s0 + $0x94] sm:$0xff]
  %v38 = vld [vmem:[%s0 + $0x9c] sm:$0xf]
  %v39 = vld [vmem:[%s0 + $0xa0] sm:$0xff]
  %v40 = vld [vmem:[%s0 + $0xa8] sm:$0xff]
  %v41 = vld [vmem:[%s0 + $0xb0] sm:$0xf]
  %v42 = vld [vmem:[%s0 + $0xb4] sm:$0xff]
  %v43 = vld [vmem:[%s0 + $0xbc] sm:$0xff]
  %v44 = vld [vmem:[%s0 + $0xc4] sm:$0xf]
  %v45 = vld [vmem:[%s0 + $0xc8] sm:$0xff]
  %v46 = vld [vmem:[%s0 + $0xd0] sm:$0xff]
  %v47 = vld [vmem:[%s0 + $0xd8] sm:$0xf]
  %v48 = vld [vmem:[%s0 + $0xdc] sm:$0xff]
  %v49 = vld [vmem:[%s0 + $0xe4] sm:$0xff]
  %v50 = vld [vmem:[%s0 + $0xec] sm:$0xf]
  %v51 = vld [vmem:[%s0 + $0xf0] sm:$0xff]
  %v52 = vld [vmem:[%s0 + $0xf8] sm:$0xff]
  %v53 = vld [vmem:[%s0 + $0x100] sm:$0xf]
  %v54 = vld [vmem:[%s0 + $0x104] sm:$0xff]
  %v55 = vld [vmem:[%s0 + $0x10c] sm:$0xff]
  %v56 = vld [vmem:[%s0 + $0x114] sm:$0xf]
  %v57 = vld [vmem:[%s0 + $0x118] sm:$0xff]
  %v58 = vld [vmem:[%s0 + $0x120] sm:$0xff]
  %v59 = vld [vmem:[%s0 + $0x128] sm:$0xf]
  %v60 = vld [vmem:[%s0 + $0x12c] sm:$0xff]
  %v61 = vld [vmem:[%s0 + $0x134] sm:$0xff]
  %v62 = vld [vmem:[%s0 + $0x13c] sm:$0xf]
  %v63 = vld [vmem:[%s0 + $0x140] sm:$0xff]
  %v64 = vld [vmem:[%s0 + $0x148] sm:$0xff]
  %v65 = vld [vmem:[%s0 + $0x150] sm:$0xf]
  %v66 = vld [vmem:[%s0 + $0x154] sm:$0xff]
  %v67 = vld [vmem:[%s0 + $0x15c] sm:$0xff]
  %v68 = vld [vmem:[%s0 + $0x164] sm:$0xf]
  %v69 = vld [vmem:[%s0 + $0x168] sm:$0xff]
  %v70 = vld [vmem:[%s0 + $0x170] sm:$0xff]
  %v71 = vld [vmem:[%s0 + $0x178] sm:$0xf]
  %v72 = vld [vmem:[%s0 + $0x17c] sm:$0xff]
  %v73 = vld [vmem:[%s0 + $0x184] sm:$0xff]
  %v74 = vld [vmem:[%s0 + $0x18c] sm:$0xf]
  %v75 = vld [vmem:[%s0 + $0x190] sm:$0xff]
  %v76 = vld [vmem:[%s0 + $0x198] sm:$0xff]
  %v77 = vld [vmem:[%s0 + $0x1a0] sm:$0xf]
  %v78 = vld [vmem:[%s0 + $0x1a4] sm:$0xff]
  %v79 = vld [vmem:[%s0 + $0x1ac] sm:$0xff]
  %v80 = vld [vmem:[%s0 + $0x1b4] sm:$0xf]
  %v81 = vld [vmem:[%s0 + $0x1b8] sm:$0xff]
  %v82 = vld [vmem:[%s0 + $0x1c0] sm:$0xff]
  %v83 = vld [vmem:[%s0 + $0x1c8] sm:$0xf]
  %v84 = vld [vmem:[%s0 + $0x1cc] sm:$0xff]
  %v85 = vld [vmem:[%s0 + $0x1d4] sm:$0xff]
  %v86 = vld [vmem:[%s0 + $0x1dc] sm:$0xf]
  %v87 = vld [vmem:[%s0 + $0x1e0] sm:$0xff]
  %v88 = vld [vmem:[%s0 + $0x1e8] sm:$0xff]
  %v89 = vld [vmem:[%s0 + $0x1f0] sm:$0xf]
  %v90 = vld [vmem:[%s0 + $0x1f4] sm:$0xff]
  %v91 = vld [vmem:[%s0 + $0x1fc] sm:$0xff]
  %v92 = vld [vmem:[%s0 + $0x204] sm:$0xf]
  %v93 = vld [vmem:[%s0 + $0x208] sm:$0xff]
  %v94 = vld [vmem:[%s0 + $0x210] sm:$0xff]
  %v95 = vld [vmem:[%s0 + $0x218] sm:$0xf]
  %v96 = vld [vmem:[%s0 + $0x21c] sm:$0xff]
  %v97 = vld [vmem:[%s0 + $0x224] sm:$0xff]
  %v98 = vld [vmem:[%s0 + $0x22c] sm:$0xf]
  %v99 = vld [vmem:[%s0 + $0x230] sm:$0xff]
  %v100 = vld [vmem:[%s0 + $0x238] sm:$0xff]
  %v101 = vld [vmem:[%s0 + $0x240] sm:$0xf]
  %v102 = vld [vmem:[%s0 + $0x244] sm:$0xff]
  %v103 = vld [vmem:[%s0 + $0x24c] sm:$0xff]
  %v104 = vld [vmem:[%s0 + $0x254] sm:$0xf]
  %v105 = vld [vmem:[%s0 + $0x258] sm:$0xff]
  %v106 = vld [vmem:[%s0 + $0x260] sm:$0xff]
  %v107 = vld [vmem:[%s0 + $0x268] sm:$0xf]
  %v108 = vld [vmem:[%s0 + $0x26c] sm:$0xff]
  %v109 = vld [vmem:[%s0 + $0x274] sm:$0xff]
  %v110 = vld [vmem:[%s0 + $0x27c] sm:$0xf]
  %v111 = vld [vmem:[%s0 + $0x280] sm:$0xff]
  %v112 = vld [vmem:[%s0 + $0x288] sm:$0xff]
  %v113 = vld [vmem:[%s0 + $0x290] sm:$0xf]
  %v114 = vld [vmem:[%s0 + $0x294] sm:$0xff]
  %v115 = vld [vmem:[%s0 + $0x29c] sm:$0xff]
  %v116 = vld [vmem:[%s0 + $0x2a4] sm:$0xf]
  %v117 = vld [vmem:[%s0 + $0x2a8] sm:$0xff]
  %v118 = vld [vmem:[%s0 + $0x2b0] sm:$0xff]
  %v119 = vld [vmem:[%s0 + $0x2b8] sm:$0xf]
  %v120 = vld [vmem:[%s0 + $0x2bc] sm:$0xff]
  %v121 = vld [vmem:[%s0 + $0x2c4] sm:$0xff]
  %v122 = vld [vmem:[%s0 + $0x2cc] sm:$0xf]
  %v123 = vld [vmem:[%s0 + $0x2d0] sm:$0xff]
  %v124 = vld [vmem:[%s0 + $0x2d8] sm:$0xff]
  %v125 = vld [vmem:[%s0 + $0x2e0] sm:$0xf]
  %v126 = vld [vmem:[%s0 + $0x2e4] sm:$0xff]
  %v127 = vld [vmem:[%s0 + $0x2ec] sm:$0xff]
  %v128 = vld [vmem:[%s0 + $0x2f4] sm:$0xf]
  %v129 = vld [vmem:[%s0 + $0x2f8] sm:$0xff]
  %v130 = vld [vmem:[%s0 + $0x300] sm:$0xff]
  %v131 = vld [vmem:[%s0 + $0x308] sm:$0xf]
  %v132 = vld [vmem:[%s0 + $0x30c] sm:$0xff]
  %v133 = vld [vmem:[%s0 + $0x314] sm:$0xff]
  %v134 = vld [vmem:[%s0 + $0x31c] sm:$0xf]
  %v135 = vld [vmem:[%s0 + $0x320] sm:$0xff]
  %v136 = vld [vmem:[%s0 + $0x328] sm:$0xff]
  %v137 = vld [vmem:[%s0 + $0x330] sm:$0xf]
  %v138 = vld [vmem:[%s0 + $0x334] sm:$0xff]
  %v139 = vld [vmem:[%s0 + $0x33c] sm:$0xff]
  %v140 = vld [vmem:[%s0 + $0x344] sm:$0xf]
  %v141 = vld [vmem:[%s0 + $0x348] sm:$0xff]
  %v142 = vld [vmem:[%s0 + $0x350] sm:$0xff]
  %v143 = vld [vmem:[%s0 + $0x358] sm:$0xf]
  %v144 = vld [vmem:[%s0 + $0x35c] sm:$0xff]
  %v145 = vld [vmem:[%s0 + $0x364] sm:$0xff]
  %v146 = vld [vmem:[%s0 + $0x36c] sm:$0xf]
  %v147 = vld [vmem:[%s0 + $0x370] sm:$0xff]
  %v148 = vld [vmem:[%s0 + $0x378] sm:$0xff]
  %v149 = vld [vmem:[%s0 + $0x380] sm:$0xf]
  %v150 = vld [vmem:[%s0 + $0x384] sm:$0xff]
  %v151 = vld [vmem:[%s0 + $0x38c] sm:$0xff]
  %v152 = vld [vmem:[%s0 + $0x394] sm:$0xf]
  %v153 = vld [vmem:[%s0 + $0x398] sm:$0xff]
  %v154 = vld [vmem:[%s0 + $0x3a0] sm:$0xff]
  %v155 = vld [vmem:[%s0 + $0x3a8] sm:$0xf]
  %v156 = vld [vmem:[%s0 + $0x3ac] sm:$0xff]
  %v157 = vld [vmem:[%s0 + $0x3b4] sm:$0xff]
  %v158 = vld [vmem:[%s0 + $0x3bc] sm:$0xf]
  %v159 = vld [vmem:[%s0 + $0x3c0] sm:$0xff]
  %v160 = vld [vmem:[%s0 + $0x3c8] sm:$0xff]
  %v161 = vld [vmem:[%s0 + $0x3d0] sm:$0xf]
  %v162 = vld [vmem:[%s0 + $0x3d4] sm:$0xff]
  %v163 = vld [vmem:[%s0 + $0x3dc] sm:$0xff]
  %v164 = vld [vmem:[%s0 + $0x3e4] sm:$0xf]
  %v165 = vld [vmem:[%s0 + $0x3e8] sm:$0xff]
  %v166 = vld [vmem:[%s0 + $0x3f0] sm:$0xff]
  %v167 = vld [vmem:[%s0 + $0x3f8] sm:$0xf]
  %v168 = vld [vmem:[%s0 + $0x3fc] sm:$0xff]
  %v169 = vld [vmem:[%s0 + $0x404] sm:$0xff]
  %v170 = vld [vmem:[%s0 + $0x40c] sm:$0xf]
  %v171 = vld [vmem:[%s0 + $0x410] sm:$0xff]
  %v172 = vld [vmem:[%s0 + $0x418] sm:$0xff]
  %v173 = vld [vmem:[%s0 + $0x420] sm:$0xf]
  %v174 = vld [vmem:[%s0 + $0x424] sm:$0xff]
  %v175 = vld [vmem:[%s0 + $0x42c] sm:$0xff]
  %v176 = vld [vmem:[%s0 + $0x434] sm:$0xf]
  %v177 = vld [vmem:[%s0 + $0x438] sm:$0xff]
  %v178 = vld [vmem:[%s0 + $0x440] sm:$0xff]
  %v179 = vld [vmem:[%s0 + $0x448] sm:$0xf]
  %v180 = vld [vmem:[%s0 + $0x44c] sm:$0xff]
  %v181 = vld [vmem:[%s0 + $0x454] sm:$0xff]
  %v182 = vld [vmem:[%s0 + $0x45c] sm:$0xf]
  %v183 = vld [vmem:[%s0 + $0x460] sm:$0xff]
  %v184 = vld [vmem:[%s0 + $0x468] sm:$0xff]
  %v185 = vld [vmem:[%s0 + $0x470] sm:$0xf]
  %v186 = vld [vmem:[%s0 + $0x474] sm:$0xff]
  %v187 = vld [vmem:[%s0 + $0x47c] sm:$0xff]
  %v188 = vld [vmem:[%s0 + $0x484] sm:$0xf]
  %v189 = vld [vmem:[%s0 + $0x488] sm:$0xff]
  %v190 = vld [vmem:[%s0 + $0x490] sm:$0xff]
  %v191 = vld [vmem:[%s0 + $0x498] sm:$0xf]
  %v192 = vld [vmem:[%s0 + $0x49c] sm:$0xff]
  %v193 = vld [vmem:[%s0 + $0x4a4] sm:$0xff]
  %v194 = vld [vmem:[%s0 + $0x4ac] sm:$0xf]
  %v195 = vld [vmem:[%s0 + $0x4b0] sm:$0xff]
  %v196 = vld [vmem:[%s0 + $0x4b8] sm:$0xff]
  %v197 = vld [vmem:[%s0 + $0x4c0] sm:$0xf]
  %v198 = vld [vmem:[%s0 + $0x4c4] sm:$0xff]
  %v199 = vld [vmem:[%s0 + $0x4cc] sm:$0xff]
  %v200 = vld [vmem:[%s0 + $0x4d4] sm:$0xf]
  %v201 = vld [vmem:[%s0 + $0x4d8] sm:$0xff]
  %v202 = vld [vmem:[%s0 + $0x4e0] sm:$0xff]
  %v203 = vld [vmem:[%s0 + $0x4e8] sm:$0xf]
  %v204 = vld [vmem:[%s0 + $0x4ec] sm:$0xff]
  %v205 = vld [vmem:[%s0 + $0x4f4] sm:$0xff]
  %v206 = vld [vmem:[%s0 + $0x4fc] sm:$0xf]
  %v207 = vld [vmem:[%s1] sm:$0xf]
  %v208 = vld [vmem:[%s1 + $0x4] sm:$0xf]
  %v209 = vld [vmem:[%s1 + $0x8] sm:$0xf]
  %v210 = vld [vmem:[%s1 + $0xc] sm:$0xf]
  %v211 = vld [vmem:[%s1 + $0x10] sm:$0xf]
  %v212 = vld [vmem:[%s1 + $0x14] sm:$0xf]
  %v213 = vld [vmem:[%s1 + $0x18] sm:$0xf]
  %v214 = vld [vmem:[%s1 + $0x1c] sm:$0xf]
  %v215 = vld [vmem:[%s1 + $0x20] sm:$0xf]
  %v216 = vld [vmem:[%s1 + $0x24] sm:$0xf]
  %v217 = vld [vmem:[%s1 + $0x28] sm:$0xf]
  %v218 = vld [vmem:[%s1 + $0x2c] sm:$0xf]
  %v219 = vld [vmem:[%s1 + $0x30] sm:$0xf]
  %v220 = vld [vmem:[%s1 + $0x34] sm:$0xf]
  %v221 = vld [vmem:[%s1 + $0x38] sm:$0xf]
  %v222 = vld [vmem:[%s1 + $0x3c] sm:$0xf]
  %v223 = vld [vmem:[%s1 + $0x40] sm:$0xf]
  %v224 = vld [vmem:[%s1 + $0x44] sm:$0xf]
  %v225 = vld [vmem:[%s1 + $0x48] sm:$0xf]
  %v226 = vld [vmem:[%s1 + $0x4c] sm:$0xf]
  %v227 = vld [vmem:[%s1 + $0x50] sm:$0xf]
  %v228 = vld [vmem:[%s1 + $0x54] sm:$0xf]
  %v229 = vld [vmem:[%s1 + $0x58] sm:$0xf]
  %v230 = vld [vmem:[%s1 + $0x5c] sm:$0xf]
  %v231 = vld [vmem:[%s1 + $0x60] sm:$0xf]
  %v232 = vld [vmem:[%s1 + $0x64] sm:$0xf]
  %v233 = vld [vmem:[%s1 + $0x68] sm:$0xf]
  %v234 = vld [vmem:[%s1 + $0x6c] sm:$0xf]
  %v235 = vld [vmem:[%s1 + $0x70] sm:$0xf]
  %v236 = vld [vmem:[%s1 + $0x74] sm:$0xf]
  %v237 = vld [vmem:[%s1 + $0x78] sm:$0xf]
  %v238 = vld [vmem:[%s1 + $0x7c] sm:$0xf]
  %v239 = vld [vmem:[%s1 + $0x80] sm:$0xf]
  %v240 = vld [vmem:[%s1 + $0x84] sm:$0xf]
  %v241 = vld [vmem:[%s1 + $0x88] sm:$0xf]
  %v242 = vld [vmem:[%s1 + $0x8c] sm:$0xf]
  %v243 = vld [vmem:[%s1 + $0x90] sm:$0xf]
  %v244 = vld [vmem:[%s1 + $0x94] sm:$0xf]
  %v245 = vld [vmem:[%s1 + $0x98] sm:$0xf]
  %v246 = vld [vmem:[%s1 + $0x9c] sm:$0xf]
  %v247 = vld [vmem:[%s1 + $0xa0] sm:$0xf]
  %v248 = vld [vmem:[%s1 + $0xa4] sm:$0xf]
  %v249 = vld [vmem:[%s1 + $0xa8] sm:$0xf]
  %v250 = vld [vmem:[%s1 + $0xac] sm:$0xf]
  %v251 = vld [vmem:[%s1 + $0xb0] sm:$0xf]
  %v252 = vld [vmem:[%s1 + $0xb4] sm:$0xf]
  %v253 = vld [vmem:[%s1 + $0xb8] sm:$0xf]
  %v254 = vld [vmem:[%s1 + $0xbc] sm:$0xf]
  %v255 = vld [vmem:[%s1 + $0xc0] sm:$0xf]
  %v256 = vld [vmem:[%s1 + $0xc4] sm:$0xf]
  %v257 = vld [vmem:[%s1 + $0xc8] sm:$0xf]
  %v258 = vld [vmem:[%s1 + $0xcc] sm:$0xf]
  %v259 = vld [vmem:[%s1 + $0xd0] sm:$0xf]
  %v260 = vld [vmem:[%s1 + $0xd4] sm:$0xf]
  %v261 = vld [vmem:[%s1 + $0xd8] sm:$0xf]
  %v262 = vld [vmem:[%s1 + $0xdc] sm:$0xf]
  %v263 = vld [vmem:[%s1 + $0xe0] sm:$0xf]
  %v264 = vld [vmem:[%s1 + $0xe4] sm:$0xf]
  %v265 = vld [vmem:[%s1 + $0xe8] sm:$0xf]
  %v266 = vld [vmem:[%s1 + $0xec] sm:$0xf]
  %v267 = vld [vmem:[%s1 + $0xf0] sm:$0xf]
  %v268 = vld [vmem:[%s1 + $0xf4] sm:$0xf]
  %v269 = vld [vmem:[%s1 + $0xf8] sm:$0xf]
  %v270 = vld [vmem:[%s1 + $0xfc] sm:$0xf]
  %v271 = vld [vmem:[%s1 + $0x100] sm:$0xf]
  %v272 = vld [vmem:[%s1 + $0x104] sm:$0xf]
  %v273 = vld [vmem:[%s1 + $0x108] sm:$0xf]
  %v274 = vld [vmem:[%s1 + $0x10c] sm:$0xf]
  %v275 = vld [vmem:[%s1 + $0x110] sm:$0xf]
  %v276 = vld [vmem:[%s1 + $0x114] sm:$0xf]
  %v277 = vld [vmem:[%s1 + $0x118] sm:$0xf]
  %v278 = vld [vmem:[%s1 + $0x11c] sm:$0xf]
  %v279 = vld [vmem:[%s2] sm:$0x1]
  %v281 = vlaneseq
  %v282 = vshrl.u32 %v281, 7
  %v283 = vsub.s32 0, %v282
  %v284 = vrot.slane %v279, %v283
  %v478 = vunpack.c.l.b16 %v15
  %v479 = vunpack.c.h.b16 %v15
  %v480 = vunpack.c.l.b16 %v16
  %v481 = vunpack.c.h.b16 %v16
  %v482 = vunpack.c.l.b16 %v17
  %v483 = vunpack.c.l.b16 %v18
  %v484 = vunpack.c.h.b16 %v18
  %v485 = vunpack.c.l.b16 %v19
  %v486 = vunpack.c.h.b16 %v19
  %v487 = vunpack.c.l.b16 %v20
  %v488 = vunpack.c.l.b16 %v21
  %v489 = vunpack.c.h.b16 %v21
  %v490 = vunpack.c.l.b16 %v22
  %v491 = vunpack.c.h.b16 %v22
  %v492 = vunpack.c.l.b16 %v23
  %v493 = vunpack.c.l.b16 %v24
  %v494 = vunpack.c.h.b16 %v24
  %v495 = vunpack.c.l.b16 %v25
  %v496 = vunpack.c.h.b16 %v25
  %v497 = vunpack.c.l.b16 %v26
  %v498 = vunpack.c.l.b16 %v27
  %v499 = vunpack.c.h.b16 %v27
  %v500 = vunpack.c.l.b16 %v28
  %v501 = vunpack.c.h.b16 %v28
  %v502 = vunpack.c.l.b16 %v29
  %v503 = vunpack.c.l.b16 %v30
  %v504 = vunpack.c.h.b16 %v30
  %v505 = vunpack.c.l.b16 %v31
  %v506 = vunpack.c.h.b16 %v31
  %v507 = vunpack.c.l.b16 %v32
  %v508 = vunpack.c.l.b16 %v33
  %v509 = vunpack.c.h.b16 %v33
  %v510 = vunpack.c.l.b16 %v34
  %v511 = vunpack.c.h.b16 %v34
  %v512 = vunpack.c.l.b16 %v35
  %v513 = vunpack.c.l.b16 %v36
  %v514 = vunpack.c.h.b16 %v36
  %v515 = vunpack.c.l.b16 %v37
  %v516 = vunpack.c.h.b16 %v37
  %v517 = vunpack.c.l.b16 %v38
  %v518 = vunpack.c.l.b16 %v39
  %v519 = vunpack.c.h.b16 %v39
  %v520 = vunpack.c.l.b16 %v40
  %v521 = vunpack.c.h.b16 %v40
  %v522 = vunpack.c.l.b16 %v41
  %v523 = vunpack.c.l.b16 %v42
  %v524 = vunpack.c.h.b16 %v42
  %v525 = vunpack.c.l.b16 %v43
  %v526 = vunpack.c.h.b16 %v43
  %v527 = vunpack.c.l.b16 %v44
  %v528 = vunpack.c.l.b16 %v45
  %v529 = vunpack.c.h.b16 %v45
  %v530 = vunpack.c.l.b16 %v46
  %v531 = vunpack.c.h.b16 %v46
  %v532 = vunpack.c.l.b16 %v47
  %v533 = vunpack.c.l.b16 %v48
  %v534 = vunpack.c.h.b16 %v48
  %v535 = vunpack.c.l.b16 %v49
  %v536 = vunpack.c.h.b16 %v49
  %v537 = vunpack.c.l.b16 %v50
  %v538 = vunpack.c.l.b16 %v51
  %v539 = vunpack.c.h.b16 %v51
  %v540 = vunpack.c.l.b16 %v52
  %v541 = vunpack.c.h.b16 %v52
  %v542 = vunpack.c.l.b16 %v53
  %v543 = vunpack.c.l.b16 %v54
  %v544 = vunpack.c.h.b16 %v54
  %v545 = vunpack.c.l.b16 %v55
  %v546 = vunpack.c.h.b16 %v55
  %v547 = vunpack.c.l.b16 %v56
  %v548 = vunpack.c.l.b16 %v57
  %v549 = vunpack.c.h.b16 %v57
  %v550 = vunpack.c.l.b16 %v58
  %v551 = vunpack.c.h.b16 %v58
  %v552 = vunpack.c.l.b16 %v59
  %v553 = vunpack.c.l.b16 %v60
  %v554 = vunpack.c.h.b16 %v60
  %v555 = vunpack.c.l.b16 %v61
  %v556 = vunpack.c.h.b16 %v61
  %v557 = vunpack.c.l.b16 %v62
  %v558 = vunpack.c.l.b16 %v63
  %v559 = vunpack.c.h.b16 %v63
  %v560 = vunpack.c.l.b16 %v64
  %v561 = vunpack.c.h.b16 %v64
  %v562 = vunpack.c.l.b16 %v65
  %v563 = vunpack.c.l.b16 %v66
  %v564 = vunpack.c.h.b16 %v66
  %v565 = vunpack.c.l.b16 %v67
  %v566 = vunpack.c.h.b16 %v67
  %v567 = vunpack.c.l.b16 %v68
  %v568 = vunpack.c.l.b16 %v69
  %v569 = vunpack.c.h.b16 %v69
  %v570 = vunpack.c.l.b16 %v70
  %v571 = vunpack.c.h.b16 %v70
  %v572 = vunpack.c.l.b16 %v71
  %v573 = vunpack.c.l.b16 %v72
  %v574 = vunpack.c.h.b16 %v72
  %v575 = vunpack.c.l.b16 %v73
  %v576 = vunpack.c.h.b16 %v73
  %v577 = vunpack.c.l.b16 %v74
  %v578 = vunpack.c.l.b16 %v75
  %v579 = vunpack.c.h.b16 %v75
  %v580 = vunpack.c.l.b16 %v76
  %v581 = vunpack.c.h.b16 %v76
  %v582 = vunpack.c.l.b16 %v77
  %v583 = vunpack.c.l.b16 %v78
  %v584 = vunpack.c.h.b16 %v78
  %v585 = vunpack.c.l.b16 %v79
  %v586 = vunpack.c.h.b16 %v79
  %v587 = vunpack.c.l.b16 %v80
  %v588 = vunpack.c.l.b16 %v81
  %v589 = vunpack.c.h.b16 %v81
  %v590 = vunpack.c.l.b16 %v82
  %v591 = vunpack.c.h.b16 %v82
  %v592 = vunpack.c.l.b16 %v83
  %v593 = vunpack.c.l.b16 %v84
  %v594 = vunpack.c.h.b16 %v84
  %v595 = vunpack.c.l.b16 %v85
  %v596 = vunpack.c.h.b16 %v85
  %v597 = vunpack.c.l.b16 %v86
  %v598 = vunpack.c.l.b16 %v87
  %v599 = vunpack.c.h.b16 %v87
  %v600 = vunpack.c.l.b16 %v88
  %v601 = vunpack.c.h.b16 %v88
  %v602 = vunpack.c.l.b16 %v89
  %v603 = vunpack.c.l.b16 %v90
  %v604 = vunpack.c.h.b16 %v90
  %v605 = vunpack.c.l.b16 %v91
  %v606 = vunpack.c.h.b16 %v91
  %v607 = vunpack.c.l.b16 %v92
  %v608 = vunpack.c.l.b16 %v93
  %v609 = vunpack.c.h.b16 %v93
  %v610 = vunpack.c.l.b16 %v94
  %v611 = vunpack.c.h.b16 %v94
  %v612 = vunpack.c.l.b16 %v95
  %v613 = vunpack.c.l.b16 %v96
  %v614 = vunpack.c.h.b16 %v96
  %v615 = vunpack.c.l.b16 %v97
  %v616 = vunpack.c.h.b16 %v97
  %v617 = vunpack.c.l.b16 %v98
  %v618 = vunpack.c.l.b16 %v99
  %v619 = vunpack.c.h.b16 %v99
  %v620 = vunpack.c.l.b16 %v100
  %v621 = vunpack.c.h.b16 %v100
  %v622 = vunpack.c.l.b16 %v101
  %v623 = vunpack.c.l.b16 %v102
  %v624 = vunpack.c.h.b16 %v102
  %v625 = vunpack.c.l.b16 %v103
  %v626 = vunpack.c.h.b16 %v103
  %v627 = vunpack.c.l.b16 %v104
  %v628 = vunpack.c.l.b16 %v105
  %v629 = vunpack.c.h.b16 %v105
  %v630 = vunpack.c.l.b16 %v106
  %v631 = vunpack.c.h.b16 %v106
  %v632 = vunpack.c.l.b16 %v107
  %v633 = vunpack.c.l.b16 %v108
  %v634 = vunpack.c.h.b16 %v108
  %v635 = vunpack.c.l.b16 %v109
  %v636 = vunpack.c.h.b16 %v109
  %v637 = vunpack.c.l.b16 %v110
  %v638 = vunpack.c.l.b16 %v111
  %v639 = vunpack.c.h.b16 %v111
  %v640 = vunpack.c.l.b16 %v112
  %v641 = vunpack.c.h.b16 %v112
  %v642 = vunpack.c.l.b16 %v113
  %v643 = vunpack.c.l.b16 %v114
  %v644 = vunpack.c.h.b16 %v114
  %v645 = vunpack.c.l.b16 %v115
  %v646 = vunpack.c.h.b16 %v115
  %v647 = vunpack.c.l.b16 %v116
  %v648 = vunpack.c.l.b16 %v117
  %v649 = vunpack.c.h.b16 %v117
  %v650 = vunpack.c.l.b16 %v118
  %v651 = vunpack.c.h.b16 %v118
  %v652 = vunpack.c.l.b16 %v119
  %v653 = vunpack.c.l.b16 %v120
  %v654 = vunpack.c.h.b16 %v120
  %v655 = vunpack.c.l.b16 %v121
  %v656 = vunpack.c.h.b16 %v121
  %v657 = vunpack.c.l.b16 %v122
  %v658 = vunpack.c.l.b16 %v123
  %v659 = vunpack.c.h.b16 %v123
  %v660 = vunpack.c.l.b16 %v124
  %v661 = vunpack.c.h.b16 %v124
  %v662 = vunpack.c.l.b16 %v125
  %v663 = vunpack.c.l.b16 %v126
  %v664 = vunpack.c.h.b16 %v126
  %v665 = vunpack.c.l.b16 %v127
  %v666 = vunpack.c.h.b16 %v127
  %v667 = vunpack.c.l.b16 %v128
  %v668 = vunpack.c.l.b16 %v129
  %v669 = vunpack.c.h.b16 %v129
  %v670 = vunpack.c.l.b16 %v130
  %v671 = vunpack.c.h.b16 %v130
  %v672 = vunpack.c.l.b16 %v131
  %v673 = vunpack.c.l.b16 %v132
  %v674 = vunpack.c.h.b16 %v132
  %v675 = vunpack.c.l.b16 %v133
  %v676 = vunpack.c.h.b16 %v133
  %v677 = vunpack.c.l.b16 %v134
  %v678 = vunpack.c.l.b16 %v135
  %v679 = vunpack.c.h.b16 %v135
  %v680 = vunpack.c.l.b16 %v136
  %v681 = vunpack.c.h.b16 %v136
  %v682 = vunpack.c.l.b16 %v137
  %v683 = vunpack.c.l.b16 %v138
  %v684 = vunpack.c.h.b16 %v138
  %v685 = vunpack.c.l.b16 %v139
  %v686 = vunpack.c.h.b16 %v139
  %v687 = vunpack.c.l.b16 %v140
  %v688 = vunpack.c.l.b16 %v141
  %v689 = vunpack.c.h.b16 %v141
  %v690 = vunpack.c.l.b16 %v142
  %v691 = vunpack.c.h.b16 %v142
  %v692 = vunpack.c.l.b16 %v143
  %v693 = vunpack.c.l.b16 %v144
  %v694 = vunpack.c.h.b16 %v144
  %v695 = vunpack.c.l.b16 %v145
  %v696 = vunpack.c.h.b16 %v145
  %v697 = vunpack.c.l.b16 %v146
  %v698 = vunpack.c.l.b16 %v147
  %v699 = vunpack.c.h.b16 %v147
  %v700 = vunpack.c.l.b16 %v148
  %v701 = vunpack.c.h.b16 %v148
  %v702 = vunpack.c.l.b16 %v149
  %v703 = vunpack.c.l.b16 %v150
  %v704 = vunpack.c.h.b16 %v150
  %v705 = vunpack.c.l.b16 %v151
  %v706 = vunpack.c.h.b16 %v151
  %v707 = vunpack.c.l.b16 %v152
  %v708 = vunpack.c.l.b16 %v153
  %v709 = vunpack.c.h.b16 %v153
  %v710 = vunpack.c.l.b16 %v154
  %v711 = vunpack.c.h.b16 %v154
  %v712 = vunpack.c.l.b16 %v155
  %v713 = vunpack.c.l.b16 %v156
  %v714 = vunpack.c.h.b16 %v156
  %v715 = vunpack.c.l.b16 %v157
  %v716 = vunpack.c.h.b16 %v157
  %v717 = vunpack.c.l.b16 %v158
  %v718 = vunpack.c.l.b16 %v159
  %v719 = vunpack.c.h.b16 %v159
  %v720 = vunpack.c.l.b16 %v160
  %v721 = vunpack.c.h.b16 %v160
  %v722 = vunpack.c.l.b16 %v161
  %v723 = vunpack.c.l.b16 %v162
  %v724 = vunpack.c.h.b16 %v162
  %v725 = vunpack.c.l.b16 %v163
  %v726 = vunpack.c.h.b16 %v163
  %v727 = vunpack.c.l.b16 %v164
  %v728 = vunpack.c.l.b16 %v165
  %v729 = vunpack.c.h.b16 %v165
  %v730 = vunpack.c.l.b16 %v166
  %v731 = vunpack.c.h.b16 %v166
  %v732 = vunpack.c.l.b16 %v167
  %v733 = vunpack.c.l.b16 %v168
  %v734 = vunpack.c.h.b16 %v168
  %v735 = vunpack.c.l.b16 %v169
  %v736 = vunpack.c.h.b16 %v169
  %v737 = vunpack.c.l.b16 %v170
  %v738 = vunpack.c.l.b16 %v171
  %v739 = vunpack.c.h.b16 %v171
  %v740 = vunpack.c.l.b16 %v172
  %v741 = vunpack.c.h.b16 %v172
  %v742 = vunpack.c.l.b16 %v173
  %v743 = vunpack.c.l.b16 %v174
  %v744 = vunpack.c.h.b16 %v174
  %v745 = vunpack.c.l.b16 %v175
  %v746 = vunpack.c.h.b16 %v175
  %v747 = vunpack.c.l.b16 %v176
  %v748 = vunpack.c.l.b16 %v177
  %v749 = vunpack.c.h.b16 %v177
  %v750 = vunpack.c.l.b16 %v178
  %v751 = vunpack.c.h.b16 %v178
  %v752 = vunpack.c.l.b16 %v179
  %v753 = vunpack.c.l.b16 %v180
  %v754 = vunpack.c.h.b16 %v180
  %v755 = vunpack.c.l.b16 %v181
  %v756 = vunpack.c.h.b16 %v181
  %v757 = vunpack.c.l.b16 %v182
  %v758 = vunpack.c.l.b16 %v183
  %v759 = vunpack.c.h.b16 %v183
  %v760 = vunpack.c.l.b16 %v184
  %v761 = vunpack.c.h.b16 %v184
  %v762 = vunpack.c.l.b16 %v185
  %v763 = vunpack.c.l.b16 %v186
  %v764 = vunpack.c.h.b16 %v186
  %v765 = vunpack.c.l.b16 %v187
  %v766 = vunpack.c.h.b16 %v187
  %v767 = vunpack.c.l.b16 %v188
  %v768 = vunpack.c.l.b16 %v189
  %v769 = vunpack.c.h.b16 %v189
  %v770 = vunpack.c.l.b16 %v190
  %v771 = vunpack.c.h.b16 %v190
  %v772 = vunpack.c.l.b16 %v191
  %v773 = vunpack.c.l.b16 %v192
  %v774 = vunpack.c.h.b16 %v192
  %v775 = vunpack.c.l.b16 %v193
  %v776 = vunpack.c.h.b16 %v193
  %v777 = vunpack.c.l.b16 %v194
  %v778 = vunpack.c.l.b16 %v195
  %v779 = vunpack.c.h.b16 %v195
  %v780 = vunpack.c.l.b16 %v196
  %v781 = vunpack.c.h.b16 %v196
  %v782 = vunpack.c.l.b16 %v197
  %v783 = vunpack.c.l.b16 %v198
  %v784 = vunpack.c.h.b16 %v198
  %v785 = vunpack.c.l.b16 %v199
  %v786 = vunpack.c.h.b16 %v199
  %v787 = vunpack.c.l.b16 %v200
  %v788 = vunpack.c.l.b16 %v201
  %v789 = vunpack.c.h.b16 %v201
  %v790 = vunpack.c.l.b16 %v202
  %v791 = vunpack.c.h.b16 %v202
  %v792 = vunpack.c.l.b16 %v203
  %v793 = vunpack.c.l.b16 %v204
  %v794 = vunpack.c.h.b16 %v204
  %v795 = vunpack.c.l.b16 %v205
  %v796 = vunpack.c.h.b16 %v205
  %v797 = vunpack.c.l.b16 %v206
  %v798 = vpack.c.b16 %v483, %v478
  %v799 = vpack.c.b16 %v484, %v479
  %v800 = vpack.c.b16 %v485, %v480
  %v801 = vpack.c.b16 %v486, %v481
  %v802 = vpack.c.b16 %v487, %v482
  %v803 = vpack.c.b16 %v493, %v488
  %v804 = vpack.c.b16 %v494, %v489
  %v805 = vpack.c.b16 %v495, %v490
  %v806 = vpack.c.b16 %v496, %v491
  %v807 = vpack.c.b16 %v497, %v492
  %v808 = vpack.c.b16 %v503, %v498
  %v809 = vpack.c.b16 %v504, %v499
  %v810 = vpack.c.b16 %v505, %v500
  %v811 = vpack.c.b16 %v506, %v501
  %v812 = vpack.c.b16 %v507, %v502
  %v813 = vpack.c.b16 %v513, %v508
  %v814 = vpack.c.b16 %v514, %v509
  %v815 = vpack.c.b16 %v515, %v510
  %v816 = vpack.c.b16 %v516, %v511
  %v817 = vpack.c.b16 %v517, %v512
  %v818 = vpack.c.b16 %v523, %v518
  %v819 = vpack.c.b16 %v524, %v519
  %v820 = vpack.c.b16 %v525, %v520
  %v821 = vpack.c.b16 %v526, %v521
  %v822 = vpack.c.b16 %v527, %v522
  %v823 = vpack.c.b16 %v533, %v528
  %v824 = vpack.c.b16 %v534, %v529
  %v825 = vpack.c.b16 %v535, %v530
  %v826 = vpack.c.b16 %v536, %v531
  %v827 = vpack.c.b16 %v537, %v532
  %v828 = vpack.c.b16 %v543, %v538
  %v829 = vpack.c.b16 %v544, %v539
  %v830 = vpack.c.b16 %v545, %v540
  %v831 = vpack.c.b16 %v546, %v541
  %v832 = vpack.c.b16 %v547, %v542
  %v833 = vpack.c.b16 %v553, %v548
  %v834 = vpack.c.b16 %v554, %v549
  %v835 = vpack.c.b16 %v555, %v550
  %v836 = vpack.c.b16 %v556, %v551
  %v837 = vpack.c.b16 %v557, %v552
  %v838 = vpack.c.b16 %v563, %v558
  %v839 = vpack.c.b16 %v564, %v559
  %v840 = vpack.c.b16 %v565, %v560
  %v841 = vpack.c.b16 %v566, %v561
  %v842 = vpack.c.b16 %v567, %v562
  %v843 = vpack.c.b16 %v573, %v568
  %v844 = vpack.c.b16 %v574, %v569
  %v845 = vpack.c.b16 %v575, %v570
  %v846 = vpack.c.b16 %v576, %v571
  %v847 = vpack.c.b16 %v577, %v572
  %v848 = vpack.c.b16 %v583, %v578
  %v849 = vpack.c.b16 %v584, %v579
  %v850 = vpack.c.b16 %v585, %v580
  %v851 = vpack.c.b16 %v586, %v581
  %v852 = vpack.c.b16 %v587, %v582
  %v853 = vpack.c.b16 %v593, %v588
  %v854 = vpack.c.b16 %v594, %v589
  %v855 = vpack.c.b16 %v595, %v590
  %v856 = vpack.c.b16 %v596, %v591
  %v857 = vpack.c.b16 %v597, %v592
  %v858 = vpack.c.b16 %v603, %v598
  %v859 = vpack.c.b16 %v604, %v599
  %v860 = vpack.c.b16 %v605, %v600
  %v861 = vpack.c.b16 %v606, %v601
  %v862 = vpack.c.b16 %v607, %v602
  %v863 = vpack.c.b16 %v613, %v608
  %v864 = vpack.c.b16 %v614, %v609
  %v865 = vpack.c.b16 %v615, %v610
  %v866 = vpack.c.b16 %v616, %v611
  %v867 = vpack.c.b16 %v617, %v612
  %v868 = vpack.c.b16 %v623, %v618
  %v869 = vpack.c.b16 %v624, %v619
  %v870 = vpack.c.b16 %v625, %v620
  %v871 = vpack.c.b16 %v626, %v621
  %v872 = vpack.c.b16 %v627, %v622
  %v873 = vpack.c.b16 %v633, %v628
  %v874 = vpack.c.b16 %v634, %v629
  %v875 = vpack.c.b16 %v635, %v630
  %v876 = vpack.c.b16 %v636, %v631
  %v877 = vpack.c.b16 %v637, %v632
  %v878 = vpack.c.b16 %v643, %v638
  %v879 = vpack.c.b16 %v644, %v639
  %v880 = vpack.c.b16 %v645, %v640
  %v881 = vpack.c.b16 %v646, %v641
  %v882 = vpack.c.b16 %v647, %v642
  %v883 = vpack.c.b16 %v653, %v648
  %v884 = vpack.c.b16 %v654, %v649
  %v885 = vpack.c.b16 %v655, %v650
  %v886 = vpack.c.b16 %v656, %v651
  %v887 = vpack.c.b16 %v657, %v652
  %v888 = vpack.c.b16 %v663, %v658
  %v889 = vpack.c.b16 %v664, %v659
  %v890 = vpack.c.b16 %v665, %v660
  %v891 = vpack.c.b16 %v666, %v661
  %v892 = vpack.c.b16 %v667, %v662
  %v893 = vpack.c.b16 %v673, %v668
  %v894 = vpack.c.b16 %v674, %v669
  %v895 = vpack.c.b16 %v675, %v670
  %v896 = vpack.c.b16 %v676, %v671
  %v897 = vpack.c.b16 %v677, %v672
  %v898 = vpack.c.b16 %v683, %v678
  %v899 = vpack.c.b16 %v684, %v679
  %v900 = vpack.c.b16 %v685, %v680
  %v901 = vpack.c.b16 %v686, %v681
  %v902 = vpack.c.b16 %v687, %v682
  %v903 = vpack.c.b16 %v693, %v688
  %v904 = vpack.c.b16 %v694, %v689
  %v905 = vpack.c.b16 %v695, %v690
  %v906 = vpack.c.b16 %v696, %v691
  %v907 = vpack.c.b16 %v697, %v692
  %v908 = vpack.c.b16 %v703, %v698
  %v909 = vpack.c.b16 %v704, %v699
  %v910 = vpack.c.b16 %v705, %v700
  %v911 = vpack.c.b16 %v706, %v701
  %v912 = vpack.c.b16 %v707, %v702
  %v913 = vpack.c.b16 %v713, %v708
  %v914 = vpack.c.b16 %v714, %v709
  %v915 = vpack.c.b16 %v715, %v710
  %v916 = vpack.c.b16 %v716, %v711
  %v917 = vpack.c.b16 %v717, %v712
  %v918 = vpack.c.b16 %v723, %v718
  %v919 = vpack.c.b16 %v724, %v719
  %v920 = vpack.c.b16 %v725, %v720
  %v921 = vpack.c.b16 %v726, %v721
  %v922 = vpack.c.b16 %v727, %v722
  %v923 = vpack.c.b16 %v733, %v728
  %v924 = vpack.c.b16 %v734, %v729
  %v925 = vpack.c.b16 %v735, %v730
  %v926 = vpack.c.b16 %v736, %v731
  %v927 = vpack.c.b16 %v737, %v732
  %v928 = vpack.c.b16 %v743, %v738
  %v929 = vpack.c.b16 %v744, %v739
  %v930 = vpack.c.b16 %v745, %v740
  %v931 = vpack.c.b16 %v746, %v741
  %v932 = vpack.c.b16 %v747, %v742
  %v933 = vpack.c.b16 %v753, %v748
  %v934 = vpack.c.b16 %v754, %v749
  %v935 = vpack.c.b16 %v755, %v750
  %v936 = vpack.c.b16 %v756, %v751
  %v937 = vpack.c.b16 %v757, %v752
  %v938 = vpack.c.b16 %v763, %v758
  %v939 = vpack.c.b16 %v764, %v759
  %v940 = vpack.c.b16 %v765, %v760
  %v941 = vpack.c.b16 %v766, %v761
  %v942 = vpack.c.b16 %v767, %v762
  %v943 = vpack.c.b16 %v773, %v768
  %v944 = vpack.c.b16 %v774, %v769
  %v945 = vpack.c.b16 %v775, %v770
  %v946 = vpack.c.b16 %v776, %v771
  %v947 = vpack.c.b16 %v777, %v772
  %v948 = vpack.c.b16 %v783, %v778
  %v949 = vpack.c.b16 %v784, %v779
  %v950 = vpack.c.b16 %v785, %v780
  %v951 = vpack.c.b16 %v786, %v781
  %v952 = vpack.c.b16 %v787, %v782
  %v953 = vpack.c.b16 %v793, %v788
  %v954 = vpack.c.b16 %v794, %v789
  %v955 = vpack.c.b16 %v795, %v790
  %v956 = vpack.c.b16 %v796, %v791
  %v957 = vpack.c.b16 %v797, %v792
  %v1158 = vunpack.c.l.b16 %v207
  %v1159 = vunpack.c.l.b16 %v208
  %v1160 = vunpack.c.l.b16 %v209
  %v1161 = vunpack.c.l.b16 %v210
  %v1162 = vunpack.c.l.b16 %v211
  %v1163 = vunpack.c.l.b16 %v212
  %v1164 = vunpack.c.l.b16 %v213
  %v1165 = vunpack.c.l.b16 %v214
  %v1166 = vunpack.c.l.b16 %v215
  %v1167 = vunpack.c.l.b16 %v216
  %v1168 = vunpack.c.l.b16 %v217
  %v1169 = vunpack.c.l.b16 %v218
  %v1170 = vunpack.c.l.b16 %v219
  %v1171 = vunpack.c.l.b16 %v220
  %v1172 = vunpack.c.l.b16 %v221
  %v1173 = vunpack.c.l.b16 %v222
  %v1174 = vunpack.c.l.b16 %v223
  %v1175 = vunpack.c.l.b16 %v224
  %v1176 = vunpack.c.l.b16 %v225
  %v1177 = vunpack.c.l.b16 %v226
  %v1178 = vunpack.c.l.b16 %v227
  %v1179 = vunpack.c.l.b16 %v228
  %v1180 = vunpack.c.l.b16 %v229
  %v1181 = vunpack.c.l.b16 %v230
  %v1182 = vunpack.c.l.b16 %v231
  %v1183 = vunpack.c.l.b16 %v232
  %v1184 = vunpack.c.l.b16 %v233
  %v1185 = vunpack.c.l.b16 %v234
  %v1186 = vunpack.c.l.b16 %v235
  %v1187 = vunpack.c.l.b16 %v236
  %v1188 = vunpack.c.l.b16 %v237
  %v1189 = vunpack.c.l.b16 %v238
  %v1190 = vunpack.c.l.b16 %v239
  %v1191 = vunpack.c.l.b16 %v240
  %v1192 = vunpack.c.l.b16 %v241
  %v1193 = vunpack.c.l.b16 %v242
  %v1194 = vunpack.c.l.b16 %v243
  %v1195 = vunpack.c.l.b16 %v244
  %v1196 = vunpack.c.l.b16 %v245
  %v1197 = vunpack.c.l.b16 %v246
  %v1198 = vunpack.c.l.b16 %v247
  %v1199 = vunpack.c.l.b16 %v248
  %v1200 = vunpack.c.l.b16 %v249
  %v1201 = vunpack.c.l.b16 %v250
  %v1202 = vunpack.c.l.b16 %v251
  %v1203 = vunpack.c.l.b16 %v252
  %v1204 = vunpack.c.l.b16 %v253
  %v1205 = vunpack.c.l.b16 %v254
  %v1206 = vunpack.c.l.b16 %v255
  %v1207 = vunpack.c.l.b16 %v256
  %v1208 = vunpack.c.l.b16 %v257
  %v1209 = vunpack.c.l.b16 %v258
  %v1210 = vunpack.c.l.b16 %v259
  %v1211 = vunpack.c.l.b16 %v260
  %v1212 = vunpack.c.l.b16 %v261
  %v1213 = vunpack.c.l.b16 %v262
  %v1214 = vunpack.c.l.b16 %v263
  %v1215 = vunpack.c.l.b16 %v264
  %v1216 = vunpack.c.l.b16 %v265
  %v1217 = vunpack.c.l.b16 %v266
  %v1218 = vunpack.c.l.b16 %v267
  %v1219 = vunpack.c.l.b16 %v268
  %v1220 = vunpack.c.l.b16 %v269
  %v1221 = vunpack.c.l.b16 %v270
  %v1222 = vunpack.c.l.b16 %v271
  %v1223 = vunpack.c.l.b16 %v272
  %v1224 = vunpack.c.l.b16 %v273
  %v1225 = vunpack.c.l.b16 %v274
  %v1226 = vunpack.c.l.b16 %v275
  %v1227 = vunpack.c.l.b16 %v276
  %v1228 = vunpack.c.l.b16 %v277
  %v1229 = vunpack.c.l.b16 %v278
  %v1230 = vpack.c.b16 %v1159, %v1158
  %v1231 = vpack.c.b16 %v1161, %v1160
  %v1232 = vpack.c.b16 %v1163, %v1162
  %v1233 = vpack.c.b16 %v1165, %v1164
  %v1234 = vpack.c.b16 %v1167, %v1166
  %v1235 = vpack.c.b16 %v1169, %v1168
  %v1236 = vpack.c.b16 %v1171, %v1170
  %v1237 = vpack.c.b16 %v1173, %v1172
  %v1238 = vpack.c.b16 %v1175, %v1174
  %v1239 = vpack.c.b16 %v1177, %v1176
  %v1240 = vpack.c.b16 %v1179, %v1178
  %v1241 = vpack.c.b16 %v1181, %v1180
  %v1242 = vpack.c.b16 %v1183, %v1182
  %v1243 = vpack.c.b16 %v1185, %v1184
  %v1244 = vpack.c.b16 %v1187, %v1186
  %v1245 = vpack.c.b16 %v1189, %v1188
  %v1246 = vpack.c.b16 %v1191, %v1190
  %v1247 = vpack.c.b16 %v1193, %v1192
  %v1248 = vpack.c.b16 %v1195, %v1194
  %v1249 = vpack.c.b16 %v1197, %v1196
  %v1250 = vpack.c.b16 %v1199, %v1198
  %v1251 = vpack.c.b16 %v1201, %v1200
  %v1252 = vpack.c.b16 %v1203, %v1202
  %v1253 = vpack.c.b16 %v1205, %v1204
  %v1254 = vpack.c.b16 %v1207, %v1206
  %v1255 = vpack.c.b16 %v1209, %v1208
  %v1256 = vpack.c.b16 %v1211, %v1210
  %v1257 = vpack.c.b16 %v1213, %v1212
  %v1258 = vpack.c.b16 %v1215, %v1214
  %v1259 = vpack.c.b16 %v1217, %v1216
  %v1260 = vpack.c.b16 %v1219, %v1218
  %v1261 = vpack.c.b16 %v1221, %v1220
  %v1262 = vpack.c.b16 %v1223, %v1222
  %v1263 = vpack.c.b16 %v1225, %v1224
  %v1264 = vpack.c.b16 %v1227, %v1226
  %v1265 = vpack.c.b16 %v1229, %v1228
  %vm1302 = vcmask 523264
  %v1304 = vsel %vm1302, %v802, 0
  %v1307 = vsel %vm1302, %v807, 0
  %v1310 = vsel %vm1302, %v812, 0
  %v1313 = vsel %vm1302, %v817, 0
  %v1316 = vsel %vm1302, %v822, 0
  %v1319 = vsel %vm1302, %v827, 0
  %v1322 = vsel %vm1302, %v832, 0
  %v1325 = vsel %vm1302, %v837, 0
  %v1328 = vsel %vm1302, %v842, 0
  %v1331 = vsel %vm1302, %v847, 0
  %v1334 = vsel %vm1302, %v852, 0
  %v1337 = vsel %vm1302, %v857, 0
  %v1340 = vsel %vm1302, %v862, 0
  %v1343 = vsel %vm1302, %v867, 0
  %v1346 = vsel %vm1302, %v872, 0
  %v1349 = vsel %vm1302, %v877, 0
  %v1352 = vsel %vm1302, %v882, 0
  %v1355 = vsel %vm1302, %v887, 0
  %v1358 = vsel %vm1302, %v892, 0
  %v1361 = vsel %vm1302, %v897, 0
  %v1364 = vsel %vm1302, %v902, 0
  %v1367 = vsel %vm1302, %v907, 0
  %v1370 = vsel %vm1302, %v912, 0
  %v1373 = vsel %vm1302, %v917, 0
  %v1376 = vsel %vm1302, %v922, 0
  %v1379 = vsel %vm1302, %v927, 0
  %v1382 = vsel %vm1302, %v932, 0
  %v1385 = vsel %vm1302, %v937, 0
  %v1388 = vsel %vm1302, %v942, 0
  %v1391 = vsel %vm1302, %v947, 0
  %v1394 = vsel %vm1302, %v952, 0
  %v1397 = vsel %vm1302, %v957, 0
  %1399 = vmatprep.subr.bf16.mxu0 0
  %1400 = vmatpush1.bf16.msra.mxu0 %v1237
  %1401 = vmatprep.subr.bf16.mxu0 0
  %1402 = vmatpush1.bf16.msra.mxu0 %v1236
  %1403 = vmatprep.subr.bf16.mxu0 0
  %1404 = vmatpush1.bf16.msra.mxu0 %v1235
  %1405 = vmatprep.subr.bf16.mxu0 0
  %1406 = vmatpush1.bf16.msra.mxu0 %v1234
  %1407 = vmatprep.subr.bf16.mxu0 0
  %1408 = vmatpush1.bf16.msra.mxu0 %v1233
  %1409 = vmatprep.subr.bf16.mxu0 0
  %1410 = vmatpush1.bf16.msra.mxu0 %v1232
  %1411 = vmatprep.subr.bf16.mxu0 0
  %1412 = vmatpush1.bf16.msra.mxu0 %v1231
  %1413 = vmatprep.subr.bf16.mxu0 0
  %1414 = vmatpush1.bf16.msra.mxu0 %v1230
  %1415 = vmatprep.subr.bf16.mxu0 0
  %1416 = vmatpush2.bf16.msra.mxu0 %v1245
  %1417 = vmatprep.subr.bf16.mxu0 0
  %1418 = vmatpush2.bf16.msra.mxu0 %v1244
  %1419 = vmatprep.subr.bf16.mxu0 0
  %1420 = vmatpush2.bf16.msra.mxu0 %v1243
  %1421 = vmatprep.subr.bf16.mxu0 0
  %1422 = vmatpush2.bf16.msra.mxu0 %v1242
  %1423 = vmatprep.subr.bf16.mxu0 0
  %1424 = vmatpush2.bf16.msra.mxu0 %v1241
  %1425 = vmatprep.subr.bf16.mxu0 0
  %1426 = vmatpush2.bf16.msra.mxu0 %v1240
  %1427 = vmatprep.subr.bf16.mxu0 0
  %1428 = vmatpush2.bf16.msra.mxu0 %v1239
  %1429 = vmatprep.subr.bf16.mxu0 0
  %1430 = vmatpush2.bf16.msra.mxu0 %v1238
  %1431 = vmatprep.mubr.bf16.mxu0 %v799
  %1432 = vmatmul.mubr.bf16.gmra.mxu0 %v798
  %v1433 = vpop.f32.mrf.mxu0
  %v1434 = vadd.f32 %v284, %v1433
  %v1435 = vpop.f32.mrf.mxu0
  %v1436 = vpop.f32.mrf.mxu0
  %v1437 = vadd.f32 %v284, %v1436
  %v1438 = vpop.f32.mrf.mxu0
  %1439 = vmatprep.mubr.bf16.mxu0 %v804
  %1440 = vmatmul.mubr.bf16.gmra.mxu0 %v803
  %v1441 = vpop.f32.mrf.mxu0
  %v1442 = vadd.f32 %v284, %v1441
  %v1443 = vpop.f32.mrf.mxu0
  %v1444 = vpop.f32.mrf.mxu0
  %v1445 = vadd.f32 %v284, %v1444
  %v1446 = vpop.f32.mrf.mxu0
  %1447 = vmatprep.mubr.bf16.mxu0 %v809
  %1448 = vmatmul.mubr.bf16.gmra.mxu0 %v808
  %v1449 = vpop.f32.mrf.mxu0
  %v1450 = vadd.f32 %v284, %v1449
  %v1451 = vpop.f32.mrf.mxu0
  %v1452 = vpop.f32.mrf.mxu0
  %v1453 = vadd.f32 %v284, %v1452
  %v1454 = vpop.f32.mrf.mxu0
  %1455 = vmatprep.mubr.bf16.mxu0 %v814
  %1456 = vmatmul.mubr.bf16.gmra.mxu0 %v813
  %v1457 = vpop.f32.mrf.mxu0
  %v1458 = vadd.f32 %v284, %v1457
  %v1459 = vpop.f32.mrf.mxu0
  %v1460 = vpop.f32.mrf.mxu0
  %v1461 = vadd.f32 %v284, %v1460
  %v1462 = vpop.f32.mrf.mxu0
  %1463 = vmatprep.mubr.bf16.mxu0 %v819
  %1464 = vmatmul.mubr.bf16.gmra.mxu0 %v818
  %v1465 = vpop.f32.mrf.mxu0
  %v1466 = vadd.f32 %v284, %v1465
  %v1467 = vpop.f32.mrf.mxu0
  %v1468 = vpop.f32.mrf.mxu0
  %v1469 = vadd.f32 %v284, %v1468
  %v1470 = vpop.f32.mrf.mxu0
  %1471 = vmatprep.mubr.bf16.mxu0 %v824
  %1472 = vmatmul.mubr.bf16.gmra.mxu0 %v823
  %v1473 = vpop.f32.mrf.mxu0
  %v1474 = vadd.f32 %v284, %v1473
  %v1475 = vpop.f32.mrf.mxu0
  %v1476 = vpop.f32.mrf.mxu0
  %v1477 = vadd.f32 %v284, %v1476
  %v1478 = vpop.f32.mrf.mxu0
  %1479 = vmatprep.mubr.bf16.mxu0 %v829
  %1480 = vmatmul.mubr.bf16.gmra.mxu0 %v828
  %v1481 = vpop.f32.mrf.mxu0
  %v1482 = vadd.f32 %v284, %v1481
  %v1483 = vpop.f32.mrf.mxu0
  %v1484 = vpop.f32.mrf.mxu0
  %v1485 = vadd.f32 %v284, %v1484
  %v1486 = vpop.f32.mrf.mxu0
  %1487 = vmatprep.mubr.bf16.mxu0 %v834
  %1488 = vmatmul.mubr.bf16.gmra.mxu0 %v833
  %v1489 = vpop.f32.mrf.mxu0
  %v1490 = vadd.f32 %v284, %v1489
  %v1491 = vpop.f32.mrf.mxu0
  %v1492 = vpop.f32.mrf.mxu0
  %v1493 = vadd.f32 %v284, %v1492
  %v1494 = vpop.f32.mrf.mxu0
  %1495 = vmatprep.mubr.bf16.mxu0 %v839
  %1496 = vmatmul.mubr.bf16.gmra.mxu0 %v838
  %v1497 = vpop.f32.mrf.mxu0
  %v1498 = vadd.f32 %v284, %v1497
  %v1499 = vpop.f32.mrf.mxu0
  %v1500 = vpop.f32.mrf.mxu0
  %v1501 = vadd.f32 %v284, %v1500
  %v1502 = vpop.f32.mrf.mxu0
  %1503 = vmatprep.mubr.bf16.mxu0 %v844
  %1504 = vmatmul.mubr.bf16.gmra.mxu0 %v843
  %v1505 = vpop.f32.mrf.mxu0
  %v1506 = vadd.f32 %v284, %v1505
  %v1507 = vpop.f32.mrf.mxu0
  %v1508 = vpop.f32.mrf.mxu0
  %v1509 = vadd.f32 %v284, %v1508
  %v1510 = vpop.f32.mrf.mxu0
  %1511 = vmatprep.mubr.bf16.mxu0 %v849
  %1512 = vmatmul.mubr.bf16.gmra.mxu0 %v848
  %v1513 = vpop.f32.mrf.mxu0
  %v1514 = vadd.f32 %v284, %v1513
  %v1515 = vpop.f32.mrf.mxu0
  %v1516 = vpop.f32.mrf.mxu0
  %v1517 = vadd.f32 %v284, %v1516
  %v1518 = vpop.f32.mrf.mxu0
  %1519 = vmatprep.mubr.bf16.mxu0 %v854
  %1520 = vmatmul.mubr.bf16.gmra.mxu0 %v853
  %v1521 = vpop.f32.mrf.mxu0
  %v1522 = vadd.f32 %v284, %v1521
  %v1523 = vpop.f32.mrf.mxu0
  %v1524 = vpop.f32.mrf.mxu0
  %v1525 = vadd.f32 %v284, %v1524
  %v1526 = vpop.f32.mrf.mxu0
  %1527 = vmatprep.mubr.bf16.mxu0 %v859
  %1528 = vmatmul.mubr.bf16.gmra.mxu0 %v858
  %v1529 = vpop.f32.mrf.mxu0
  %v1530 = vadd.f32 %v284, %v1529
  %v1531 = vpop.f32.mrf.mxu0
  %v1532 = vpop.f32.mrf.mxu0
  %v1533 = vadd.f32 %v284, %v1532
  %v1534 = vpop.f32.mrf.mxu0
  %1535 = vmatprep.mubr.bf16.mxu0 %v864
  %1536 = vmatmul.mubr.bf16.gmra.mxu0 %v863
  %v1537 = vpop.f32.mrf.mxu0
  %v1538 = vadd.f32 %v284, %v1537
  %v1539 = vpop.f32.mrf.mxu0
  %v1540 = vpop.f32.mrf.mxu0
  %v1541 = vadd.f32 %v284, %v1540
  %v1542 = vpop.f32.mrf.mxu0
  %1543 = vmatprep.mubr.bf16.mxu0 %v869
  %1544 = vmatmul.mubr.bf16.gmra.mxu0 %v868
  %v1545 = vpop.f32.mrf.mxu0
  %v1546 = vadd.f32 %v284, %v1545
  %v1547 = vpop.f32.mrf.mxu0
  %v1548 = vpop.f32.mrf.mxu0
  %v1549 = vadd.f32 %v284, %v1548
  %v1550 = vpop.f32.mrf.mxu0
  %1551 = vmatprep.mubr.bf16.mxu0 %v874
  %1552 = vmatmul.mubr.bf16.gmra.mxu0 %v873
  %v1553 = vpop.f32.mrf.mxu0
  %v1554 = vadd.f32 %v284, %v1553
  %v1555 = vpop.f32.mrf.mxu0
  %v1556 = vpop.f32.mrf.mxu0
  %v1557 = vadd.f32 %v284, %v1556
  %v1558 = vpop.f32.mrf.mxu0
  %1559 = vmatprep.mubr.bf16.mxu0 %v879
  %1560 = vmatmul.mubr.bf16.gmra.mxu0 %v878
  %v1561 = vpop.f32.mrf.mxu0
  %v1562 = vadd.f32 %v284, %v1561
  %v1563 = vpop.f32.mrf.mxu0
  %v1564 = vpop.f32.mrf.mxu0
  %v1565 = vadd.f32 %v284, %v1564
  %v1566 = vpop.f32.mrf.mxu0
  %1567 = vmatprep.mubr.bf16.mxu0 %v884
  %1568 = vmatmul.mubr.bf16.gmra.mxu0 %v883
  %v1569 = vpop.f32.mrf.mxu0
  %v1570 = vadd.f32 %v284, %v1569
  %v1571 = vpop.f32.mrf.mxu0
  %v1572 = vpop.f32.mrf.mxu0
  %v1573 = vadd.f32 %v284, %v1572
  %v1574 = vpop.f32.mrf.mxu0
  %1575 = vmatprep.mubr.bf16.mxu0 %v889
  %1576 = vmatmul.mubr.bf16.gmra.mxu0 %v888
  %v1577 = vpop.f32.mrf.mxu0
  %v1578 = vadd.f32 %v284, %v1577
  %v1579 = vpop.f32.mrf.mxu0
  %v1580 = vpop.f32.mrf.mxu0
  %v1581 = vadd.f32 %v284, %v1580
  %v1582 = vpop.f32.mrf.mxu0
  %1583 = vmatprep.mubr.bf16.mxu0 %v894
  %1584 = vmatmul.mubr.bf16.gmra.mxu0 %v893
  %v1585 = vpop.f32.mrf.mxu0
  %v1586 = vadd.f32 %v284, %v1585
  %v1587 = vpop.f32.mrf.mxu0
  %v1588 = vpop.f32.mrf.mxu0
  %v1589 = vadd.f32 %v284, %v1588
  %v1590 = vpop.f32.mrf.mxu0
  %1591 = vmatprep.mubr.bf16.mxu0 %v899
  %1592 = vmatmul.mubr.bf16.gmra.mxu0 %v898
  %v1593 = vpop.f32.mrf.mxu0
  %v1594 = vadd.f32 %v284, %v1593
  %v1595 = vpop.f32.mrf.mxu0
  %v1596 = vpop.f32.mrf.mxu0
  %v1597 = vadd.f32 %v284, %v1596
  %v1598 = vpop.f32.mrf.mxu0
  %1599 = vmatprep.mubr.bf16.mxu0 %v904
  %1600 = vmatmul.mubr.bf16.gmra.mxu0 %v903
  %v1601 = vpop.f32.mrf.mxu0
  %v1602 = vadd.f32 %v284, %v1601
  %v1603 = vpop.f32.mrf.mxu0
  %v1604 = vpop.f32.mrf.mxu0
  %v1605 = vadd.f32 %v284, %v1604
  %v1606 = vpop.f32.mrf.mxu0
  %1607 = vmatprep.mubr.bf16.mxu0 %v909
  %1608 = vmatmul.mubr.bf16.gmra.mxu0 %v908
  %v1609 = vpop.f32.mrf.mxu0
  %v1610 = vadd.f32 %v284, %v1609
  %v1611 = vpop.f32.mrf.mxu0
  %v1612 = vpop.f32.mrf.mxu0
  %v1613 = vadd.f32 %v284, %v1612
  %v1614 = vpop.f32.mrf.mxu0
  %1615 = vmatprep.mubr.bf16.mxu0 %v914
  %1616 = vmatmul.mubr.bf16.gmra.mxu0 %v913
  %v1617 = vpop.f32.mrf.mxu0
  %v1618 = vadd.f32 %v284, %v1617
  %v1619 = vpop.f32.mrf.mxu0
  %v1620 = vpop.f32.mrf.mxu0
  %v1621 = vadd.f32 %v284, %v1620
  %v1622 = vpop.f32.mrf.mxu0
  %1623 = vmatprep.mubr.bf16.mxu0 %v919
  %1624 = vmatmul.mubr.bf16.gmra.mxu0 %v918
  %v1625 = vpop.f32.mrf.mxu0
  %v1626 = vadd.f32 %v284, %v1625
  %v1627 = vpop.f32.mrf.mxu0
  %v1628 = vpop.f32.mrf.mxu0
  %v1629 = vadd.f32 %v284, %v1628
  %v1630 = vpop.f32.mrf.mxu0
  %1631 = vmatprep.mubr.bf16.mxu0 %v924
  %1632 = vmatmul.mubr.bf16.gmra.mxu0 %v923
  %v1633 = vpop.f32.mrf.mxu0
  %v1634 = vadd.f32 %v284, %v1633
  %v1635 = vpop.f32.mrf.mxu0
  %v1636 = vpop.f32.mrf.mxu0
  %v1637 = vadd.f32 %v284, %v1636
  %v1638 = vpop.f32.mrf.mxu0
  %1639 = vmatprep.mubr.bf16.mxu0 %v929
  %1640 = vmatmul.mubr.bf16.gmra.mxu0 %v928
  %v1641 = vpop.f32.mrf.mxu0
  %v1642 = vadd.f32 %v284, %v1641
  %v1643 = vpop.f32.mrf.mxu0
  %v1644 = vpop.f32.mrf.mxu0
  %v1645 = vadd.f32 %v284, %v1644
  %v1646 = vpop.f32.mrf.mxu0
  %1647 = vmatprep.mubr.bf16.mxu0 %v934
  %1648 = vmatmul.mubr.bf16.gmra.mxu0 %v933
  %v1649 = vpop.f32.mrf.mxu0
  %v1650 = vadd.f32 %v284, %v1649
  %v1651 = vpop.f32.mrf.mxu0
  %v1652 = vpop.f32.mrf.mxu0
  %v1653 = vadd.f32 %v284, %v1652
  %v1654 = vpop.f32.mrf.mxu0
  %1655 = vmatprep.mubr.bf16.mxu0 %v939
  %1656 = vmatmul.mubr.bf16.gmra.mxu0 %v938
  %v1657 = vpop.f32.mrf.mxu0
  %v1658 = vadd.f32 %v284, %v1657
  %v1659 = vpop.f32.mrf.mxu0
  %v1660 = vpop.f32.mrf.mxu0
  %v1661 = vadd.f32 %v284, %v1660
  %v1662 = vpop.f32.mrf.mxu0
  %1663 = vmatprep.mubr.bf16.mxu0 %v944
  %1664 = vmatmul.mubr.bf16.gmra.mxu0 %v943
  %v1665 = vpop.f32.mrf.mxu0
  %v1666 = vadd.f32 %v284, %v1665
  %v1667 = vpop.f32.mrf.mxu0
  %v1668 = vpop.f32.mrf.mxu0
  %v1669 = vadd.f32 %v284, %v1668
  %v1670 = vpop.f32.mrf.mxu0
  %1671 = vmatprep.mubr.bf16.mxu0 %v949
  %1672 = vmatmul.mubr.bf16.gmra.mxu0 %v948
  %v1673 = vpop.f32.mrf.mxu0
  %v1674 = vadd.f32 %v284, %v1673
  %v1675 = vpop.f32.mrf.mxu0
  %v1676 = vpop.f32.mrf.mxu0
  %v1677 = vadd.f32 %v284, %v1676
  %v1678 = vpop.f32.mrf.mxu0
  %1679 = vmatprep.mubr.bf16.mxu0 %v954
  %1680 = vmatmul.mubr.bf16.gmra.mxu0 %v953
  %v1681 = vpop.f32.mrf.mxu0
  %v1682 = vadd.f32 %v284, %v1681
  %v1683 = vpop.f32.mrf.mxu0
  %v1684 = vpop.f32.mrf.mxu0
  %v1685 = vadd.f32 %v284, %v1684
  %v1686 = vpop.f32.mrf.mxu0
  %1687 = vdwg.mxu0
  %1688 = vmatprep.subr.bf16.mxu0 0
  %1689 = vmatpush1.bf16.msra.mxu0 %v1253
  %1690 = vmatprep.subr.bf16.mxu0 0
  %1691 = vmatpush1.bf16.msra.mxu0 %v1252
  %1692 = vmatprep.subr.bf16.mxu0 0
  %1693 = vmatpush1.bf16.msra.mxu0 %v1251
  %1694 = vmatprep.subr.bf16.mxu0 0
  %1695 = vmatpush1.bf16.msra.mxu0 %v1250
  %1696 = vmatprep.subr.bf16.mxu0 0
  %1697 = vmatpush1.bf16.msra.mxu0 %v1249
  %1698 = vmatprep.subr.bf16.mxu0 0
  %1699 = vmatpush1.bf16.msra.mxu0 %v1248
  %1700 = vmatprep.subr.bf16.mxu0 0
  %1701 = vmatpush1.bf16.msra.mxu0 %v1247
  %1702 = vmatprep.subr.bf16.mxu0 0
  %1703 = vmatpush1.bf16.msra.mxu0 %v1246
  %1704 = vmatprep.subr.bf16.mxu0 0
  %1705 = vmatpush2.bf16.msra.mxu0 %v1261
  %1706 = vmatprep.subr.bf16.mxu0 0
  %1707 = vmatpush2.bf16.msra.mxu0 %v1260
  %1708 = vmatprep.subr.bf16.mxu0 0
  %1709 = vmatpush2.bf16.msra.mxu0 %v1259
  %1710 = vmatprep.subr.bf16.mxu0 0
  %1711 = vmatpush2.bf16.msra.mxu0 %v1258
  %1712 = vmatprep.subr.bf16.mxu0 0
  %1713 = vmatpush2.bf16.msra.mxu0 %v1257
  %1714 = vmatprep.subr.bf16.mxu0 0
  %1715 = vmatpush2.bf16.msra.mxu0 %v1256
  %1716 = vmatprep.subr.bf16.mxu0 0
  %1717 = vmatpush2.bf16.msra.mxu0 %v1255
  %1718 = vmatprep.subr.bf16.mxu0 0
  %1719 = vmatpush2.bf16.msra.mxu0 %v1254
  %1720 = vmatprep.mubr.bf16.mxu0 %v801
  %1721 = vmatmul.mubr.bf16.gmra.mxu0 %v800
  %v1722 = vpop.f32.mrf.mxu0
  %v1723 = vadd.f32 %v1434, %v1722
  %v1724 = vpop.f32.mrf.mxu0
  %v1725 = vpop.f32.mrf.mxu0
  %v1726 = vadd.f32 %v1437, %v1725
  %v1727 = vpop.f32.mrf.mxu0
  %1728 = vmatprep.mubr.bf16.mxu0 %v806
  %1729 = vmatmul.mubr.bf16.gmra.mxu0 %v805
  %v1730 = vpop.f32.mrf.mxu0
  %v1731 = vadd.f32 %v1442, %v1730
  %v1732 = vpop.f32.mrf.mxu0
  %v1733 = vpop.f32.mrf.mxu0
  %v1734 = vadd.f32 %v1445, %v1733
  %v1735 = vpop.f32.mrf.mxu0
  %1736 = vmatprep.mubr.bf16.mxu0 %v811
  %1737 = vmatmul.mubr.bf16.gmra.mxu0 %v810
  %v1738 = vpop.f32.mrf.mxu0
  %v1739 = vadd.f32 %v1450, %v1738
  %v1740 = vpop.f32.mrf.mxu0
  %v1741 = vpop.f32.mrf.mxu0
  %v1742 = vadd.f32 %v1453, %v1741
  %v1743 = vpop.f32.mrf.mxu0
  %1744 = vmatprep.mubr.bf16.mxu0 %v816
  %1745 = vmatmul.mubr.bf16.gmra.mxu0 %v815
  %v1746 = vpop.f32.mrf.mxu0
  %v1747 = vadd.f32 %v1458, %v1746
  %v1748 = vpop.f32.mrf.mxu0
  %v1749 = vpop.f32.mrf.mxu0
  %v1750 = vadd.f32 %v1461, %v1749
  %v1751 = vpop.f32.mrf.mxu0
  %1752 = vmatprep.mubr.bf16.mxu0 %v821
  %1753 = vmatmul.mubr.bf16.gmra.mxu0 %v820
  %v1754 = vpop.f32.mrf.mxu0
  %v1755 = vadd.f32 %v1466, %v1754
  %v1756 = vpop.f32.mrf.mxu0
  %v1757 = vpop.f32.mrf.mxu0
  %v1758 = vadd.f32 %v1469, %v1757
  %v1759 = vpop.f32.mrf.mxu0
  %1760 = vmatprep.mubr.bf16.mxu0 %v826
  %1761 = vmatmul.mubr.bf16.gmra.mxu0 %v825
  %v1762 = vpop.f32.mrf.mxu0
  %v1763 = vadd.f32 %v1474, %v1762
  %v1764 = vpop.f32.mrf.mxu0
  %v1765 = vpop.f32.mrf.mxu0
  %v1766 = vadd.f32 %v1477, %v1765
  %v1767 = vpop.f32.mrf.mxu0
  %1768 = vmatprep.mubr.bf16.mxu0 %v831
  %1769 = vmatmul.mubr.bf16.gmra.mxu0 %v830
  %v1770 = vpop.f32.mrf.mxu0
  %v1771 = vadd.f32 %v1482, %v1770
  %v1772 = vpop.f32.mrf.mxu0
  %v1773 = vpop.f32.mrf.mxu0
  %v1774 = vadd.f32 %v1485, %v1773
  %v1775 = vpop.f32.mrf.mxu0
  %1776 = vmatprep.mubr.bf16.mxu0 %v836
  %1777 = vmatmul.mubr.bf16.gmra.mxu0 %v835
  %v1778 = vpop.f32.mrf.mxu0
  %v1779 = vadd.f32 %v1490, %v1778
  %v1780 = vpop.f32.mrf.mxu0
  %v1781 = vpop.f32.mrf.mxu0
  %v1782 = vadd.f32 %v1493, %v1781
  %v1783 = vpop.f32.mrf.mxu0
  %1784 = vmatprep.mubr.bf16.mxu0 %v841
  %1785 = vmatmul.mubr.bf16.gmra.mxu0 %v840
  %v1786 = vpop.f32.mrf.mxu0
  %v1787 = vadd.f32 %v1498, %v1786
  %v1788 = vpop.f32.mrf.mxu0
  %v1789 = vpop.f32.mrf.mxu0
  %v1790 = vadd.f32 %v1501, %v1789
  %v1791 = vpop.f32.mrf.mxu0
  %1792 = vmatprep.mubr.bf16.mxu0 %v846
  %1793 = vmatmul.mubr.bf16.gmra.mxu0 %v845
  %v1794 = vpop.f32.mrf.mxu0
  %v1795 = vadd.f32 %v1506, %v1794
  %v1796 = vpop.f32.mrf.mxu0
  %v1797 = vpop.f32.mrf.mxu0
  %v1798 = vadd.f32 %v1509, %v1797
  %v1799 = vpop.f32.mrf.mxu0
  %1800 = vmatprep.mubr.bf16.mxu0 %v851
  %1801 = vmatmul.mubr.bf16.gmra.mxu0 %v850
  %v1802 = vpop.f32.mrf.mxu0
  %v1803 = vadd.f32 %v1514, %v1802
  %v1804 = vpop.f32.mrf.mxu0
  %v1805 = vpop.f32.mrf.mxu0
  %v1806 = vadd.f32 %v1517, %v1805
  %v1807 = vpop.f32.mrf.mxu0
  %1808 = vmatprep.mubr.bf16.mxu0 %v856
  %1809 = vmatmul.mubr.bf16.gmra.mxu0 %v855
  %v1810 = vpop.f32.mrf.mxu0
  %v1811 = vadd.f32 %v1522, %v1810
  %v1812 = vpop.f32.mrf.mxu0
  %v1813 = vpop.f32.mrf.mxu0
  %v1814 = vadd.f32 %v1525, %v1813
  %v1815 = vpop.f32.mrf.mxu0
  %1816 = vmatprep.mubr.bf16.mxu0 %v861
  %1817 = vmatmul.mubr.bf16.gmra.mxu0 %v860
  %v1818 = vpop.f32.mrf.mxu0
  %v1819 = vadd.f32 %v1530, %v1818
  %v1820 = vpop.f32.mrf.mxu0
  %v1821 = vpop.f32.mrf.mxu0
  %v1822 = vadd.f32 %v1533, %v1821
  %v1823 = vpop.f32.mrf.mxu0
  %1824 = vmatprep.mubr.bf16.mxu0 %v866
  %1825 = vmatmul.mubr.bf16.gmra.mxu0 %v865
  %v1826 = vpop.f32.mrf.mxu0
  %v1827 = vadd.f32 %v1538, %v1826
  %v1828 = vpop.f32.mrf.mxu0
  %v1829 = vpop.f32.mrf.mxu0
  %v1830 = vadd.f32 %v1541, %v1829
  %v1831 = vpop.f32.mrf.mxu0
  %1832 = vmatprep.mubr.bf16.mxu0 %v871
  %1833 = vmatmul.mubr.bf16.gmra.mxu0 %v870
  %v1834 = vpop.f32.mrf.mxu0
  %v1835 = vadd.f32 %v1546, %v1834
  %v1836 = vpop.f32.mrf.mxu0
  %v1837 = vpop.f32.mrf.mxu0
  %v1838 = vadd.f32 %v1549, %v1837
  %v1839 = vpop.f32.mrf.mxu0
  %1840 = vmatprep.mubr.bf16.mxu0 %v876
  %1841 = vmatmul.mubr.bf16.gmra.mxu0 %v875
  %v1842 = vpop.f32.mrf.mxu0
  %v1843 = vadd.f32 %v1554, %v1842
  %v1844 = vpop.f32.mrf.mxu0
  %v1845 = vpop.f32.mrf.mxu0
  %v1846 = vadd.f32 %v1557, %v1845
  %v1847 = vpop.f32.mrf.mxu0
  %1848 = vmatprep.mubr.bf16.mxu0 %v881
  %1849 = vmatmul.mubr.bf16.gmra.mxu0 %v880
  %v1850 = vpop.f32.mrf.mxu0
  %v1851 = vadd.f32 %v1562, %v1850
  %v1852 = vpop.f32.mrf.mxu0
  %v1853 = vpop.f32.mrf.mxu0
  %v1854 = vadd.f32 %v1565, %v1853
  %v1855 = vpop.f32.mrf.mxu0
  %1856 = vmatprep.mubr.bf16.mxu0 %v886
  %1857 = vmatmul.mubr.bf16.gmra.mxu0 %v885
  %v1858 = vpop.f32.mrf.mxu0
  %v1859 = vadd.f32 %v1570, %v1858
  %v1860 = vpop.f32.mrf.mxu0
  %v1861 = vpop.f32.mrf.mxu0
  %v1862 = vadd.f32 %v1573, %v1861
  %v1863 = vpop.f32.mrf.mxu0
  %1864 = vmatprep.mubr.bf16.mxu0 %v891
  %1865 = vmatmul.mubr.bf16.gmra.mxu0 %v890
  %v1866 = vpop.f32.mrf.mxu0
  %v1867 = vadd.f32 %v1578, %v1866
  %v1868 = vpop.f32.mrf.mxu0
  %v1869 = vpop.f32.mrf.mxu0
  %v1870 = vadd.f32 %v1581, %v1869
  %v1871 = vpop.f32.mrf.mxu0
  %1872 = vmatprep.mubr.bf16.mxu0 %v896
  %1873 = vmatmul.mubr.bf16.gmra.mxu0 %v895
  %v1874 = vpop.f32.mrf.mxu0
  %v1875 = vadd.f32 %v1586, %v1874
  %v1876 = vpop.f32.mrf.mxu0
  %v1877 = vpop.f32.mrf.mxu0
  %v1878 = vadd.f32 %v1589, %v1877
  %v1879 = vpop.f32.mrf.mxu0
  %1880 = vmatprep.mubr.bf16.mxu0 %v901
  %1881 = vmatmul.mubr.bf16.gmra.mxu0 %v900
  %v1882 = vpop.f32.mrf.mxu0
  %v1883 = vadd.f32 %v1594, %v1882
  %v1884 = vpop.f32.mrf.mxu0
  %v1885 = vpop.f32.mrf.mxu0
  %v1886 = vadd.f32 %v1597, %v1885
  %v1887 = vpop.f32.mrf.mxu0
  %1888 = vmatprep.mubr.bf16.mxu0 %v906
  %1889 = vmatmul.mubr.bf16.gmra.mxu0 %v905
  %v1890 = vpop.f32.mrf.mxu0
  %v1891 = vadd.f32 %v1602, %v1890
  %v1892 = vpop.f32.mrf.mxu0
  %v1893 = vpop.f32.mrf.mxu0
  %v1894 = vadd.f32 %v1605, %v1893
  %v1895 = vpop.f32.mrf.mxu0
  %1896 = vmatprep.mubr.bf16.mxu0 %v911
  %1897 = vmatmul.mubr.bf16.gmra.mxu0 %v910
  %v1898 = vpop.f32.mrf.mxu0
  %v1899 = vadd.f32 %v1610, %v1898
  %v1900 = vpop.f32.mrf.mxu0
  %v1901 = vpop.f32.mrf.mxu0
  %v1902 = vadd.f32 %v1613, %v1901
  %v1903 = vpop.f32.mrf.mxu0
  %1904 = vmatprep.mubr.bf16.mxu0 %v916
  %1905 = vmatmul.mubr.bf16.gmra.mxu0 %v915
  %v1906 = vpop.f32.mrf.mxu0
  %v1907 = vadd.f32 %v1618, %v1906
  %v1908 = vpop.f32.mrf.mxu0
  %v1909 = vpop.f32.mrf.mxu0
  %v1910 = vadd.f32 %v1621, %v1909
  %v1911 = vpop.f32.mrf.mxu0
  %1912 = vmatprep.mubr.bf16.mxu0 %v921
  %1913 = vmatmul.mubr.bf16.gmra.mxu0 %v920
  %v1914 = vpop.f32.mrf.mxu0
  %v1915 = vadd.f32 %v1626, %v1914
  %v1916 = vpop.f32.mrf.mxu0
  %v1917 = vpop.f32.mrf.mxu0
  %v1918 = vadd.f32 %v1629, %v1917
  %v1919 = vpop.f32.mrf.mxu0
  %1920 = vmatprep.mubr.bf16.mxu0 %v926
  %1921 = vmatmul.mubr.bf16.gmra.mxu0 %v925
  %v1922 = vpop.f32.mrf.mxu0
  %v1923 = vadd.f32 %v1634, %v1922
  %v1924 = vpop.f32.mrf.mxu0
  %v1925 = vpop.f32.mrf.mxu0
  %v1926 = vadd.f32 %v1637, %v1925
  %v1927 = vpop.f32.mrf.mxu0
  %1928 = vmatprep.mubr.bf16.mxu0 %v931
  %1929 = vmatmul.mubr.bf16.gmra.mxu0 %v930
  %v1930 = vpop.f32.mrf.mxu0
  %v1931 = vadd.f32 %v1642, %v1930
  %v1932 = vpop.f32.mrf.mxu0
  %v1933 = vpop.f32.mrf.mxu0
  %v1934 = vadd.f32 %v1645, %v1933
  %v1935 = vpop.f32.mrf.mxu0
  %1936 = vmatprep.mubr.bf16.mxu0 %v936
  %1937 = vmatmul.mubr.bf16.gmra.mxu0 %v935
  %v1938 = vpop.f32.mrf.mxu0
  %v1939 = vadd.f32 %v1650, %v1938
  %v1940 = vpop.f32.mrf.mxu0
  %v1941 = vpop.f32.mrf.mxu0
  %v1942 = vadd.f32 %v1653, %v1941
  %v1943 = vpop.f32.mrf.mxu0
  %1944 = vmatprep.mubr.bf16.mxu0 %v941
  %1945 = vmatmul.mubr.bf16.gmra.mxu0 %v940
  %v1946 = vpop.f32.mrf.mxu0
  %v1947 = vadd.f32 %v1658, %v1946
  %v1948 = vpop.f32.mrf.mxu0
  %v1949 = vpop.f32.mrf.mxu0
  %v1950 = vadd.f32 %v1661, %v1949
  %v1951 = vpop.f32.mrf.mxu0
  %1952 = vmatprep.mubr.bf16.mxu0 %v946
  %1953 = vmatmul.mubr.bf16.gmra.mxu0 %v945
  %v1954 = vpop.f32.mrf.mxu0
  %v1955 = vadd.f32 %v1666, %v1954
  %v1956 = vpop.f32.mrf.mxu0
  %v1957 = vpop.f32.mrf.mxu0
  %v1958 = vadd.f32 %v1669, %v1957
  %v1959 = vpop.f32.mrf.mxu0
  %1960 = vmatprep.mubr.bf16.mxu0 %v951
  %1961 = vmatmul.mubr.bf16.gmra.mxu0 %v950
  %v1962 = vpop.f32.mrf.mxu0
  %v1963 = vadd.f32 %v1674, %v1962
  %v1964 = vpop.f32.mrf.mxu0
  %v1965 = vpop.f32.mrf.mxu0
  %v1966 = vadd.f32 %v1677, %v1965
  %v1967 = vpop.f32.mrf.mxu0
  %1968 = vmatprep.mubr.bf16.mxu0 %v956
  %1969 = vmatmul.mubr.bf16.gmra.mxu0 %v955
  %v1970 = vpop.f32.mrf.mxu0
  %v1971 = vadd.f32 %v1682, %v1970
  %v1972 = vpop.f32.mrf.mxu0
  %v1973 = vpop.f32.mrf.mxu0
  %v1974 = vadd.f32 %v1685, %v1973
  %v1975 = vpop.f32.mrf.mxu0
  %1976 = vdwg.mxu0
  %1977 = vmatprep.subr.bf16.mxu0 0
  %1978 = vmatpush1.bf16.msra.mxu0 0
  %1979 = vmatprep.subr.bf16.mxu0 0
  %1980 = vmatpush1.bf16.msra.mxu0 0
  %1981 = vmatprep.subr.bf16.mxu0 0
  %1982 = vmatpush1.bf16.msra.mxu0 0
  %1983 = vmatprep.subr.bf16.mxu0 0
  %1984 = vmatpush1.bf16.msra.mxu0 0
  %1985 = vmatprep.subr.bf16.mxu0 0
  %1986 = vmatpush1.bf16.msra.mxu0 %v1265
  %1987 = vmatprep.subr.bf16.mxu0 0
  %1988 = vmatpush1.bf16.msra.mxu0 %v1264
  %1989 = vmatprep.subr.bf16.mxu0 0
  %1990 = vmatpush1.bf16.msra.mxu0 %v1263
  %1991 = vmatprep.subr.bf16.mxu0 0
  %1992 = vmatpush1.bf16.msra.mxu0 %v1262
  %1993 = vmatprep.subr.bf16.mxu0 0
  %1994 = vmatpush2.bf16.msra.mxu0 0
  %1995 = vmatprep.subr.bf16.mxu0 0
  %1996 = vmatpush2.bf16.msra.mxu0 0
  %1997 = vmatprep.subr.bf16.mxu0 0
  %1998 = vmatpush2.bf16.msra.mxu0 0
  %1999 = vmatprep.subr.bf16.mxu0 0
  %2000 = vmatpush2.bf16.msra.mxu0 0
  %2001 = vmatprep.subr.bf16.mxu0 0
  %2002 = vmatpush2.bf16.msra.mxu0 0
  %2003 = vmatprep.subr.bf16.mxu0 0
  %2004 = vmatpush2.bf16.msra.mxu0 0
  %2005 = vmatprep.subr.bf16.mxu0 0
  %2006 = vmatpush2.bf16.msra.mxu0 0
  %2007 = vmatprep.subr.bf16.mxu0 0
  %2008 = vmatpush2.bf16.msra.mxu0 0
  %2009 = vmatprep.mubr.bf16.mxu0 0
  %2010 = vmatmul.mubr.bf16.gmra.mxu0 %v1304
  %v2011 = vpop.f32.mrf.mxu0
  %v2012 = vadd.f32 %v1723, %v2011
  %v2013 = vpop.f32.mrf.mxu0
  %v2014 = vpop.f32.mrf.mxu0
  %v2015 = vadd.f32 %v1726, %v2014
  %v2016 = vpop.f32.mrf.mxu0
  %2017 = vmatprep.mubr.bf16.mxu0 0
  %2018 = vmatmul.mubr.bf16.gmra.mxu0 %v1307
  %v2019 = vpop.f32.mrf.mxu0
  %v2020 = vadd.f32 %v1731, %v2019
  %v2021 = vpop.f32.mrf.mxu0
  %v2022 = vpop.f32.mrf.mxu0
  %v2023 = vadd.f32 %v1734, %v2022
  %v2024 = vpop.f32.mrf.mxu0
  %2025 = vmatprep.mubr.bf16.mxu0 0
  %2026 = vmatmul.mubr.bf16.gmra.mxu0 %v1310
  %v2027 = vpop.f32.mrf.mxu0
  %v2028 = vadd.f32 %v1739, %v2027
  %v2029 = vpop.f32.mrf.mxu0
  %v2030 = vpop.f32.mrf.mxu0
  %v2031 = vadd.f32 %v1742, %v2030
  %v2032 = vpop.f32.mrf.mxu0
  %2033 = vmatprep.mubr.bf16.mxu0 0
  %2034 = vmatmul.mubr.bf16.gmra.mxu0 %v1313
  %v2035 = vpop.f32.mrf.mxu0
  %v2036 = vadd.f32 %v1747, %v2035
  %v2037 = vpop.f32.mrf.mxu0
  %v2038 = vpop.f32.mrf.mxu0
  %v2039 = vadd.f32 %v1750, %v2038
  %v2040 = vpop.f32.mrf.mxu0
  %2041 = vmatprep.mubr.bf16.mxu0 0
  %2042 = vmatmul.mubr.bf16.gmra.mxu0 %v1316
  %v2043 = vpop.f32.mrf.mxu0
  %v2044 = vadd.f32 %v1755, %v2043
  %v2045 = vpop.f32.mrf.mxu0
  %v2046 = vpop.f32.mrf.mxu0
  %v2047 = vadd.f32 %v1758, %v2046
  %v2048 = vpop.f32.mrf.mxu0
  %2049 = vmatprep.mubr.bf16.mxu0 0
  %2050 = vmatmul.mubr.bf16.gmra.mxu0 %v1319
  %v2051 = vpop.f32.mrf.mxu0
  %v2052 = vadd.f32 %v1763, %v2051
  %v2053 = vpop.f32.mrf.mxu0
  %v2054 = vpop.f32.mrf.mxu0
  %v2055 = vadd.f32 %v1766, %v2054
  %v2056 = vpop.f32.mrf.mxu0
  %2057 = vmatprep.mubr.bf16.mxu0 0
  %2058 = vmatmul.mubr.bf16.gmra.mxu0 %v1322
  %v2059 = vpop.f32.mrf.mxu0
  %v2060 = vadd.f32 %v1771, %v2059
  %v2061 = vpop.f32.mrf.mxu0
  %v2062 = vpop.f32.mrf.mxu0
  %v2063 = vadd.f32 %v1774, %v2062
  %v2064 = vpop.f32.mrf.mxu0
  %2065 = vmatprep.mubr.bf16.mxu0 0
  %2066 = vmatmul.mubr.bf16.gmra.mxu0 %v1325
  %v2067 = vpop.f32.mrf.mxu0
  %v2068 = vadd.f32 %v1779, %v2067
  %v2069 = vpop.f32.mrf.mxu0
  %v2070 = vpop.f32.mrf.mxu0
  %v2071 = vadd.f32 %v1782, %v2070
  %v2072 = vpop.f32.mrf.mxu0
  %2073 = vmatprep.mubr.bf16.mxu0 0
  %2074 = vmatmul.mubr.bf16.gmra.mxu0 %v1328
  %v2075 = vpop.f32.mrf.mxu0
  %v2076 = vadd.f32 %v1787, %v2075
  %v2077 = vpop.f32.mrf.mxu0
  %v2078 = vpop.f32.mrf.mxu0
  %v2079 = vadd.f32 %v1790, %v2078
  %v2080 = vpop.f32.mrf.mxu0
  %2081 = vmatprep.mubr.bf16.mxu0 0
  %2082 = vmatmul.mubr.bf16.gmra.mxu0 %v1331
  %v2083 = vpop.f32.mrf.mxu0
  %v2084 = vadd.f32 %v1795, %v2083
  %v2085 = vpop.f32.mrf.mxu0
  %v2086 = vpop.f32.mrf.mxu0
  %v2087 = vadd.f32 %v1798, %v2086
  %v2088 = vpop.f32.mrf.mxu0
  %2089 = vmatprep.mubr.bf16.mxu0 0
  %2090 = vmatmul.mubr.bf16.gmra.mxu0 %v1334
  %v2091 = vpop.f32.mrf.mxu0
  %v2092 = vadd.f32 %v1803, %v2091
  %v2093 = vpop.f32.mrf.mxu0
  %v2094 = vpop.f32.mrf.mxu0
  %v2095 = vadd.f32 %v1806, %v2094
  %v2096 = vpop.f32.mrf.mxu0
  %2097 = vmatprep.mubr.bf16.mxu0 0
  %2098 = vmatmul.mubr.bf16.gmra.mxu0 %v1337
  %v2099 = vpop.f32.mrf.mxu0
  %v2100 = vadd.f32 %v1811, %v2099
  %v2101 = vpop.f32.mrf.mxu0
  %v2102 = vpop.f32.mrf.mxu0
  %v2103 = vadd.f32 %v1814, %v2102
  %v2104 = vpop.f32.mrf.mxu0
  %2105 = vmatprep.mubr.bf16.mxu0 0
  %2106 = vmatmul.mubr.bf16.gmra.mxu0 %v1340
  %v2107 = vpop.f32.mrf.mxu0
  %v2108 = vadd.f32 %v1819, %v2107
  %v2109 = vpop.f32.mrf.mxu0
  %v2110 = vpop.f32.mrf.mxu0
  %v2111 = vadd.f32 %v1822, %v2110
  %v2112 = vpop.f32.mrf.mxu0
  %2113 = vmatprep.mubr.bf16.mxu0 0
  %2114 = vmatmul.mubr.bf16.gmra.mxu0 %v1343
  %v2115 = vpop.f32.mrf.mxu0
  %v2116 = vadd.f32 %v1827, %v2115
  %v2117 = vpop.f32.mrf.mxu0
  %v2118 = vpop.f32.mrf.mxu0
  %v2119 = vadd.f32 %v1830, %v2118
  %v2120 = vpop.f32.mrf.mxu0
  %2121 = vmatprep.mubr.bf16.mxu0 0
  %2122 = vmatmul.mubr.bf16.gmra.mxu0 %v1346
  %v2123 = vpop.f32.mrf.mxu0
  %v2124 = vadd.f32 %v1835, %v2123
  %v2125 = vpop.f32.mrf.mxu0
  %v2126 = vpop.f32.mrf.mxu0
  %v2127 = vadd.f32 %v1838, %v2126
  %v2128 = vpop.f32.mrf.mxu0
  %2129 = vmatprep.mubr.bf16.mxu0 0
  %2130 = vmatmul.mubr.bf16.gmra.mxu0 %v1349
  %v2131 = vpop.f32.mrf.mxu0
  %v2132 = vadd.f32 %v1843, %v2131
  %v2133 = vpop.f32.mrf.mxu0
  %v2134 = vpop.f32.mrf.mxu0
  %v2135 = vadd.f32 %v1846, %v2134
  %v2136 = vpop.f32.mrf.mxu0
  %2137 = vmatprep.mubr.bf16.mxu0 0
  %2138 = vmatmul.mubr.bf16.gmra.mxu0 %v1352
  %v2139 = vpop.f32.mrf.mxu0
  %v2140 = vadd.f32 %v1851, %v2139
  %v2141 = vpop.f32.mrf.mxu0
  %v2142 = vpop.f32.mrf.mxu0
  %v2143 = vadd.f32 %v1854, %v2142
  %v2144 = vpop.f32.mrf.mxu0
  %2145 = vmatprep.mubr.bf16.mxu0 0
  %2146 = vmatmul.mubr.bf16.gmra.mxu0 %v1355
  %v2147 = vpop.f32.mrf.mxu0
  %v2148 = vadd.f32 %v1859, %v2147
  %v2149 = vpop.f32.mrf.mxu0
  %v2150 = vpop.f32.mrf.mxu0
  %v2151 = vadd.f32 %v1862, %v2150
  %v2152 = vpop.f32.mrf.mxu0
  %2153 = vmatprep.mubr.bf16.mxu0 0
  %2154 = vmatmul.mubr.bf16.gmra.mxu0 %v1358
  %v2155 = vpop.f32.mrf.mxu0
  %v2156 = vadd.f32 %v1867, %v2155
  %v2157 = vpop.f32.mrf.mxu0
  %v2158 = vpop.f32.mrf.mxu0
  %v2159 = vadd.f32 %v1870, %v2158
  %v2160 = vpop.f32.mrf.mxu0
  %2161 = vmatprep.mubr.bf16.mxu0 0
  %2162 = vmatmul.mubr.bf16.gmra.mxu0 %v1361
  %v2163 = vpop.f32.mrf.mxu0
  %v2164 = vadd.f32 %v1875, %v2163
  %v2165 = vpop.f32.mrf.mxu0
  %v2166 = vpop.f32.mrf.mxu0
  %v2167 = vadd.f32 %v1878, %v2166
  %v2168 = vpop.f32.mrf.mxu0
  %2169 = vmatprep.mubr.bf16.mxu0 0
  %2170 = vmatmul.mubr.bf16.gmra.mxu0 %v1364
  %v2171 = vpop.f32.mrf.mxu0
  %v2172 = vadd.f32 %v1883, %v2171
  %v2173 = vpop.f32.mrf.mxu0
  %v2174 = vpop.f32.mrf.mxu0
  %v2175 = vadd.f32 %v1886, %v2174
  %v2176 = vpop.f32.mrf.mxu0
  %2177 = vmatprep.mubr.bf16.mxu0 0
  %2178 = vmatmul.mubr.bf16.gmra.mxu0 %v1367
  %v2179 = vpop.f32.mrf.mxu0
  %v2180 = vadd.f32 %v1891, %v2179
  %v2181 = vpop.f32.mrf.mxu0
  %v2182 = vpop.f32.mrf.mxu0
  %v2183 = vadd.f32 %v1894, %v2182
  %v2184 = vpop.f32.mrf.mxu0
  %2185 = vmatprep.mubr.bf16.mxu0 0
  %2186 = vmatmul.mubr.bf16.gmra.mxu0 %v1370
  %v2187 = vpop.f32.mrf.mxu0
  %v2188 = vadd.f32 %v1899, %v2187
  %v2189 = vpop.f32.mrf.mxu0
  %v2190 = vpop.f32.mrf.mxu0
  %v2191 = vadd.f32 %v1902, %v2190
  %v2192 = vpop.f32.mrf.mxu0
  %2193 = vmatprep.mubr.bf16.mxu0 0
  %2194 = vmatmul.mubr.bf16.gmra.mxu0 %v1373
  %v2195 = vpop.f32.mrf.mxu0
  %v2196 = vadd.f32 %v1907, %v2195
  %v2197 = vpop.f32.mrf.mxu0
  %v2198 = vpop.f32.mrf.mxu0
  %v2199 = vadd.f32 %v1910, %v2198
  %v2200 = vpop.f32.mrf.mxu0
  %2201 = vmatprep.mubr.bf16.mxu0 0
  %2202 = vmatmul.mubr.bf16.gmra.mxu0 %v1376
  %v2203 = vpop.f32.mrf.mxu0
  %v2204 = vadd.f32 %v1915, %v2203
  %v2205 = vpop.f32.mrf.mxu0
  %v2206 = vpop.f32.mrf.mxu0
  %v2207 = vadd.f32 %v1918, %v2206
  %v2208 = vpop.f32.mrf.mxu0
  %2209 = vmatprep.mubr.bf16.mxu0 0
  %2210 = vmatmul.mubr.bf16.gmra.mxu0 %v1379
  %v2211 = vpop.f32.mrf.mxu0
  %v2212 = vadd.f32 %v1923, %v2211
  %v2213 = vpop.f32.mrf.mxu0
  %v2214 = vpop.f32.mrf.mxu0
  %v2215 = vadd.f32 %v1926, %v2214
  %v2216 = vpop.f32.mrf.mxu0
  %2217 = vmatprep.mubr.bf16.mxu0 0
  %2218 = vmatmul.mubr.bf16.gmra.mxu0 %v1382
  %v2219 = vpop.f32.mrf.mxu0
  %v2220 = vadd.f32 %v1931, %v2219
  %v2221 = vpop.f32.mrf.mxu0
  %v2222 = vpop.f32.mrf.mxu0
  %v2223 = vadd.f32 %v1934, %v2222
  %v2224 = vpop.f32.mrf.mxu0
  %2225 = vmatprep.mubr.bf16.mxu0 0
  %2226 = vmatmul.mubr.bf16.gmra.mxu0 %v1385
  %v2227 = vpop.f32.mrf.mxu0
  %v2228 = vadd.f32 %v1939, %v2227
  %v2229 = vpop.f32.mrf.mxu0
  %v2230 = vpop.f32.mrf.mxu0
  %v2231 = vadd.f32 %v1942, %v2230
  %v2232 = vpop.f32.mrf.mxu0
  %2233 = vmatprep.mubr.bf16.mxu0 0
  %2234 = vmatmul.mubr.bf16.gmra.mxu0 %v1388
  %v2235 = vpop.f32.mrf.mxu0
  %v2236 = vadd.f32 %v1947, %v2235
  %v2237 = vpop.f32.mrf.mxu0
  %v2238 = vpop.f32.mrf.mxu0
  %v2239 = vadd.f32 %v1950, %v2238
  %v2240 = vpop.f32.mrf.mxu0
  %2241 = vmatprep.mubr.bf16.mxu0 0
  %2242 = vmatmul.mubr.bf16.gmra.mxu0 %v1391
  %v2243 = vpop.f32.mrf.mxu0
  %v2244 = vadd.f32 %v1955, %v2243
  %v2245 = vpop.f32.mrf.mxu0
  %v2246 = vpop.f32.mrf.mxu0
  %v2247 = vadd.f32 %v1958, %v2246
  %v2248 = vpop.f32.mrf.mxu0
  %2249 = vmatprep.mubr.bf16.mxu0 0
  %2250 = vmatmul.mubr.bf16.gmra.mxu0 %v1394
  %v2251 = vpop.f32.mrf.mxu0
  %v2252 = vadd.f32 %v1963, %v2251
  %v2253 = vpop.f32.mrf.mxu0
  %v2254 = vpop.f32.mrf.mxu0
  %v2255 = vadd.f32 %v1966, %v2254
  %v2256 = vpop.f32.mrf.mxu0
  %2257 = vmatprep.mubr.bf16.mxu0 0
  %2258 = vmatmul.mubr.bf16.gmra.mxu0 %v1397
  %v2259 = vpop.f32.mrf.mxu0
  %v2260 = vadd.f32 %v1971, %v2259
  %v2261 = vpop.f32.mrf.mxu0
  %v2262 = vpop.f32.mrf.mxu0
  %v2263 = vadd.f32 %v1974, %v2262
  %v2264 = vpop.f32.mrf.mxu0
  %2265 = vdwg.mxu0
  %vm2266 = vcmp.gt.f32.partialorder %v2012, 0.0
  %vm2267 = vcmp.gt.f32.partialorder %v2015, 0.0
  %vm2268 = vcmp.gt.f32.partialorder %v2020, 0.0
  %vm2269 = vcmp.gt.f32.partialorder %v2023, 0.0
  %vm2270 = vcmp.gt.f32.partialorder %v2028, 0.0
  %vm2271 = vcmp.gt.f32.partialorder %v2031, 0.0
  %vm2272 = vcmp.gt.f32.partialorder %v2036, 0.0
  %vm2273 = vcmp.gt.f32.partialorder %v2039, 0.0
  %vm2274 = vcmp.gt.f32.partialorder %v2044, 0.0
  %vm2275 = vcmp.gt.f32.partialorder %v2047, 0.0
  %vm2276 = vcmp.gt.f32.partialorder %v2052, 0.0
  %vm2277 = vcmp.gt.f32.partialorder %v2055, 0.0
  %vm2278 = vcmp.gt.f32.partialorder %v2060, 0.0
  %vm2279 = vcmp.gt.f32.partialorder %v2063, 0.0
  %vm2280 = vcmp.gt.f32.partialorder %v2068, 0.0
  %vm2281 = vcmp.gt.f32.partialorder %v2071, 0.0
  %vm2282 = vcmp.gt.f32.partialorder %v2076, 0.0
  %vm2283 = vcmp.gt.f32.partialorder %v2079, 0.0
  %vm2284 = vcmp.gt.f32.partialorder %v2084, 0.0
  %vm2285 = vcmp.gt.f32.partialorder %v2087, 0.0
  %vm2286 = vcmp.gt.f32.partialorder %v2092, 0.0
  %vm2287 = vcmp.gt.f32.partialorder %v2095, 0.0
  %vm2288 = vcmp.gt.f32.partialorder %v2100, 0.0
  %vm2289 = vcmp.gt.f32.partialorder %v2103, 0.0
  %vm2290 = vcmp.gt.f32.partialorder %v2108, 0.0
  %vm2291 = vcmp.gt.f32.partialorder %v2111, 0.0
  %vm2292 = vcmp.gt.f32.partialorder %v2116, 0.0
  %vm2293 = vcmp.gt.f32.partialorder %v2119, 0.0
  %vm2294 = vcmp.gt.f32.partialorder %v2124, 0.0
  %vm2295 = vcmp.gt.f32.partialorder %v2127, 0.0
  %vm2296 = vcmp.gt.f32.partialorder %v2132, 0.0
  %vm2297 = vcmp.gt.f32.partialorder %v2135, 0.0
  %vm2298 = vcmp.gt.f32.partialorder %v2140, 0.0
  %vm2299 = vcmp.gt.f32.partialorder %v2143, 0.0
  %vm2300 = vcmp.gt.f32.partialorder %v2148, 0.0
  %vm2301 = vcmp.gt.f32.partialorder %v2151, 0.0
  %vm2302 = vcmp.gt.f32.partialorder %v2156, 0.0
  %vm2303 = vcmp.gt.f32.partialorder %v2159, 0.0
  %vm2304 = vcmp.gt.f32.partialorder %v2164, 0.0
  %vm2305 = vcmp.gt.f32.partialorder %v2167, 0.0
  %vm2306 = vcmp.gt.f32.partialorder %v2172, 0.0
  %vm2307 = vcmp.gt.f32.partialorder %v2175, 0.0
  %vm2308 = vcmp.gt.f32.partialorder %v2180, 0.0
  %vm2309 = vcmp.gt.f32.partialorder %v2183, 0.0
  %vm2310 = vcmp.gt.f32.partialorder %v2188, 0.0
  %vm2311 = vcmp.gt.f32.partialorder %v2191, 0.0
  %vm2312 = vcmp.gt.f32.partialorder %v2196, 0.0
  %vm2313 = vcmp.gt.f32.partialorder %v2199, 0.0
  %vm2314 = vcmp.gt.f32.partialorder %v2204, 0.0
  %vm2315 = vcmp.gt.f32.partialorder %v2207, 0.0
  %vm2316 = vcmp.gt.f32.partialorder %v2212, 0.0
  %vm2317 = vcmp.gt.f32.partialorder %v2215, 0.0
  %vm2318 = vcmp.gt.f32.partialorder %v2220, 0.0
  %vm2319 = vcmp.gt.f32.partialorder %v2223, 0.0
  %vm2320 = vcmp.gt.f32.partialorder %v2228, 0.0
  %vm2321 = vcmp.gt.f32.partialorder %v2231, 0.0
  %vm2322 = vcmp.gt.f32.partialorder %v2236, 0.0
  %vm2323 = vcmp.gt.f32.partialorder %v2239, 0.0
  %vm2324 = vcmp.gt.f32.partialorder %v2244, 0.0
  %vm2325 = vcmp.gt.f32.partialorder %v2247, 0.0
  %vm2326 = vcmp.gt.f32.partialorder %v2252, 0.0
  %vm2327 = vcmp.gt.f32.partialorder %v2255, 0.0
  %vm2328 = vcmp.gt.f32.partialorder %v2260, 0.0
  %vm2329 = vcmp.gt.f32.partialorder %v2263, 0.0
  %v2330 = vmul.f32 %v2012, 0.2
  %v2331 = vmul.f32 %v2015, 0.2
  %v2332 = vmul.f32 %v2020, 0.2
  %v2333 = vmul.f32 %v2023, 0.2
  %v2334 = vmul.f32 %v2028, 0.2
  %v2335 = vmul.f32 %v2031, 0.2
  %v2336 = vmul.f32 %v2036, 0.2
  %v2337 = vmul.f32 %v2039, 0.2
  %v2338 = vmul.f32 %v2044, 0.2
  %v2339 = vmul.f32 %v2047, 0.2
  %v2340 = vmul.f32 %v2052, 0.2
  %v2341 = vmul.f32 %v2055, 0.2
  %v2342 = vmul.f32 %v2060, 0.2
  %v2343 = vmul.f32 %v2063, 0.2
  %v2344 = vmul.f32 %v2068, 0.2
  %v2345 = vmul.f32 %v2071, 0.2
  %v2346 = vmul.f32 %v2076, 0.2
  %v2347 = vmul.f32 %v2079, 0.2
  %v2348 = vmul.f32 %v2084, 0.2
  %v2349 = vmul.f32 %v2087, 0.2
  %v2350 = vmul.f32 %v2092, 0.2
  %v2351 = vmul.f32 %v2095, 0.2
  %v2352 = vmul.f32 %v2100, 0.2
  %v2353 = vmul.f32 %v2103, 0.2
  %v2354 = vmul.f32 %v2108, 0.2
  %v2355 = vmul.f32 %v2111, 0.2
  %v2356 = vmul.f32 %v2116, 0.2
  %v2357 = vmul.f32 %v2119, 0.2
  %v2358 = vmul.f32 %v2124, 0.2
  %v2359 = vmul.f32 %v2127, 0.2
  %v2360 = vmul.f32 %v2132, 0.2
  %v2361 = vmul.f32 %v2135, 0.2
  %v2362 = vmul.f32 %v2140, 0.2
  %v2363 = vmul.f32 %v2143, 0.2
  %v2364 = vmul.f32 %v2148, 0.2
  %v2365 = vmul.f32 %v2151, 0.2
  %v2366 = vmul.f32 %v2156, 0.2
  %v2367 = vmul.f32 %v2159, 0.2
  %v2368 = vmul.f32 %v2164, 0.2
  %v2369 = vmul.f32 %v2167, 0.2
  %v2370 = vmul.f32 %v2172, 0.2
  %v2371 = vmul.f32 %v2175, 0.2
  %v2372 = vmul.f32 %v2180, 0.2
  %v2373 = vmul.f32 %v2183, 0.2
  %v2374 = vmul.f32 %v2188, 0.2
  %v2375 = vmul.f32 %v2191, 0.2
  %v2376 = vmul.f32 %v2196, 0.2
  %v2377 = vmul.f32 %v2199, 0.2
  %v2378 = vmul.f32 %v2204, 0.2
  %v2379 = vmul.f32 %v2207, 0.2
  %v2380 = vmul.f32 %v2212, 0.2
  %v2381 = vmul.f32 %v2215, 0.2
  %v2382 = vmul.f32 %v2220, 0.2
  %v2383 = vmul.f32 %v2223, 0.2
  %v2384 = vmul.f32 %v2228, 0.2
  %v2385 = vmul.f32 %v2231, 0.2
  %v2386 = vmul.f32 %v2236, 0.2
  %v2387 = vmul.f32 %v2239, 0.2
  %v2388 = vmul.f32 %v2244, 0.2
  %v2389 = vmul.f32 %v2247, 0.2
  %v2390 = vmul.f32 %v2252, 0.2
  %v2391 = vmul.f32 %v2255, 0.2
  %v2392 = vmul.f32 %v2260, 0.2
  %v2393 = vmul.f32 %v2263, 0.2
  %v2394 = vsel %vm2266, %v2012, %v2330
  %v2395 = vsel %vm2267, %v2015, %v2331
  %v2396 = vsel %vm2268, %v2020, %v2332
  %v2397 = vsel %vm2269, %v2023, %v2333
  %v2398 = vsel %vm2270, %v2028, %v2334
  %v2399 = vsel %vm2271, %v2031, %v2335
  %v2400 = vsel %vm2272, %v2036, %v2336
  %v2401 = vsel %vm2273, %v2039, %v2337
  %v2402 = vsel %vm2274, %v2044, %v2338
  %v2403 = vsel %vm2275, %v2047, %v2339
  %v2404 = vsel %vm2276, %v2052, %v2340
  %v2405 = vsel %vm2277, %v2055, %v2341
  %v2406 = vsel %vm2278, %v2060, %v2342
  %v2407 = vsel %vm2279, %v2063, %v2343
  %v2408 = vsel %vm2280, %v2068, %v2344
  %v2409 = vsel %vm2281, %v2071, %v2345
  %v2410 = vsel %vm2282, %v2076, %v2346
  %v2411 = vsel %vm2283, %v2079, %v2347
  %v2412 = vsel %vm2284, %v2084, %v2348
  %v2413 = vsel %vm2285, %v2087, %v2349
  %v2414 = vsel %vm2286, %v2092, %v2350
  %v2415 = vsel %vm2287, %v2095, %v2351
  %v2416 = vsel %vm2288, %v2100, %v2352
  %v2417 = vsel %vm2289, %v2103, %v2353
  %v2418 = vsel %vm2290, %v2108, %v2354
  %v2419 = vsel %vm2291, %v2111, %v2355
  %v2420 = vsel %vm2292, %v2116, %v2356
  %v2421 = vsel %vm2293, %v2119, %v2357
  %v2422 = vsel %vm2294, %v2124, %v2358
  %v2423 = vsel %vm2295, %v2127, %v2359
  %v2424 = vsel %vm2296, %v2132, %v2360
  %v2425 = vsel %vm2297, %v2135, %v2361
  %v2426 = vsel %vm2298, %v2140, %v2362
  %v2427 = vsel %vm2299, %v2143, %v2363
  %v2428 = vsel %vm2300, %v2148, %v2364
  %v2429 = vsel %vm2301, %v2151, %v2365
  %v2430 = vsel %vm2302, %v2156, %v2366
  %v2431 = vsel %vm2303, %v2159, %v2367
  %v2432 = vsel %vm2304, %v2164, %v2368
  %v2433 = vsel %vm2305, %v2167, %v2369
  %v2434 = vsel %vm2306, %v2172, %v2370
  %v2435 = vsel %vm2307, %v2175, %v2371
  %v2436 = vsel %vm2308, %v2180, %v2372
  %v2437 = vsel %vm2309, %v2183, %v2373
  %v2438 = vsel %vm2310, %v2188, %v2374
  %v2439 = vsel %vm2311, %v2191, %v2375
  %v2440 = vsel %vm2312, %v2196, %v2376
  %v2441 = vsel %vm2313, %v2199, %v2377
  %v2442 = vsel %vm2314, %v2204, %v2378
  %v2443 = vsel %vm2315, %v2207, %v2379
  %v2444 = vsel %vm2316, %v2212, %v2380
  %v2445 = vsel %vm2317, %v2215, %v2381
  %v2446 = vsel %vm2318, %v2220, %v2382
  %v2447 = vsel %vm2319, %v2223, %v2383
  %v2448 = vsel %vm2320, %v2228, %v2384
  %v2449 = vsel %vm2321, %v2231, %v2385
  %v2450 = vsel %vm2322, %v2236, %v2386
  %v2451 = vsel %vm2323, %v2239, %v2387
  %v2452 = vsel %vm2324, %v2244, %v2388
  %v2453 = vsel %vm2325, %v2247, %v2389
  %v2454 = vsel %vm2326, %v2252, %v2390
  %v2455 = vsel %vm2327, %v2255, %v2391
  %v2456 = vsel %vm2328, %v2260, %v2392
  %v2457 = vsel %vm2329, %v2263, %v2393
  %v2458 = vpack.c.bf16 %v2395, %v2394
  %v2459 = vpack.c.bf16 %v2397, %v2396
  %v2460 = vpack.c.bf16 %v2399, %v2398
  %v2461 = vpack.c.bf16 %v2401, %v2400
  %v2462 = vpack.c.bf16 %v2403, %v2402
  %v2463 = vpack.c.bf16 %v2405, %v2404
  %v2464 = vpack.c.bf16 %v2407, %v2406
  %v2465 = vpack.c.bf16 %v2409, %v2408
  %v2466 = vpack.c.bf16 %v2411, %v2410
  %v2467 = vpack.c.bf16 %v2413, %v2412
  %v2468 = vpack.c.bf16 %v2415, %v2414
  %v2469 = vpack.c.bf16 %v2417, %v2416
  %v2470 = vpack.c.bf16 %v2419, %v2418
  %v2471 = vpack.c.bf16 %v2421, %v2420
  %v2472 = vpack.c.bf16 %v2423, %v2422
  %v2473 = vpack.c.bf16 %v2425, %v2424
  %v2474 = vpack.c.bf16 %v2427, %v2426
  %v2475 = vpack.c.bf16 %v2429, %v2428
  %v2476 = vpack.c.bf16 %v2431, %v2430
  %v2477 = vpack.c.bf16 %v2433, %v2432
  %v2478 = vpack.c.bf16 %v2435, %v2434
  %v2479 = vpack.c.bf16 %v2437, %v2436
  %v2480 = vpack.c.bf16 %v2439, %v2438
  %v2481 = vpack.c.bf16 %v2441, %v2440
  %v2482 = vpack.c.bf16 %v2443, %v2442
  %v2483 = vpack.c.bf16 %v2445, %v2444
  %v2484 = vpack.c.bf16 %v2447, %v2446
  %v2485 = vpack.c.bf16 %v2449, %v2448
  %v2486 = vpack.c.bf16 %v2451, %v2450
  %v2487 = vpack.c.bf16 %v2453, %v2452
  %v2488 = vpack.c.bf16 %v2455, %v2454
  %v2489 = vpack.c.bf16 %v2457, %v2456
  %v2522 = vunpack.c.l.b16 %v2458
  %v2523 = vunpack.c.h.b16 %v2458
  %v2524 = vunpack.c.l.b16 %v2459
  %v2525 = vunpack.c.h.b16 %v2459
  %v2526 = vunpack.c.l.b16 %v2460
  %v2527 = vunpack.c.h.b16 %v2460
  %v2528 = vunpack.c.l.b16 %v2461
  %v2529 = vunpack.c.h.b16 %v2461
  %v2530 = vunpack.c.l.b16 %v2462
  %v2531 = vunpack.c.h.b16 %v2462
  %v2532 = vunpack.c.l.b16 %v2463
  %v2533 = vunpack.c.h.b16 %v2463
  %v2534 = vunpack.c.l.b16 %v2464
  %v2535 = vunpack.c.h.b16 %v2464
  %v2536 = vunpack.c.l.b16 %v2465
  %v2537 = vunpack.c.h.b16 %v2465
  %v2538 = vunpack.c.l.b16 %v2466
  %v2539 = vunpack.c.h.b16 %v2466
  %v2540 = vunpack.c.l.b16 %v2467
  %v2541 = vunpack.c.h.b16 %v2467
  %v2542 = vunpack.c.l.b16 %v2468
  %v2543 = vunpack.c.h.b16 %v2468
  %v2544 = vunpack.c.l.b16 %v2469
  %v2545 = vunpack.c.h.b16 %v2469
  %v2546 = vunpack.c.l.b16 %v2470
  %v2547 = vunpack.c.h.b16 %v2470
  %v2548 = vunpack.c.l.b16 %v2471
  %v2549 = vunpack.c.h.b16 %v2471
  %v2550 = vunpack.c.l.b16 %v2472
  %v2551 = vunpack.c.h.b16 %v2472
  %v2552 = vunpack.c.l.b16 %v2473
  %v2553 = vunpack.c.h.b16 %v2473
  %v2554 = vunpack.c.l.b16 %v2474
  %v2555 = vunpack.c.h.b16 %v2474
  %v2556 = vunpack.c.l.b16 %v2475
  %v2557 = vunpack.c.h.b16 %v2475
  %v2558 = vunpack.c.l.b16 %v2476
  %v2559 = vunpack.c.h.b16 %v2476
  %v2560 = vunpack.c.l.b16 %v2477
  %v2561 = vunpack.c.h.b16 %v2477
  %v2562 = vunpack.c.l.b16 %v2478
  %v2563 = vunpack.c.h.b16 %v2478
  %v2564 = vunpack.c.l.b16 %v2479
  %v2565 = vunpack.c.h.b16 %v2479
  %v2566 = vunpack.c.l.b16 %v2480
  %v2567 = vunpack.c.h.b16 %v2480
  %v2568 = vunpack.c.l.b16 %v2481
  %v2569 = vunpack.c.h.b16 %v2481
  %v2570 = vunpack.c.l.b16 %v2482
  %v2571 = vunpack.c.h.b16 %v2482
  %v2572 = vunpack.c.l.b16 %v2483
  %v2573 = vunpack.c.h.b16 %v2483
  %v2574 = vunpack.c.l.b16 %v2484
  %v2575 = vunpack.c.h.b16 %v2484
  %v2576 = vunpack.c.l.b16 %v2485
  %v2577 = vunpack.c.h.b16 %v2485
  %v2578 = vunpack.c.l.b16 %v2486
  %v2579 = vunpack.c.h.b16 %v2486
  %v2580 = vunpack.c.l.b16 %v2487
  %v2581 = vunpack.c.h.b16 %v2487
  %v2582 = vunpack.c.l.b16 %v2488
  %v2583 = vunpack.c.h.b16 %v2488
  %v2584 = vunpack.c.l.b16 %v2489
  %v2585 = vunpack.c.h.b16 %v2489
  %v2586 = vpack.c.b16 %v2522, %v2522
  %v2587 = vpack.c.b16 %v2523, %v2523
  %v2588 = vpack.c.b16 %v2524, %v2524
  %v2589 = vpack.c.b16 %v2525, %v2525
  %v2590 = vpack.c.b16 %v2526, %v2526
  %v2591 = vpack.c.b16 %v2527, %v2527
  %v2592 = vpack.c.b16 %v2528, %v2528
  %v2593 = vpack.c.b16 %v2529, %v2529
  %v2594 = vpack.c.b16 %v2530, %v2530
  %v2595 = vpack.c.b16 %v2531, %v2531
  %v2596 = vpack.c.b16 %v2532, %v2532
  %v2597 = vpack.c.b16 %v2533, %v2533
  %v2598 = vpack.c.b16 %v2534, %v2534
  %v2599 = vpack.c.b16 %v2535, %v2535
  %v2600 = vpack.c.b16 %v2536, %v2536
  %v2601 = vpack.c.b16 %v2537, %v2537
  %v2602 = vpack.c.b16 %v2538, %v2538
  %v2603 = vpack.c.b16 %v2539, %v2539
  %v2604 = vpack.c.b16 %v2540, %v2540
  %v2605 = vpack.c.b16 %v2541, %v2541
  %v2606 = vpack.c.b16 %v2542, %v2542
  %v2607 = vpack.c.b16 %v2543, %v2543
  %v2608 = vpack.c.b16 %v2544, %v2544
  %v2609 = vpack.c.b16 %v2545, %v2545
  %v2610 = vpack.c.b16 %v2546, %v2546
  %v2611 = vpack.c.b16 %v2547, %v2547
  %v2612 = vpack.c.b16 %v2548, %v2548
  %v2613 = vpack.c.b16 %v2549, %v2549
  %v2614 = vpack.c.b16 %v2550, %v2550
  %v2615 = vpack.c.b16 %v2551, %v2551
  %v2616 = vpack.c.b16 %v2552, %v2552
  %v2617 = vpack.c.b16 %v2553, %v2553
  %v2618 = vpack.c.b16 %v2554, %v2554
  %v2619 = vpack.c.b16 %v2555, %v2555
  %v2620 = vpack.c.b16 %v2556, %v2556
  %v2621 = vpack.c.b16 %v2557, %v2557
  %v2622 = vpack.c.b16 %v2558, %v2558
  %v2623 = vpack.c.b16 %v2559, %v2559
  %v2624 = vpack.c.b16 %v2560, %v2560
  %v2625 = vpack.c.b16 %v2561, %v2561
  %v2626 = vpack.c.b16 %v2562, %v2562
  %v2627 = vpack.c.b16 %v2563, %v2563
  %v2628 = vpack.c.b16 %v2564, %v2564
  %v2629 = vpack.c.b16 %v2565, %v2565
  %v2630 = vpack.c.b16 %v2566, %v2566
  %v2631 = vpack.c.b16 %v2567, %v2567
  %v2632 = vpack.c.b16 %v2568, %v2568
  %v2633 = vpack.c.b16 %v2569, %v2569
  %v2634 = vpack.c.b16 %v2570, %v2570
  %v2635 = vpack.c.b16 %v2571, %v2571
  %v2636 = vpack.c.b16 %v2572, %v2572
  %v2637 = vpack.c.b16 %v2573, %v2573
  %v2638 = vpack.c.b16 %v2574, %v2574
  %v2639 = vpack.c.b16 %v2575, %v2575
  %v2640 = vpack.c.b16 %v2576, %v2576
  %v2641 = vpack.c.b16 %v2577, %v2577
  %v2642 = vpack.c.b16 %v2578, %v2578
  %v2643 = vpack.c.b16 %v2579, %v2579
  %v2644 = vpack.c.b16 %v2580, %v2580
  %v2645 = vpack.c.b16 %v2581, %v2581
  %v2646 = vpack.c.b16 %v2582, %v2582
  %v2647 = vpack.c.b16 %v2583, %v2583
  %v2648 = vpack.c.b16 %v2584, %v2584
  %v2649 = vpack.c.b16 %v2585, %v2585
  %2714 = vst [vmem:[%s3] sm:$0xf] %v2586
  %2715 = vst [vmem:[%s3 + $0x4] sm:$0xf] %v2587
  %2716 = vst [vmem:[%s3 + $0x8] sm:$0xf] %v2588
  %2717 = vst [vmem:[%s3 + $0xc] sm:$0xf] %v2589
  %2718 = vst [vmem:[%s3 + $0x10] sm:$0xf] %v2590
  %2719 = vst [vmem:[%s3 + $0x14] sm:$0xf] %v2591
  %2720 = vst [vmem:[%s3 + $0x18] sm:$0xf] %v2592
  %2721 = vst [vmem:[%s3 + $0x1c] sm:$0xf] %v2593
  %2722 = vst [vmem:[%s3 + $0x20] sm:$0xf] %v2594
  %2723 = vst [vmem:[%s3 + $0x24] sm:$0xf] %v2595
  %2724 = vst [vmem:[%s3 + $0x28] sm:$0xf] %v2596
  %2725 = vst [vmem:[%s3 + $0x2c] sm:$0xf] %v2597
  %2726 = vst [vmem:[%s3 + $0x30] sm:$0xf] %v2598
  %2727 = vst [vmem:[%s3 + $0x34] sm:$0xf] %v2599
  %2728 = vst [vmem:[%s3 + $0x38] sm:$0xf] %v2600
  %2729 = vst [vmem:[%s3 + $0x3c] sm:$0xf] %v2601
  %2730 = vst [vmem:[%s3 + $0x40] sm:$0xf] %v2602
  %2731 = vst [vmem:[%s3 + $0x44] sm:$0xf] %v2603
  %2732 = vst [vmem:[%s3 + $0x48] sm:$0xf] %v2604
  %2733 = vst [vmem:[%s3 + $0x4c] sm:$0xf] %v2605
  %2734 = vst [vmem:[%s3 + $0x50] sm:$0xf] %v2606
  %2735 = vst [vmem:[%s3 + $0x54] sm:$0xf] %v2607
  %2736 = vst [vmem:[%s3 + $0x58] sm:$0xf] %v2608
  %2737 = vst [vmem:[%s3 + $0x5c] sm:$0xf] %v2609
  %2738 = vst [vmem:[%s3 + $0x60] sm:$0xf] %v2610
  %2739 = vst [vmem:[%s3 + $0x64] sm:$0xf] %v2611
  %2740 = vst [vmem:[%s3 + $0x68] sm:$0xf] %v2612
  %2741 = vst [vmem:[%s3 + $0x6c] sm:$0xf] %v2613
  %2742 = vst [vmem:[%s3 + $0x70] sm:$0xf] %v2614
  %2743 = vst [vmem:[%s3 + $0x74] sm:$0xf] %v2615
  %2744 = vst [vmem:[%s3 + $0x78] sm:$0xf] %v2616
  %2745 = vst [vmem:[%s3 + $0x7c] sm:$0xf] %v2617
  %2746 = vst [vmem:[%s3 + $0x80] sm:$0xf] %v2618
  %2747 = vst [vmem:[%s3 + $0x84] sm:$0xf] %v2619
  %2748 = vst [vmem:[%s3 + $0x88] sm:$0xf] %v2620
  %2749 = vst [vmem:[%s3 + $0x8c] sm:$0xf] %v2621
  %2750 = vst [vmem:[%s3 + $0x90] sm:$0xf] %v2622
  %2751 = vst [vmem:[%s3 + $0x94] sm:$0xf] %v2623
  %2752 = vst [vmem:[%s3 + $0x98] sm:$0xf] %v2624
  %2753 = vst [vmem:[%s3 + $0x9c] sm:$0xf] %v2625
  %2754 = vst [vmem:[%s3 + $0xa0] sm:$0xf] %v2626
  %2755 = vst [vmem:[%s3 + $0xa4] sm:$0xf] %v2627
  %2756 = vst [vmem:[%s3 + $0xa8] sm:$0xf] %v2628
  %2757 = vst [vmem:[%s3 + $0xac] sm:$0xf] %v2629
  %2758 = vst [vmem:[%s3 + $0xb0] sm:$0xf] %v2630
  %2759 = vst [vmem:[%s3 + $0xb4] sm:$0xf] %v2631
  %2760 = vst [vmem:[%s3 + $0xb8] sm:$0xf] %v2632
  %2761 = vst [vmem:[%s3 + $0xbc] sm:$0xf] %v2633
  %2762 = vst [vmem:[%s3 + $0xc0] sm:$0xf] %v2634
  %2763 = vst [vmem:[%s3 + $0xc4] sm:$0xf] %v2635
  %2764 = vst [vmem:[%s3 + $0xc8] sm:$0xf] %v2636
  %2765 = vst [vmem:[%s3 + $0xcc] sm:$0xf] %v2637
  %2766 = vst [vmem:[%s3 + $0xd0] sm:$0xf] %v2638
  %2767 = vst [vmem:[%s3 + $0xd4] sm:$0xf] %v2639
  %2768 = vst [vmem:[%s3 + $0xd8] sm:$0xf] %v2640
  %2769 = vst [vmem:[%s3 + $0xdc] sm:$0xf] %v2641
  %2770 = vst [vmem:[%s3 + $0xe0] sm:$0xf] %v2642
  %2771 = vst [vmem:[%s3 + $0xe4] sm:$0xf] %v2643
  %2772 = vst [vmem:[%s3 + $0xe8] sm:$0xf] %v2644
  %2773 = vst [vmem:[%s3 + $0xec] sm:$0xf] %v2645
  %2774 = vst [vmem:[%s3 + $0xf0] sm:$0xf] %v2646
  %2775 = vst [vmem:[%s3 + $0xf4] sm:$0xf] %v2647
  %2776 = vst [vmem:[%s3 + $0xf8] sm:$0xf] %v2648
  %2777 = vst [vmem:[%s3 + $0xfc] sm:$0xf] %v2649
  // Predicated region
  $region14: #{discriminator_forward.8} parent=0 // pred_check
    _
  $region15: #{discriminator_forward.8} parent=0 // pred_check_branch
    %2779 = sbr.rel (0) target = $region17
  $region16: #{discriminator_forward.8} parent=0 // pred_region
    _
  $region17: #{discriminator_forward.8} parent=0 // pred_fallthru
    _
  // Predicated region
  $region18: #{discriminator_forward.8} parent=0 // pred_check
    _
  $region19: #{discriminator_forward.8} parent=0 // pred_check_branch
    %2781 = sbr.rel (0) target = $region21
  $region20: #{discriminator_forward.8} parent=0 // pred_region
    _
  $region21: #{discriminator_forward.8} parent=0 // pred_fallthru
    _

// kernel: discriminator_forward.6
$region0: #{discriminator_forward.6}
  #allocation0 [shape = 'u32[]', space=smem, size = 0x4, offset = 0x4, fixed_abs, tag = 'smem constant byte address 0x4 - core index']
  #allocation1 [shape = 'u32[144,128]{1,0:T(1,128)}', space=vmem, size = 0x12000, scoped, tag = 'internal scratch']
  %s0 = inlined_call_operand.vmem [shape: bf16[2,300], index: 0, kind: input, shape index: {}]
  %s1 = inlined_call_operand.vmem [shape: bf16[300,256], index: 1, kind: input, shape index: {}]
  %s2 = inlined_call_operand.vmem [shape: f32[1,256], index: 2, kind: input, shape index: {}]
  %s3 = inlined_call_operand.vmem [shape: bf16[2,256], index: 3, kind: output, shape index: {}]
  %s4 = sld [smem:[#allocation0]]
  $region22: #{discriminator_forward.6} parent=0
    _
  %s6 = ssub.s32 1, %s4
  %s7 = scalar_select 0, %s6, %s4
  // Predicated region
  $region2: #{discriminator_forward.6} parent=0 // pred_check
    _
  $region3: #{discriminator_forward.6} parent=0 // pred_check_branch
    %9 = sbr.rel (0) target = $region5
  $region4: #{discriminator_forward.6} parent=0 // pred_region
    _
  $region5: #{discriminator_forward.6} parent=0 // pred_fallthru
    _
  // Predicated region
  $region6: #{discriminator_forward.6} parent=0 // pred_check
    _
  $region7: #{discriminator_forward.6} parent=0 // pred_check_branch
    %11 = sbr.rel (0) target = $region9
  $region8: #{discriminator_forward.6} parent=0 // pred_region
    _
  $region9: #{discriminator_forward.6} parent=0 // pred_fallthru
    _
  // Predicated region
  $region10: #{discriminator_forward.6} parent=0 // pred_check
    _
  $region11: #{discriminator_forward.6} parent=0 // pred_check_branch
    %13 = sbr.rel (0) target = $region13
  $region12: #{discriminator_forward.6} parent=0 // pred_region
    _
  $region13: #{discriminator_forward.6} parent=0 // pred_fallthru
    _
  %v15 = vld [vmem:[%s0] sm:$0x7]
  %v16 = vld [vmem:[%s1] sm:$0xff]
  %v17 = vld [vmem:[%s1 + $0x8] sm:$0xff]
  %v18 = vld [vmem:[%s1 + $0x10] sm:$0xff]
  %v19 = vld [vmem:[%s1 + $0x18] sm:$0xff]
  %v20 = vld [vmem:[%s1 + $0x20] sm:$0xff]
  %v21 = vld [vmem:[%s1 + $0x28] sm:$0xff]
  %v22 = vld [vmem:[%s1 + $0x30] sm:$0xff]
  %v23 = vld [vmem:[%s1 + $0x38] sm:$0xff]
  %v24 = vld [vmem:[%s1 + $0x40] sm:$0xff]
  %v25 = vld [vmem:[%s1 + $0x48] sm:$0xff]
  %v26 = vld [vmem:[%s1 + $0x50] sm:$0xff]
  %v27 = vld [vmem:[%s1 + $0x58] sm:$0xff]
  %v28 = vld [vmem:[%s1 + $0x60] sm:$0xff]
  %v29 = vld [vmem:[%s1 + $0x68] sm:$0xff]
  %v30 = vld [vmem:[%s1 + $0x70] sm:$0xff]
  %v31 = vld [vmem:[%s1 + $0x78] sm:$0xff]
  %v32 = vld [vmem:[%s1 + $0x80] sm:$0xff]
  %v33 = vld [vmem:[%s1 + $0x88] sm:$0xff]
  %v34 = vld [vmem:[%s1 + $0x90] sm:$0xff]
  %v35 = vld [vmem:[%s1 + $0x98] sm:$0xff]
  %v36 = vld [vmem:[%s1 + $0xa0] sm:$0xff]
  %v37 = vld [vmem:[%s1 + $0xa8] sm:$0xff]
  %v38 = vld [vmem:[%s1 + $0xb0] sm:$0xff]
  %v39 = vld [vmem:[%s1 + $0xb8] sm:$0xff]
  %v40 = vld [vmem:[%s1 + $0xc0] sm:$0xff]
  %v41 = vld [vmem:[%s1 + $0xc8] sm:$0xff]
  %v42 = vld [vmem:[%s1 + $0xd0] sm:$0xff]
  %v43 = vld [vmem:[%s1 + $0xd8] sm:$0xff]
  %v44 = vld [vmem:[%s1 + $0xe0] sm:$0xff]
  %v45 = vld [vmem:[%s1 + $0xe8] sm:$0xff]
  %v46 = vld [vmem:[%s1 + $0xf0] sm:$0xff]
  %v47 = vld [vmem:[%s1 + $0xf8] sm:$0xff]
  %v48 = vld [vmem:[%s1 + $0x100] sm:$0xff]
  %v49 = vld [vmem:[%s1 + $0x108] sm:$0xff]
  %v50 = vld [vmem:[%s1 + $0x110] sm:$0xff]
  %v51 = vld [vmem:[%s1 + $0x118] sm:$0xff]
  %v52 = vld [vmem:[%s1 + $0x120] sm:$0xff]
  %v53 = vld [vmem:[%s1 + $0x128] sm:$0x33]
  %v54 = vld [vmem:[%s2] sm:$0x3]
  %v56 = vlaneseq
  %v57 = vshrl.u32 %v56, 7
  %v58 = vsub.s32 0, %v57
  %v59 = vrot.slane %v54, %v58
  %v60 = vlaneseq
  %v61 = vshrl.u32 %v60, 7
  %v62 = vsub.s32 1, %v61
  %v63 = vrot.slane %v54, %v62
  %v68 = vunpack.c.l.s4 1966171168
  %v69 = vunpack.c.0.s8 %v68
  %v70 = vlaneseq
  %v71 = vshrl.u32 %v70, 7
  %v72 = vsub.s32 %v69, %v71
  %v73 = vrot.slane %v15, %v72
  %v74 = vcombine.high %v73, %v73
  %v76 = vunpack.c.l.s4 1966171168
  %v77 = vunpack.c.0.s8 %v76
  %v78 = vlaneseq
  %v79 = vshrl.u32 %v78, 7
  %v80 = vsub.s32 %v77, %v79
  %v81 = vrot.slane %v73, %v80
  %v83 = vunpack.c.l.s4 1966171168
  %v84 = vunpack.c.0.s8 %v83
  %v85 = vlaneseq
  %v86 = vshrl.u32 %v85, 7
  %v87 = vsub.s32 %v84, %v86
  %v88 = vrot.slane %v74, %v87
  %v89 = vcombine.high %v81, %v81
  %v130 = vunpack.c.l.b16 %v16
  %v131 = vunpack.c.h.b16 %v16
  %v132 = vunpack.c.l.b16 %v17
  %v133 = vunpack.c.h.b16 %v17
  %v134 = vunpack.c.l.b16 %v18
  %v135 = vunpack.c.h.b16 %v18
  %v136 = vunpack.c.l.b16 %v19
  %v137 = vunpack.c.h.b16 %v19
  %v138 = vunpack.c.l.b16 %v20
  %v139 = vunpack.c.h.b16 %v20
  %v140 = vunpack.c.l.b16 %v21
  %v141 = vunpack.c.h.b16 %v21
  %v142 = vunpack.c.l.b16 %v22
  %v143 = vunpack.c.h.b16 %v22
  %v144 = vunpack.c.l.b16 %v23
  %v145 = vunpack.c.h.b16 %v23
  %v146 = vunpack.c.l.b16 %v24
  %v147 = vunpack.c.h.b16 %v24
  %v148 = vunpack.c.l.b16 %v25
  %v149 = vunpack.c.h.b16 %v25
  %v150 = vunpack.c.l.b16 %v26
  %v151 = vunpack.c.h.b16 %v26
  %v152 = vunpack.c.l.b16 %v27
  %v153 = vunpack.c.h.b16 %v27
  %v154 = vunpack.c.l.b16 %v28
  %v155 = vunpack.c.h.b16 %v28
  %v156 = vunpack.c.l.b16 %v29
  %v157 = vunpack.c.h.b16 %v29
  %v158 = vunpack.c.l.b16 %v30
  %v159 = vunpack.c.h.b16 %v30
  %v160 = vunpack.c.l.b16 %v31
  %v161 = vunpack.c.h.b16 %v31
  %v162 = vunpack.c.l.b16 %v32
  %v163 = vunpack.c.h.b16 %v32
  %v164 = vunpack.c.l.b16 %v33
  %v165 = vunpack.c.h.b16 %v33
  %v166 = vunpack.c.l.b16 %v34
  %v167 = vunpack.c.h.b16 %v34
  %v168 = vunpack.c.l.b16 %v35
  %v169 = vunpack.c.h.b16 %v35
  %v170 = vunpack.c.l.b16 %v36
  %v171 = vunpack.c.h.b16 %v36
  %v172 = vunpack.c.l.b16 %v37
  %v173 = vunpack.c.h.b16 %v37
  %v174 = vunpack.c.l.b16 %v38
  %v175 = vunpack.c.h.b16 %v38
  %v176 = vunpack.c.l.b16 %v39
  %v177 = vunpack.c.h.b16 %v39
  %v178 = vunpack.c.l.b16 %v40
  %v179 = vunpack.c.h.b16 %v40
  %v180 = vunpack.c.l.b16 %v41
  %v181 = vunpack.c.h.b16 %v41
  %v182 = vunpack.c.l.b16 %v42
  %v183 = vunpack.c.h.b16 %v42
  %v184 = vunpack.c.l.b16 %v43
  %v185 = vunpack.c.h.b16 %v43
  %v186 = vunpack.c.l.b16 %v44
  %v187 = vunpack.c.h.b16 %v44
  %v188 = vunpack.c.l.b16 %v45
  %v189 = vunpack.c.h.b16 %v45
  %v190 = vunpack.c.l.b16 %v46
  %v191 = vunpack.c.h.b16 %v46
  %v192 = vunpack.c.l.b16 %v47
  %v193 = vunpack.c.h.b16 %v47
  %v194 = vunpack.c.l.b16 %v48
  %v195 = vunpack.c.h.b16 %v48
  %v196 = vunpack.c.l.b16 %v49
  %v197 = vunpack.c.h.b16 %v49
  %v198 = vunpack.c.l.b16 %v50
  %v199 = vunpack.c.h.b16 %v50
  %v200 = vunpack.c.l.b16 %v51
  %v201 = vunpack.c.h.b16 %v51
  %v202 = vunpack.c.l.b16 %v52
  %v203 = vunpack.c.h.b16 %v52
  %v204 = vunpack.c.l.b16 %v53
  %v205 = vunpack.c.h.b16 %v53
  %v206 = vpack.c.b16 %v132, %v130
  %v207 = vpack.c.b16 %v133, %v131
  %v208 = vpack.c.b16 %v136, %v134
  %v209 = vpack.c.b16 %v137, %v135
  %v210 = vpack.c.b16 %v140, %v138
  %v211 = vpack.c.b16 %v141, %v139
  %v212 = vpack.c.b16 %v144, %v142
  %v213 = vpack.c.b16 %v145, %v143
  %v214 = vpack.c.b16 %v148, %v146
  %v215 = vpack.c.b16 %v149, %v147
  %v216 = vpack.c.b16 %v152, %v150
  %v217 = vpack.c.b16 %v153, %v151
  %v218 = vpack.c.b16 %v156, %v154
  %v219 = vpack.c.b16 %v157, %v155
  %v220 = vpack.c.b16 %v160, %v158
  %v221 = vpack.c.b16 %v161, %v159
  %v222 = vpack.c.b16 %v164, %v162
  %v223 = vpack.c.b16 %v165, %v163
  %v224 = vpack.c.b16 %v168, %v166
  %v225 = vpack.c.b16 %v169, %v167
  %v226 = vpack.c.b16 %v172, %v170
  %v227 = vpack.c.b16 %v173, %v171
  %v228 = vpack.c.b16 %v176, %v174
  %v229 = vpack.c.b16 %v177, %v175
  %v230 = vpack.c.b16 %v180, %v178
  %v231 = vpack.c.b16 %v181, %v179
  %v232 = vpack.c.b16 %v184, %v182
  %v233 = vpack.c.b16 %v185, %v183
  %v234 = vpack.c.b16 %v188, %v186
  %v235 = vpack.c.b16 %v189, %v187
  %v236 = vpack.c.b16 %v192, %v190
  %v237 = vpack.c.b16 %v193, %v191
  %v238 = vpack.c.b16 %v196, %v194
  %v239 = vpack.c.b16 %v197, %v195
  %v240 = vpack.c.b16 %v200, %v198
  %v241 = vpack.c.b16 %v201, %v199
  %v242 = vpack.c.b16 %v204, %v202
  %v243 = vpack.c.b16 %v205, %v203
  %vm280 = vcmask 359424
  %v282 = vsel %vm280, %v89, 0
  %vm284 = vcmask 1045504
  %v286 = vsel %vm284, %v242, 0
  %v289 = vsel %vm284, %v243, 0
  %291 = vmatprep.subr.bf16.mxu0 %v221
  %292 = vmatpush1.bf16.msra.mxu0 %v220
  %293 = vmatprep.subr.bf16.mxu0 %v219
  %294 = vmatpush1.bf16.msra.mxu0 %v218
  %295 = vmatprep.subr.bf16.mxu0 %v217
  %296 = vmatpush1.bf16.msra.mxu0 %v216
  %297 = vmatprep.subr.bf16.mxu0 %v215
  %298 = vmatpush1.bf16.msra.mxu0 %v214
  %299 = vmatprep.subr.bf16.mxu0 %v213
  %300 = vmatpush1.bf16.msra.mxu0 %v212
  %301 = vmatprep.subr.bf16.mxu0 %v211
  %302 = vmatpush1.bf16.msra.mxu0 %v210
  %303 = vmatprep.subr.bf16.mxu0 %v209
  %304 = vmatpush1.bf16.msra.mxu0 %v208
  %305 = vmatprep.subr.bf16.mxu0 %v207
  %306 = vmatpush1.bf16.msra.mxu0 %v206
  %307 = vmatprep.subr.bf16.mxu0 %v237
  %308 = vmatpush2.bf16.msra.mxu0 %v236
  %309 = vmatprep.subr.bf16.mxu0 %v235
  %310 = vmatpush2.bf16.msra.mxu0 %v234
  %311 = vmatprep.subr.bf16.mxu0 %v233
  %312 = vmatpush2.bf16.msra.mxu0 %v232
  %313 = vmatprep.subr.bf16.mxu0 %v231
  %314 = vmatpush2.bf16.msra.mxu0 %v230
  %315 = vmatprep.subr.bf16.mxu0 %v229
  %316 = vmatpush2.bf16.msra.mxu0 %v228
  %317 = vmatprep.subr.bf16.mxu0 %v227
  %318 = vmatpush2.bf16.msra.mxu0 %v226
  %319 = vmatprep.subr.bf16.mxu0 %v225
  %320 = vmatpush2.bf16.msra.mxu0 %v224
  %321 = vmatprep.subr.bf16.mxu0 %v223
  %322 = vmatpush2.bf16.msra.mxu0 %v222
  %323 = vmatprep.mubr.bf16.mxu0 %v88
  %324 = vmatmul.mubr.bf16.gmra.mxu0 %v81
  %v325 = vpop.f32.mrf.mxu0
  %v326 = vadd.f32 %v59, %v325
  %v327 = vpop.f32.mrf.mxu0
  %v328 = vadd.f32 %v63, %v327
  %v329 = vpop.f32.mrf.mxu0
  %v330 = vpop.f32.mrf.mxu0
  %331 = vdwg.mxu0
  %332 = vmatprep.subr.bf16.mxu0 0
  %333 = vmatpush1.bf16.msra.mxu0 0
  %334 = vmatprep.subr.bf16.mxu0 0
  %335 = vmatpush1.bf16.msra.mxu0 0
  %336 = vmatprep.subr.bf16.mxu0 0
  %337 = vmatpush1.bf16.msra.mxu0 0
  %338 = vmatprep.subr.bf16.mxu0 0
  %339 = vmatpush1.bf16.msra.mxu0 0
  %340 = vmatprep.subr.bf16.mxu0 0
  %341 = vmatpush1.bf16.msra.mxu0 0
  %342 = vmatprep.subr.bf16.mxu0 %v289
  %343 = vmatpush1.bf16.msra.mxu0 %v286
  %344 = vmatprep.subr.bf16.mxu0 %v241
  %345 = vmatpush1.bf16.msra.mxu0 %v240
  %346 = vmatprep.subr.bf16.mxu0 %v239
  %347 = vmatpush1.bf16.msra.mxu0 %v238
  %348 = vmatprep.subr.bf16.mxu0 0
  %349 = vmatpush2.bf16.msra.mxu0 0
  %350 = vmatprep.subr.bf16.mxu0 0
  %351 = vmatpush2.bf16.msra.mxu0 0
  %352 = vmatprep.subr.bf16.mxu0 0
  %353 = vmatpush2.bf16.msra.mxu0 0
  %354 = vmatprep.subr.bf16.mxu0 0
  %355 = vmatpush2.bf16.msra.mxu0 0
  %356 = vmatprep.subr.bf16.mxu0 0
  %357 = vmatpush2.bf16.msra.mxu0 0
  %358 = vmatprep.subr.bf16.mxu0 0
  %359 = vmatpush2.bf16.msra.mxu0 0
  %360 = vmatprep.subr.bf16.mxu0 0
  %361 = vmatpush2.bf16.msra.mxu0 0
  %362 = vmatprep.subr.bf16.mxu0 0
  %363 = vmatpush2.bf16.msra.mxu0 0
  %364 = vmatprep.mubr.bf16.mxu0 0
  %365 = vmatmul.mubr.bf16.gmra.mxu0 %v282
  %v366 = vpop.f32.mrf.mxu0
  %v367 = vadd.f32 %v326, %v366
  %v368 = vpop.f32.mrf.mxu0
  %v369 = vadd.f32 %v328, %v368
  %v370 = vpop.f32.mrf.mxu0
  %v371 = vpop.f32.mrf.mxu0
  %372 = vdwg.mxu0
  %v373 = vpack.c.bf16 %v367, %v367
  %v374 = vpack.c.bf16 %v369, %v369
  %v377 = vcombine.low %v373, %v374
  %v379 = vunpack.c.l.s4 1966171168
  %v380 = vunpack.c.0.s8 %v379
  %v381 = vlaneseq
  %v382 = vshrl.u32 %v381, 7
  %v383 = vsub.s32 %v380, %v382
  %v384 = vrot.slane %v377, %v383
  %v386 = vunpack.c.l.s4 1966171168
  %v387 = vunpack.c.0.s8 %v386
  %v388 = vlaneseq
  %v389 = vshrl.u32 %v388, 7
  %v390 = vsub.s32 %v387, %v389
  %v391 = vrot.slane %v384, %v390
  %393 = vst [vmem:[%s3] sm:$0x3] %v391
  // Predicated region
  $region14: #{discriminator_forward.6} parent=0 // pred_check
    _
  $region15: #{discriminator_forward.6} parent=0 // pred_check_branch
    %395 = sbr.rel (0) target = $region17
  $region16: #{discriminator_forward.6} parent=0 // pred_region
    _
  $region17: #{discriminator_forward.6} parent=0 // pred_fallthru
    _
  // Predicated region
  $region18: #{discriminator_forward.6} parent=0 // pred_check
    _
  $region19: #{discriminator_forward.6} parent=0 // pred_check_branch
    %397 = sbr.rel (0) target = $region21
  $region20: #{discriminator_forward.6} parent=0 // pred_region
    _
  $region21: #{discriminator_forward.6} parent=0 // pred_fallthru
    _

// kernel: discriminator_forward.9
$region0: #{discriminator_forward.9}
  #allocation0 [shape = 'u32[]', space=smem, size = 0x4, offset = 0x4, fixed_abs, tag = 'smem constant byte address 0x4 - core index']
  #allocation1 [shape = 'u32[144,128]{1,0:T(1,128)}', space=vmem, size = 0x12000, scoped, tag = 'internal scratch']
  %s0 = inlined_call_operand.vmem [shape: bf16[128,1152], index: 0, kind: input, shape index: {}]
  %s1 = inlined_call_operand.vmem [shape: bf16[1152,256], index: 1, kind: input, shape index: {}]
  %s2 = inlined_call_operand.vmem [shape: f32[1,256], index: 2, kind: input, shape index: {}]
  %s3 = inlined_call_operand.vmem [shape: bf16[128,256], index: 3, kind: output, shape index: {}]
  %s4 = sld [smem:[#allocation0]]
  $region22: #{discriminator_forward.9} parent=0
    _
  %s6 = ssub.s32 1, %s4
  %s7 = scalar_select 0, %s6, %s4
  // Predicated region
  $region2: #{discriminator_forward.9} parent=0 // pred_check
    _
  $region3: #{discriminator_forward.9} parent=0 // pred_check_branch
    %9 = sbr.rel (0) target = $region5
  $region4: #{discriminator_forward.9} parent=0 // pred_region
    _
  $region5: #{discriminator_forward.9} parent=0 // pred_fallthru
    _
  // Predicated region
  $region6: #{discriminator_forward.9} parent=0 // pred_check
    _
  $region7: #{discriminator_forward.9} parent=0 // pred_check_branch
    %11 = sbr.rel (0) target = $region9
  $region8: #{discriminator_forward.9} parent=0 // pred_region
    _
  $region9: #{discriminator_forward.9} parent=0 // pred_fallthru
    _
  // Predicated region
  $region10: #{discriminator_forward.9} parent=0 // pred_check
    _
  $region11: #{discriminator_forward.9} parent=0 // pred_check_branch
    %13 = sbr.rel (0) target = $region13
  $region12: #{discriminator_forward.9} parent=0 // pred_region
    _
  $region13: #{discriminator_forward.9} parent=0 // pred_fallthru
    _
  %v15 = vld [vmem:[%s0] sm:$0xff]
  %v16 = vld [vmem:[%s0 + $0x8] sm:$0xff]
  %v17 = vld [vmem:[%s0 + $0x10] sm:$0xff]
  %v18 = vld [vmem:[%s0 + $0x18] sm:$0xff]
  %v19 = vld [vmem:[%s0 + $0x20] sm:$0xf]
  %v20 = vld [vmem:[%s0 + $0x24] sm:$0xff]
  %v21 = vld [vmem:[%s0 + $0x2c] sm:$0xff]
  %v22 = vld [vmem:[%s0 + $0x34] sm:$0xff]
  %v23 = vld [vmem:[%s0 + $0x3c] sm:$0xff]
  %v24 = vld [vmem:[%s0 + $0x44] sm:$0xf]
  %v25 = vld [vmem:[%s0 + $0x48] sm:$0xff]
  %v26 = vld [vmem:[%s0 + $0x50] sm:$0xff]
  %v27 = vld [vmem:[%s0 + $0x58] sm:$0xff]
  %v28 = vld [vmem:[%s0 + $0x60] sm:$0xff]
  %v29 = vld [vmem:[%s0 + $0x68] sm:$0xf]
  %v30 = vld [vmem:[%s0 + $0x6c] sm:$0xff]
  %v31 = vld [vmem:[%s0 + $0x74] sm:$0xff]
  %v32 = vld [vmem:[%s0 + $0x7c] sm:$0xff]
  %v33 = vld [vmem:[%s0 + $0x84] sm:$0xff]
  %v34 = vld [vmem:[%s0 + $0x8c] sm:$0xf]
  %v35 = vld [vmem:[%s0 + $0x90] sm:$0xff]
  %v36 = vld [vmem:[%s0 + $0x98] sm:$0xff]
  %v37 = vld [vmem:[%s0 + $0xa0] sm:$0xff]
  %v38 = vld [vmem:[%s0 + $0xa8] sm:$0xff]
  %v39 = vld [vmem:[%s0 + $0xb0] sm:$0xf]
  %v40 = vld [vmem:[%s0 + $0xb4] sm:$0xff]
  %v41 = vld [vmem:[%s0 + $0xbc] sm:$0xff]
  %v42 = vld [vmem:[%s0 + $0xc4] sm:$0xff]
  %v43 = vld [vmem:[%s0 + $0xcc] sm:$0xff]
  %v44 = vld [vmem:[%s0 + $0xd4] sm:$0xf]
  %v45 = vld [vmem:[%s0 + $0xd8] sm:$0xff]
  %v46 = vld [vmem:[%s0 + $0xe0] sm:$0xff]
  %v47 = vld [vmem:[%s0 + $0xe8] sm:$0xff]
  %v48 = vld [vmem:[%s0 + $0xf0] sm:$0xff]
  %v49 = vld [vmem:[%s0 + $0xf8] sm:$0xf]
  %v50 = vld [vmem:[%s0 + $0xfc] sm:$0xff]
  %v51 = vld [vmem:[%s0 + $0x104] sm:$0xff]
  %v52 = vld [vmem:[%s0 + $0x10c] sm:$0xff]
  %v53 = vld [vmem:[%s0 + $0x114] sm:$0xff]
  %v54 = vld [vmem:[%s0 + $0x11c] sm:$0xf]
  %v55 = vld [vmem:[%s0 + $0x120] sm:$0xff]
  %v56 = vld [vmem:[%s0 + $0x128] sm:$0xff]
  %v57 = vld [vmem:[%s0 + $0x130] sm:$0xff]
  %v58 = vld [vmem:[%s0 + $0x138] sm:$0xff]
  %v59 = vld [vmem:[%s0 + $0x140] sm:$0xf]
  %v60 = vld [vmem:[%s0 + $0x144] sm:$0xff]
  %v61 = vld [vmem:[%s0 + $0x14c] sm:$0xff]
  %v62 = vld [vmem:[%s0 + $0x154] sm:$0xff]
  %v63 = vld [vmem:[%s0 + $0x15c] sm:$0xff]
  %v64 = vld [vmem:[%s0 + $0x164] sm:$0xf]
  %v65 = vld [vmem:[%s0 + $0x168] sm:$0xff]
  %v66 = vld [vmem:[%s0 + $0x170] sm:$0xff]
  %v67 = vld [vmem:[%s0 + $0x178] sm:$0xff]
  %v68 = vld [vmem:[%s0 + $0x180] sm:$0xff]
  %v69 = vld [vmem:[%s0 + $0x188] sm:$0xf]
  %v70 = vld [vmem:[%s0 + $0x18c] sm:$0xff]
  %v71 = vld [vmem:[%s0 + $0x194] sm:$0xff]
  %v72 = vld [vmem:[%s0 + $0x19c] sm:$0xff]
  %v73 = vld [vmem:[%s0 + $0x1a4] sm:$0xff]
  %v74 = vld [vmem:[%s0 + $0x1ac] sm:$0xf]
  %v75 = vld [vmem:[%s0 + $0x1b0] sm:$0xff]
  %v76 = vld [vmem:[%s0 + $0x1b8] sm:$0xff]
  %v77 = vld [vmem:[%s0 + $0x1c0] sm:$0xff]
  %v78 = vld [vmem:[%s0 + $0x1c8] sm:$0xff]
  %v79 = vld [vmem:[%s0 + $0x1d0] sm:$0xf]
  %v80 = vld [vmem:[%s0 + $0x1d4] sm:$0xff]
  %v81 = vld [vmem:[%s0 + $0x1dc] sm:$0xff]
  %v82 = vld [vmem:[%s0 + $0x1e4] sm:$0xff]
  %v83 = vld [vmem:[%s0 + $0x1ec] sm:$0xff]
  %v84 = vld [vmem:[%s0 + $0x1f4] sm:$0xf]
  %v85 = vld [vmem:[%s0 + $0x1f8] sm:$0xff]
  %v86 = vld [vmem:[%s0 + $0x200] sm:$0xff]
  %v87 = vld [vmem:[%s0 + $0x208] sm:$0xff]
  %v88 = vld [vmem:[%s0 + $0x210] sm:$0xff]
  %v89 = vld [vmem:[%s0 + $0x218] sm:$0xf]
  %v90 = vld [vmem:[%s0 + $0x21c] sm:$0xff]
  %v91 = vld [vmem:[%s0 + $0x224] sm:$0xff]
  %v92 = vld [vmem:[%s0 + $0x22c] sm:$0xff]
  %v93 = vld [vmem:[%s0 + $0x234] sm:$0xff]
  %v94 = vld [vmem:[%s0 + $0x23c] sm:$0xf]
  %v95 = vld [vmem:[%s1] sm:$0xff]
  %v96 = vld [vmem:[%s1 + $0x8] sm:$0xff]
  %v97 = vld [vmem:[%s1 + $0x10] sm:$0xff]
  %v98 = vld [vmem:[%s1 + $0x18] sm:$0xff]
  %v99 = vld [vmem:[%s1 + $0x20] sm:$0xff]
  %v100 = vld [vmem:[%s1 + $0x28] sm:$0xff]
  %v101 = vld [vmem:[%s1 + $0x30] sm:$0xff]
  %v102 = vld [vmem:[%s1 + $0x38] sm:$0xff]
  %v103 = vld [vmem:[%s1 + $0x40] sm:$0xff]
  %v104 = vld [vmem:[%s1 + $0x48] sm:$0xff]
  %v105 = vld [vmem:[%s1 + $0x50] sm:$0xff]
  %v106 = vld [vmem:[%s1 + $0x58] sm:$0xff]
  %v107 = vld [vmem:[%s1 + $0x60] sm:$0xff]
  %v108 = vld [vmem:[%s1 + $0x68] sm:$0xff]
  %v109 = vld [vmem:[%s1 + $0x70] sm:$0xff]
  %v110 = vld [vmem:[%s1 + $0x78] sm:$0xff]
  %v111 = vld [vmem:[%s1 + $0x80] sm:$0xff]
  %v112 = vld [vmem:[%s1 + $0x88] sm:$0xff]
  %v113 = vld [vmem:[%s1 + $0x90] sm:$0xff]
  %v114 = vld [vmem:[%s1 + $0x98] sm:$0xff]
  %v115 = vld [vmem:[%s1 + $0xa0] sm:$0xff]
  %v116 = vld [vmem:[%s1 + $0xa8] sm:$0xff]
  %v117 = vld [vmem:[%s1 + $0xb0] sm:$0xff]
  %v118 = vld [vmem:[%s1 + $0xb8] sm:$0xff]
  %v119 = vld [vmem:[%s1 + $0xc0] sm:$0xff]
  %v120 = vld [vmem:[%s1 + $0xc8] sm:$0xff]
  %v121 = vld [vmem:[%s1 + $0xd0] sm:$0xff]
  %v122 = vld [vmem:[%s1 + $0xd8] sm:$0xff]
  %v123 = vld [vmem:[%s1 + $0xe0] sm:$0xff]
  %v124 = vld [vmem:[%s1 + $0xe8] sm:$0xff]
  %v125 = vld [vmem:[%s1 + $0xf0] sm:$0xff]
  %v126 = vld [vmem:[%s1 + $0xf8] sm:$0xff]
  %v127 = vld [vmem:[%s1 + $0x100] sm:$0xff]
  %v128 = vld [vmem:[%s1 + $0x108] sm:$0xff]
  %v129 = vld [vmem:[%s1 + $0x110] sm:$0xff]
  %v130 = vld [vmem:[%s1 + $0x118] sm:$0xff]
  %v131 = vld [vmem:[%s1 + $0x120] sm:$0xff]
  %v132 = vld [vmem:[%s1 + $0x128] sm:$0xff]
  %v133 = vld [vmem:[%s1 + $0x130] sm:$0xff]
  %v134 = vld [vmem:[%s1 + $0x138] sm:$0xff]
  %v135 = vld [vmem:[%s1 + $0x140] sm:$0xff]
  %v136 = vld [vmem:[%s1 + $0x148] sm:$0xff]
  %v137 = vld [vmem:[%s1 + $0x150] sm:$0xff]
  %v138 = vld [vmem:[%s1 + $0x158] sm:$0xff]
  %v139 = vld [vmem:[%s1 + $0x160] sm:$0xff]
  %v140 = vld [vmem:[%s1 + $0x168] sm:$0xff]
  %v141 = vld [vmem:[%s1 + $0x170] sm:$0xff]
  %v142 = vld [vmem:[%s1 + $0x178] sm:$0xff]
  %v143 = vld [vmem:[%s1 + $0x180] sm:$0xff]
  %v144 = vld [vmem:[%s1 + $0x188] sm:$0xff]
  %v145 = vld [vmem:[%s1 + $0x190] sm:$0xff]
  %v146 = vld [vmem:[%s1 + $0x198] sm:$0xff]
  %v147 = vld [vmem:[%s1 + $0x1a0] sm:$0xff]
  %v148 = vld [vmem:[%s1 + $0x1a8] sm:$0xff]
  %v149 = vld [vmem:[%s1 + $0x1b0] sm:$0xff]
  %v150 = vld [vmem:[%s1 + $0x1b8] sm:$0xff]
  %v151 = vld [vmem:[%s1 + $0x1c0] sm:$0xff]
  %v152 = vld [vmem:[%s1 + $0x1c8] sm:$0xff]
  %v153 = vld [vmem:[%s1 + $0x1d0] sm:$0xff]
  %v154 = vld [vmem:[%s1 + $0x1d8] sm:$0xff]
  %v155 = vld [vmem:[%s1 + $0x1e0] sm:$0xff]
  %v156 = vld [vmem:[%s1 + $0x1e8] sm:$0xff]
  %v157 = vld [vmem:[%s1 + $0x1f0] sm:$0xff]
  %v158 = vld [vmem:[%s1 + $0x1f8] sm:$0xff]
  %v159 = vld [vmem:[%s1 + $0x200] sm:$0xff]
  %v160 = vld [vmem:[%s1 + $0x208] sm:$0xff]
  %v161 = vld [vmem:[%s1 + $0x210] sm:$0xff]
  %v162 = vld [vmem:[%s1 + $0x218] sm:$0xff]
  %v163 = vld [vmem:[%s1 + $0x220] sm:$0xff]
  %v164 = vld [vmem:[%s1 + $0x228] sm:$0xff]
  %v165 = vld [vmem:[%s1 + $0x230] sm:$0xff]
  %v166 = vld [vmem:[%s1 + $0x238] sm:$0xff]
  %v167 = vld [vmem:[%s1 + $0x240] sm:$0xff]
  %v168 = vld [vmem:[%s1 + $0x248] sm:$0xff]
  %v169 = vld [vmem:[%s1 + $0x250] sm:$0xff]
  %v170 = vld [vmem:[%s1 + $0x258] sm:$0xff]
  %v171 = vld [vmem:[%s1 + $0x260] sm:$0xff]
  %v172 = vld [vmem:[%s1 + $0x268] sm:$0xff]
  %v173 = vld [vmem:[%s1 + $0x270] sm:$0xff]
  %v174 = vld [vmem:[%s1 + $0x278] sm:$0xff]
  %v175 = vld [vmem:[%s1 + $0x280] sm:$0xff]
  %v176 = vld [vmem:[%s1 + $0x288] sm:$0xff]
  %v177 = vld [vmem:[%s1 + $0x290] sm:$0xff]
  %v178 = vld [vmem:[%s1 + $0x298] sm:$0xff]
  %v179 = vld [vmem:[%s1 + $0x2a0] sm:$0xff]
  %v180 = vld [vmem:[%s1 + $0x2a8] sm:$0xff]
  %v181 = vld [vmem:[%s1 + $0x2b0] sm:$0xff]
  %v182 = vld [vmem:[%s1 + $0x2b8] sm:$0xff]
  %v183 = vld [vmem:[%s1 + $0x2c0] sm:$0xff]
  %v184 = vld [vmem:[%s1 + $0x2c8] sm:$0xff]
  %v185 = vld [vmem:[%s1 + $0x2d0] sm:$0xff]
  %v186 = vld [vmem:[%s1 + $0x2d8] sm:$0xff]
  %v187 = vld [vmem:[%s1 + $0x2e0] sm:$0xff]
  %v188 = vld [vmem:[%s1 + $0x2e8] sm:$0xff]
  %v189 = vld [vmem:[%s1 + $0x2f0] sm:$0xff]
  %v190 = vld [vmem:[%s1 + $0x2f8] sm:$0xff]
  %v191 = vld [vmem:[%s1 + $0x300] sm:$0xff]
  %v192 = vld [vmem:[%s1 + $0x308] sm:$0xff]
  %v193 = vld [vmem:[%s1 + $0x310] sm:$0xff]
  %v194 = vld [vmem:[%s1 + $0x318] sm:$0xff]
  %v195 = vld [vmem:[%s1 + $0x320] sm:$0xff]
  %v196 = vld [vmem:[%s1 + $0x328] sm:$0xff]
  %v197 = vld [vmem:[%s1 + $0x330] sm:$0xff]
  %v198 = vld [vmem:[%s1 + $0x338] sm:$0xff]
  %v199 = vld [vmem:[%s1 + $0x340] sm:$0xff]
  %v200 = vld [vmem:[%s1 + $0x348] sm:$0xff]
  %v201 = vld [vmem:[%s1 + $0x350] sm:$0xff]
  %v202 = vld [vmem:[%s1 + $0x358] sm:$0xff]
  %v203 = vld [vmem:[%s1 + $0x360] sm:$0xff]
  %v204 = vld [vmem:[%s1 + $0x368] sm:$0xff]
  %v205 = vld [vmem:[%s1 + $0x370] sm:$0xff]
  %v206 = vld [vmem:[%s1 + $0x378] sm:$0xff]
  %v207 = vld [vmem:[%s1 + $0x380] sm:$0xff]
  %v208 = vld [vmem:[%s1 + $0x388] sm:$0xff]
  %v209 = vld [vmem:[%s1 + $0x390] sm:$0xff]
  %v210 = vld [vmem:[%s1 + $0x398] sm:$0xff]
  %v211 = vld [vmem:[%s1 + $0x3a0] sm:$0xff]
  %v212 = vld [vmem:[%s1 + $0x3a8] sm:$0xff]
  %v213 = vld [vmem:[%s1 + $0x3b0] sm:$0xff]
  %v214 = vld [vmem:[%s1 + $0x3b8] sm:$0xff]
  %v215 = vld [vmem:[%s1 + $0x3c0] sm:$0xff]
  %v216 = vld [vmem:[%s1 + $0x3c8] sm:$0xff]
  %v217 = vld [vmem:[%s1 + $0x3d0] sm:$0xff]
  %v218 = vld [vmem:[%s1 + $0x3d8] sm:$0xff]
  %v219 = vld [vmem:[%s1 + $0x3e0] sm:$0xff]
  %v220 = vld [vmem:[%s1 + $0x3e8] sm:$0xff]
  %v221 = vld [vmem:[%s1 + $0x3f0] sm:$0xff]
  %v222 = vld [vmem:[%s1 + $0x3f8] sm:$0xff]
  %v223 = vld [vmem:[%s1 + $0x400] sm:$0xff]
  %v224 = vld [vmem:[%s1 + $0x408] sm:$0xff]
  %v225 = vld [vmem:[%s1 + $0x410] sm:$0xff]
  %v226 = vld [vmem:[%s1 + $0x418] sm:$0xff]
  %v227 = vld [vmem:[%s1 + $0x420] sm:$0xff]
  %v228 = vld [vmem:[%s1 + $0x428] sm:$0xff]
  %v229 = vld [vmem:[%s1 + $0x430] sm:$0xff]
  %v230 = vld [vmem:[%s1 + $0x438] sm:$0xff]
  %v231 = vld [vmem:[%s1 + $0x440] sm:$0xff]
  %v232 = vld [vmem:[%s1 + $0x448] sm:$0xff]
  %v233 = vld [vmem:[%s1 + $0x450] sm:$0xff]
  %v234 = vld [vmem:[%s1 + $0x458] sm:$0xff]
  %v235 = vld [vmem:[%s1 + $0x460] sm:$0xff]
  %v236 = vld [vmem:[%s1 + $0x468] sm:$0xff]
  %v237 = vld [vmem:[%s1 + $0x470] sm:$0xff]
  %v238 = vld [vmem:[%s1 + $0x478] sm:$0xff]
  %v239 = vld [vmem:[%s2] sm:$0x3]
  %v241 = vlaneseq
  %v242 = vshrl.u32 %v241, 7
  %v243 = vsub.s32 0, %v242
  %v244 = vrot.slane %v239, %v243
  %v245 = vlaneseq
  %v246 = vshrl.u32 %v245, 7
  %v247 = vsub.s32 1, %v246
  %v248 = vrot.slane %v239, %v247
  %v331 = vunpack.c.l.b16 %v15
  %v332 = vunpack.c.h.b16 %v15
  %v333 = vunpack.c.l.b16 %v16
  %v334 = vunpack.c.h.b16 %v16
  %v335 = vunpack.c.l.b16 %v17
  %v336 = vunpack.c.h.b16 %v17
  %v337 = vunpack.c.l.b16 %v18
  %v338 = vunpack.c.h.b16 %v18
  %v339 = vunpack.c.l.b16 %v19
  %v340 = vunpack.c.l.b16 %v20
  %v341 = vunpack.c.h.b16 %v20
  %v342 = vunpack.c.l.b16 %v21
  %v343 = vunpack.c.h.b16 %v21
  %v344 = vunpack.c.l.b16 %v22
  %v345 = vunpack.c.h.b16 %v22
  %v346 = vunpack.c.l.b16 %v23
  %v347 = vunpack.c.h.b16 %v23
  %v348 = vunpack.c.l.b16 %v24
  %v349 = vunpack.c.l.b16 %v25
  %v350 = vunpack.c.h.b16 %v25
  %v351 = vunpack.c.l.b16 %v26
  %v352 = vunpack.c.h.b16 %v26
  %v353 = vunpack.c.l.b16 %v27
  %v354 = vunpack.c.h.b16 %v27
  %v355 = vunpack.c.l.b16 %v28
  %v356 = vunpack.c.h.b16 %v28
  %v357 = vunpack.c.l.b16 %v29
  %v358 = vunpack.c.l.b16 %v30
  %v359 = vunpack.c.h.b16 %v30
  %v360 = vunpack.c.l.b16 %v31
  %v361 = vunpack.c.h.b16 %v31
  %v362 = vunpack.c.l.b16 %v32
  %v363 = vunpack.c.h.b16 %v32
  %v364 = vunpack.c.l.b16 %v33
  %v365 = vunpack.c.h.b16 %v33
  %v366 = vunpack.c.l.b16 %v34
  %v367 = vunpack.c.l.b16 %v35
  %v368 = vunpack.c.h.b16 %v35
  %v369 = vunpack.c.l.b16 %v36
  %v370 = vunpack.c.h.b16 %v36
  %v371 = vunpack.c.l.b16 %v37
  %v372 = vunpack.c.h.b16 %v37
  %v373 = vunpack.c.l.b16 %v38
  %v374 = vunpack.c.h.b16 %v38
  %v375 = vunpack.c.l.b16 %v39
  %v376 = vunpack.c.l.b16 %v40
  %v377 = vunpack.c.h.b16 %v40
  %v378 = vunpack.c.l.b16 %v41
  %v379 = vunpack.c.h.b16 %v41
  %v380 = vunpack.c.l.b16 %v42
  %v381 = vunpack.c.h.b16 %v42
  %v382 = vunpack.c.l.b16 %v43
  %v383 = vunpack.c.h.b16 %v43
  %v384 = vunpack.c.l.b16 %v44
  %v385 = vunpack.c.l.b16 %v45
  %v386 = vunpack.c.h.b16 %v45
  %v387 = vunpack.c.l.b16 %v46
  %v388 = vunpack.c.h.b16 %v46
  %v389 = vunpack.c.l.b16 %v47
  %v390 = vunpack.c.h.b16 %v47
  %v391 = vunpack.c.l.b16 %v48
  %v392 = vunpack.c.h.b16 %v48
  %v393 = vunpack.c.l.b16 %v49
  %v394 = vunpack.c.l.b16 %v50
  %v395 = vunpack.c.h.b16 %v50
  %v396 = vunpack.c.l.b16 %v51
  %v397 = vunpack.c.h.b16 %v51
  %v398 = vunpack.c.l.b16 %v52
  %v399 = vunpack.c.h.b16 %v52
  %v400 = vunpack.c.l.b16 %v53
  %v401 = vunpack.c.h.b16 %v53
  %v402 = vunpack.c.l.b16 %v54
  %v403 = vunpack.c.l.b16 %v55
  %v404 = vunpack.c.h.b16 %v55
  %v405 = vunpack.c.l.b16 %v56
  %v406 = vunpack.c.h.b16 %v56
  %v407 = vunpack.c.l.b16 %v57
  %v408 = vunpack.c.h.b16 %v57
  %v409 = vunpack.c.l.b16 %v58
  %v410 = vunpack.c.h.b16 %v58
  %v411 = vunpack.c.l.b16 %v59
  %v412 = vunpack.c.l.b16 %v60
  %v413 = vunpack.c.h.b16 %v60
  %v414 = vunpack.c.l.b16 %v61
  %v415 = vunpack.c.h.b16 %v61
  %v416 = vunpack.c.l.b16 %v62
  %v417 = vunpack.c.h.b16 %v62
  %v418 = vunpack.c.l.b16 %v63
  %v419 = vunpack.c.h.b16 %v63
  %v420 = vunpack.c.l.b16 %v64
  %v421 = vunpack.c.l.b16 %v65
  %v422 = vunpack.c.h.b16 %v65
  %v423 = vunpack.c.l.b16 %v66
  %v424 = vunpack.c.h.b16 %v66
  %v425 = vunpack.c.l.b16 %v67
  %v426 = vunpack.c.h.b16 %v67
  %v427 = vunpack.c.l.b16 %v68
  %v428 = vunpack.c.h.b16 %v68
  %v429 = vunpack.c.l.b16 %v69
  %v430 = vunpack.c.l.b16 %v70
  %v431 = vunpack.c.h.b16 %v70
  %v432 = vunpack.c.l.b16 %v71
  %v433 = vunpack.c.h.b16 %v71
  %v434 = vunpack.c.l.b16 %v72
  %v435 = vunpack.c.h.b16 %v72
  %v436 = vunpack.c.l.b16 %v73
  %v437 = vunpack.c.h.b16 %v73
  %v438 = vunpack.c.l.b16 %v74
  %v439 = vunpack.c.l.b16 %v75
  %v440 = vunpack.c.h.b16 %v75
  %v441 = vunpack.c.l.b16 %v76
  %v442 = vunpack.c.h.b16 %v76
  %v443 = vunpack.c.l.b16 %v77
  %v444 = vunpack.c.h.b16 %v77
  %v445 = vunpack.c.l.b16 %v78
  %v446 = vunpack.c.h.b16 %v78
  %v447 = vunpack.c.l.b16 %v79
  %v448 = vunpack.c.l.b16 %v80
  %v449 = vunpack.c.h.b16 %v80
  %v450 = vunpack.c.l.b16 %v81
  %v451 = vunpack.c.h.b16 %v81
  %v452 = vunpack.c.l.b16 %v82
  %v453 = vunpack.c.h.b16 %v82
  %v454 = vunpack.c.l.b16 %v83
  %v455 = vunpack.c.h.b16 %v83
  %v456 = vunpack.c.l.b16 %v84
  %v457 = vunpack.c.l.b16 %v85
  %v458 = vunpack.c.h.b16 %v85
  %v459 = vunpack.c.l.b16 %v86
  %v460 = vunpack.c.h.b16 %v86
  %v461 = vunpack.c.l.b16 %v87
  %v462 = vunpack.c.h.b16 %v87
  %v463 = vunpack.c.l.b16 %v88
  %v464 = vunpack.c.h.b16 %v88
  %v465 = vunpack.c.l.b16 %v89
  %v466 = vunpack.c.l.b16 %v90
  %v467 = vunpack.c.h.b16 %v90
  %v468 = vunpack.c.l.b16 %v91
  %v469 = vunpack.c.h.b16 %v91
  %v470 = vunpack.c.l.b16 %v92
  %v471 = vunpack.c.h.b16 %v92
  %v472 = vunpack.c.l.b16 %v93
  %v473 = vunpack.c.h.b16 %v93
  %v474 = vunpack.c.l.b16 %v94
  %v475 = vpack.c.b16 %v340, %v331
  %v476 = vpack.c.b16 %v341, %v332
  %v477 = vpack.c.b16 %v342, %v333
  %v478 = vpack.c.b16 %v343, %v334
  %v479 = vpack.c.b16 %v344, %v335
  %v480 = vpack.c.b16 %v345, %v336
  %v481 = vpack.c.b16 %v346, %v337
  %v482 = vpack.c.b16 %v347, %v338
  %v483 = vpack.c.b16 %v348, %v339
  %v484 = vpack.c.b16 %v358, %v349
  %v485 = vpack.c.b16 %v359, %v350
  %v486 = vpack.c.b16 %v360, %v351
  %v487 = vpack.c.b16 %v361, %v352
  %v488 = vpack.c.b16 %v362, %v353
  %v489 = vpack.c.b16 %v363, %v354
  %v490 = vpack.c.b16 %v364, %v355
  %v491 = vpack.c.b16 %v365, %v356
  %v492 = vpack.c.b16 %v366, %v357
  %v493 = vpack.c.b16 %v376, %v367
  %v494 = vpack.c.b16 %v377, %v368
  %v495 = vpack.c.b16 %v378, %v369
  %v496 = vpack.c.b16 %v379, %v370
  %v497 = vpack.c.b16 %v380, %v371
  %v498 = vpack.c.b16 %v381, %v372
  %v499 = vpack.c.b16 %v382, %v373
  %v500 = vpack.c.b16 %v383, %v374
  %v501 = vpack.c.b16 %v384, %v375
  %v502 = vpack.c.b16 %v394, %v385
  %v503 = vpack.c.b16 %v395, %v386
  %v504 = vpack.c.b16 %v396, %v387
  %v505 = vpack.c.b16 %v397, %v388
  %v506 = vpack.c.b16 %v398, %v389
  %v507 = vpack.c.b16 %v399, %v390
  %v508 = vpack.c.b16 %v400, %v391
  %v509 = vpack.c.b16 %v401, %v392
  %v510 = vpack.c.b16 %v402, %v393
  %v511 = vpack.c.b16 %v412, %v403
  %v512 = vpack.c.b16 %v413, %v404
  %v513 = vpack.c.b16 %v414, %v405
  %v514 = vpack.c.b16 %v415, %v406
  %v515 = vpack.c.b16 %v416, %v407
  %v516 = vpack.c.b16 %v417, %v408
  %v517 = vpack.c.b16 %v418, %v409
  %v518 = vpack.c.b16 %v419, %v410
  %v519 = vpack.c.b16 %v420, %v411
  %v520 = vpack.c.b16 %v430, %v421
  %v521 = vpack.c.b16 %v431, %v422
  %v522 = vpack.c.b16 %v432, %v423
  %v523 = vpack.c.b16 %v433, %v424
  %v524 = vpack.c.b16 %v434, %v425
  %v525 = vpack.c.b16 %v435, %v426
  %v526 = vpack.c.b16 %v436, %v427
  %v527 = vpack.c.b16 %v437, %v428
  %v528 = vpack.c.b16 %v438, %v429
  %v529 = vpack.c.b16 %v448, %v439
  %v530 = vpack.c.b16 %v449, %v440
  %v531 = vpack.c.b16 %v450, %v441
  %v532 = vpack.c.b16 %v451, %v442
  %v533 = vpack.c.b16 %v452, %v443
  %v534 = vpack.c.b16 %v453, %v444
  %v535 = vpack.c.b16 %v454, %v445
  %v536 = vpack.c.b16 %v455, %v446
  %v537 = vpack.c.b16 %v456, %v447
  %v538 = vpack.c.b16 %v466, %v457
  %v539 = vpack.c.b16 %v467, %v458
  %v540 = vpack.c.b16 %v468, %v459
  %v541 = vpack.c.b16 %v469, %v460
  %v542 = vpack.c.b16 %v470, %v461
  %v543 = vpack.c.b16 %v471, %v462
  %v544 = vpack.c.b16 %v472, %v463
  %v545 = vpack.c.b16 %v473, %v464
  %v546 = vpack.c.b16 %v474, %v465
  %v763 = vunpack.c.l.b16 %v95
  %v764 = vunpack.c.h.b16 %v95
  %v765 = vunpack.c.l.b16 %v96
  %v766 = vunpack.c.h.b16 %v96
  %v767 = vunpack.c.l.b16 %v97
  %v768 = vunpack.c.h.b16 %v97
  %v769 = vunpack.c.l.b16 %v98
  %v770 = vunpack.c.h.b16 %v98
  %v771 = vunpack.c.l.b16 %v99
  %v772 = vunpack.c.h.b16 %v99
  %v773 = vunpack.c.l.b16 %v100
  %v774 = vunpack.c.h.b16 %v100
  %v775 = vunpack.c.l.b16 %v101
  %v776 = vunpack.c.h.b16 %v101
  %v777 = vunpack.c.l.b16 %v102
  %v778 = vunpack.c.h.b16 %v102
  %v779 = vunpack.c.l.b16 %v103
  %v780 = vunpack.c.h.b16 %v103
  %v781 = vunpack.c.l.b16 %v104
  %v782 = vunpack.c.h.b16 %v104
  %v783 = vunpack.c.l.b16 %v105
  %v784 = vunpack.c.h.b16 %v105
  %v785 = vunpack.c.l.b16 %v106
  %v786 = vunpack.c.h.b16 %v106
  %v787 = vunpack.c.l.b16 %v107
  %v788 = vunpack.c.h.b16 %v107
  %v789 = vunpack.c.l.b16 %v108
  %v790 = vunpack.c.h.b16 %v108
  %v791 = vunpack.c.l.b16 %v109
  %v792 = vunpack.c.h.b16 %v109
  %v793 = vunpack.c.l.b16 %v110
  %v794 = vunpack.c.h.b16 %v110
  %v795 = vunpack.c.l.b16 %v111
  %v796 = vunpack.c.h.b16 %v111
  %v797 = vunpack.c.l.b16 %v112
  %v798 = vunpack.c.h.b16 %v112
  %v799 = vunpack.c.l.b16 %v113
  %v800 = vunpack.c.h.b16 %v113
  %v801 = vunpack.c.l.b16 %v114
  %v802 = vunpack.c.h.b16 %v114
  %v803 = vunpack.c.l.b16 %v115
  %v804 = vunpack.c.h.b16 %v115
  %v805 = vunpack.c.l.b16 %v116
  %v806 = vunpack.c.h.b16 %v116
  %v807 = vunpack.c.l.b16 %v117
  %v808 = vunpack.c.h.b16 %v117
  %v809 = vunpack.c.l.b16 %v118
  %v810 = vunpack.c.h.b16 %v118
  %v811 = vunpack.c.l.b16 %v119
  %v812 = vunpack.c.h.b16 %v119
  %v813 = vunpack.c.l.b16 %v120
  %v814 = vunpack.c.h.b16 %v120
  %v815 = vunpack.c.l.b16 %v121
  %v816 = vunpack.c.h.b16 %v121
  %v817 = vunpack.c.l.b16 %v122
  %v818 = vunpack.c.h.b16 %v122
  %v819 = vunpack.c.l.b16 %v123
  %v820 = vunpack.c.h.b16 %v123
  %v821 = vunpack.c.l.b16 %v124
  %v822 = vunpack.c.h.b16 %v124
  %v823 = vunpack.c.l.b16 %v125
  %v824 = vunpack.c.h.b16 %v125
  %v825 = vunpack.c.l.b16 %v126
  %v826 = vunpack.c.h.b16 %v126
  %v827 = vunpack.c.l.b16 %v127
  %v828 = vunpack.c.h.b16 %v127
  %v829 = vunpack.c.l.b16 %v128
  %v830 = vunpack.c.h.b16 %v128
  %v831 = vunpack.c.l.b16 %v129
  %v832 = vunpack.c.h.b16 %v129
  %v833 = vunpack.c.l.b16 %v130
  %v834 = vunpack.c.h.b16 %v130
  %v835 = vunpack.c.l.b16 %v131
  %v836 = vunpack.c.h.b16 %v131
  %v837 = vunpack.c.l.b16 %v132
  %v838 = vunpack.c.h.b16 %v132
  %v839 = vunpack.c.l.b16 %v133
  %v840 = vunpack.c.h.b16 %v133
  %v841 = vunpack.c.l.b16 %v134
  %v842 = vunpack.c.h.b16 %v134
  %v843 = vunpack.c.l.b16 %v135
  %v844 = vunpack.c.h.b16 %v135
  %v845 = vunpack.c.l.b16 %v136
  %v846 = vunpack.c.h.b16 %v136
  %v847 = vunpack.c.l.b16 %v137
  %v848 = vunpack.c.h.b16 %v137
  %v849 = vunpack.c.l.b16 %v138
  %v850 = vunpack.c.h.b16 %v138
  %v851 = vunpack.c.l.b16 %v139
  %v852 = vunpack.c.h.b16 %v139
  %v853 = vunpack.c.l.b16 %v140
  %v854 = vunpack.c.h.b16 %v140
  %v855 = vunpack.c.l.b16 %v141
  %v856 = vunpack.c.h.b16 %v141
  %v857 = vunpack.c.l.b16 %v142
  %v858 = vunpack.c.h.b16 %v142
  %v859 = vunpack.c.l.b16 %v143
  %v860 = vunpack.c.h.b16 %v143
  %v861 = vunpack.c.l.b16 %v144
  %v862 = vunpack.c.h.b16 %v144
  %v863 = vunpack.c.l.b16 %v145
  %v864 = vunpack.c.h.b16 %v145
  %v865 = vunpack.c.l.b16 %v146
  %v866 = vunpack.c.h.b16 %v146
  %v867 = vunpack.c.l.b16 %v147
  %v868 = vunpack.c.h.b16 %v147
  %v869 = vunpack.c.l.b16 %v148
  %v870 = vunpack.c.h.b16 %v148
  %v871 = vunpack.c.l.b16 %v149
  %v872 = vunpack.c.h.b16 %v149
  %v873 = vunpack.c.l.b16 %v150
  %v874 = vunpack.c.h.b16 %v150
  %v875 = vunpack.c.l.b16 %v151
  %v876 = vunpack.c.h.b16 %v151
  %v877 = vunpack.c.l.b16 %v152
  %v878 = vunpack.c.h.b16 %v152
  %v879 = vunpack.c.l.b16 %v153
  %v880 = vunpack.c.h.b16 %v153
  %v881 = vunpack.c.l.b16 %v154
  %v882 = vunpack.c.h.b16 %v154
  %v883 = vunpack.c.l.b16 %v155
  %v884 = vunpack.c.h.b16 %v155
  %v885 = vunpack.c.l.b16 %v156
  %v886 = vunpack.c.h.b16 %v156
  %v887 = vunpack.c.l.b16 %v157
  %v888 = vunpack.c.h.b16 %v157
  %v889 = vunpack.c.l.b16 %v158
  %v890 = vunpack.c.h.b16 %v158
  %v891 = vunpack.c.l.b16 %v159
  %v892 = vunpack.c.h.b16 %v159
  %v893 = vunpack.c.l.b16 %v160
  %v894 = vunpack.c.h.b16 %v160
  %v895 = vunpack.c.l.b16 %v161
  %v896 = vunpack.c.h.b16 %v161
  %v897 = vunpack.c.l.b16 %v162
  %v898 = vunpack.c.h.b16 %v162
  %v899 = vunpack.c.l.b16 %v163
  %v900 = vunpack.c.h.b16 %v163
  %v901 = vunpack.c.l.b16 %v164
  %v902 = vunpack.c.h.b16 %v164
  %v903 = vunpack.c.l.b16 %v165
  %v904 = vunpack.c.h.b16 %v165
  %v905 = vunpack.c.l.b16 %v166
  %v906 = vunpack.c.h.b16 %v166
  %v907 = vunpack.c.l.b16 %v167
  %v908 = vunpack.c.h.b16 %v167
  %v909 = vunpack.c.l.b16 %v168
  %v910 = vunpack.c.h.b16 %v168
  %v911 = vunpack.c.l.b16 %v169
  %v912 = vunpack.c.h.b16 %v169
  %v913 = vunpack.c.l.b16 %v170
  %v914 = vunpack.c.h.b16 %v170
  %v915 = vunpack.c.l.b16 %v171
  %v916 = vunpack.c.h.b16 %v171
  %v917 = vunpack.c.l.b16 %v172
  %v918 = vunpack.c.h.b16 %v172
  %v919 = vunpack.c.l.b16 %v173
  %v920 = vunpack.c.h.b16 %v173
  %v921 = vunpack.c.l.b16 %v174
  %v922 = vunpack.c.h.b16 %v174
  %v923 = vunpack.c.l.b16 %v175
  %v924 = vunpack.c.h.b16 %v175
  %v925 = vunpack.c.l.b16 %v176
  %v926 = vunpack.c.h.b16 %v176
  %v927 = vunpack.c.l.b16 %v177
  %v928 = vunpack.c.h.b16 %v177
  %v929 = vunpack.c.l.b16 %v178
  %v930 = vunpack.c.h.b16 %v178
  %v931 = vunpack.c.l.b16 %v179
  %v932 = vunpack.c.h.b16 %v179
  %v933 = vunpack.c.l.b16 %v180
  %v934 = vunpack.c.h.b16 %v180
  %v935 = vunpack.c.l.b16 %v181
  %v936 = vunpack.c.h.b16 %v181
  %v937 = vunpack.c.l.b16 %v182
  %v938 = vunpack.c.h.b16 %v182
  %v939 = vunpack.c.l.b16 %v183
  %v940 = vunpack.c.h.b16 %v183
  %v941 = vunpack.c.l.b16 %v184
  %v942 = vunpack.c.h.b16 %v184
  %v943 = vunpack.c.l.b16 %v185
  %v944 = vunpack.c.h.b16 %v185
  %v945 = vunpack.c.l.b16 %v186
  %v946 = vunpack.c.h.b16 %v186
  %v947 = vunpack.c.l.b16 %v187
  %v948 = vunpack.c.h.b16 %v187
  %v949 = vunpack.c.l.b16 %v188
  %v950 = vunpack.c.h.b16 %v188
  %v951 = vunpack.c.l.b16 %v189
  %v952 = vunpack.c.h.b16 %v189
  %v953 = vunpack.c.l.b16 %v190
  %v954 = vunpack.c.h.b16 %v190
  %v955 = vunpack.c.l.b16 %v191
  %v956 = vunpack.c.h.b16 %v191
  %v957 = vunpack.c.l.b16 %v192
  %v958 = vunpack.c.h.b16 %v192
  %v959 = vunpack.c.l.b16 %v193
  %v960 = vunpack.c.h.b16 %v193
  %v961 = vunpack.c.l.b16 %v194
  %v962 = vunpack.c.h.b16 %v194
  %v963 = vunpack.c.l.b16 %v195
  %v964 = vunpack.c.h.b16 %v195
  %v965 = vunpack.c.l.b16 %v196
  %v966 = vunpack.c.h.b16 %v196
  %v967 = vunpack.c.l.b16 %v197
  %v968 = vunpack.c.h.b16 %v197
  %v969 = vunpack.c.l.b16 %v198
  %v970 = vunpack.c.h.b16 %v198
  %v971 = vunpack.c.l.b16 %v199
  %v972 = vunpack.c.h.b16 %v199
  %v973 = vunpack.c.l.b16 %v200
  %v974 = vunpack.c.h.b16 %v200
  %v975 = vunpack.c.l.b16 %v201
  %v976 = vunpack.c.h.b16 %v201
  %v977 = vunpack.c.l.b16 %v202
  %v978 = vunpack.c.h.b16 %v202
  %v979 = vunpack.c.l.b16 %v203
  %v980 = vunpack.c.h.b16 %v203
  %v981 = vunpack.c.l.b16 %v204
  %v982 = vunpack.c.h.b16 %v204
  %v983 = vunpack.c.l.b16 %v205
  %v984 = vunpack.c.h.b16 %v205
  %v985 = vunpack.c.l.b16 %v206
  %v986 = vunpack.c.h.b16 %v206
  %v987 = vunpack.c.l.b16 %v207
  %v988 = vunpack.c.h.b16 %v207
  %v989 = vunpack.c.l.b16 %v208
  %v990 = vunpack.c.h.b16 %v208
  %v991 = vunpack.c.l.b16 %v209
  %v992 = vunpack.c.h.b16 %v209
  %v993 = vunpack.c.l.b16 %v210
  %v994 = vunpack.c.h.b16 %v210
  %v995 = vunpack.c.l.b16 %v211
  %v996 = vunpack.c.h.b16 %v211
  %v997 = vunpack.c.l.b16 %v212
  %v998 = vunpack.c.h.b16 %v212
  %v999 = vunpack.c.l.b16 %v213
  %v1000 = vunpack.c.h.b16 %v213
  %v1001 = vunpack.c.l.b16 %v214
  %v1002 = vunpack.c.h.b16 %v214
  %v1003 = vunpack.c.l.b16 %v215
  %v1004 = vunpack.c.h.b16 %v215
  %v1005 = vunpack.c.l.b16 %v216
  %v1006 = vunpack.c.h.b16 %v216
  %v1007 = vunpack.c.l.b16 %v217
  %v1008 = vunpack.c.h.b16 %v217
  %v1009 = vunpack.c.l.b16 %v218
  %v1010 = vunpack.c.h.b16 %v218
  %v1011 = vunpack.c.l.b16 %v219
  %v1012 = vunpack.c.h.b16 %v219
  %v1013 = vunpack.c.l.b16 %v220
  %v1014 = vunpack.c.h.b16 %v220
  %v1015 = vunpack.c.l.b16 %v221
  %v1016 = vunpack.c.h.b16 %v221
  %v1017 = vunpack.c.l.b16 %v222
  %v1018 = vunpack.c.h.b16 %v222
  %v1019 = vunpack.c.l.b16 %v223
  %v1020 = vunpack.c.h.b16 %v223
  %v1021 = vunpack.c.l.b16 %v224
  %v1022 = vunpack.c.h.b16 %v224
  %v1023 = vunpack.c.l.b16 %v225
  %v1024 = vunpack.c.h.b16 %v225
  %v1025 = vunpack.c.l.b16 %v226
  %v1026 = vunpack.c.h.b16 %v226
  %v1027 = vunpack.c.l.b16 %v227
  %v1028 = vunpack.c.h.b16 %v227
  %v1029 = vunpack.c.l.b16 %v228
  %v1030 = vunpack.c.h.b16 %v228
  %v1031 = vunpack.c.l.b16 %v229
  %v1032 = vunpack.c.h.b16 %v229
  %v1033 = vunpack.c.l.b16 %v230
  %v1034 = vunpack.c.h.b16 %v230
  %v1035 = vunpack.c.l.b16 %v231
  %v1036 = vunpack.c.h.b16 %v231
  %v1037 = vunpack.c.l.b16 %v232
  %v1038 = vunpack.c.h.b16 %v232
  %v1039 = vunpack.c.l.b16 %v233
  %v1040 = vunpack.c.h.b16 %v233
  %v1041 = vunpack.c.l.b16 %v234
  %v1042 = vunpack.c.h.b16 %v234
  %v1043 = vunpack.c.l.b16 %v235
  %v1044 = vunpack.c.h.b16 %v235
  %v1045 = vunpack.c.l.b16 %v236
  %v1046 = vunpack.c.h.b16 %v236
  %v1047 = vunpack.c.l.b16 %v237
  %v1048 = vunpack.c.h.b16 %v237
  %v1049 = vunpack.c.l.b16 %v238
  %v1050 = vunpack.c.h.b16 %v238
  %v1051 = vpack.c.b16 %v765, %v763
  %v1052 = vpack.c.b16 %v766, %v764
  %v1053 = vpack.c.b16 %v769, %v767
  %v1054 = vpack.c.b16 %v770, %v768
  %v1055 = vpack.c.b16 %v773, %v771
  %v1056 = vpack.c.b16 %v774, %v772
  %v1057 = vpack.c.b16 %v777, %v775
  %v1058 = vpack.c.b16 %v778, %v776
  %v1059 = vpack.c.b16 %v781, %v779
  %v1060 = vpack.c.b16 %v782, %v780
  %v1061 = vpack.c.b16 %v785, %v783
  %v1062 = vpack.c.b16 %v786, %v784
  %v1063 = vpack.c.b16 %v789, %v787
  %v1064 = vpack.c.b16 %v790, %v788
  %v1065 = vpack.c.b16 %v793, %v791
  %v1066 = vpack.c.b16 %v794, %v792
  %v1067 = vpack.c.b16 %v797, %v795
  %v1068 = vpack.c.b16 %v798, %v796
  %v1069 = vpack.c.b16 %v801, %v799
  %v1070 = vpack.c.b16 %v802, %v800
  %v1071 = vpack.c.b16 %v805, %v803
  %v1072 = vpack.c.b16 %v806, %v804
  %v1073 = vpack.c.b16 %v809, %v807
  %v1074 = vpack.c.b16 %v810, %v808
  %v1075 = vpack.c.b16 %v813, %v811
  %v1076 = vpack.c.b16 %v814, %v812
  %v1077 = vpack.c.b16 %v817, %v815
  %v1078 = vpack.c.b16 %v818, %v816
  %v1079 = vpack.c.b16 %v821, %v819
  %v1080 = vpack.c.b16 %v822, %v820
  %v1081 = vpack.c.b16 %v825, %v823
  %v1082 = vpack.c.b16 %v826, %v824
  %v1083 = vpack.c.b16 %v829, %v827
  %v1084 = vpack.c.b16 %v830, %v828
  %v1085 = vpack.c.b16 %v833, %v831
  %v1086 = vpack.c.b16 %v834, %v832
  %v1087 = vpack.c.b16 %v837, %v835
  %v1088 = vpack.c.b16 %v838, %v836
  %v1089 = vpack.c.b16 %v841, %v839
  %v1090 = vpack.c.b16 %v842, %v840
  %v1091 = vpack.c.b16 %v845, %v843
  %v1092 = vpack.c.b16 %v846, %v844
  %v1093 = vpack.c.b16 %v849, %v847
  %v1094 = vpack.c.b16 %v850, %v848
  %v1095 = vpack.c.b16 %v853, %v851
  %v1096 = vpack.c.b16 %v854, %v852
  %v1097 = vpack.c.b16 %v857, %v855
  %v1098 = vpack.c.b16 %v858, %v856
  %v1099 = vpack.c.b16 %v861, %v859
  %v1100 = vpack.c.b16 %v862, %v860
  %v1101 = vpack.c.b16 %v865, %v863
  %v1102 = vpack.c.b16 %v866, %v864
  %v1103 = vpack.c.b16 %v869, %v867
  %v1104 = vpack.c.b16 %v870, %v868
  %v1105 = vpack.c.b16 %v873, %v871
  %v1106 = vpack.c.b16 %v874, %v872
  %v1107 = vpack.c.b16 %v877, %v875
  %v1108 = vpack.c.b16 %v878, %v876
  %v1109 = vpack.c.b16 %v881, %v879
  %v1110 = vpack.c.b16 %v882, %v880
  %v1111 = vpack.c.b16 %v885, %v883
  %v1112 = vpack.c.b16 %v886, %v884
  %v1113 = vpack.c.b16 %v889, %v887
  %v1114 = vpack.c.b16 %v890, %v888
  %v1115 = vpack.c.b16 %v893, %v891
  %v1116 = vpack.c.b16 %v894, %v892
  %v1117 = vpack.c.b16 %v897, %v895
  %v1118 = vpack.c.b16 %v898, %v896
  %v1119 = vpack.c.b16 %v901, %v899
  %v1120 = vpack.c.b16 %v902, %v900
  %v1121 = vpack.c.b16 %v905, %v903
  %v1122 = vpack.c.b16 %v906, %v904
  %v1123 = vpack.c.b16 %v909, %v907
  %v1124 = vpack.c.b16 %v910, %v908
  %v1125 = vpack.c.b16 %v913, %v911
  %v1126 = vpack.c.b16 %v914, %v912
  %v1127 = vpack.c.b16 %v917, %v915
  %v1128 = vpack.c.b16 %v918, %v916
  %v1129 = vpack.c.b16 %v921, %v919
  %v1130 = vpack.c.b16 %v922, %v920
  %v1131 = vpack.c.b16 %v925, %v923
  %v1132 = vpack.c.b16 %v926, %v924
  %v1133 = vpack.c.b16 %v929, %v927
  %v1134 = vpack.c.b16 %v930, %v928
  %v1135 = vpack.c.b16 %v933, %v931
  %v1136 = vpack.c.b16 %v934, %v932
  %v1137 = vpack.c.b16 %v937, %v935
  %v1138 = vpack.c.b16 %v938, %v936
  %v1139 = vpack.c.b16 %v941, %v939
  %v1140 = vpack.c.b16 %v942, %v940
  %v1141 = vpack.c.b16 %v945, %v943
  %v1142 = vpack.c.b16 %v946, %v944
  %v1143 = vpack.c.b16 %v949, %v947
  %v1144 = vpack.c.b16 %v950, %v948
  %v1145 = vpack.c.b16 %v953, %v951
  %v1146 = vpack.c.b16 %v954, %v952
  %v1147 = vpack.c.b16 %v957, %v955
  %v1148 = vpack.c.b16 %v958, %v956
  %v1149 = vpack.c.b16 %v961, %v959
  %v1150 = vpack.c.b16 %v962, %v960
  %v1151 = vpack.c.b16 %v965, %v963
  %v1152 = vpack.c.b16 %v966, %v964
  %v1153 = vpack.c.b16 %v969, %v967
  %v1154 = vpack.c.b16 %v970, %v968
  %v1155 = vpack.c.b16 %v973, %v971
  %v1156 = vpack.c.b16 %v974, %v972
  %v1157 = vpack.c.b16 %v977, %v975
  %v1158 = vpack.c.b16 %v978, %v976
  %v1159 = vpack.c.b16 %v981, %v979
  %v1160 = vpack.c.b16 %v982, %v980
  %v1161 = vpack.c.b16 %v985, %v983
  %v1162 = vpack.c.b16 %v986, %v984
  %v1163 = vpack.c.b16 %v989, %v987
  %v1164 = vpack.c.b16 %v990, %v988
  %v1165 = vpack.c.b16 %v993, %v991
  %v1166 = vpack.c.b16 %v994, %v992
  %v1167 = vpack.c.b16 %v997, %v995
  %v1168 = vpack.c.b16 %v998, %v996
  %v1169 = vpack.c.b16 %v1001, %v999
  %v1170 = vpack.c.b16 %v1002, %v1000
  %v1171 = vpack.c.b16 %v1005, %v1003
  %v1172 = vpack.c.b16 %v1006, %v1004
  %v1173 = vpack.c.b16 %v1009, %v1007
  %v1174 = vpack.c.b16 %v1010, %v1008
  %v1175 = vpack.c.b16 %v1013, %v1011
  %v1176 = vpack.c.b16 %v1014, %v1012
  %v1177 = vpack.c.b16 %v1017, %v1015
  %v1178 = vpack.c.b16 %v1018, %v1016
  %v1179 = vpack.c.b16 %v1021, %v1019
  %v1180 = vpack.c.b16 %v1022, %v1020
  %v1181 = vpack.c.b16 %v1025, %v1023
  %v1182 = vpack.c.b16 %v1026, %v1024
  %v1183 = vpack.c.b16 %v1029, %v1027
  %v1184 = vpack.c.b16 %v1030, %v1028
  %v1185 = vpack.c.b16 %v1033, %v1031
  %v1186 = vpack.c.b16 %v1034, %v1032
  %v1187 = vpack.c.b16 %v1037, %v1035
  %v1188 = vpack.c.b16 %v1038, %v1036
  %v1189 = vpack.c.b16 %v1041, %v1039
  %v1190 = vpack.c.b16 %v1042, %v1040
  %v1191 = vpack.c.b16 %v1045, %v1043
  %v1192 = vpack.c.b16 %v1046, %v1044
  %v1193 = vpack.c.b16 %v1049, %v1047
  %v1194 = vpack.c.b16 %v1050, %v1048
  %1339 = vmatprep.subr.bf16.mxu0 %v1066
  %1340 = vmatpush1.bf16.msra.mxu0 %v1065
  %1341 = vmatprep.subr.bf16.mxu0 %v1064
  %1342 = vmatpush1.bf16.msra.mxu0 %v1063
  %1343 = vmatprep.subr.bf16.mxu0 %v1062
  %1344 = vmatpush1.bf16.msra.mxu0 %v1061
  %1345 = vmatprep.subr.bf16.mxu0 %v1060
  %1346 = vmatpush1.bf16.msra.mxu0 %v1059
  %1347 = vmatprep.subr.bf16.mxu0 %v1058
  %1348 = vmatpush1.bf16.msra.mxu0 %v1057
  %1349 = vmatprep.subr.bf16.mxu0 %v1056
  %1350 = vmatpush1.bf16.msra.mxu0 %v1055
  %1351 = vmatprep.subr.bf16.mxu0 %v1054
  %1352 = vmatpush1.bf16.msra.mxu0 %v1053
  %1353 = vmatprep.subr.bf16.mxu0 %v1052
  %1354 = vmatpush1.bf16.msra.mxu0 %v1051
  %1355 = vmatprep.subr.bf16.mxu0 %v1082
  %1356 = vmatpush2.bf16.msra.mxu0 %v1081
  %1357 = vmatprep.subr.bf16.mxu0 %v1080
  %1358 = vmatpush2.bf16.msra.mxu0 %v1079
  %1359 = vmatprep.subr.bf16.mxu0 %v1078
  %1360 = vmatpush2.bf16.msra.mxu0 %v1077
  %1361 = vmatprep.subr.bf16.mxu0 %v1076
  %1362 = vmatpush2.bf16.msra.mxu0 %v1075
  %1363 = vmatprep.subr.bf16.mxu0 %v1074
  %1364 = vmatpush2.bf16.msra.mxu0 %v1073
  %1365 = vmatprep.subr.bf16.mxu0 %v1072
  %1366 = vmatpush2.bf16.msra.mxu0 %v1071
  %1367 = vmatprep.subr.bf16.mxu0 %v1070
  %1368 = vmatpush2.bf16.msra.mxu0 %v1069
  %1369 = vmatprep.subr.bf16.mxu0 %v1068
  %1370 = vmatpush2.bf16.msra.mxu0 %v1067
  %1371 = vmatprep.mubr.bf16.mxu0 %v476
  %1372 = vmatmul.mubr.bf16.gmra.mxu0 %v475
  %v1373 = vpop.f32.mrf.mxu0
  %v1374 = vadd.f32 %v244, %v1373
  %v1375 = vpop.f32.mrf.mxu0
  %v1376 = vadd.f32 %v248, %v1375
  %v1377 = vpop.f32.mrf.mxu0
  %v1378 = vadd.f32 %v244, %v1377
  %v1379 = vpop.f32.mrf.mxu0
  %v1380 = vadd.f32 %v248, %v1379
  %1381 = vmatprep.mubr.bf16.mxu0 %v485
  %1382 = vmatmul.mubr.bf16.gmra.mxu0 %v484
  %v1383 = vpop.f32.mrf.mxu0
  %v1384 = vadd.f32 %v244, %v1383
  %v1385 = vpop.f32.mrf.mxu0
  %v1386 = vadd.f32 %v248, %v1385
  %v1387 = vpop.f32.mrf.mxu0
  %v1388 = vadd.f32 %v244, %v1387
  %v1389 = vpop.f32.mrf.mxu0
  %v1390 = vadd.f32 %v248, %v1389
  %1391 = vmatprep.mubr.bf16.mxu0 %v494
  %1392 = vmatmul.mubr.bf16.gmra.mxu0 %v493
  %v1393 = vpop.f32.mrf.mxu0
  %v1394 = vadd.f32 %v244, %v1393
  %v1395 = vpop.f32.mrf.mxu0
  %v1396 = vadd.f32 %v248, %v1395
  %v1397 = vpop.f32.mrf.mxu0
  %v1398 = vadd.f32 %v244, %v1397
  %v1399 = vpop.f32.mrf.mxu0
  %v1400 = vadd.f32 %v248, %v1399
  %1401 = vmatprep.mubr.bf16.mxu0 %v503
  %1402 = vmatmul.mubr.bf16.gmra.mxu0 %v502
  %v1403 = vpop.f32.mrf.mxu0
  %v1404 = vadd.f32 %v244, %v1403
  %v1405 = vpop.f32.mrf.mxu0
  %v1406 = vadd.f32 %v248, %v1405
  %v1407 = vpop.f32.mrf.mxu0
  %v1408 = vadd.f32 %v244, %v1407
  %v1409 = vpop.f32.mrf.mxu0
  %v1410 = vadd.f32 %v248, %v1409
  %1411 = vmatprep.mubr.bf16.mxu0 %v512
  %1412 = vmatmul.mubr.bf16.gmra.mxu0 %v511
  %v1413 = vpop.f32.mrf.mxu0
  %v1414 = vadd.f32 %v244, %v1413
  %v1415 = vpop.f32.mrf.mxu0
  %v1416 = vadd.f32 %v248, %v1415
  %v1417 = vpop.f32.mrf.mxu0
  %v1418 = vadd.f32 %v244, %v1417
  %v1419 = vpop.f32.mrf.mxu0
  %v1420 = vadd.f32 %v248, %v1419
  %1421 = vmatprep.mubr.bf16.mxu0 %v521
  %1422 = vmatmul.mubr.bf16.gmra.mxu0 %v520
  %v1423 = vpop.f32.mrf.mxu0
  %v1424 = vadd.f32 %v244, %v1423
  %v1425 = vpop.f32.mrf.mxu0
  %v1426 = vadd.f32 %v248, %v1425
  %v1427 = vpop.f32.mrf.mxu0
  %v1428 = vadd.f32 %v244, %v1427
  %v1429 = vpop.f32.mrf.mxu0
  %v1430 = vadd.f32 %v248, %v1429
  %1431 = vmatprep.mubr.bf16.mxu0 %v530
  %1432 = vmatmul.mubr.bf16.gmra.mxu0 %v529
  %v1433 = vpop.f32.mrf.mxu0
  %v1434 = vadd.f32 %v244, %v1433
  %v1435 = vpop.f32.mrf.mxu0
  %v1436 = vadd.f32 %v248, %v1435
  %v1437 = vpop.f32.mrf.mxu0
  %v1438 = vadd.f32 %v244, %v1437
  %v1439 = vpop.f32.mrf.mxu0
  %v1440 = vadd.f32 %v248, %v1439
  %1441 = vmatprep.mubr.bf16.mxu0 %v539
  %1442 = vmatmul.mubr.bf16.gmra.mxu0 %v538
  %v1443 = vpop.f32.mrf.mxu0
  %v1444 = vadd.f32 %v244, %v1443
  %v1445 = vpop.f32.mrf.mxu0
  %v1446 = vadd.f32 %v248, %v1445
  %v1447 = vpop.f32.mrf.mxu0
  %v1448 = vadd.f32 %v244, %v1447
  %v1449 = vpop.f32.mrf.mxu0
  %v1450 = vadd.f32 %v248, %v1449
  %1451 = vdwg.mxu0
  %1452 = vmatprep.subr.bf16.mxu0 %v1098
  %1453 = vmatpush1.bf16.msra.mxu0 %v1097
  %1454 = vmatprep.subr.bf16.mxu0 %v1096
  %1455 = vmatpush1.bf16.msra.mxu0 %v1095
  %1456 = vmatprep.subr.bf16.mxu0 %v1094
  %1457 = vmatpush1.bf16.msra.mxu0 %v1093
  %1458 = vmatprep.subr.bf16.mxu0 %v1092
  %1459 = vmatpush1.bf16.msra.mxu0 %v1091
  %1460 = vmatprep.subr.bf16.mxu0 %v1090
  %1461 = vmatpush1.bf16.msra.mxu0 %v1089
  %1462 = vmatprep.subr.bf16.mxu0 %v1088
  %1463 = vmatpush1.bf16.msra.mxu0 %v1087
  %1464 = vmatprep.subr.bf16.mxu0 %v1086
  %1465 = vmatpush1.bf16.msra.mxu0 %v1085
  %1466 = vmatprep.subr.bf16.mxu0 %v1084
  %1467 = vmatpush1.bf16.msra.mxu0 %v1083
  %1468 = vmatprep.subr.bf16.mxu0 %v1114
  %1469 = vmatpush2.bf16.msra.mxu0 %v1113
  %1470 = vmatprep.subr.bf16.mxu0 %v1112
  %1471 = vmatpush2.bf16.msra.mxu0 %v1111
  %1472 = vmatprep.subr.bf16.mxu0 %v1110
  %1473 = vmatpush2.bf16.msra.mxu0 %v1109
  %1474 = vmatprep.subr.bf16.mxu0 %v1108
  %1475 = vmatpush2.bf16.msra.mxu0 %v1107
  %1476 = vmatprep.subr.bf16.mxu0 %v1106
  %1477 = vmatpush2.bf16.msra.mxu0 %v1105
  %1478 = vmatprep.subr.bf16.mxu0 %v1104
  %1479 = vmatpush2.bf16.msra.mxu0 %v1103
  %1480 = vmatprep.subr.bf16.mxu0 %v1102
  %1481 = vmatpush2.bf16.msra.mxu0 %v1101
  %1482 = vmatprep.subr.bf16.mxu0 %v1100
  %1483 = vmatpush2.bf16.msra.mxu0 %v1099
  %1484 = vmatprep.mubr.bf16.mxu0 %v478
  %1485 = vmatmul.mubr.bf16.gmra.mxu0 %v477
  %v1486 = vpop.f32.mrf.mxu0
  %v1487 = vadd.f32 %v1374, %v1486
  %v1488 = vpop.f32.mrf.mxu0
  %v1489 = vadd.f32 %v1376, %v1488
  %v1490 = vpop.f32.mrf.mxu0
  %v1491 = vadd.f32 %v1378, %v1490
  %v1492 = vpop.f32.mrf.mxu0
  %v1493 = vadd.f32 %v1380, %v1492
  %1494 = vmatprep.mubr.bf16.mxu0 %v487
  %1495 = vmatmul.mubr.bf16.gmra.mxu0 %v486
  %v1496 = vpop.f32.mrf.mxu0
  %v1497 = vadd.f32 %v1384, %v1496
  %v1498 = vpop.f32.mrf.mxu0
  %v1499 = vadd.f32 %v1386, %v1498
  %v1500 = vpop.f32.mrf.mxu0
  %v1501 = vadd.f32 %v1388, %v1500
  %v1502 = vpop.f32.mrf.mxu0
  %v1503 = vadd.f32 %v1390, %v1502
  %1504 = vmatprep.mubr.bf16.mxu0 %v496
  %1505 = vmatmul.mubr.bf16.gmra.mxu0 %v495
  %v1506 = vpop.f32.mrf.mxu0
  %v1507 = vadd.f32 %v1394, %v1506
  %v1508 = vpop.f32.mrf.mxu0
  %v1509 = vadd.f32 %v1396, %v1508
  %v1510 = vpop.f32.mrf.mxu0
  %v1511 = vadd.f32 %v1398, %v1510
  %v1512 = vpop.f32.mrf.mxu0
  %v1513 = vadd.f32 %v1400, %v1512
  %1514 = vmatprep.mubr.bf16.mxu0 %v505
  %1515 = vmatmul.mubr.bf16.gmra.mxu0 %v504
  %v1516 = vpop.f32.mrf.mxu0
  %v1517 = vadd.f32 %v1404, %v1516
  %v1518 = vpop.f32.mrf.mxu0
  %v1519 = vadd.f32 %v1406, %v1518
  %v1520 = vpop.f32.mrf.mxu0
  %v1521 = vadd.f32 %v1408, %v1520
  %v1522 = vpop.f32.mrf.mxu0
  %v1523 = vadd.f32 %v1410, %v1522
  %1524 = vmatprep.mubr.bf16.mxu0 %v514
  %1525 = vmatmul.mubr.bf16.gmra.mxu0 %v513
  %v1526 = vpop.f32.mrf.mxu0
  %v1527 = vadd.f32 %v1414, %v1526
  %v1528 = vpop.f32.mrf.mxu0
  %v1529 = vadd.f32 %v1416, %v1528
  %v1530 = vpop.f32.mrf.mxu0
  %v1531 = vadd.f32 %v1418, %v1530
  %v1532 = vpop.f32.mrf.mxu0
  %v1533 = vadd.f32 %v1420, %v1532
  %1534 = vmatprep.mubr.bf16.mxu0 %v523
  %1535 = vmatmul.mubr.bf16.gmra.mxu0 %v522
  %v1536 = vpop.f32.mrf.mxu0
  %v1537 = vadd.f32 %v1424, %v1536
  %v1538 = vpop.f32.mrf.mxu0
  %v1539 = vadd.f32 %v1426, %v1538
  %v1540 = vpop.f32.mrf.mxu0
  %v1541 = vadd.f32 %v1428, %v1540
  %v1542 = vpop.f32.mrf.mxu0
  %v1543 = vadd.f32 %v1430, %v1542
  %1544 = vmatprep.mubr.bf16.mxu0 %v532
  %1545 = vmatmul.mubr.bf16.gmra.mxu0 %v531
  %v1546 = vpop.f32.mrf.mxu0
  %v1547 = vadd.f32 %v1434, %v1546
  %v1548 = vpop.f32.mrf.mxu0
  %v1549 = vadd.f32 %v1436, %v1548
  %v1550 = vpop.f32.mrf.mxu0
  %v1551 = vadd.f32 %v1438, %v1550
  %v1552 = vpop.f32.mrf.mxu0
  %v1553 = vadd.f32 %v1440, %v1552
  %1554 = vmatprep.mubr.bf16.mxu0 %v541
  %1555 = vmatmul.mubr.bf16.gmra.mxu0 %v540
  %v1556 = vpop.f32.mrf.mxu0
  %v1557 = vadd.f32 %v1444, %v1556
  %v1558 = vpop.f32.mrf.mxu0
  %v1559 = vadd.f32 %v1446, %v1558
  %v1560 = vpop.f32.mrf.mxu0
  %v1561 = vadd.f32 %v1448, %v1560
  %v1562 = vpop.f32.mrf.mxu0
  %v1563 = vadd.f32 %v1450, %v1562
  %1564 = vdwg.mxu0
  %1565 = vmatprep.subr.bf16.mxu0 %v1130
  %1566 = vmatpush1.bf16.msra.mxu0 %v1129
  %1567 = vmatprep.subr.bf16.mxu0 %v1128
  %1568 = vmatpush1.bf16.msra.mxu0 %v1127
  %1569 = vmatprep.subr.bf16.mxu0 %v1126
  %1570 = vmatpush1.bf16.msra.mxu0 %v1125
  %1571 = vmatprep.subr.bf16.mxu0 %v1124
  %1572 = vmatpush1.bf16.msra.mxu0 %v1123
  %1573 = vmatprep.subr.bf16.mxu0 %v1122
  %1574 = vmatpush1.bf16.msra.mxu0 %v1121
  %1575 = vmatprep.subr.bf16.mxu0 %v1120
  %1576 = vmatpush1.bf16.msra.mxu0 %v1119
  %1577 = vmatprep.subr.bf16.mxu0 %v1118
  %1578 = vmatpush1.bf16.msra.mxu0 %v1117
  %1579 = vmatprep.subr.bf16.mxu0 %v1116
  %1580 = vmatpush1.bf16.msra.mxu0 %v1115
  %1581 = vmatprep.subr.bf16.mxu0 %v1146
  %1582 = vmatpush2.bf16.msra.mxu0 %v1145
  %1583 = vmatprep.subr.bf16.mxu0 %v1144
  %1584 = vmatpush2.bf16.msra.mxu0 %v1143
  %1585 = vmatprep.subr.bf16.mxu0 %v1142
  %1586 = vmatpush2.bf16.msra.mxu0 %v1141
  %1587 = vmatprep.subr.bf16.mxu0 %v1140
  %1588 = vmatpush2.bf16.msra.mxu0 %v1139
  %1589 = vmatprep.subr.bf16.mxu0 %v1138
  %1590 = vmatpush2.bf16.msra.mxu0 %v1137
  %1591 = vmatprep.subr.bf16.mxu0 %v1136
  %1592 = vmatpush2.bf16.msra.mxu0 %v1135
  %1593 = vmatprep.subr.bf16.mxu0 %v1134
  %1594 = vmatpush2.bf16.msra.mxu0 %v1133
  %1595 = vmatprep.subr.bf16.mxu0 %v1132
  %1596 = vmatpush2.bf16.msra.mxu0 %v1131
  %1597 = vmatprep.mubr.bf16.mxu0 %v480
  %1598 = vmatmul.mubr.bf16.gmra.mxu0 %v479
  %v1599 = vpop.f32.mrf.mxu0
  %v1600 = vadd.f32 %v1487, %v1599
  %v1601 = vpop.f32.mrf.mxu0
  %v1602 = vadd.f32 %v1489, %v1601
  %v1603 = vpop.f32.mrf.mxu0
  %v1604 = vadd.f32 %v1491, %v1603
  %v1605 = vpop.f32.mrf.mxu0
  %v1606 = vadd.f32 %v1493, %v1605
  %1607 = vmatprep.mubr.bf16.mxu0 %v489
  %1608 = vmatmul.mubr.bf16.gmra.mxu0 %v488
  %v1609 = vpop.f32.mrf.mxu0
  %v1610 = vadd.f32 %v1497, %v1609
  %v1611 = vpop.f32.mrf.mxu0
  %v1612 = vadd.f32 %v1499, %v1611
  %v1613 = vpop.f32.mrf.mxu0
  %v1614 = vadd.f32 %v1501, %v1613
  %v1615 = vpop.f32.mrf.mxu0
  %v1616 = vadd.f32 %v1503, %v1615
  %1617 = vmatprep.mubr.bf16.mxu0 %v498
  %1618 = vmatmul.mubr.bf16.gmra.mxu0 %v497
  %v1619 = vpop.f32.mrf.mxu0
  %v1620 = vadd.f32 %v1507, %v1619
  %v1621 = vpop.f32.mrf.mxu0
  %v1622 = vadd.f32 %v1509, %v1621
  %v1623 = vpop.f32.mrf.mxu0
  %v1624 = vadd.f32 %v1511, %v1623
  %v1625 = vpop.f32.mrf.mxu0
  %v1626 = vadd.f32 %v1513, %v1625
  %1627 = vmatprep.mubr.bf16.mxu0 %v507
  %1628 = vmatmul.mubr.bf16.gmra.mxu0 %v506
  %v1629 = vpop.f32.mrf.mxu0
  %v1630 = vadd.f32 %v1517, %v1629
  %v1631 = vpop.f32.mrf.mxu0
  %v1632 = vadd.f32 %v1519, %v1631
  %v1633 = vpop.f32.mrf.mxu0
  %v1634 = vadd.f32 %v1521, %v1633
  %v1635 = vpop.f32.mrf.mxu0
  %v1636 = vadd.f32 %v1523, %v1635
  %1637 = vmatprep.mubr.bf16.mxu0 %v516
  %1638 = vmatmul.mubr.bf16.gmra.mxu0 %v515
  %v1639 = vpop.f32.mrf.mxu0
  %v1640 = vadd.f32 %v1527, %v1639
  %v1641 = vpop.f32.mrf.mxu0
  %v1642 = vadd.f32 %v1529, %v1641
  %v1643 = vpop.f32.mrf.mxu0
  %v1644 = vadd.f32 %v1531, %v1643
  %v1645 = vpop.f32.mrf.mxu0
  %v1646 = vadd.f32 %v1533, %v1645
  %1647 = vmatprep.mubr.bf16.mxu0 %v525
  %1648 = vmatmul.mubr.bf16.gmra.mxu0 %v524
  %v1649 = vpop.f32.mrf.mxu0
  %v1650 = vadd.f32 %v1537, %v1649
  %v1651 = vpop.f32.mrf.mxu0
  %v1652 = vadd.f32 %v1539, %v1651
  %v1653 = vpop.f32.mrf.mxu0
  %v1654 = vadd.f32 %v1541, %v1653
  %v1655 = vpop.f32.mrf.mxu0
  %v1656 = vadd.f32 %v1543, %v1655
  %1657 = vmatprep.mubr.bf16.mxu0 %v534
  %1658 = vmatmul.mubr.bf16.gmra.mxu0 %v533
  %v1659 = vpop.f32.mrf.mxu0
  %v1660 = vadd.f32 %v1547, %v1659
  %v1661 = vpop.f32.mrf.mxu0
  %v1662 = vadd.f32 %v1549, %v1661
  %v1663 = vpop.f32.mrf.mxu0
  %v1664 = vadd.f32 %v1551, %v1663
  %v1665 = vpop.f32.mrf.mxu0
  %v1666 = vadd.f32 %v1553, %v1665
  %1667 = vmatprep.mubr.bf16.mxu0 %v543
  %1668 = vmatmul.mubr.bf16.gmra.mxu0 %v542
  %v1669 = vpop.f32.mrf.mxu0
  %v1670 = vadd.f32 %v1557, %v1669
  %v1671 = vpop.f32.mrf.mxu0
  %v1672 = vadd.f32 %v1559, %v1671
  %v1673 = vpop.f32.mrf.mxu0
  %v1674 = vadd.f32 %v1561, %v1673
  %v1675 = vpop.f32.mrf.mxu0
  %v1676 = vadd.f32 %v1563, %v1675
  %1677 = vdwg.mxu0
  %1678 = vmatprep.subr.bf16.mxu0 %v1162
  %1679 = vmatpush1.bf16.msra.mxu0 %v1161
  %1680 = vmatprep.subr.bf16.mxu0 %v1160
  %1681 = vmatpush1.bf16.msra.mxu0 %v1159
  %1682 = vmatprep.subr.bf16.mxu0 %v1158
  %1683 = vmatpush1.bf16.msra.mxu0 %v1157
  %1684 = vmatprep.subr.bf16.mxu0 %v1156
  %1685 = vmatpush1.bf16.msra.mxu0 %v1155
  %1686 = vmatprep.subr.bf16.mxu0 %v1154
  %1687 = vmatpush1.bf16.msra.mxu0 %v1153
  %1688 = vmatprep.subr.bf16.mxu0 %v1152
  %1689 = vmatpush1.bf16.msra.mxu0 %v1151
  %1690 = vmatprep.subr.bf16.mxu0 %v1150
  %1691 = vmatpush1.bf16.msra.mxu0 %v1149
  %1692 = vmatprep.subr.bf16.mxu0 %v1148
  %1693 = vmatpush1.bf16.msra.mxu0 %v1147
  %1694 = vmatprep.subr.bf16.mxu0 %v1178
  %1695 = vmatpush2.bf16.msra.mxu0 %v1177
  %1696 = vmatprep.subr.bf16.mxu0 %v1176
  %1697 = vmatpush2.bf16.msra.mxu0 %v1175
  %1698 = vmatprep.subr.bf16.mxu0 %v1174
  %1699 = vmatpush2.bf16.msra.mxu0 %v1173
  %1700 = vmatprep.subr.bf16.mxu0 %v1172
  %1701 = vmatpush2.bf16.msra.mxu0 %v1171
  %1702 = vmatprep.subr.bf16.mxu0 %v1170
  %1703 = vmatpush2.bf16.msra.mxu0 %v1169
  %1704 = vmatprep.subr.bf16.mxu0 %v1168
  %1705 = vmatpush2.bf16.msra.mxu0 %v1167
  %1706 = vmatprep.subr.bf16.mxu0 %v1166
  %1707 = vmatpush2.bf16.msra.mxu0 %v1165
  %1708 = vmatprep.subr.bf16.mxu0 %v1164
  %1709 = vmatpush2.bf16.msra.mxu0 %v1163
  %1710 = vmatprep.mubr.bf16.mxu0 %v482
  %1711 = vmatmul.mubr.bf16.gmra.mxu0 %v481
  %v1712 = vpop.f32.mrf.mxu0
  %v1713 = vadd.f32 %v1600, %v1712
  %v1714 = vpop.f32.mrf.mxu0
  %v1715 = vadd.f32 %v1602, %v1714
  %v1716 = vpop.f32.mrf.mxu0
  %v1717 = vadd.f32 %v1604, %v1716
  %v1718 = vpop.f32.mrf.mxu0
  %v1719 = vadd.f32 %v1606, %v1718
  %1720 = vmatprep.mubr.bf16.mxu0 %v491
  %1721 = vmatmul.mubr.bf16.gmra.mxu0 %v490
  %v1722 = vpop.f32.mrf.mxu0
  %v1723 = vadd.f32 %v1610, %v1722
  %v1724 = vpop.f32.mrf.mxu0
  %v1725 = vadd.f32 %v1612, %v1724
  %v1726 = vpop.f32.mrf.mxu0
  %v1727 = vadd.f32 %v1614, %v1726
  %v1728 = vpop.f32.mrf.mxu0
  %v1729 = vadd.f32 %v1616, %v1728
  %1730 = vmatprep.mubr.bf16.mxu0 %v500
  %1731 = vmatmul.mubr.bf16.gmra.mxu0 %v499
  %v1732 = vpop.f32.mrf.mxu0
  %v1733 = vadd.f32 %v1620, %v1732
  %v1734 = vpop.f32.mrf.mxu0
  %v1735 = vadd.f32 %v1622, %v1734
  %v1736 = vpop.f32.mrf.mxu0
  %v1737 = vadd.f32 %v1624, %v1736
  %v1738 = vpop.f32.mrf.mxu0
  %v1739 = vadd.f32 %v1626, %v1738
  %1740 = vmatprep.mubr.bf16.mxu0 %v509
  %1741 = vmatmul.mubr.bf16.gmra.mxu0 %v508
  %v1742 = vpop.f32.mrf.mxu0
  %v1743 = vadd.f32 %v1630, %v1742
  %v1744 = vpop.f32.mrf.mxu0
  %v1745 = vadd.f32 %v1632, %v1744
  %v1746 = vpop.f32.mrf.mxu0
  %v1747 = vadd.f32 %v1634, %v1746
  %v1748 = vpop.f32.mrf.mxu0
  %v1749 = vadd.f32 %v1636, %v1748
  %1750 = vmatprep.mubr.bf16.mxu0 %v518
  %1751 = vmatmul.mubr.bf16.gmra.mxu0 %v517
  %v1752 = vpop.f32.mrf.mxu0
  %v1753 = vadd.f32 %v1640, %v1752
  %v1754 = vpop.f32.mrf.mxu0
  %v1755 = vadd.f32 %v1642, %v1754
  %v1756 = vpop.f32.mrf.mxu0
  %v1757 = vadd.f32 %v1644, %v1756
  %v1758 = vpop.f32.mrf.mxu0
  %v1759 = vadd.f32 %v1646, %v1758
  %1760 = vmatprep.mubr.bf16.mxu0 %v527
  %1761 = vmatmul.mubr.bf16.gmra.mxu0 %v526
  %v1762 = vpop.f32.mrf.mxu0
  %v1763 = vadd.f32 %v1650, %v1762
  %v1764 = vpop.f32.mrf.mxu0
  %v1765 = vadd.f32 %v1652, %v1764
  %v1766 = vpop.f32.mrf.mxu0
  %v1767 = vadd.f32 %v1654, %v1766
  %v1768 = vpop.f32.mrf.mxu0
  %v1769 = vadd.f32 %v1656, %v1768
  %1770 = vmatprep.mubr.bf16.mxu0 %v536
  %1771 = vmatmul.mubr.bf16.gmra.mxu0 %v535
  %v1772 = vpop.f32.mrf.mxu0
  %v1773 = vadd.f32 %v1660, %v1772
  %v1774 = vpop.f32.mrf.mxu0
  %v1775 = vadd.f32 %v1662, %v1774
  %v1776 = vpop.f32.mrf.mxu0
  %v1777 = vadd.f32 %v1664, %v1776
  %v1778 = vpop.f32.mrf.mxu0
  %v1779 = vadd.f32 %v1666, %v1778
  %1780 = vmatprep.mubr.bf16.mxu0 %v545
  %1781 = vmatmul.mubr.bf16.gmra.mxu0 %v544
  %v1782 = vpop.f32.mrf.mxu0
  %v1783 = vadd.f32 %v1670, %v1782
  %v1784 = vpop.f32.mrf.mxu0
  %v1785 = vadd.f32 %v1672, %v1784
  %v1786 = vpop.f32.mrf.mxu0
  %v1787 = vadd.f32 %v1674, %v1786
  %v1788 = vpop.f32.mrf.mxu0
  %v1789 = vadd.f32 %v1676, %v1788
  %1790 = vdwg.mxu0
  %1791 = vmatprep.subr.bf16.mxu0 %v1194
  %1792 = vmatpush1.bf16.msra.mxu0 %v1193
  %1793 = vmatprep.subr.bf16.mxu0 %v1192
  %1794 = vmatpush1.bf16.msra.mxu0 %v1191
  %1795 = vmatprep.subr.bf16.mxu0 %v1190
  %1796 = vmatpush1.bf16.msra.mxu0 %v1189
  %1797 = vmatprep.subr.bf16.mxu0 %v1188
  %1798 = vmatpush1.bf16.msra.mxu0 %v1187
  %1799 = vmatprep.subr.bf16.mxu0 %v1186
  %1800 = vmatpush1.bf16.msra.mxu0 %v1185
  %1801 = vmatprep.subr.bf16.mxu0 %v1184
  %1802 = vmatpush1.bf16.msra.mxu0 %v1183
  %1803 = vmatprep.subr.bf16.mxu0 %v1182
  %1804 = vmatpush1.bf16.msra.mxu0 %v1181
  %1805 = vmatprep.subr.bf16.mxu0 %v1180
  %1806 = vmatpush1.bf16.msra.mxu0 %v1179
  %1807 = vmatprep.subr.bf16.mxu0 0
  %1808 = vmatpush2.bf16.msra.mxu0 0
  %1809 = vmatprep.subr.bf16.mxu0 0
  %1810 = vmatpush2.bf16.msra.mxu0 0
  %1811 = vmatprep.subr.bf16.mxu0 0
  %1812 = vmatpush2.bf16.msra.mxu0 0
  %1813 = vmatprep.subr.bf16.mxu0 0
  %1814 = vmatpush2.bf16.msra.mxu0 0
  %1815 = vmatprep.subr.bf16.mxu0 0
  %1816 = vmatpush2.bf16.msra.mxu0 0
  %1817 = vmatprep.subr.bf16.mxu0 0
  %1818 = vmatpush2.bf16.msra.mxu0 0
  %1819 = vmatprep.subr.bf16.mxu0 0
  %1820 = vmatpush2.bf16.msra.mxu0 0
  %1821 = vmatprep.subr.bf16.mxu0 0
  %1822 = vmatpush2.bf16.msra.mxu0 0
  %1823 = vmatprep.mubr.bf16.mxu0 0
  %1824 = vmatmul.mubr.bf16.gmra.mxu0 %v483
  %v1825 = vpop.f32.mrf.mxu0
  %v1826 = vadd.f32 %v1713, %v1825
  %v1827 = vpop.f32.mrf.mxu0
  %v1828 = vadd.f32 %v1715, %v1827
  %v1829 = vpop.f32.mrf.mxu0
  %v1830 = vadd.f32 %v1717, %v1829
  %v1831 = vpop.f32.mrf.mxu0
  %v1832 = vadd.f32 %v1719, %v1831
  %1833 = vmatprep.mubr.bf16.mxu0 0
  %1834 = vmatmul.mubr.bf16.gmra.mxu0 %v492
  %v1835 = vpop.f32.mrf.mxu0
  %v1836 = vadd.f32 %v1723, %v1835
  %v1837 = vpop.f32.mrf.mxu0
  %v1838 = vadd.f32 %v1725, %v1837
  %v1839 = vpop.f32.mrf.mxu0
  %v1840 = vadd.f32 %v1727, %v1839
  %v1841 = vpop.f32.mrf.mxu0
  %v1842 = vadd.f32 %v1729, %v1841
  %1843 = vmatprep.mubr.bf16.mxu0 0
  %1844 = vmatmul.mubr.bf16.gmra.mxu0 %v501
  %v1845 = vpop.f32.mrf.mxu0
  %v1846 = vadd.f32 %v1733, %v1845
  %v1847 = vpop.f32.mrf.mxu0
  %v1848 = vadd.f32 %v1735, %v1847
  %v1849 = vpop.f32.mrf.mxu0
  %v1850 = vadd.f32 %v1737, %v1849
  %v1851 = vpop.f32.mrf.mxu0
  %v1852 = vadd.f32 %v1739, %v1851
  %1853 = vmatprep.mubr.bf16.mxu0 0
  %1854 = vmatmul.mubr.bf16.gmra.mxu0 %v510
  %v1855 = vpop.f32.mrf.mxu0
  %v1856 = vadd.f32 %v1743, %v1855
  %v1857 = vpop.f32.mrf.mxu0
  %v1858 = vadd.f32 %v1745, %v1857
  %v1859 = vpop.f32.mrf.mxu0
  %v1860 = vadd.f32 %v1747, %v1859
  %v1861 = vpop.f32.mrf.mxu0
  %v1862 = vadd.f32 %v1749, %v1861
  %1863 = vmatprep.mubr.bf16.mxu0 0
  %1864 = vmatmul.mubr.bf16.gmra.mxu0 %v519
  %v1865 = vpop.f32.mrf.mxu0
  %v1866 = vadd.f32 %v1753, %v1865
  %v1867 = vpop.f32.mrf.mxu0
  %v1868 = vadd.f32 %v1755, %v1867
  %v1869 = vpop.f32.mrf.mxu0
  %v1870 = vadd.f32 %v1757, %v1869
  %v1871 = vpop.f32.mrf.mxu0
  %v1872 = vadd.f32 %v1759, %v1871
  %1873 = vmatprep.mubr.bf16.mxu0 0
  %1874 = vmatmul.mubr.bf16.gmra.mxu0 %v528
  %v1875 = vpop.f32.mrf.mxu0
  %v1876 = vadd.f32 %v1763, %v1875
  %v1877 = vpop.f32.mrf.mxu0
  %v1878 = vadd.f32 %v1765, %v1877
  %v1879 = vpop.f32.mrf.mxu0
  %v1880 = vadd.f32 %v1767, %v1879
  %v1881 = vpop.f32.mrf.mxu0
  %v1882 = vadd.f32 %v1769, %v1881
  %1883 = vmatprep.mubr.bf16.mxu0 0
  %1884 = vmatmul.mubr.bf16.gmra.mxu0 %v537
  %v1885 = vpop.f32.mrf.mxu0
  %v1886 = vadd.f32 %v1773, %v1885
  %v1887 = vpop.f32.mrf.mxu0
  %v1888 = vadd.f32 %v1775, %v1887
  %v1889 = vpop.f32.mrf.mxu0
  %v1890 = vadd.f32 %v1777, %v1889
  %v1891 = vpop.f32.mrf.mxu0
  %v1892 = vadd.f32 %v1779, %v1891
  %1893 = vmatprep.mubr.bf16.mxu0 0
  %1894 = vmatmul.mubr.bf16.gmra.mxu0 %v546
  %v1895 = vpop.f32.mrf.mxu0
  %v1896 = vadd.f32 %v1783, %v1895
  %v1897 = vpop.f32.mrf.mxu0
  %v1898 = vadd.f32 %v1785, %v1897
  %v1899 = vpop.f32.mrf.mxu0
  %v1900 = vadd.f32 %v1787, %v1899
  %v1901 = vpop.f32.mrf.mxu0
  %v1902 = vadd.f32 %v1789, %v1901
  %1903 = vdwg.mxu0
  %vm1904 = vcmp.gt.f32.partialorder %v1826, 0.0
  %vm1905 = vcmp.gt.f32.partialorder %v1828, 0.0
  %vm1906 = vcmp.gt.f32.partialorder %v1830, 0.0
  %vm1907 = vcmp.gt.f32.partialorder %v1832, 0.0
  %vm1908 = vcmp.gt.f32.partialorder %v1836, 0.0
  %vm1909 = vcmp.gt.f32.partialorder %v1838, 0.0
  %vm1910 = vcmp.gt.f32.partialorder %v1840, 0.0
  %vm1911 = vcmp.gt.f32.partialorder %v1842, 0.0
  %vm1912 = vcmp.gt.f32.partialorder %v1846, 0.0
  %vm1913 = vcmp.gt.f32.partialorder %v1848, 0.0
  %vm1914 = vcmp.gt.f32.partialorder %v1850, 0.0
  %vm1915 = vcmp.gt.f32.partialorder %v1852, 0.0
  %vm1916 = vcmp.gt.f32.partialorder %v1856, 0.0
  %vm1917 = vcmp.gt.f32.partialorder %v1858, 0.0
  %vm1918 = vcmp.gt.f32.partialorder %v1860, 0.0
  %vm1919 = vcmp.gt.f32.partialorder %v1862, 0.0
  %vm1920 = vcmp.gt.f32.partialorder %v1866, 0.0
  %vm1921 = vcmp.gt.f32.partialorder %v1868, 0.0
  %vm1922 = vcmp.gt.f32.partialorder %v1870, 0.0
  %vm1923 = vcmp.gt.f32.partialorder %v1872, 0.0
  %vm1924 = vcmp.gt.f32.partialorder %v1876, 0.0
  %vm1925 = vcmp.gt.f32.partialorder %v1878, 0.0
  %vm1926 = vcmp.gt.f32.partialorder %v1880, 0.0
  %vm1927 = vcmp.gt.f32.partialorder %v1882, 0.0
  %vm1928 = vcmp.gt.f32.partialorder %v1886, 0.0
  %vm1929 = vcmp.gt.f32.partialorder %v1888, 0.0
  %vm1930 = vcmp.gt.f32.partialorder %v1890, 0.0
  %vm1931 = vcmp.gt.f32.partialorder %v1892, 0.0
  %vm1932 = vcmp.gt.f32.partialorder %v1896, 0.0
  %vm1933 = vcmp.gt.f32.partialorder %v1898, 0.0
  %vm1934 = vcmp.gt.f32.partialorder %v1900, 0.0
  %vm1935 = vcmp.gt.f32.partialorder %v1902, 0.0
  %v1936 = vmul.f32 %v1826, 0.2
  %v1937 = vmul.f32 %v1828, 0.2
  %v1938 = vmul.f32 %v1830, 0.2
  %v1939 = vmul.f32 %v1832, 0.2
  %v1940 = vmul.f32 %v1836, 0.2
  %v1941 = vmul.f32 %v1838, 0.2
  %v1942 = vmul.f32 %v1840, 0.2
  %v1943 = vmul.f32 %v1842, 0.2
  %v1944 = vmul.f32 %v1846, 0.2
  %v1945 = vmul.f32 %v1848, 0.2
  %v1946 = vmul.f32 %v1850, 0.2
  %v1947 = vmul.f32 %v1852, 0.2
  %v1948 = vmul.f32 %v1856, 0.2
  %v1949 = vmul.f32 %v1858, 0.2
  %v1950 = vmul.f32 %v1860, 0.2
  %v1951 = vmul.f32 %v1862, 0.2
  %v1952 = vmul.f32 %v1866, 0.2
  %v1953 = vmul.f32 %v1868, 0.2
  %v1954 = vmul.f32 %v1870, 0.2
  %v1955 = vmul.f32 %v1872, 0.2
  %v1956 = vmul.f32 %v1876, 0.2
  %v1957 = vmul.f32 %v1878, 0.2
  %v1958 = vmul.f32 %v1880, 0.2
  %v1959 = vmul.f32 %v1882, 0.2
  %v1960 = vmul.f32 %v1886, 0.2
  %v1961 = vmul.f32 %v1888, 0.2
  %v1962 = vmul.f32 %v1890, 0.2
  %v1963 = vmul.f32 %v1892, 0.2
  %v1964 = vmul.f32 %v1896, 0.2
  %v1965 = vmul.f32 %v1898, 0.2
  %v1966 = vmul.f32 %v1900, 0.2
  %v1967 = vmul.f32 %v1902, 0.2
  %v1968 = vsel %vm1904, %v1826, %v1936
  %v1969 = vsel %vm1905, %v1828, %v1937
  %v1970 = vsel %vm1906, %v1830, %v1938
  %v1971 = vsel %vm1907, %v1832, %v1939
  %v1972 = vsel %vm1908, %v1836, %v1940
  %v1973 = vsel %vm1909, %v1838, %v1941
  %v1974 = vsel %vm1910, %v1840, %v1942
  %v1975 = vsel %vm1911, %v1842, %v1943
  %v1976 = vsel %vm1912, %v1846, %v1944
  %v1977 = vsel %vm1913, %v1848, %v1945
  %v1978 = vsel %vm1914, %v1850, %v1946
  %v1979 = vsel %vm1915, %v1852, %v1947
  %v1980 = vsel %vm1916, %v1856, %v1948
  %v1981 = vsel %vm1917, %v1858, %v1949
  %v1982 = vsel %vm1918, %v1860, %v1950
  %v1983 = vsel %vm1919, %v1862, %v1951
  %v1984 = vsel %vm1920, %v1866, %v1952
  %v1985 = vsel %vm1921, %v1868, %v1953
  %v1986 = vsel %vm1922, %v1870, %v1954
  %v1987 = vsel %vm1923, %v1872, %v1955
  %v1988 = vsel %vm1924, %v1876, %v1956
  %v1989 = vsel %vm1925, %v1878, %v1957
  %v1990 = vsel %vm1926, %v1880, %v1958
  %v1991 = vsel %vm1927, %v1882, %v1959
  %v1992 = vsel %vm1928, %v1886, %v1960
  %v1993 = vsel %vm1929, %v1888, %v1961
  %v1994 = vsel %vm1930, %v1890, %v1962
  %v1995 = vsel %vm1931, %v1892, %v1963
  %v1996 = vsel %vm1932, %v1896, %v1964
  %v1997 = vsel %vm1933, %v1898, %v1965
  %v1998 = vsel %vm1934, %v1900, %v1966
  %v1999 = vsel %vm1935, %v1902, %v1967
  %v2000 = vpack.c.bf16 %v1970, %v1968
  %v2001 = vpack.c.bf16 %v1971, %v1969
  %v2002 = vpack.c.bf16 %v1974, %v1972
  %v2003 = vpack.c.bf16 %v1975, %v1973
  %v2004 = vpack.c.bf16 %v1978, %v1976
  %v2005 = vpack.c.bf16 %v1979, %v1977
  %v2006 = vpack.c.bf16 %v1982, %v1980
  %v2007 = vpack.c.bf16 %v1983, %v1981
  %v2008 = vpack.c.bf16 %v1986, %v1984
  %v2009 = vpack.c.bf16 %v1987, %v1985
  %v2010 = vpack.c.bf16 %v1990, %v1988
  %v2011 = vpack.c.bf16 %v1991, %v1989
  %v2012 = vpack.c.bf16 %v1994, %v1992
  %v2013 = vpack.c.bf16 %v1995, %v1993
  %v2014 = vpack.c.bf16 %v1998, %v1996
  %v2015 = vpack.c.bf16 %v1999, %v1997
  %v2032 = vunpack.c.l.b16 %v2000
  %v2033 = vunpack.c.l.b16 %v2001
  %v2034 = vunpack.c.h.b16 %v2000
  %v2035 = vunpack.c.h.b16 %v2001
  %v2036 = vunpack.c.l.b16 %v2002
  %v2037 = vunpack.c.l.b16 %v2003
  %v2038 = vunpack.c.h.b16 %v2002
  %v2039 = vunpack.c.h.b16 %v2003
  %v2040 = vunpack.c.l.b16 %v2004
  %v2041 = vunpack.c.l.b16 %v2005
  %v2042 = vunpack.c.h.b16 %v2004
  %v2043 = vunpack.c.h.b16 %v2005
  %v2044 = vunpack.c.l.b16 %v2006
  %v2045 = vunpack.c.l.b16 %v2007
  %v2046 = vunpack.c.h.b16 %v2006
  %v2047 = vunpack.c.h.b16 %v2007
  %v2048 = vunpack.c.l.b16 %v2008
  %v2049 = vunpack.c.l.b16 %v2009
  %v2050 = vunpack.c.h.b16 %v2008
  %v2051 = vunpack.c.h.b16 %v2009
  %v2052 = vunpack.c.l.b16 %v2010
  %v2053 = vunpack.c.l.b16 %v2011
  %v2054 = vunpack.c.h.b16 %v2010
  %v2055 = vunpack.c.h.b16 %v2011
  %v2056 = vunpack.c.l.b16 %v2012
  %v2057 = vunpack.c.l.b16 %v2013
  %v2058 = vunpack.c.h.b16 %v2012
  %v2059 = vunpack.c.h.b16 %v2013
  %v2060 = vunpack.c.l.b16 %v2014
  %v2061 = vunpack.c.l.b16 %v2015
  %v2062 = vunpack.c.h.b16 %v2014
  %v2063 = vunpack.c.h.b16 %v2015
  %v2064 = vpack.c.b16 %v2033, %v2032
  %v2065 = vpack.c.b16 %v2035, %v2034
  %v2066 = vpack.c.b16 %v2037, %v2036
  %v2067 = vpack.c.b16 %v2039, %v2038
  %v2068 = vpack.c.b16 %v2041, %v2040
  %v2069 = vpack.c.b16 %v2043, %v2042
  %v2070 = vpack.c.b16 %v2045, %v2044
  %v2071 = vpack.c.b16 %v2047, %v2046
  %v2072 = vpack.c.b16 %v2049, %v2048
  %v2073 = vpack.c.b16 %v2051, %v2050
  %v2074 = vpack.c.b16 %v2053, %v2052
  %v2075 = vpack.c.b16 %v2055, %v2054
  %v2076 = vpack.c.b16 %v2057, %v2056
  %v2077 = vpack.c.b16 %v2059, %v2058
  %v2078 = vpack.c.b16 %v2061, %v2060
  %v2079 = vpack.c.b16 %v2063, %v2062
  %2096 = vst [vmem:[%s3] sm:$0xff] %v2064
  %2097 = vst [vmem:[%s3 + $0x8] sm:$0xff] %v2065
  %2098 = vst [vmem:[%s3 + $0x10] sm:$0xff] %v2066
  %2099 = vst [vmem:[%s3 + $0x18] sm:$0xff] %v2067
  %2100 = vst [vmem:[%s3 + $0x20] sm:$0xff] %v2068
  %2101 = vst [vmem:[%s3 + $0x28] sm:$0xff] %v2069
  %2102 = vst [vmem:[%s3 + $0x30] sm:$0xff] %v2070
  %2103 = vst [vmem:[%s3 + $0x38] sm:$0xff] %v2071
  %2104 = vst [vmem:[%s3 + $0x40] sm:$0xff] %v2072
  %2105 = vst [vmem:[%s3 + $0x48] sm:$0xff] %v2073
  %2106 = vst [vmem:[%s3 + $0x50] sm:$0xff] %v2074
  %2107 = vst [vmem:[%s3 + $0x58] sm:$0xff] %v2075
  %2108 = vst [vmem:[%s3 + $0x60] sm:$0xff] %v2076
  %2109 = vst [vmem:[%s3 + $0x68] sm:$0xff] %v2077
  %2110 = vst [vmem:[%s3 + $0x70] sm:$0xff] %v2078
  %2111 = vst [vmem:[%s3 + $0x78] sm:$0xff] %v2079
  // Predicated region
  $region14: #{discriminator_forward.9} parent=0 // pred_check
    _
  $region15: #{discriminator_forward.9} parent=0 // pred_check_branch
    %2113 = sbr.rel (0) target = $region17
  $region16: #{discriminator_forward.9} parent=0 // pred_region
    _
  $region17: #{discriminator_forward.9} parent=0 // pred_fallthru
    _
  // Predicated region
  $region18: #{discriminator_forward.9} parent=0 // pred_check
    _
  $region19: #{discriminator_forward.9} parent=0 // pred_check_branch
    %2115 = sbr.rel (0) target = $region21
  $region20: #{discriminator_forward.9} parent=0 // pred_region
    _
  $region21: #{discriminator_forward.9} parent=0 // pred_fallthru
    _

// kernel: discriminator_forward.11
$region0: #{discriminator_forward.11}
  #allocation0 [shape = 'u32[]', space=smem, size = 0x4, offset = 0x4, fixed_abs, tag = 'smem constant byte address 0x4 - core index']
  #allocation1 [shape = 'u32[144,128]{1,0:T(1,128)}', space=vmem, size = 0x12000, scoped, tag = 'internal scratch']
  #allocation2 [shape = 'f32[1,1]{1,0:T(1,128)S(1)}', space=vmem, size = 0x200, scoped, tag = 'scoped memory for discriminator_forward.11']
  %s0 = inlined_call_operand.vmem [shape: bf16[2,8448], index: 0, kind: input, shape index: {}]
  %s1 = inlined_call_operand.vmem [shape: bf16[1,8448], index: 1, kind: input, shape index: {}]
  %s2 = inlined_call_operand.<no memory space> [shape: f32[1,1], index: 2, kind: input, shape index: {}]
  %s3 = inlined_call_operand.vmem [shape: f32[2,1], index: 3, kind: output, shape index: {}]
  %s4 = sld [smem:[#allocation0]]
  $region22: #{discriminator_forward.11} parent=0
    _
  %s6 = ssub.s32 1, %s4
  %s7 = scalar_select 0, %s6, %s4
  %v8 = vstv %s2
  %9 = vst [vmem:[#allocation2] sm:$0x1] %v8
  // Predicated region
  $region2: #{discriminator_forward.11} parent=0 // pred_check
    _
  $region3: #{discriminator_forward.11} parent=0 // pred_check_branch
    %11 = sbr.rel (0) target = $region5
  $region4: #{discriminator_forward.11} parent=0 // pred_region
    _
  $region5: #{discriminator_forward.11} parent=0 // pred_fallthru
    _
  // Predicated region
  $region6: #{discriminator_forward.11} parent=0 // pred_check
    _
  $region7: #{discriminator_forward.11} parent=0 // pred_check_branch
    %13 = sbr.rel (0) target = $region9
  $region8: #{discriminator_forward.11} parent=0 // pred_region
    _
  $region9: #{discriminator_forward.11} parent=0 // pred_fallthru
    _
  // Predicated region
  $region10: #{discriminator_forward.11} parent=0 // pred_check
    _
  $region11: #{discriminator_forward.11} parent=0 // pred_check_branch
    %15 = sbr.rel (0) target = $region13
  $region12: #{discriminator_forward.11} parent=0 // pred_region
    _
  $region13: #{discriminator_forward.11} parent=0 // pred_fallthru
    _
  %v16 = vld [vmem:[%s0] sm:$0xff]
  %v17 = vld [vmem:[%s0 + $0x8] sm:$0xff]
  %v18 = vld [vmem:[%s0 + $0x10] sm:$0xff]
  %v19 = vld [vmem:[%s0 + $0x18] sm:$0xff]
  %v20 = vld [vmem:[%s0 + $0x20] sm:$0xff]
  %v21 = vld [vmem:[%s0 + $0x28] sm:$0xff]
  %v22 = vld [vmem:[%s0 + $0x30] sm:$0xff]
  %v23 = vld [vmem:[%s0 + $0x38] sm:$0xff]
  %v24 = vld [vmem:[%s0 + $0x40] sm:$0x3]
  %v25 = vunpack.c.l.bf16 %v16
  %v26 = vunpack.c.h.bf16 %v16
  %v27 = vunpack.c.l.bf16 %v17
  %v28 = vunpack.c.h.bf16 %v17
  %v29 = vunpack.c.l.bf16 %v18
  %v30 = vunpack.c.h.bf16 %v18
  %v31 = vunpack.c.l.bf16 %v19
  %v32 = vunpack.c.h.bf16 %v19
  %v33 = vunpack.c.l.bf16 %v20
  %v34 = vunpack.c.h.bf16 %v20
  %v35 = vunpack.c.l.bf16 %v21
  %v36 = vunpack.c.h.bf16 %v21
  %v37 = vunpack.c.l.bf16 %v22
  %v38 = vunpack.c.h.bf16 %v22
  %v39 = vunpack.c.l.bf16 %v23
  %v40 = vunpack.c.h.bf16 %v23
  %v41 = vunpack.c.l.bf16 %v24
  %v42 = vld [vmem:[%s1] sm:$0xff]
  %v43 = vld [vmem:[%s1 + $0x8] sm:$0xff]
  %v44 = vld [vmem:[%s1 + $0x10] sm:$0xff]
  %v45 = vld [vmem:[%s1 + $0x18] sm:$0xff]
  %v46 = vld [vmem:[%s1 + $0x20] sm:$0xff]
  %v47 = vld [vmem:[%s1 + $0x28] sm:$0xff]
  %v48 = vld [vmem:[%s1 + $0x30] sm:$0xff]
  %v49 = vld [vmem:[%s1 + $0x38] sm:$0xff]
  %v50 = vld [vmem:[%s1 + $0x40] sm:$0x3]
  %v51 = vunpack.c.l.bf16 %v42
  %v52 = vunpack.c.h.bf16 %v42
  %v53 = vunpack.c.l.bf16 %v43
  %v54 = vunpack.c.h.bf16 %v43
  %v55 = vunpack.c.l.bf16 %v44
  %v56 = vunpack.c.h.bf16 %v44
  %v57 = vunpack.c.l.bf16 %v45
  %v58 = vunpack.c.h.bf16 %v45
  %v59 = vunpack.c.l.bf16 %v46
  %v60 = vunpack.c.h.bf16 %v46
  %v61 = vunpack.c.l.bf16 %v47
  %v62 = vunpack.c.h.bf16 %v47
  %v63 = vunpack.c.l.bf16 %v48
  %v64 = vunpack.c.h.bf16 %v48
  %v65 = vunpack.c.l.bf16 %v49
  %v66 = vunpack.c.h.bf16 %v49
  %v67 = vunpack.c.l.bf16 %v50
  %v85 = vlaneseq
  %v86 = vshrl.u32 %v85, 7
  %v87 = vsub.s32 0, %v86
  %v88 = vrot.slane %v51, %v87
  %v89 = vlaneseq
  %v90 = vshrl.u32 %v89, 7
  %v91 = vsub.s32 2, %v90
  %v92 = vrot.slane %v51, %v91
  %v93 = vlaneseq
  %v94 = vshrl.u32 %v93, 7
  %v95 = vsub.s32 4, %v94
  %v96 = vrot.slane %v51, %v95
  %v97 = vlaneseq
  %v98 = vshrl.u32 %v97, 7
  %v99 = vsub.s32 6, %v98
  %v100 = vrot.slane %v51, %v99
  %v101 = vlaneseq
  %v102 = vshrl.u32 %v101, 7
  %v103 = vsub.s32 0, %v102
  %v104 = vrot.slane %v52, %v103
  %v105 = vlaneseq
  %v106 = vshrl.u32 %v105, 7
  %v107 = vsub.s32 2, %v106
  %v108 = vrot.slane %v52, %v107
  %v109 = vlaneseq
  %v110 = vshrl.u32 %v109, 7
  %v111 = vsub.s32 4, %v110
  %v112 = vrot.slane %v52, %v111
  %v113 = vlaneseq
  %v114 = vshrl.u32 %v113, 7
  %v115 = vsub.s32 6, %v114
  %v116 = vrot.slane %v52, %v115
  %v117 = vlaneseq
  %v118 = vshrl.u32 %v117, 7
  %v119 = vsub.s32 0, %v118
  %v120 = vrot.slane %v53, %v119
  %v121 = vlaneseq
  %v122 = vshrl.u32 %v121, 7
  %v123 = vsub.s32 2, %v122
  %v124 = vrot.slane %v53, %v123
  %v125 = vlaneseq
  %v126 = vshrl.u32 %v125, 7
  %v127 = vsub.s32 4, %v126
  %v128 = vrot.slane %v53, %v127
  %v129 = vlaneseq
  %v130 = vshrl.u32 %v129, 7
  %v131 = vsub.s32 6, %v130
  %v132 = vrot.slane %v53, %v131
  %v133 = vlaneseq
  %v134 = vshrl.u32 %v133, 7
  %v135 = vsub.s32 0, %v134
  %v136 = vrot.slane %v54, %v135
  %v137 = vlaneseq
  %v138 = vshrl.u32 %v137, 7
  %v139 = vsub.s32 2, %v138
  %v140 = vrot.slane %v54, %v139
  %v141 = vlaneseq
  %v142 = vshrl.u32 %v141, 7
  %v143 = vsub.s32 4, %v142
  %v144 = vrot.slane %v54, %v143
  %v145 = vlaneseq
  %v146 = vshrl.u32 %v145, 7
  %v147 = vsub.s32 6, %v146
  %v148 = vrot.slane %v54, %v147
  %v149 = vlaneseq
  %v150 = vshrl.u32 %v149, 7
  %v151 = vsub.s32 0, %v150
  %v152 = vrot.slane %v55, %v151
  %v153 = vlaneseq
  %v154 = vshrl.u32 %v153, 7
  %v155 = vsub.s32 2, %v154
  %v156 = vrot.slane %v55, %v155
  %v157 = vlaneseq
  %v158 = vshrl.u32 %v157, 7
  %v159 = vsub.s32 4, %v158
  %v160 = vrot.slane %v55, %v159
  %v161 = vlaneseq
  %v162 = vshrl.u32 %v161, 7
  %v163 = vsub.s32 6, %v162
  %v164 = vrot.slane %v55, %v163
  %v165 = vlaneseq
  %v166 = vshrl.u32 %v165, 7
  %v167 = vsub.s32 0, %v166
  %v168 = vrot.slane %v56, %v167
  %v169 = vlaneseq
  %v170 = vshrl.u32 %v169, 7
  %v171 = vsub.s32 2, %v170
  %v172 = vrot.slane %v56, %v171
  %v173 = vlaneseq
  %v174 = vshrl.u32 %v173, 7
  %v175 = vsub.s32 4, %v174
  %v176 = vrot.slane %v56, %v175
  %v177 = vlaneseq
  %v178 = vshrl.u32 %v177, 7
  %v179 = vsub.s32 6, %v178
  %v180 = vrot.slane %v56, %v179
  %v181 = vlaneseq
  %v182 = vshrl.u32 %v181, 7
  %v183 = vsub.s32 0, %v182
  %v184 = vrot.slane %v57, %v183
  %v185 = vlaneseq
  %v186 = vshrl.u32 %v185, 7
  %v187 = vsub.s32 2, %v186
  %v188 = vrot.slane %v57, %v187
  %v189 = vlaneseq
  %v190 = vshrl.u32 %v189, 7
  %v191 = vsub.s32 4, %v190
  %v192 = vrot.slane %v57, %v191
  %v193 = vlaneseq
  %v194 = vshrl.u32 %v193, 7
  %v195 = vsub.s32 6, %v194
  %v196 = vrot.slane %v57, %v195
  %v197 = vlaneseq
  %v198 = vshrl.u32 %v197, 7
  %v199 = vsub.s32 0, %v198
  %v200 = vrot.slane %v58, %v199
  %v201 = vlaneseq
  %v202 = vshrl.u32 %v201, 7
  %v203 = vsub.s32 2, %v202
  %v204 = vrot.slane %v58, %v203
  %v205 = vlaneseq
  %v206 = vshrl.u32 %v205, 7
  %v207 = vsub.s32 4, %v206
  %v208 = vrot.slane %v58, %v207
  %v209 = vlaneseq
  %v210 = vshrl.u32 %v209, 7
  %v211 = vsub.s32 6, %v210
  %v212 = vrot.slane %v58, %v211
  %v213 = vlaneseq
  %v214 = vshrl.u32 %v213, 7
  %v215 = vsub.s32 0, %v214
  %v216 = vrot.slane %v59, %v215
  %v217 = vlaneseq
  %v218 = vshrl.u32 %v217, 7
  %v219 = vsub.s32 2, %v218
  %v220 = vrot.slane %v59, %v219
  %v221 = vlaneseq
  %v222 = vshrl.u32 %v221, 7
  %v223 = vsub.s32 4, %v222
  %v224 = vrot.slane %v59, %v223
  %v225 = vlaneseq
  %v226 = vshrl.u32 %v225, 7
  %v227 = vsub.s32 6, %v226
  %v228 = vrot.slane %v59, %v227
  %v229 = vlaneseq
  %v230 = vshrl.u32 %v229, 7
  %v231 = vsub.s32 0, %v230
  %v232 = vrot.slane %v60, %v231
  %v233 = vlaneseq
  %v234 = vshrl.u32 %v233, 7
  %v235 = vsub.s32 2, %v234
  %v236 = vrot.slane %v60, %v235
  %v237 = vlaneseq
  %v238 = vshrl.u32 %v237, 7
  %v239 = vsub.s32 4, %v238
  %v240 = vrot.slane %v60, %v239
  %v241 = vlaneseq
  %v242 = vshrl.u32 %v241, 7
  %v243 = vsub.s32 6, %v242
  %v244 = vrot.slane %v60, %v243
  %v245 = vlaneseq
  %v246 = vshrl.u32 %v245, 7
  %v247 = vsub.s32 0, %v246
  %v248 = vrot.slane %v61, %v247
  %v249 = vlaneseq
  %v250 = vshrl.u32 %v249, 7
  %v251 = vsub.s32 2, %v250
  %v252 = vrot.slane %v61, %v251
  %v253 = vlaneseq
  %v254 = vshrl.u32 %v253, 7
  %v255 = vsub.s32 4, %v254
  %v256 = vrot.slane %v61, %v255
  %v257 = vlaneseq
  %v258 = vshrl.u32 %v257, 7
  %v259 = vsub.s32 6, %v258
  %v260 = vrot.slane %v61, %v259
  %v261 = vlaneseq
  %v262 = vshrl.u32 %v261, 7
  %v263 = vsub.s32 0, %v262
  %v264 = vrot.slane %v62, %v263
  %v265 = vlaneseq
  %v266 = vshrl.u32 %v265, 7
  %v267 = vsub.s32 2, %v266
  %v268 = vrot.slane %v62, %v267
  %v269 = vlaneseq
  %v270 = vshrl.u32 %v269, 7
  %v271 = vsub.s32 4, %v270
  %v272 = vrot.slane %v62, %v271
  %v273 = vlaneseq
  %v274 = vshrl.u32 %v273, 7
  %v275 = vsub.s32 6, %v274
  %v276 = vrot.slane %v62, %v275
  %v277 = vlaneseq
  %v278 = vshrl.u32 %v277, 7
  %v279 = vsub.s32 0, %v278
  %v280 = vrot.slane %v63, %v279
  %v281 = vlaneseq
  %v282 = vshrl.u32 %v281, 7
  %v283 = vsub.s32 2, %v282
  %v284 = vrot.slane %v63, %v283
  %v285 = vlaneseq
  %v286 = vshrl.u32 %v285, 7
  %v287 = vsub.s32 4, %v286
  %v288 = vrot.slane %v63, %v287
  %v289 = vlaneseq
  %v290 = vshrl.u32 %v289, 7
  %v291 = vsub.s32 6, %v290
  %v292 = vrot.slane %v63, %v291
  %v293 = vlaneseq
  %v294 = vshrl.u32 %v293, 7
  %v295 = vsub.s32 0, %v294
  %v296 = vrot.slane %v64, %v295
  %v297 = vlaneseq
  %v298 = vshrl.u32 %v297, 7
  %v299 = vsub.s32 2, %v298
  %v300 = vrot.slane %v64, %v299
  %v301 = vlaneseq
  %v302 = vshrl.u32 %v301, 7
  %v303 = vsub.s32 4, %v302
  %v304 = vrot.slane %v64, %v303
  %v305 = vlaneseq
  %v306 = vshrl.u32 %v305, 7
  %v307 = vsub.s32 6, %v306
  %v308 = vrot.slane %v64, %v307
  %v309 = vlaneseq
  %v310 = vshrl.u32 %v309, 7
  %v311 = vsub.s32 0, %v310
  %v312 = vrot.slane %v65, %v311
  %v313 = vlaneseq
  %v314 = vshrl.u32 %v313, 7
  %v315 = vsub.s32 2, %v314
  %v316 = vrot.slane %v65, %v315
  %v317 = vlaneseq
  %v318 = vshrl.u32 %v317, 7
  %v319 = vsub.s32 4, %v318
  %v320 = vrot.slane %v65, %v319
  %v321 = vlaneseq
  %v322 = vshrl.u32 %v321, 7
  %v323 = vsub.s32 6, %v322
  %v324 = vrot.slane %v65, %v323
  %v325 = vlaneseq
  %v326 = vshrl.u32 %v325, 7
  %v327 = vsub.s32 0, %v326
  %v328 = vrot.slane %v66, %v327
  %v329 = vlaneseq
  %v330 = vshrl.u32 %v329, 7
  %v331 = vsub.s32 2, %v330
  %v332 = vrot.slane %v66, %v331
  %v333 = vlaneseq
  %v334 = vshrl.u32 %v333, 7
  %v335 = vsub.s32 4, %v334
  %v336 = vrot.slane %v66, %v335
  %v337 = vlaneseq
  %v338 = vshrl.u32 %v337, 7
  %v339 = vsub.s32 6, %v338
  %v340 = vrot.slane %v66, %v339
  %v341 = vlaneseq
  %v342 = vshrl.u32 %v341, 7
  %v343 = vsub.s32 0, %v342
  %v344 = vrot.slane %v67, %v343
  %v345 = vlaneseq
  %v346 = vshrl.u32 %v345, 7
  %v347 = vsub.s32 2, %v346
  %v348 = vrot.slane %v67, %v347
  %v415 = vlaneseq
  %v416 = vshrl.u32 %v415, 7
  %v417 = vsub.s32 0, %v416
  %v418 = vrot.slane %v88, %v417
  %v419 = vlaneseq
  %v420 = vshrl.u32 %v419, 7
  %v421 = vsub.s32 0, %v420
  %v422 = vrot.slane %v92, %v421
  %v423 = vlaneseq
  %v424 = vshrl.u32 %v423, 7
  %v425 = vsub.s32 0, %v424
  %v426 = vrot.slane %v96, %v425
  %v427 = vlaneseq
  %v428 = vshrl.u32 %v427, 7
  %v429 = vsub.s32 0, %v428
  %v430 = vrot.slane %v100, %v429
  %v431 = vlaneseq
  %v432 = vshrl.u32 %v431, 7
  %v433 = vsub.s32 0, %v432
  %v434 = vrot.slane %v104, %v433
  %v435 = vlaneseq
  %v436 = vshrl.u32 %v435, 7
  %v437 = vsub.s32 0, %v436
  %v438 = vrot.slane %v108, %v437
  %v439 = vlaneseq
  %v440 = vshrl.u32 %v439, 7
  %v441 = vsub.s32 0, %v440
  %v442 = vrot.slane %v112, %v441
  %v443 = vlaneseq
  %v444 = vshrl.u32 %v443, 7
  %v445 = vsub.s32 0, %v444
  %v446 = vrot.slane %v116, %v445
  %v447 = vlaneseq
  %v448 = vshrl.u32 %v447, 7
  %v449 = vsub.s32 0, %v448
  %v450 = vrot.slane %v120, %v449
  %v451 = vlaneseq
  %v452 = vshrl.u32 %v451, 7
  %v453 = vsub.s32 0, %v452
  %v454 = vrot.slane %v124, %v453
  %v455 = vlaneseq
  %v456 = vshrl.u32 %v455, 7
  %v457 = vsub.s32 0, %v456
  %v458 = vrot.slane %v128, %v457
  %v459 = vlaneseq
  %v460 = vshrl.u32 %v459, 7
  %v461 = vsub.s32 0, %v460
  %v462 = vrot.slane %v132, %v461
  %v463 = vlaneseq
  %v464 = vshrl.u32 %v463, 7
  %v465 = vsub.s32 0, %v464
  %v466 = vrot.slane %v136, %v465
  %v467 = vlaneseq
  %v468 = vshrl.u32 %v467, 7
  %v469 = vsub.s32 0, %v468
  %v470 = vrot.slane %v140, %v469
  %v471 = vlaneseq
  %v472 = vshrl.u32 %v471, 7
  %v473 = vsub.s32 0, %v472
  %v474 = vrot.slane %v144, %v473
  %v475 = vlaneseq
  %v476 = vshrl.u32 %v475, 7
  %v477 = vsub.s32 0, %v476
  %v478 = vrot.slane %v148, %v477
  %v479 = vlaneseq
  %v480 = vshrl.u32 %v479, 7
  %v481 = vsub.s32 0, %v480
  %v482 = vrot.slane %v152, %v481
  %v483 = vlaneseq
  %v484 = vshrl.u32 %v483, 7
  %v485 = vsub.s32 0, %v484
  %v486 = vrot.slane %v156, %v485
  %v487 = vlaneseq
  %v488 = vshrl.u32 %v487, 7
  %v489 = vsub.s32 0, %v488
  %v490 = vrot.slane %v160, %v489
  %v491 = vlaneseq
  %v492 = vshrl.u32 %v491, 7
  %v493 = vsub.s32 0, %v492
  %v494 = vrot.slane %v164, %v493
  %v495 = vlaneseq
  %v496 = vshrl.u32 %v495, 7
  %v497 = vsub.s32 0, %v496
  %v498 = vrot.slane %v168, %v497
  %v499 = vlaneseq
  %v500 = vshrl.u32 %v499, 7
  %v501 = vsub.s32 0, %v500
  %v502 = vrot.slane %v172, %v501
  %v503 = vlaneseq
  %v504 = vshrl.u32 %v503, 7
  %v505 = vsub.s32 0, %v504
  %v506 = vrot.slane %v176, %v505
  %v507 = vlaneseq
  %v508 = vshrl.u32 %v507, 7
  %v509 = vsub.s32 0, %v508
  %v510 = vrot.slane %v180, %v509
  %v511 = vlaneseq
  %v512 = vshrl.u32 %v511, 7
  %v513 = vsub.s32 0, %v512
  %v514 = vrot.slane %v184, %v513
  %v515 = vlaneseq
  %v516 = vshrl.u32 %v515, 7
  %v517 = vsub.s32 0, %v516
  %v518 = vrot.slane %v188, %v517
  %v519 = vlaneseq
  %v520 = vshrl.u32 %v519, 7
  %v521 = vsub.s32 0, %v520
  %v522 = vrot.slane %v192, %v521
  %v523 = vlaneseq
  %v524 = vshrl.u32 %v523, 7
  %v525 = vsub.s32 0, %v524
  %v526 = vrot.slane %v196, %v525
  %v527 = vlaneseq
  %v528 = vshrl.u32 %v527, 7
  %v529 = vsub.s32 0, %v528
  %v530 = vrot.slane %v200, %v529
  %v531 = vlaneseq
  %v532 = vshrl.u32 %v531, 7
  %v533 = vsub.s32 0, %v532
  %v534 = vrot.slane %v204, %v533
  %v535 = vlaneseq
  %v536 = vshrl.u32 %v535, 7
  %v537 = vsub.s32 0, %v536
  %v538 = vrot.slane %v208, %v537
  %v539 = vlaneseq
  %v540 = vshrl.u32 %v539, 7
  %v541 = vsub.s32 0, %v540
  %v542 = vrot.slane %v212, %v541
  %v543 = vlaneseq
  %v544 = vshrl.u32 %v543, 7
  %v545 = vsub.s32 0, %v544
  %v546 = vrot.slane %v216, %v545
  %v547 = vlaneseq
  %v548 = vshrl.u32 %v547, 7
  %v549 = vsub.s32 0, %v548
  %v550 = vrot.slane %v220, %v549
  %v551 = vlaneseq
  %v552 = vshrl.u32 %v551, 7
  %v553 = vsub.s32 0, %v552
  %v554 = vrot.slane %v224, %v553
  %v555 = vlaneseq
  %v556 = vshrl.u32 %v555, 7
  %v557 = vsub.s32 0, %v556
  %v558 = vrot.slane %v228, %v557
  %v559 = vlaneseq
  %v560 = vshrl.u32 %v559, 7
  %v561 = vsub.s32 0, %v560
  %v562 = vrot.slane %v232, %v561
  %v563 = vlaneseq
  %v564 = vshrl.u32 %v563, 7
  %v565 = vsub.s32 0, %v564
  %v566 = vrot.slane %v236, %v565
  %v567 = vlaneseq
  %v568 = vshrl.u32 %v567, 7
  %v569 = vsub.s32 0, %v568
  %v570 = vrot.slane %v240, %v569
  %v571 = vlaneseq
  %v572 = vshrl.u32 %v571, 7
  %v573 = vsub.s32 0, %v572
  %v574 = vrot.slane %v244, %v573
  %v575 = vlaneseq
  %v576 = vshrl.u32 %v575, 7
  %v577 = vsub.s32 0, %v576
  %v578 = vrot.slane %v248, %v577
  %v579 = vlaneseq
  %v580 = vshrl.u32 %v579, 7
  %v581 = vsub.s32 0, %v580
  %v582 = vrot.slane %v252, %v581
  %v583 = vlaneseq
  %v584 = vshrl.u32 %v583, 7
  %v585 = vsub.s32 0, %v584
  %v586 = vrot.slane %v256, %v585
  %v587 = vlaneseq
  %v588 = vshrl.u32 %v587, 7
  %v589 = vsub.s32 0, %v588
  %v590 = vrot.slane %v260, %v589
  %v591 = vlaneseq
  %v592 = vshrl.u32 %v591, 7
  %v593 = vsub.s32 0, %v592
  %v594 = vrot.slane %v264, %v593
  %v595 = vlaneseq
  %v596 = vshrl.u32 %v595, 7
  %v597 = vsub.s32 0, %v596
  %v598 = vrot.slane %v268, %v597
  %v599 = vlaneseq
  %v600 = vshrl.u32 %v599, 7
  %v601 = vsub.s32 0, %v600
  %v602 = vrot.slane %v272, %v601
  %v603 = vlaneseq
  %v604 = vshrl.u32 %v603, 7
  %v605 = vsub.s32 0, %v604
  %v606 = vrot.slane %v276, %v605
  %v607 = vlaneseq
  %v608 = vshrl.u32 %v607, 7
  %v609 = vsub.s32 0, %v608
  %v610 = vrot.slane %v280, %v609
  %v611 = vlaneseq
  %v612 = vshrl.u32 %v611, 7
  %v613 = vsub.s32 0, %v612
  %v614 = vrot.slane %v284, %v613
  %v615 = vlaneseq
  %v616 = vshrl.u32 %v615, 7
  %v617 = vsub.s32 0, %v616
  %v618 = vrot.slane %v288, %v617
  %v619 = vlaneseq
  %v620 = vshrl.u32 %v619, 7
  %v621 = vsub.s32 0, %v620
  %v622 = vrot.slane %v292, %v621
  %v623 = vlaneseq
  %v624 = vshrl.u32 %v623, 7
  %v625 = vsub.s32 0, %v624
  %v626 = vrot.slane %v296, %v625
  %v627 = vlaneseq
  %v628 = vshrl.u32 %v627, 7
  %v629 = vsub.s32 0, %v628
  %v630 = vrot.slane %v300, %v629
  %v631 = vlaneseq
  %v632 = vshrl.u32 %v631, 7
  %v633 = vsub.s32 0, %v632
  %v634 = vrot.slane %v304, %v633
  %v635 = vlaneseq
  %v636 = vshrl.u32 %v635, 7
  %v637 = vsub.s32 0, %v636
  %v638 = vrot.slane %v308, %v637
  %v639 = vlaneseq
  %v640 = vshrl.u32 %v639, 7
  %v641 = vsub.s32 0, %v640
  %v642 = vrot.slane %v312, %v641
  %v643 = vlaneseq
  %v644 = vshrl.u32 %v643, 7
  %v645 = vsub.s32 0, %v644
  %v646 = vrot.slane %v316, %v645
  %v647 = vlaneseq
  %v648 = vshrl.u32 %v647, 7
  %v649 = vsub.s32 0, %v648
  %v650 = vrot.slane %v320, %v649
  %v651 = vlaneseq
  %v652 = vshrl.u32 %v651, 7
  %v653 = vsub.s32 0, %v652
  %v654 = vrot.slane %v324, %v653
  %v655 = vlaneseq
  %v656 = vshrl.u32 %v655, 7
  %v657 = vsub.s32 0, %v656
  %v658 = vrot.slane %v328, %v657
  %v659 = vlaneseq
  %v660 = vshrl.u32 %v659, 7
  %v661 = vsub.s32 0, %v660
  %v662 = vrot.slane %v332, %v661
  %v663 = vlaneseq
  %v664 = vshrl.u32 %v663, 7
  %v665 = vsub.s32 0, %v664
  %v666 = vrot.slane %v336, %v665
  %v667 = vlaneseq
  %v668 = vshrl.u32 %v667, 7
  %v669 = vsub.s32 0, %v668
  %v670 = vrot.slane %v340, %v669
  %v671 = vlaneseq
  %v672 = vshrl.u32 %v671, 7
  %v673 = vsub.s32 0, %v672
  %v674 = vrot.slane %v344, %v673
  %v675 = vlaneseq
  %v676 = vshrl.u32 %v675, 7
  %v677 = vsub.s32 0, %v676
  %v678 = vrot.slane %v348, %v677
  %v745 = vcombine.low %v418, %v422
  %v746 = vcombine.low %v426, %v430
  %v748 = vunpack.c.l.s4 1983009808
  %v749 = vunpack.c.0.s8 %v748
  %v750 = vlaneseq
  %v751 = vshrl.u32 %v750, 7
  %v752 = vsub.s32 %v749, %v751
  %v753 = vrot.slane %v745, %v752
  %v755 = vunpack.c.l.s4 1983009808
  %v756 = vunpack.c.0.s8 %v755
  %v757 = vlaneseq
  %v758 = vshrl.u32 %v757, 7
  %v759 = vsub.s32 %v756, %v758
  %v760 = vrot.slane %v746, %v759
  %v761 = vcombine.low %v753, %v760
  %v762 = vcombine.low %v434, %v438
  %v763 = vcombine.low %v442, %v446
  %v765 = vunpack.c.l.s4 1983009808
  %v766 = vunpack.c.0.s8 %v765
  %v767 = vlaneseq
  %v768 = vshrl.u32 %v767, 7
  %v769 = vsub.s32 %v766, %v768
  %v770 = vrot.slane %v762, %v769
  %v772 = vunpack.c.l.s4 1983009808
  %v773 = vunpack.c.0.s8 %v772
  %v774 = vlaneseq
  %v775 = vshrl.u32 %v774, 7
  %v776 = vsub.s32 %v773, %v775
  %v777 = vrot.slane %v763, %v776
  %v778 = vcombine.low %v770, %v777
  %v779 = vcombine.low %v450, %v454
  %v780 = vcombine.low %v458, %v462
  %v782 = vunpack.c.l.s4 1983009808
  %v783 = vunpack.c.0.s8 %v782
  %v784 = vlaneseq
  %v785 = vshrl.u32 %v784, 7
  %v786 = vsub.s32 %v783, %v785
  %v787 = vrot.slane %v779, %v786
  %v789 = vunpack.c.l.s4 1983009808
  %v790 = vunpack.c.0.s8 %v789
  %v791 = vlaneseq
  %v792 = vshrl.u32 %v791, 7
  %v793 = vsub.s32 %v790, %v792
  %v794 = vrot.slane %v780, %v793
  %v795 = vcombine.low %v787, %v794
  %v796 = vcombine.low %v466, %v470
  %v797 = vcombine.low %v474, %v478
  %v799 = vunpack.c.l.s4 1983009808
  %v800 = vunpack.c.0.s8 %v799
  %v801 = vlaneseq
  %v802 = vshrl.u32 %v801, 7
  %v803 = vsub.s32 %v800, %v802
  %v804 = vrot.slane %v796, %v803
  %v806 = vunpack.c.l.s4 1983009808
  %v807 = vunpack.c.0.s8 %v806
  %v808 = vlaneseq
  %v809 = vshrl.u32 %v808, 7
  %v810 = vsub.s32 %v807, %v809
  %v811 = vrot.slane %v797, %v810
  %v812 = vcombine.low %v804, %v811
  %v813 = vcombine.low %v482, %v486
  %v814 = vcombine.low %v490, %v494
  %v816 = vunpack.c.l.s4 1983009808
  %v817 = vunpack.c.0.s8 %v816
  %v818 = vlaneseq
  %v819 = vshrl.u32 %v818, 7
  %v820 = vsub.s32 %v817, %v819
  %v821 = vrot.slane %v813, %v820
  %v823 = vunpack.c.l.s4 1983009808
  %v824 = vunpack.c.0.s8 %v823
  %v825 = vlaneseq
  %v826 = vshrl.u32 %v825, 7
  %v827 = vsub.s32 %v824, %v826
  %v828 = vrot.slane %v814, %v827
  %v829 = vcombine.low %v821, %v828
  %v830 = vcombine.low %v498, %v502
  %v831 = vcombine.low %v506, %v510
  %v833 = vunpack.c.l.s4 1983009808
  %v834 = vunpack.c.0.s8 %v833
  %v835 = vlaneseq
  %v836 = vshrl.u32 %v835, 7
  %v837 = vsub.s32 %v834, %v836
  %v838 = vrot.slane %v830, %v837
  %v840 = vunpack.c.l.s4 1983009808
  %v841 = vunpack.c.0.s8 %v840
  %v842 = vlaneseq
  %v843 = vshrl.u32 %v842, 7
  %v844 = vsub.s32 %v841, %v843
  %v845 = vrot.slane %v831, %v844
  %v846 = vcombine.low %v838, %v845
  %v847 = vcombine.low %v514, %v518
  %v848 = vcombine.low %v522, %v526
  %v850 = vunpack.c.l.s4 1983009808
  %v851 = vunpack.c.0.s8 %v850
  %v852 = vlaneseq
  %v853 = vshrl.u32 %v852, 7
  %v854 = vsub.s32 %v851, %v853
  %v855 = vrot.slane %v847, %v854
  %v857 = vunpack.c.l.s4 1983009808
  %v858 = vunpack.c.0.s8 %v857
  %v859 = vlaneseq
  %v860 = vshrl.u32 %v859, 7
  %v861 = vsub.s32 %v858, %v860
  %v862 = vrot.slane %v848, %v861
  %v863 = vcombine.low %v855, %v862
  %v864 = vcombine.low %v530, %v534
  %v865 = vcombine.low %v538, %v542
  %v867 = vunpack.c.l.s4 1983009808
  %v868 = vunpack.c.0.s8 %v867
  %v869 = vlaneseq
  %v870 = vshrl.u32 %v869, 7
  %v871 = vsub.s32 %v868, %v870
  %v872 = vrot.slane %v864, %v871
  %v874 = vunpack.c.l.s4 1983009808
  %v875 = vunpack.c.0.s8 %v874
  %v876 = vlaneseq
  %v877 = vshrl.u32 %v876, 7
  %v878 = vsub.s32 %v875, %v877
  %v879 = vrot.slane %v865, %v878
  %v880 = vcombine.low %v872, %v879
  %v881 = vcombine.low %v546, %v550
  %v882 = vcombine.low %v554, %v558
  %v884 = vunpack.c.l.s4 1983009808
  %v885 = vunpack.c.0.s8 %v884
  %v886 = vlaneseq
  %v887 = vshrl.u32 %v886, 7
  %v888 = vsub.s32 %v885, %v887
  %v889 = vrot.slane %v881, %v888
  %v891 = vunpack.c.l.s4 1983009808
  %v892 = vunpack.c.0.s8 %v891
  %v893 = vlaneseq
  %v894 = vshrl.u32 %v893, 7
  %v895 = vsub.s32 %v892, %v894
  %v896 = vrot.slane %v882, %v895
  %v897 = vcombine.low %v889, %v896
  %v898 = vcombine.low %v562, %v566
  %v899 = vcombine.low %v570, %v574
  %v901 = vunpack.c.l.s4 1983009808
  %v902 = vunpack.c.0.s8 %v901
  %v903 = vlaneseq
  %v904 = vshrl.u32 %v903, 7
  %v905 = vsub.s32 %v902, %v904
  %v906 = vrot.slane %v898, %v905
  %v908 = vunpack.c.l.s4 1983009808
  %v909 = vunpack.c.0.s8 %v908
  %v910 = vlaneseq
  %v911 = vshrl.u32 %v910, 7
  %v912 = vsub.s32 %v909, %v911
  %v913 = vrot.slane %v899, %v912
  %v914 = vcombine.low %v906, %v913
  %v915 = vcombine.low %v578, %v582
  %v916 = vcombine.low %v586, %v590
  %v918 = vunpack.c.l.s4 1983009808
  %v919 = vunpack.c.0.s8 %v918
  %v920 = vlaneseq
  %v921 = vshrl.u32 %v920, 7
  %v922 = vsub.s32 %v919, %v921
  %v923 = vrot.slane %v915, %v922
  %v925 = vunpack.c.l.s4 1983009808
  %v926 = vunpack.c.0.s8 %v925
  %v927 = vlaneseq
  %v928 = vshrl.u32 %v927, 7
  %v929 = vsub.s32 %v926, %v928
  %v930 = vrot.slane %v916, %v929
  %v931 = vcombine.low %v923, %v930
  %v932 = vcombine.low %v594, %v598
  %v933 = vcombine.low %v602, %v606
  %v935 = vunpack.c.l.s4 1983009808
  %v936 = vunpack.c.0.s8 %v935
  %v937 = vlaneseq
  %v938 = vshrl.u32 %v937, 7
  %v939 = vsub.s32 %v936, %v938
  %v940 = vrot.slane %v932, %v939
  %v942 = vunpack.c.l.s4 1983009808
  %v943 = vunpack.c.0.s8 %v942
  %v944 = vlaneseq
  %v945 = vshrl.u32 %v944, 7
  %v946 = vsub.s32 %v943, %v945
  %v947 = vrot.slane %v933, %v946
  %v948 = vcombine.low %v940, %v947
  %v949 = vcombine.low %v610, %v614
  %v950 = vcombine.low %v618, %v622
  %v952 = vunpack.c.l.s4 1983009808
  %v953 = vunpack.c.0.s8 %v952
  %v954 = vlaneseq
  %v955 = vshrl.u32 %v954, 7
  %v956 = vsub.s32 %v953, %v955
  %v957 = vrot.slane %v949, %v956
  %v959 = vunpack.c.l.s4 1983009808
  %v960 = vunpack.c.0.s8 %v959
  %v961 = vlaneseq
  %v962 = vshrl.u32 %v961, 7
  %v963 = vsub.s32 %v960, %v962
  %v964 = vrot.slane %v950, %v963
  %v965 = vcombine.low %v957, %v964
  %v966 = vcombine.low %v626, %v630
  %v967 = vcombine.low %v634, %v638
  %v969 = vunpack.c.l.s4 1983009808
  %v970 = vunpack.c.0.s8 %v969
  %v971 = vlaneseq
  %v972 = vshrl.u32 %v971, 7
  %v973 = vsub.s32 %v970, %v972
  %v974 = vrot.slane %v966, %v973
  %v976 = vunpack.c.l.s4 1983009808
  %v977 = vunpack.c.0.s8 %v976
  %v978 = vlaneseq
  %v979 = vshrl.u32 %v978, 7
  %v980 = vsub.s32 %v977, %v979
  %v981 = vrot.slane %v967, %v980
  %v982 = vcombine.low %v974, %v981
  %v983 = vcombine.low %v642, %v646
  %v984 = vcombine.low %v650, %v654
  %v986 = vunpack.c.l.s4 1983009808
  %v987 = vunpack.c.0.s8 %v986
  %v988 = vlaneseq
  %v989 = vshrl.u32 %v988, 7
  %v990 = vsub.s32 %v987, %v989
  %v991 = vrot.slane %v983, %v990
  %v993 = vunpack.c.l.s4 1983009808
  %v994 = vunpack.c.0.s8 %v993
  %v995 = vlaneseq
  %v996 = vshrl.u32 %v995, 7
  %v997 = vsub.s32 %v994, %v996
  %v998 = vrot.slane %v984, %v997
  %v999 = vcombine.low %v991, %v998
  %v1000 = vcombine.low %v658, %v662
  %v1001 = vcombine.low %v666, %v670
  %v1003 = vunpack.c.l.s4 1983009808
  %v1004 = vunpack.c.0.s8 %v1003
  %v1005 = vlaneseq
  %v1006 = vshrl.u32 %v1005, 7
  %v1007 = vsub.s32 %v1004, %v1006
  %v1008 = vrot.slane %v1000, %v1007
  %v1010 = vunpack.c.l.s4 1983009808
  %v1011 = vunpack.c.0.s8 %v1010
  %v1012 = vlaneseq
  %v1013 = vshrl.u32 %v1012, 7
  %v1014 = vsub.s32 %v1011, %v1013
  %v1015 = vrot.slane %v1001, %v1014
  %v1016 = vcombine.low %v1008, %v1015
  %v1017 = vcombine.low %v674, %v678
  %v1019 = vunpack.c.l.s4 1983009808
  %v1020 = vunpack.c.0.s8 %v1019
  %v1021 = vlaneseq
  %v1022 = vshrl.u32 %v1021, 7
  %v1023 = vsub.s32 %v1020, %v1022
  %v1024 = vrot.slane %v1017, %v1023
  %v1042 = vmul.f32 %v25, %v761
  %v1043 = vmul.f32 %v26, %v778
  %v1044 = vmul.f32 %v27, %v795
  %v1045 = vmul.f32 %v28, %v812
  %v1046 = vmul.f32 %v29, %v829
  %v1047 = vmul.f32 %v30, %v846
  %v1048 = vmul.f32 %v31, %v863
  %v1049 = vmul.f32 %v32, %v880
  %v1050 = vmul.f32 %v33, %v897
  %v1051 = vmul.f32 %v34, %v914
  %v1052 = vmul.f32 %v35, %v931
  %v1053 = vmul.f32 %v36, %v948
  %v1054 = vmul.f32 %v37, %v965
  %v1055 = vmul.f32 %v38, %v982
  %v1056 = vmul.f32 %v39, %v999
  %v1057 = vmul.f32 %v40, %v1016
  %v1058 = vmul.f32 %v41, %v1024
  %v1076 = vcombine.high %v1042, %v1042
  %v1078 = vunpack.c.l.s4 1983009808
  %v1079 = vunpack.c.0.s8 %v1078
  %v1080 = vlaneseq
  %v1081 = vshrl.u32 %v1080, 7
  %v1082 = vsub.s32 %v1079, %v1081
  %v1083 = vrot.slane %v1042, %v1082
  %v1085 = vunpack.c.l.s4 1983009808
  %v1086 = vunpack.c.0.s8 %v1085
  %v1087 = vlaneseq
  %v1088 = vshrl.u32 %v1087, 7
  %v1089 = vsub.s32 %v1086, %v1088
  %v1090 = vrot.slane %v1076, %v1089
  %v1091 = vcombine.high %v1083, %v1083
  %v1092 = vcombine.high %v1090, %v1090
  %v1093 = vcombine.high %v1043, %v1043
  %v1095 = vunpack.c.l.s4 1983009808
  %v1096 = vunpack.c.0.s8 %v1095
  %v1097 = vlaneseq
  %v1098 = vshrl.u32 %v1097, 7
  %v1099 = vsub.s32 %v1096, %v1098
  %v1100 = vrot.slane %v1043, %v1099
  %v1102 = vunpack.c.l.s4 1983009808
  %v1103 = vunpack.c.0.s8 %v1102
  %v1104 = vlaneseq
  %v1105 = vshrl.u32 %v1104, 7
  %v1106 = vsub.s32 %v1103, %v1105
  %v1107 = vrot.slane %v1093, %v1106
  %v1108 = vcombine.high %v1100, %v1100
  %v1109 = vcombine.high %v1107, %v1107
  %v1110 = vcombine.high %v1044, %v1044
  %v1112 = vunpack.c.l.s4 1983009808
  %v1113 = vunpack.c.0.s8 %v1112
  %v1114 = vlaneseq
  %v1115 = vshrl.u32 %v1114, 7
  %v1116 = vsub.s32 %v1113, %v1115
  %v1117 = vrot.slane %v1044, %v1116
  %v1119 = vunpack.c.l.s4 1983009808
  %v1120 = vunpack.c.0.s8 %v1119
  %v1121 = vlaneseq
  %v1122 = vshrl.u32 %v1121, 7
  %v1123 = vsub.s32 %v1120, %v1122
  %v1124 = vrot.slane %v1110, %v1123
  %v1125 = vcombine.high %v1117, %v1117
  %v1126 = vcombine.high %v1124, %v1124
  %v1127 = vcombine.high %v1045, %v1045
  %v1129 = vunpack.c.l.s4 1983009808
  %v1130 = vunpack.c.0.s8 %v1129
  %v1131 = vlaneseq
  %v1132 = vshrl.u32 %v1131, 7
  %v1133 = vsub.s32 %v1130, %v1132
  %v1134 = vrot.slane %v1045, %v1133
  %v1136 = vunpack.c.l.s4 1983009808
  %v1137 = vunpack.c.0.s8 %v1136
  %v1138 = vlaneseq
  %v1139 = vshrl.u32 %v1138, 7
  %v1140 = vsub.s32 %v1137, %v1139
  %v1141 = vrot.slane %v1127, %v1140
  %v1142 = vcombine.high %v1134, %v1134
  %v1143 = vcombine.high %v1141, %v1141
  %v1144 = vcombine.high %v1046, %v1046
  %v1146 = vunpack.c.l.s4 1983009808
  %v1147 = vunpack.c.0.s8 %v1146
  %v1148 = vlaneseq
  %v1149 = vshrl.u32 %v1148, 7
  %v1150 = vsub.s32 %v1147, %v1149
  %v1151 = vrot.slane %v1046, %v1150
  %v1153 = vunpack.c.l.s4 1983009808
  %v1154 = vunpack.c.0.s8 %v1153
  %v1155 = vlaneseq
  %v1156 = vshrl.u32 %v1155, 7
  %v1157 = vsub.s32 %v1154, %v1156
  %v1158 = vrot.slane %v1144, %v1157
  %v1159 = vcombine.high %v1151, %v1151
  %v1160 = vcombine.high %v1158, %v1158
  %v1161 = vcombine.high %v1047, %v1047
  %v1163 = vunpack.c.l.s4 1983009808
  %v1164 = vunpack.c.0.s8 %v1163
  %v1165 = vlaneseq
  %v1166 = vshrl.u32 %v1165, 7
  %v1167 = vsub.s32 %v1164, %v1166
  %v1168 = vrot.slane %v1047, %v1167
  %v1170 = vunpack.c.l.s4 1983009808
  %v1171 = vunpack.c.0.s8 %v1170
  %v1172 = vlaneseq
  %v1173 = vshrl.u32 %v1172, 7
  %v1174 = vsub.s32 %v1171, %v1173
  %v1175 = vrot.slane %v1161, %v1174
  %v1176 = vcombine.high %v1168, %v1168
  %v1177 = vcombine.high %v1175, %v1175
  %v1178 = vcombine.high %v1048, %v1048
  %v1180 = vunpack.c.l.s4 1983009808
  %v1181 = vunpack.c.0.s8 %v1180
  %v1182 = vlaneseq
  %v1183 = vshrl.u32 %v1182, 7
  %v1184 = vsub.s32 %v1181, %v1183
  %v1185 = vrot.slane %v1048, %v1184
  %v1187 = vunpack.c.l.s4 1983009808
  %v1188 = vunpack.c.0.s8 %v1187
  %v1189 = vlaneseq
  %v1190 = vshrl.u32 %v1189, 7
  %v1191 = vsub.s32 %v1188, %v1190
  %v1192 = vrot.slane %v1178, %v1191
  %v1193 = vcombine.high %v1185, %v1185
  %v1194 = vcombine.high %v1192, %v1192
  %v1195 = vcombine.high %v1049, %v1049
  %v1197 = vunpack.c.l.s4 1983009808
  %v1198 = vunpack.c.0.s8 %v1197
  %v1199 = vlaneseq
  %v1200 = vshrl.u32 %v1199, 7
  %v1201 = vsub.s32 %v1198, %v1200
  %v1202 = vrot.slane %v1049, %v1201
  %v1204 = vunpack.c.l.s4 1983009808
  %v1205 = vunpack.c.0.s8 %v1204
  %v1206 = vlaneseq
  %v1207 = vshrl.u32 %v1206, 7
  %v1208 = vsub.s32 %v1205, %v1207
  %v1209 = vrot.slane %v1195, %v1208
  %v1210 = vcombine.high %v1202, %v1202
  %v1211 = vcombine.high %v1209, %v1209
  %v1212 = vcombine.high %v1050, %v1050
  %v1214 = vunpack.c.l.s4 1983009808
  %v1215 = vunpack.c.0.s8 %v1214
  %v1216 = vlaneseq
  %v1217 = vshrl.u32 %v1216, 7
  %v1218 = vsub.s32 %v1215, %v1217
  %v1219 = vrot.slane %v1050, %v1218
  %v1221 = vunpack.c.l.s4 1983009808
  %v1222 = vunpack.c.0.s8 %v1221
  %v1223 = vlaneseq
  %v1224 = vshrl.u32 %v1223, 7
  %v1225 = vsub.s32 %v1222, %v1224
  %v1226 = vrot.slane %v1212, %v1225
  %v1227 = vcombine.high %v1219, %v1219
  %v1228 = vcombine.high %v1226, %v1226
  %v1229 = vcombine.high %v1051, %v1051
  %v1231 = vunpack.c.l.s4 1983009808
  %v1232 = vunpack.c.0.s8 %v1231
  %v1233 = vlaneseq
  %v1234 = vshrl.u32 %v1233, 7
  %v1235 = vsub.s32 %v1232, %v1234
  %v1236 = vrot.slane %v1051, %v1235
  %v1238 = vunpack.c.l.s4 1983009808
  %v1239 = vunpack.c.0.s8 %v1238
  %v1240 = vlaneseq
  %v1241 = vshrl.u32 %v1240, 7
  %v1242 = vsub.s32 %v1239, %v1241
  %v1243 = vrot.slane %v1229, %v1242
  %v1244 = vcombine.high %v1236, %v1236
  %v1245 = vcombine.high %v1243, %v1243
  %v1246 = vcombine.high %v1052, %v1052
  %v1248 = vunpack.c.l.s4 1983009808
  %v1249 = vunpack.c.0.s8 %v1248
  %v1250 = vlaneseq
  %v1251 = vshrl.u32 %v1250, 7
  %v1252 = vsub.s32 %v1249, %v1251
  %v1253 = vrot.slane %v1052, %v1252
  %v1255 = vunpack.c.l.s4 1983009808
  %v1256 = vunpack.c.0.s8 %v1255
  %v1257 = vlaneseq
  %v1258 = vshrl.u32 %v1257, 7
  %v1259 = vsub.s32 %v1256, %v1258
  %v1260 = vrot.slane %v1246, %v1259
  %v1261 = vcombine.high %v1253, %v1253
  %v1262 = vcombine.high %v1260, %v1260
  %v1263 = vcombine.high %v1053, %v1053
  %v1265 = vunpack.c.l.s4 1983009808
  %v1266 = vunpack.c.0.s8 %v1265
  %v1267 = vlaneseq
  %v1268 = vshrl.u32 %v1267, 7
  %v1269 = vsub.s32 %v1266, %v1268
  %v1270 = vrot.slane %v1053, %v1269
  %v1272 = vunpack.c.l.s4 1983009808
  %v1273 = vunpack.c.0.s8 %v1272
  %v1274 = vlaneseq
  %v1275 = vshrl.u32 %v1274, 7
  %v1276 = vsub.s32 %v1273, %v1275
  %v1277 = vrot.slane %v1263, %v1276
  %v1278 = vcombine.high %v1270, %v1270
  %v1279 = vcombine.high %v1277, %v1277
  %v1280 = vcombine.high %v1054, %v1054
  %v1282 = vunpack.c.l.s4 1983009808
  %v1283 = vunpack.c.0.s8 %v1282
  %v1284 = vlaneseq
  %v1285 = vshrl.u32 %v1284, 7
  %v1286 = vsub.s32 %v1283, %v1285
  %v1287 = vrot.slane %v1054, %v1286
  %v1289 = vunpack.c.l.s4 1983009808
  %v1290 = vunpack.c.0.s8 %v1289
  %v1291 = vlaneseq
  %v1292 = vshrl.u32 %v1291, 7
  %v1293 = vsub.s32 %v1290, %v1292
  %v1294 = vrot.slane %v1280, %v1293
  %v1295 = vcombine.high %v1287, %v1287
  %v1296 = vcombine.high %v1294, %v1294
  %v1297 = vcombine.high %v1055, %v1055
  %v1299 = vunpack.c.l.s4 1983009808
  %v1300 = vunpack.c.0.s8 %v1299
  %v1301 = vlaneseq
  %v1302 = vshrl.u32 %v1301, 7
  %v1303 = vsub.s32 %v1300, %v1302
  %v1304 = vrot.slane %v1055, %v1303
  %v1306 = vunpack.c.l.s4 1983009808
  %v1307 = vunpack.c.0.s8 %v1306
  %v1308 = vlaneseq
  %v1309 = vshrl.u32 %v1308, 7
  %v1310 = vsub.s32 %v1307, %v1309
  %v1311 = vrot.slane %v1297, %v1310
  %v1312 = vcombine.high %v1304, %v1304
  %v1313 = vcombine.high %v1311, %v1311
  %v1314 = vcombine.high %v1056, %v1056
  %v1316 = vunpack.c.l.s4 1983009808
  %v1317 = vunpack.c.0.s8 %v1316
  %v1318 = vlaneseq
  %v1319 = vshrl.u32 %v1318, 7
  %v1320 = vsub.s32 %v1317, %v1319
  %v1321 = vrot.slane %v1056, %v1320
  %v1323 = vunpack.c.l.s4 1983009808
  %v1324 = vunpack.c.0.s8 %v1323
  %v1325 = vlaneseq
  %v1326 = vshrl.u32 %v1325, 7
  %v1327 = vsub.s32 %v1324, %v1326
  %v1328 = vrot.slane %v1314, %v1327
  %v1329 = vcombine.high %v1321, %v1321
  %v1330 = vcombine.high %v1328, %v1328
  %v1331 = vcombine.high %v1057, %v1057
  %v1333 = vunpack.c.l.s4 1983009808
  %v1334 = vunpack.c.0.s8 %v1333
  %v1335 = vlaneseq
  %v1336 = vshrl.u32 %v1335, 7
  %v1337 = vsub.s32 %v1334, %v1336
  %v1338 = vrot.slane %v1057, %v1337
  %v1340 = vunpack.c.l.s4 1983009808
  %v1341 = vunpack.c.0.s8 %v1340
  %v1342 = vlaneseq
  %v1343 = vshrl.u32 %v1342, 7
  %v1344 = vsub.s32 %v1341, %v1343
  %v1345 = vrot.slane %v1331, %v1344
  %v1346 = vcombine.high %v1338, %v1338
  %v1347 = vcombine.high %v1345, %v1345
  %v1349 = vunpack.c.l.s4 1983009808
  %v1350 = vunpack.c.0.s8 %v1349
  %v1351 = vlaneseq
  %v1352 = vshrl.u32 %v1351, 7
  %v1353 = vsub.s32 %v1350, %v1352
  %v1354 = vrot.slane %v1058, %v1353
  %v1355 = vcombine.high %v1354, %v1354
  %vm1422 = vcmask 1041408
  %v1423 = vsel %vm1422, %v1083, 0.0
  %v1424 = vsel %vm1422, %v1091, 0.0
  %v1425 = vadd.f32 %v1423, %v1424
  %v1426 = vsel %vm1422, %v1090, 0.0
  %v1427 = vadd.f32 %v1425, %v1426
  %v1428 = vsel %vm1422, %v1092, 0.0
  %v1429 = vadd.f32 %v1427, %v1428
  %v1430 = vsel %vm1422, %v1100, 0.0
  %v1431 = vadd.f32 %v1429, %v1430
  %v1432 = vsel %vm1422, %v1108, 0.0
  %v1433 = vadd.f32 %v1431, %v1432
  %v1434 = vsel %vm1422, %v1107, 0.0
  %v1435 = vadd.f32 %v1433, %v1434
  %v1436 = vsel %vm1422, %v1109, 0.0
  %v1437 = vadd.f32 %v1435, %v1436
  %v1438 = vsel %vm1422, %v1117, 0.0
  %v1439 = vadd.f32 %v1437, %v1438
  %v1440 = vsel %vm1422, %v1125, 0.0
  %v1441 = vadd.f32 %v1439, %v1440
  %v1442 = vsel %vm1422, %v1124, 0.0
  %v1443 = vadd.f32 %v1441, %v1442
  %v1444 = vsel %vm1422, %v1126, 0.0
  %v1445 = vadd.f32 %v1443, %v1444
  %v1446 = vsel %vm1422, %v1134, 0.0
  %v1447 = vadd.f32 %v1445, %v1446
  %v1448 = vsel %vm1422, %v1142, 0.0
  %v1449 = vadd.f32 %v1447, %v1448
  %v1450 = vsel %vm1422, %v1141, 0.0
  %v1451 = vadd.f32 %v1449, %v1450
  %v1452 = vsel %vm1422, %v1143, 0.0
  %v1453 = vadd.f32 %v1451, %v1452
  %v1454 = vsel %vm1422, %v1151, 0.0
  %v1455 = vadd.f32 %v1453, %v1454
  %v1456 = vsel %vm1422, %v1159, 0.0
  %v1457 = vadd.f32 %v1455, %v1456
  %v1458 = vsel %vm1422, %v1158, 0.0
  %v1459 = vadd.f32 %v1457, %v1458
  %v1460 = vsel %vm1422, %v1160, 0.0
  %v1461 = vadd.f32 %v1459, %v1460
  %v1462 = vsel %vm1422, %v1168, 0.0
  %v1463 = vadd.f32 %v1461, %v1462
  %v1464 = vsel %vm1422, %v1176, 0.0
  %v1465 = vadd.f32 %v1463, %v1464
  %v1466 = vsel %vm1422, %v1175, 0.0
  %v1467 = vadd.f32 %v1465, %v1466
  %v1468 = vsel %vm1422, %v1177, 0.0
  %v1469 = vadd.f32 %v1467, %v1468
  %v1470 = vsel %vm1422, %v1185, 0.0
  %v1471 = vadd.f32 %v1469, %v1470
  %v1472 = vsel %vm1422, %v1193, 0.0
  %v1473 = vadd.f32 %v1471, %v1472
  %v1474 = vsel %vm1422, %v1192, 0.0
  %v1475 = vadd.f32 %v1473, %v1474
  %v1476 = vsel %vm1422, %v1194, 0.0
  %v1477 = vadd.f32 %v1475, %v1476
  %v1478 = vsel %vm1422, %v1202, 0.0
  %v1479 = vadd.f32 %v1477, %v1478
  %v1480 = vsel %vm1422, %v1210, 0.0
  %v1481 = vadd.f32 %v1479, %v1480
  %v1482 = vsel %vm1422, %v1209, 0.0
  %v1483 = vadd.f32 %v1481, %v1482
  %v1484 = vsel %vm1422, %v1211, 0.0
  %v1485 = vadd.f32 %v1483, %v1484
  %v1486 = vsel %vm1422, %v1219, 0.0
  %v1487 = vadd.f32 %v1485, %v1486
  %v1488 = vsel %vm1422, %v1227, 0.0
  %v1489 = vadd.f32 %v1487, %v1488
  %v1490 = vsel %vm1422, %v1226, 0.0
  %v1491 = vadd.f32 %v1489, %v1490
  %v1492 = vsel %vm1422, %v1228, 0.0
  %v1493 = vadd.f32 %v1491, %v1492
  %v1494 = vsel %vm1422, %v1236, 0.0
  %v1495 = vadd.f32 %v1493, %v1494
  %v1496 = vsel %vm1422, %v1244, 0.0
  %v1497 = vadd.f32 %v1495, %v1496
  %v1498 = vsel %vm1422, %v1243, 0.0
  %v1499 = vadd.f32 %v1497, %v1498
  %v1500 = vsel %vm1422, %v1245, 0.0
  %v1501 = vadd.f32 %v1499, %v1500
  %v1502 = vsel %vm1422, %v1253, 0.0
  %v1503 = vadd.f32 %v1501, %v1502
  %v1504 = vsel %vm1422, %v1261, 0.0
  %v1505 = vadd.f32 %v1503, %v1504
  %v1506 = vsel %vm1422, %v1260, 0.0
  %v1507 = vadd.f32 %v1505, %v1506
  %v1508 = vsel %vm1422, %v1262, 0.0
  %v1509 = vadd.f32 %v1507, %v1508
  %v1510 = vsel %vm1422, %v1270, 0.0
  %v1511 = vadd.f32 %v1509, %v1510
  %v1512 = vsel %vm1422, %v1278, 0.0
  %v1513 = vadd.f32 %v1511, %v1512
  %v1514 = vsel %vm1422, %v1277, 0.0
  %v1515 = vadd.f32 %v1513, %v1514
  %v1516 = vsel %vm1422, %v1279, 0.0
  %v1517 = vadd.f32 %v1515, %v1516
  %v1518 = vsel %vm1422, %v1287, 0.0
  %v1519 = vadd.f32 %v1517, %v1518
  %v1520 = vsel %vm1422, %v1295, 0.0
  %v1521 = vadd.f32 %v1519, %v1520
  %v1522 = vsel %vm1422, %v1294, 0.0
  %v1523 = vadd.f32 %v1521, %v1522
  %v1524 = vsel %vm1422, %v1296, 0.0
  %v1525 = vadd.f32 %v1523, %v1524
  %v1526 = vsel %vm1422, %v1304, 0.0
  %v1527 = vadd.f32 %v1525, %v1526
  %v1528 = vsel %vm1422, %v1312, 0.0
  %v1529 = vadd.f32 %v1527, %v1528
  %v1530 = vsel %vm1422, %v1311, 0.0
  %v1531 = vadd.f32 %v1529, %v1530
  %v1532 = vsel %vm1422, %v1313, 0.0
  %v1533 = vadd.f32 %v1531, %v1532
  %v1534 = vsel %vm1422, %v1321, 0.0
  %v1535 = vadd.f32 %v1533, %v1534
  %v1536 = vsel %vm1422, %v1329, 0.0
  %v1537 = vadd.f32 %v1535, %v1536
  %v1538 = vsel %vm1422, %v1328, 0.0
  %v1539 = vadd.f32 %v1537, %v1538
  %v1540 = vsel %vm1422, %v1330, 0.0
  %v1541 = vadd.f32 %v1539, %v1540
  %v1542 = vsel %vm1422, %v1338, 0.0
  %v1543 = vadd.f32 %v1541, %v1542
  %v1544 = vsel %vm1422, %v1346, 0.0
  %v1545 = vadd.f32 %v1543, %v1544
  %v1546 = vsel %vm1422, %v1345, 0.0
  %v1547 = vadd.f32 %v1545, %v1546
  %v1548 = vsel %vm1422, %v1347, 0.0
  %v1549 = vadd.f32 %v1547, %v1548
  %v1550 = vsel %vm1422, %v1354, 0.0
  %v1551 = vadd.f32 %v1549, %v1550
  %v1552 = vsel %vm1422, %v1355, 0.0
  %v1553 = vadd.f32 %v1551, %v1552
  %1554 = vadd.xlane.f32.xlu0 %v1553
  %v1555 = vpop.xlane.xlu0 %1554
  %v1556 = vld [vmem:[#allocation2] sm:$0x1]
  %v1558 = vlaneseq
  %v1559 = vshrl.u32 %v1558, 7
  %v1560 = vsub.s32 0, %v1559
  %v1561 = vrot.slane %v1556, %v1560
  %v1563 = vadd.f32 %v1555, %v1561
  %v1564 = vand.u32 2147483647, %v1563
  %v1565 = vsub.f32 0.0, %v1564
  %v1566 = vmul.f32 %v1565, 1.442695
  %v1567 = vpow.pop %v1566
  %vm1568 = vcmp.ge.f32.partialorder %v1563, 0.0
  %v1569 = vadd.f32 %v1567, 1.0
  %v1570 = vrcp.pop %v1569
  %v1571 = vmul.f32 1.0, %v1570
  %v1572 = vmul.f32 %v1567, %v1570
  %v1573 = vsel %vm1568, %v1571, %v1572
  %vm1574 = vcmask 1024
  %1575 = vst.msk [vmem:[%s3] sm:$0x3] %vm1574, %v1573
  // Predicated region
  $region14: #{discriminator_forward.11} parent=0 // pred_check
    _
  $region15: #{discriminator_forward.11} parent=0 // pred_check_branch
    %1577 = sbr.rel (0) target = $region17
  $region16: #{discriminator_forward.11} parent=0 // pred_region
    _
  $region17: #{discriminator_forward.11} parent=0 // pred_fallthru
    _
  // Predicated region
  $region18: #{discriminator_forward.11} parent=0 // pred_check
    _
  $region19: #{discriminator_forward.11} parent=0 // pred_check_branch
    %1579 = sbr.rel (0) target = $region21
  $region20: #{discriminator_forward.11} parent=0 // pred_region
    _
  $region21: #{discriminator_forward.11} parent=0 // pred_fallthru
    _

// kernel: discriminator_forward.10
$region0: #{discriminator_forward.10}
  #allocation0 [shape = 'u32[]', space=smem, size = 0x4, offset = 0x4, fixed_abs, tag = 'smem constant byte address 0x4 - core index']
  #allocation1 [shape = 'u32[144,128]{1,0:T(1,128)}', space=vmem, size = 0x12000, scoped, tag = 'internal scratch']
  %s0 = inlined_call_operand.vmem [shape: bf16[32,2304], index: 0, kind: input, shape index: {}]
  %s1 = inlined_call_operand.vmem [shape: bf16[2304,512], index: 1, kind: input, shape index: {}]
  %s2 = inlined_call_operand.vmem [shape: f32[1,512], index: 2, kind: input, shape index: {}]
  %s3 = inlined_call_operand.vmem [shape: bf16[32,512], index: 3, kind: output, shape index: {}]
  %s4 = sld [smem:[#allocation0]]
  $region117: #{discriminator_forward.10} parent=0
    _
  %s6 = ssub.s32 1, %s4
  %s7 = scalar_select 0, %s6, %s4
  $region1: #{discriminator_forward.10} parent=0
    #allocation2 [shape = 'u8[2359296]{0}', space=vmem, size = 0x240000, scoped, tag = 'input window, operand 1']
    #allocation3 [shape = 'u8[32768]{0}', space=vmem, size = 0x8000, scoped, tag = 'output window, operand 0']
    loop: start=0, step=1, limit=4
    $region2: #{discriminator_forward.10} parent=1 // loop_pre_header
      _
    $region3: #{discriminator_forward.10} parent=1 // loop_header
      %s9 = sphi 0, %s13
      %p10 = scmp.ge.s32.totalorder %s9, 4
      %s16 = sphi 0, %s28
      %s17 = sphi 0, %s24
      %s18 = sphi 0, %s16
      %s19 = sphi 0, %s17
      %s20 = sphi 0, %s18
      %s21 = sphi 0, %s19
      %s31 = sphi 0, %s33
      %s34 = sphi 0, %s31
      %s35 = sphi 0, %s34
      %s51 = sphi 0, %s35
      %s57 = sphi 0, %s59
      %s60 = sphi 0, %s57
      %s61 = sphi 0, %s60
      %s77 = sphi 0, %s61
      %s83 = sphi 0, %s85
      %s86 = sphi 0, %s83
      %s87 = sphi 0, %s86
      %s103 = sphi 0, %s87
      %s111 = sphi 0, %s113
      %s114 = sphi 0, %s111
      %s115 = sphi 0, %s114
      %s131 = sphi 0, %s115
    $region4: #{discriminator_forward.10} parent=1 // loop_header_branch
      %12 = sbr.rel (%p10) target = $region8
    $region5: #{discriminator_forward.10} parent=1 // loop_body
      %s14 = ssub.s32 %s9, 1
      %s15 = ssub.s32 %s9, 2
      %s22 = sadd.s32 1, %s17
      %p23 = scmp.ge.s32.totalorder %s22, 2
      %s24 = scalar_select %p23, 0, %s22
      %s25 = sadd.s32 1, %s16
      %s26 = scalar_select %p23, %s25, %s16
      %p27 = scmp.ge.s32.totalorder %s26, 1
      %s28 = scalar_select %p27, 0, %s26
      %s29 = ssub.s32 %s16, %s28
      %p30 = scmp.eq.s32.totalorder %s29, 0
      %s32 = sadd.s32 %s31, 1
      %s33 = scalar_select %p30, %s31, %s32
      %p36 = pneg %p30
      %p37 = scmp.eq.s32.totalorder %s9, 1
      %p38 = por %p36, %p37
      %p39 = scmp.ne.s32.totalorder %s31, %s34
      %p40 = scmp.eq.s32.totalorder %s9, 0
      %p41 = por %p39, %p40
      %p42 = scmp.ne.s32.totalorder %s31, %s34
      %p43 = scmp.eq.s32.totalorder %s14, 1
      %p44 = por %p42, %p43
      %p45 = scmp.ne.s32.totalorder %s34, %s35
      %p46 = scmp.eq.s32.totalorder %s14, 0
      %p47 = por %p45, %p46
      %p48 = scmp.ne.s32.totalorder %s34, %s35
      %p49 = scmp.eq.s32.totalorder %s15, 1
      %p50 = por %p48, %p49
      %p52 = scmp.ne.s32.totalorder %s35, %s51
      %p53 = scmp.eq.s32.totalorder %s15, 0
      %p54 = por %p52, %p53
      %s55 = ssub.s32 %s17, %s24
      %p56 = scmp.eq.s32.totalorder %s55, 0
      %s58 = sadd.s32 %s57, 1
      %s59 = scalar_select %p56, %s57, %s58
      %p62 = pneg %p56
      %p63 = scmp.eq.s32.totalorder %s9, 1
      %p64 = por %p62, %p63
      %p65 = scmp.ne.s32.totalorder %s57, %s60
      %p66 = scmp.eq.s32.totalorder %s9, 0
      %p67 = por %p65, %p66
      %p68 = scmp.ne.s32.totalorder %s57, %s60
      %p69 = scmp.eq.s32.totalorder %s14, 1
      %p70 = por %p68, %p69
      %p71 = scmp.ne.s32.totalorder %s60, %s61
      %p72 = scmp.eq.s32.totalorder %s14, 0
      %p73 = por %p71, %p72
      %p74 = scmp.ne.s32.totalorder %s60, %s61
      %p75 = scmp.eq.s32.totalorder %s15, 1
      %p76 = por %p74, %p75
      %p78 = scmp.ne.s32.totalorder %s61, %s77
      %p79 = scmp.eq.s32.totalorder %s15, 0
      %p80 = por %p78, %p79
      %s81 = ssub.s32 %s17, %s24
      %p82 = scmp.eq.s32.totalorder %s81, 0
      %s84 = sadd.s32 %s83, 1
      %s85 = scalar_select %p82, %s83, %s84
      %p88 = pneg %p82
      %p89 = scmp.eq.s32.totalorder %s9, 1
      %p90 = por %p88, %p89
      %p91 = scmp.ne.s32.totalorder %s83, %s86
      %p92 = scmp.eq.s32.totalorder %s9, 0
      %p93 = por %p91, %p92
      %p94 = scmp.ne.s32.totalorder %s83, %s86
      %p95 = scmp.eq.s32.totalorder %s14, 1
      %p96 = por %p94, %p95
      %p97 = scmp.ne.s32.totalorder %s86, %s87
      %p98 = scmp.eq.s32.totalorder %s14, 0
      %p99 = por %p97, %p98
      %p100 = scmp.ne.s32.totalorder %s86, %s87
      %p101 = scmp.eq.s32.totalorder %s15, 1
      %p102 = por %p100, %p101
      %p104 = scmp.ne.s32.totalorder %s87, %s103
      %p105 = scmp.eq.s32.totalorder %s15, 0
      %p106 = por %p104, %p105
      %s107 = ssub.s32 %s16, %s28
      %s108 = ssub.s32 %s17, %s24
      %s109 = sor.u32 %s107, %s108
      %p110 = scmp.eq.s32.totalorder %s109, 0
      %s112 = sadd.s32 %s111, 1
      %s113 = scalar_select %p110, %s111, %s112
      %p116 = pneg %p110
      %p117 = scmp.eq.s32.totalorder %s9, 1
      %p118 = por %p116, %p117
      %p119 = scmp.ne.s32.totalorder %s111, %s114
      %p120 = scmp.eq.s32.totalorder %s9, 0
      %p121 = por %p119, %p120
      %p122 = scmp.ne.s32.totalorder %s111, %s114
      %p123 = scmp.eq.s32.totalorder %s14, 1
      %p124 = por %p122, %p123
      %p125 = scmp.ne.s32.totalorder %s114, %s115
      %p126 = scmp.eq.s32.totalorder %s14, 0
      %p127 = por %p125, %p126
      %p128 = scmp.ne.s32.totalorder %s114, %s115
      %p129 = scmp.eq.s32.totalorder %s15, 1
      %p130 = por %p128, %p129
      %p132 = scmp.ne.s32.totalorder %s115, %s131
      %p133 = scmp.eq.s32.totalorder %s15, 0
      %p134 = por %p132, %p133
      %p135 = scmp.le.s32.totalorder 1, %s9
      %p136 = scmp.lt.s32.totalorder %s9, 3
      %p137 = pnand %p135, %p136
      %p138 = pneg %p137
      // Predicated region
      $region9: #{discriminator_forward.10} parent=5 // pred_check
        _
      $region10: #{discriminator_forward.10} parent=5 // pred_check_branch
        %140 = sbr.rel (%p137) target = $region12
      $region11: #{discriminator_forward.10} parent=5 // pred_region
        %s141 = ssub.s32 %s9, 1
        // Predicated region
        $region13: #{discriminator_forward.10} parent=11 // pred_check
          %p142 = pneg %p47
        $region14: #{discriminator_forward.10} parent=11 // pred_check_branch
          %144 = sbr.rel (%p142) target = $region16
        $region15: #{discriminator_forward.10} parent=11 // pred_region
          %s145 = smul.u32 4, %s18
          %p146 = scmp.lt.s32.totalorder %s145, 3
          %s147 = scalar_select %p146, %s145, 3
          %s148 = smul.addr %s147, 18
          %s149 = smul.addr %s148, 4
          %s150 = scalar_lea.vmem %s0, %s149
          %s151 = smul.u32 4, %s18
        $region16: #{discriminator_forward.10} parent=11 // pred_fallthru
          _
      $region12: #{discriminator_forward.10} parent=5 // pred_fallthru
        _
      %p152 = scmp.lt.s32.totalorder %s9, 2
      // Predicated region
      $region17: #{discriminator_forward.10} parent=5 // pred_check
        %p153 = pneg %p152
      $region18: #{discriminator_forward.10} parent=5 // pred_check_branch
        %155 = sbr.rel (%p153) target = $region20
      $region19: #{discriminator_forward.10} parent=5 // pred_region
        // Predicated region
        $region21: #{discriminator_forward.10} parent=19 // pred_check
          %p156 = pneg %p67
        $region22: #{discriminator_forward.10} parent=19 // pred_check_branch
          %158 = sbr.rel (%p156) target = $region24
        $region23: #{discriminator_forward.10} parent=19 // pred_region
          %s159 = sand.u32 %s57, 1
          %s160 = sand.u32 %s57, 1
          %s161 = smul.addr %s160, 2304
          %s162 = scalar_lea.vmem [#allocation2], %s161
          %s163 = smul.u32 2, %s17
          %s164 = smul.addr %s163, 4
          %s165 = scalar_lea.vmem %s1, %s164
          // Predicated region
          $region25: #{discriminator_forward.10} parent=23 // pred_check
            _
          $region26: #{discriminator_forward.10} parent=23 // pred_check_branch
            %167 = sbr.rel (0) target = $region28
          $region27: #{discriminator_forward.10} parent=23 // pred_region
            // Predicated region
            $region29: #{discriminator_forward.10} parent=27 // pred_check
              _
            $region30: #{discriminator_forward.10} parent=27 // pred_check_branch
              %169 = sbr.rel (0) target = $region32
            $region31: #{discriminator_forward.10} parent=27 // pred_region
              // Predicated region
              $region44: #{discriminator_forward.10} parent=31 // pred_check
                _
              $region45: #{discriminator_forward.10} parent=31 // pred_check_branch
                %759 = sbr.rel (0) target = $region47
              $region46: #{discriminator_forward.10} parent=31 // pred_region
                loop: start=0, step=1, limit=1
                $region48: #{discriminator_forward.10} parent=46 // loop_pre_header
                  _
                $region49: #{discriminator_forward.10} parent=46 // loop_header
                  %s761 = sphi 0, %s765
                  %p762 = scmp.ge.s32.totalorder %s761, 1
                  %s766 = sphi %s165, %s165
                  %s767 = sphi %s162, %s162
                $region50: #{discriminator_forward.10} parent=46 // loop_header_branch
                  %764 = sbr.rel (%p762) target = $region54
                $region51: #{discriminator_forward.10} parent=46 // loop_body
                  %v768 = vld [vmem:[%s766] sm:$0xff]
                  %769 = vst [vmem:[%s767] sm:$0xff] %v768
                  %v770 = vld [vmem:[%s766 + $0x10] sm:$0xff]
                  %771 = vst [vmem:[%s767 + $0x8] sm:$0xff] %v770
                  %v772 = vld [vmem:[%s766 + $0x20] sm:$0xff]
                  %773 = vst [vmem:[%s767 + $0x10] sm:$0xff] %v772
                  %v774 = vld [vmem:[%s766 + $0x30] sm:$0xff]
                  %775 = vst [vmem:[%s767 + $0x18] sm:$0xff] %v774
                  %v776 = vld [vmem:[%s766 + $0x40] sm:$0xff]
                  %777 = vst [vmem:[%s767 + $0x20] sm:$0xff] %v776
                  %v778 = vld [vmem:[%s766 + $0x50] sm:$0xff]
                  %779 = vst [vmem:[%s767 + $0x28] sm:$0xff] %v778
                  %v780 = vld [vmem:[%s766 + $0x60] sm:$0xff]
                  %781 = vst [vmem:[%s767 + $0x30] sm:$0xff] %v780
                  %v782 = vld [vmem:[%s766 + $0x70] sm:$0xff]
                  %783 = vst [vmem:[%s767 + $0x38] sm:$0xff] %v782
                  %v784 = vld [vmem:[%s766 + $0x80] sm:$0xff]
                  %785 = vst [vmem:[%s767 + $0x40] sm:$0xff] %v784
                  %v786 = vld [vmem:[%s766 + $0x90] sm:$0xff]
                  %787 = vst [vmem:[%s767 + $0x48] sm:$0xff] %v786
                  %v788 = vld [vmem:[%s766 + $0xa0] sm:$0xff]
                  %789 = vst [vmem:[%s767 + $0x50] sm:$0xff] %v788
                  %v790 = vld [vmem:[%s766 + $0xb0] sm:$0xff]
                  %791 = vst [vmem:[%s767 + $0x58] sm:$0xff] %v790
                  %v792 = vld [vmem:[%s766 + $0xc0] sm:$0xff]
                  %793 = vst [vmem:[%s767 + $0x60] sm:$0xff] %v792
                  %v794 = vld [vmem:[%s766 + $0xd0] sm:$0xff]
                  %795 = vst [vmem:[%s767 + $0x68] sm:$0xff] %v794
                  %v796 = vld [vmem:[%s766 + $0xe0] sm:$0xff]
                  %797 = vst [vmem:[%s767 + $0x70] sm:$0xff] %v796
                  %v798 = vld [vmem:[%s766 + $0xf0] sm:$0xff]
                  %799 = vst [vmem:[%s767 + $0x78] sm:$0xff] %v798
                  %v800 = vld [vmem:[%s766 + $0x100] sm:$0xff]
                  %801 = vst [vmem:[%s767 + $0x80] sm:$0xff] %v800
                  %v802 = vld [vmem:[%s766 + $0x110] sm:$0xff]
                  %803 = vst [vmem:[%s767 + $0x88] sm:$0xff] %v802
                  %v804 = vld [vmem:[%s766 + $0x120] sm:$0xff]
                  %805 = vst [vmem:[%s767 + $0x90] sm:$0xff] %v804
                  %v806 = vld [vmem:[%s766 + $0x130] sm:$0xff]
                  %807 = vst [vmem:[%s767 + $0x98] sm:$0xff] %v806
                  %v808 = vld [vmem:[%s766 + $0x140] sm:$0xff]
                  %809 = vst [vmem:[%s767 + $0xa0] sm:$0xff] %v808
                  %v810 = vld [vmem:[%s766 + $0x150] sm:$0xff]
                  %811 = vst [vmem:[%s767 + $0xa8] sm:$0xff] %v810
                  %v812 = vld [vmem:[%s766 + $0x160] sm:$0xff]
                  %813 = vst [vmem:[%s767 + $0xb0] sm:$0xff] %v812
                  %v814 = vld [vmem:[%s766 + $0x170] sm:$0xff]
                  %815 = vst [vmem:[%s767 + $0xb8] sm:$0xff] %v814
                  %v816 = vld [vmem:[%s766 + $0x180] sm:$0xff]
                  %817 = vst [vmem:[%s767 + $0xc0] sm:$0xff] %v816
                  %v818 = vld [vmem:[%s766 + $0x190] sm:$0xff]
                  %819 = vst [vmem:[%s767 + $0xc8] sm:$0xff] %v818
                  %v820 = vld [vmem:[%s766 + $0x1a0] sm:$0xff]
                  %821 = vst [vmem:[%s767 + $0xd0] sm:$0xff] %v820
                  %v822 = vld [vmem:[%s766 + $0x1b0] sm:$0xff]
                  %823 = vst [vmem:[%s767 + $0xd8] sm:$0xff] %v822
                  %v824 = vld [vmem:[%s766 + $0x1c0] sm:$0xff]
                  %825 = vst [vmem:[%s767 + $0xe0] sm:$0xff] %v824
                  %v826 = vld [vmem:[%s766 + $0x1d0] sm:$0xff]
                  %827 = vst [vmem:[%s767 + $0xe8] sm:$0xff] %v826
                  %v828 = vld [vmem:[%s766 + $0x1e0] sm:$0xff]
                  %829 = vst [vmem:[%s767 + $0xf0] sm:$0xff] %v828
                  %v830 = vld [vmem:[%s766 + $0x1f0] sm:$0xff]
                  %831 = vst [vmem:[%s767 + $0xf8] sm:$0xff] %v830
                  %v832 = vld [vmem:[%s766 + $0x200] sm:$0xff]
                  %833 = vst [vmem:[%s767 + $0x100] sm:$0xff] %v832
                  %v834 = vld [vmem:[%s766 + $0x210] sm:$0xff]
                  %835 = vst [vmem:[%s767 + $0x108] sm:$0xff] %v834
                  %v836 = vld [vmem:[%s766 + $0x220] sm:$0xff]
                  %837 = vst [vmem:[%s767 + $0x110] sm:$0xff] %v836
                  %v838 = vld [vmem:[%s766 + $0x230] sm:$0xff]
                  %839 = vst [vmem:[%s767 + $0x118] sm:$0xff] %v838
                  %v840 = vld [vmem:[%s766 + $0x240] sm:$0xff]
                  %841 = vst [vmem:[%s767 + $0x120] sm:$0xff] %v840
                  %v842 = vld [vmem:[%s766 + $0x250] sm:$0xff]
                  %843 = vst [vmem:[%s767 + $0x128] sm:$0xff] %v842
                  %v844 = vld [vmem:[%s766 + $0x260] sm:$0xff]
                  %845 = vst [vmem:[%s767 + $0x130] sm:$0xff] %v844
                  %v846 = vld [vmem:[%s766 + $0x270] sm:$0xff]
                  %847 = vst [vmem:[%s767 + $0x138] sm:$0xff] %v846
                  %v848 = vld [vmem:[%s766 + $0x280] sm:$0xff]
                  %849 = vst [vmem:[%s767 + $0x140] sm:$0xff] %v848
                  %v850 = vld [vmem:[%s766 + $0x290] sm:$0xff]
                  %851 = vst [vmem:[%s767 + $0x148] sm:$0xff] %v850
                  %v852 = vld [vmem:[%s766 + $0x2a0] sm:$0xff]
                  %853 = vst [vmem:[%s767 + $0x150] sm:$0xff] %v852
                  %v854 = vld [vmem:[%s766 + $0x2b0] sm:$0xff]
                  %855 = vst [vmem:[%s767 + $0x158] sm:$0xff] %v854
                  %v856 = vld [vmem:[%s766 + $0x2c0] sm:$0xff]
                  %857 = vst [vmem:[%s767 + $0x160] sm:$0xff] %v856
                  %v858 = vld [vmem:[%s766 + $0x2d0] sm:$0xff]
                  %859 = vst [vmem:[%s767 + $0x168] sm:$0xff] %v858
                  %v860 = vld [vmem:[%s766 + $0x2e0] sm:$0xff]
                  %861 = vst [vmem:[%s767 + $0x170] sm:$0xff] %v860
                  %v862 = vld [vmem:[%s766 + $0x2f0] sm:$0xff]
                  %863 = vst [vmem:[%s767 + $0x178] sm:$0xff] %v862
                  %v864 = vld [vmem:[%s766 + $0x300] sm:$0xff]
                  %865 = vst [vmem:[%s767 + $0x180] sm:$0xff] %v864
                  %v866 = vld [vmem:[%s766 + $0x310] sm:$0xff]
                  %867 = vst [vmem:[%s767 + $0x188] sm:$0xff] %v866
                  %v868 = vld [vmem:[%s766 + $0x320] sm:$0xff]
                  %869 = vst [vmem:[%s767 + $0x190] sm:$0xff] %v868
                  %v870 = vld [vmem:[%s766 + $0x330] sm:$0xff]
                  %871 = vst [vmem:[%s767 + $0x198] sm:$0xff] %v870
                  %v872 = vld [vmem:[%s766 + $0x340] sm:$0xff]
                  %873 = vst [vmem:[%s767 + $0x1a0] sm:$0xff] %v872
                  %v874 = vld [vmem:[%s766 + $0x350] sm:$0xff]
                  %875 = vst [vmem:[%s767 + $0x1a8] sm:$0xff] %v874
                  %v876 = vld [vmem:[%s766 + $0x360] sm:$0xff]
                  %877 = vst [vmem:[%s767 + $0x1b0] sm:$0xff] %v876
                  %v878 = vld [vmem:[%s766 + $0x370] sm:$0xff]
                  %879 = vst [vmem:[%s767 + $0x1b8] sm:$0xff] %v878
                  %v880 = vld [vmem:[%s766 + $0x380] sm:$0xff]
                  %881 = vst [vmem:[%s767 + $0x1c0] sm:$0xff] %v880
                  %v882 = vld [vmem:[%s766 + $0x390] sm:$0xff]
                  %883 = vst [vmem:[%s767 + $0x1c8] sm:$0xff] %v882
                  %v884 = vld [vmem:[%s766 + $0x3a0] sm:$0xff]
                  %885 = vst [vmem:[%s767 + $0x1d0] sm:$0xff] %v884
                  %v886 = vld [vmem:[%s766 + $0x3b0] sm:$0xff]
                  %887 = vst [vmem:[%s767 + $0x1d8] sm:$0xff] %v886
                  %v888 = vld [vmem:[%s766 + $0x3c0] sm:$0xff]
                  %889 = vst [vmem:[%s767 + $0x1e0] sm:$0xff] %v888
                  %v890 = vld [vmem:[%s766 + $0x3d0] sm:$0xff]
                  %891 = vst [vmem:[%s767 + $0x1e8] sm:$0xff] %v890
                  %v892 = vld [vmem:[%s766 + $0x3e0] sm:$0xff]
                  %893 = vst [vmem:[%s767 + $0x1f0] sm:$0xff] %v892
                  %v894 = vld [vmem:[%s766 + $0x3f0] sm:$0xff]
                  %895 = vst [vmem:[%s767 + $0x1f8] sm:$0xff] %v894
                  %v896 = vld [vmem:[%s766 + $0x400] sm:$0xff]
                  %897 = vst [vmem:[%s767 + $0x200] sm:$0xff] %v896
                  %v898 = vld [vmem:[%s766 + $0x410] sm:$0xff]
                  %899 = vst [vmem:[%s767 + $0x208] sm:$0xff] %v898
                  %v900 = vld [vmem:[%s766 + $0x420] sm:$0xff]
                  %901 = vst [vmem:[%s767 + $0x210] sm:$0xff] %v900
                  %v902 = vld [vmem:[%s766 + $0x430] sm:$0xff]
                  %903 = vst [vmem:[%s767 + $0x218] sm:$0xff] %v902
                  %v904 = vld [vmem:[%s766 + $0x440] sm:$0xff]
                  %905 = vst [vmem:[%s767 + $0x220] sm:$0xff] %v904
                  %v906 = vld [vmem:[%s766 + $0x450] sm:$0xff]
                  %907 = vst [vmem:[%s767 + $0x228] sm:$0xff] %v906
                  %v908 = vld [vmem:[%s766 + $0x460] sm:$0xff]
                  %909 = vst [vmem:[%s767 + $0x230] sm:$0xff] %v908
                  %v910 = vld [vmem:[%s766 + $0x470] sm:$0xff]
                  %911 = vst [vmem:[%s767 + $0x238] sm:$0xff] %v910
                  %v912 = vld [vmem:[%s766 + $0x480] sm:$0xff]
                  %913 = vst [vmem:[%s767 + $0x240] sm:$0xff] %v912
                  %v914 = vld [vmem:[%s766 + $0x490] sm:$0xff]
                  %915 = vst [vmem:[%s767 + $0x248] sm:$0xff] %v914
                  %v916 = vld [vmem:[%s766 + $0x4a0] sm:$0xff]
                  %917 = vst [vmem:[%s767 + $0x250] sm:$0xff] %v916
                  %v918 = vld [vmem:[%s766 + $0x4b0] sm:$0xff]
                  %919 = vst [vmem:[%s767 + $0x258] sm:$0xff] %v918
                  %v920 = vld [vmem:[%s766 + $0x4c0] sm:$0xff]
                  %921 = vst [vmem:[%s767 + $0x260] sm:$0xff] %v920
                  %v922 = vld [vmem:[%s766 + $0x4d0] sm:$0xff]
                  %923 = vst [vmem:[%s767 + $0x268] sm:$0xff] %v922
                  %v924 = vld [vmem:[%s766 + $0x4e0] sm:$0xff]
                  %925 = vst [vmem:[%s767 + $0x270] sm:$0xff] %v924
                  %v926 = vld [vmem:[%s766 + $0x4f0] sm:$0xff]
                  %927 = vst [vmem:[%s767 + $0x278] sm:$0xff] %v926
                  %v928 = vld [vmem:[%s766 + $0x500] sm:$0xff]
                  %929 = vst [vmem:[%s767 + $0x280] sm:$0xff] %v928
                  %v930 = vld [vmem:[%s766 + $0x510] sm:$0xff]
                  %931 = vst [vmem:[%s767 + $0x288] sm:$0xff] %v930
                  %v932 = vld [vmem:[%s766 + $0x520] sm:$0xff]
                  %933 = vst [vmem:[%s767 + $0x290] sm:$0xff] %v932
                  %v934 = vld [vmem:[%s766 + $0x530] sm:$0xff]
                  %935 = vst [vmem:[%s767 + $0x298] sm:$0xff] %v934
                  %v936 = vld [vmem:[%s766 + $0x540] sm:$0xff]
                  %937 = vst [vmem:[%s767 + $0x2a0] sm:$0xff] %v936
                  %v938 = vld [vmem:[%s766 + $0x550] sm:$0xff]
                  %939 = vst [vmem:[%s767 + $0x2a8] sm:$0xff] %v938
                  %v940 = vld [vmem:[%s766 + $0x560] sm:$0xff]
                  %941 = vst [vmem:[%s767 + $0x2b0] sm:$0xff] %v940
                  %v942 = vld [vmem:[%s766 + $0x570] sm:$0xff]
                  %943 = vst [vmem:[%s767 + $0x2b8] sm:$0xff] %v942
                  %v944 = vld [vmem:[%s766 + $0x580] sm:$0xff]
                  %945 = vst [vmem:[%s767 + $0x2c0] sm:$0xff] %v944
                  %v946 = vld [vmem:[%s766 + $0x590] sm:$0xff]
                  %947 = vst [vmem:[%s767 + $0x2c8] sm:$0xff] %v946
                  %v948 = vld [vmem:[%s766 + $0x5a0] sm:$0xff]
                  %949 = vst [vmem:[%s767 + $0x2d0] sm:$0xff] %v948
                  %v950 = vld [vmem:[%s766 + $0x5b0] sm:$0xff]
                  %951 = vst [vmem:[%s767 + $0x2d8] sm:$0xff] %v950
                  %v952 = vld [vmem:[%s766 + $0x5c0] sm:$0xff]
                  %953 = vst [vmem:[%s767 + $0x2e0] sm:$0xff] %v952
                  %v954 = vld [vmem:[%s766 + $0x5d0] sm:$0xff]
                  %955 = vst [vmem:[%s767 + $0x2e8] sm:$0xff] %v954
                  %v956 = vld [vmem:[%s766 + $0x5e0] sm:$0xff]
                  %957 = vst [vmem:[%s767 + $0x2f0] sm:$0xff] %v956
                  %v958 = vld [vmem:[%s766 + $0x5f0] sm:$0xff]
                  %959 = vst [vmem:[%s767 + $0x2f8] sm:$0xff] %v958
                  %v960 = vld [vmem:[%s766 + $0x600] sm:$0xff]
                  %961 = vst [vmem:[%s767 + $0x300] sm:$0xff] %v960
                  %v962 = vld [vmem:[%s766 + $0x610] sm:$0xff]
                  %963 = vst [vmem:[%s767 + $0x308] sm:$0xff] %v962
                  %v964 = vld [vmem:[%s766 + $0x620] sm:$0xff]
                  %965 = vst [vmem:[%s767 + $0x310] sm:$0xff] %v964
                  %v966 = vld [vmem:[%s766 + $0x630] sm:$0xff]
                  %967 = vst [vmem:[%s767 + $0x318] sm:$0xff] %v966
                  %v968 = vld [vmem:[%s766 + $0x640] sm:$0xff]
                  %969 = vst [vmem:[%s767 + $0x320] sm:$0xff] %v968
                  %v970 = vld [vmem:[%s766 + $0x650] sm:$0xff]
                  %971 = vst [vmem:[%s767 + $0x328] sm:$0xff] %v970
                  %v972 = vld [vmem:[%s766 + $0x660] sm:$0xff]
                  %973 = vst [vmem:[%s767 + $0x330] sm:$0xff] %v972
                  %v974 = vld [vmem:[%s766 + $0x670] sm:$0xff]
                  %975 = vst [vmem:[%s767 + $0x338] sm:$0xff] %v974
                  %v976 = vld [vmem:[%s766 + $0x680] sm:$0xff]
                  %977 = vst [vmem:[%s767 + $0x340] sm:$0xff] %v976
                  %v978 = vld [vmem:[%s766 + $0x690] sm:$0xff]
                  %979 = vst [vmem:[%s767 + $0x348] sm:$0xff] %v978
                  %v980 = vld [vmem:[%s766 + $0x6a0] sm:$0xff]
                  %981 = vst [vmem:[%s767 + $0x350] sm:$0xff] %v980
                  %v982 = vld [vmem:[%s766 + $0x6b0] sm:$0xff]
                  %983 = vst [vmem:[%s767 + $0x358] sm:$0xff] %v982
                  %v984 = vld [vmem:[%s766 + $0x6c0] sm:$0xff]
                  %985 = vst [vmem:[%s767 + $0x360] sm:$0xff] %v984
                  %v986 = vld [vmem:[%s766 + $0x6d0] sm:$0xff]
                  %987 = vst [vmem:[%s767 + $0x368] sm:$0xff] %v986
                  %v988 = vld [vmem:[%s766 + $0x6e0] sm:$0xff]
                  %989 = vst [vmem:[%s767 + $0x370] sm:$0xff] %v988
                  %v990 = vld [vmem:[%s766 + $0x6f0] sm:$0xff]
                  %991 = vst [vmem:[%s767 + $0x378] sm:$0xff] %v990
                  %v992 = vld [vmem:[%s766 + $0x700] sm:$0xff]
                  %993 = vst [vmem:[%s767 + $0x380] sm:$0xff] %v992
                  %v994 = vld [vmem:[%s766 + $0x710] sm:$0xff]
                  %995 = vst [vmem:[%s767 + $0x388] sm:$0xff] %v994
                  %v996 = vld [vmem:[%s766 + $0x720] sm:$0xff]
                  %997 = vst [vmem:[%s767 + $0x390] sm:$0xff] %v996
                  %v998 = vld [vmem:[%s766 + $0x730] sm:$0xff]
                  %999 = vst [vmem:[%s767 + $0x398] sm:$0xff] %v998
                  %v1000 = vld [vmem:[%s766 + $0x740] sm:$0xff]
                  %1001 = vst [vmem:[%s767 + $0x3a0] sm:$0xff] %v1000
                  %v1002 = vld [vmem:[%s766 + $0x750] sm:$0xff]
                  %1003 = vst [vmem:[%s767 + $0x3a8] sm:$0xff] %v1002
                  %v1004 = vld [vmem:[%s766 + $0x760] sm:$0xff]
                  %1005 = vst [vmem:[%s767 + $0x3b0] sm:$0xff] %v1004
                  %v1006 = vld [vmem:[%s766 + $0x770] sm:$0xff]
                  %1007 = vst [vmem:[%s767 + $0x3b8] sm:$0xff] %v1006
                  %v1008 = vld [vmem:[%s766 + $0x780] sm:$0xff]
                  %1009 = vst [vmem:[%s767 + $0x3c0] sm:$0xff] %v1008
                  %v1010 = vld [vmem:[%s766 + $0x790] sm:$0xff]
                  %1011 = vst [vmem:[%s767 + $0x3c8] sm:$0xff] %v1010
                  %v1012 = vld [vmem:[%s766 + $0x7a0] sm:$0xff]
                  %1013 = vst [vmem:[%s767 + $0x3d0] sm:$0xff] %v1012
                  %v1014 = vld [vmem:[%s766 + $0x7b0] sm:$0xff]
                  %1015 = vst [vmem:[%s767 + $0x3d8] sm:$0xff] %v1014
                  %v1016 = vld [vmem:[%s766 + $0x7c0] sm:$0xff]
                  %1017 = vst [vmem:[%s767 + $0x3e0] sm:$0xff] %v1016
                  %v1018 = vld [vmem:[%s766 + $0x7d0] sm:$0xff]
                  %1019 = vst [vmem:[%s767 + $0x3e8] sm:$0xff] %v1018
                  %v1020 = vld [vmem:[%s766 + $0x7e0] sm:$0xff]
                  %1021 = vst [vmem:[%s767 + $0x3f0] sm:$0xff] %v1020
                  %v1022 = vld [vmem:[%s766 + $0x7f0] sm:$0xff]
                  %1023 = vst [vmem:[%s767 + $0x3f8] sm:$0xff] %v1022
                  %v1024 = vld [vmem:[%s766 + $0x800] sm:$0xff]
                  %1025 = vst [vmem:[%s767 + $0x400] sm:$0xff] %v1024
                  %v1026 = vld [vmem:[%s766 + $0x810] sm:$0xff]
                  %1027 = vst [vmem:[%s767 + $0x408] sm:$0xff] %v1026
                  %v1028 = vld [vmem:[%s766 + $0x820] sm:$0xff]
                  %1029 = vst [vmem:[%s767 + $0x410] sm:$0xff] %v1028
                  %v1030 = vld [vmem:[%s766 + $0x830] sm:$0xff]
                  %1031 = vst [vmem:[%s767 + $0x418] sm:$0xff] %v1030
                  %v1032 = vld [vmem:[%s766 + $0x840] sm:$0xff]
                  %1033 = vst [vmem:[%s767 + $0x420] sm:$0xff] %v1032
                  %v1034 = vld [vmem:[%s766 + $0x850] sm:$0xff]
                  %1035 = vst [vmem:[%s767 + $0x428] sm:$0xff] %v1034
                  %v1036 = vld [vmem:[%s766 + $0x860] sm:$0xff]
                  %1037 = vst [vmem:[%s767 + $0x430] sm:$0xff] %v1036
                  %v1038 = vld [vmem:[%s766 + $0x870] sm:$0xff]
                  %1039 = vst [vmem:[%s767 + $0x438] sm:$0xff] %v1038
                  %v1040 = vld [vmem:[%s766 + $0x880] sm:$0xff]
                  %1041 = vst [vmem:[%s767 + $0x440] sm:$0xff] %v1040
                  %v1042 = vld [vmem:[%s766 + $0x890] sm:$0xff]
                  %1043 = vst [vmem:[%s767 + $0x448] sm:$0xff] %v1042
                  %v1044 = vld [vmem:[%s766 + $0x8a0] sm:$0xff]
                  %1045 = vst [vmem:[%s767 + $0x450] sm:$0xff] %v1044
                  %v1046 = vld [vmem:[%s766 + $0x8b0] sm:$0xff]
                  %1047 = vst [vmem:[%s767 + $0x458] sm:$0xff] %v1046
                  %v1048 = vld [vmem:[%s766 + $0x8c0] sm:$0xff]
                  %1049 = vst [vmem:[%s767 + $0x460] sm:$0xff] %v1048
                  %v1050 = vld [vmem:[%s766 + $0x8d0] sm:$0xff]
                  %1051 = vst [vmem:[%s767 + $0x468] sm:$0xff] %v1050
                  %v1052 = vld [vmem:[%s766 + $0x8e0] sm:$0xff]
                  %1053 = vst [vmem:[%s767 + $0x470] sm:$0xff] %v1052
                  %v1054 = vld [vmem:[%s766 + $0x8f0] sm:$0xff]
                  %1055 = vst [vmem:[%s767 + $0x478] sm:$0xff] %v1054
                  %v1056 = vld [vmem:[%s766 + $0x900] sm:$0xff]
                  %1057 = vst [vmem:[%s767 + $0x480] sm:$0xff] %v1056
                  %v1058 = vld [vmem:[%s766 + $0x910] sm:$0xff]
                  %1059 = vst [vmem:[%s767 + $0x488] sm:$0xff] %v1058
                  %v1060 = vld [vmem:[%s766 + $0x920] sm:$0xff]
                  %1061 = vst [vmem:[%s767 + $0x490] sm:$0xff] %v1060
                  %v1062 = vld [vmem:[%s766 + $0x930] sm:$0xff]
                  %1063 = vst [vmem:[%s767 + $0x498] sm:$0xff] %v1062
                  %v1064 = vld [vmem:[%s766 + $0x940] sm:$0xff]
                  %1065 = vst [vmem:[%s767 + $0x4a0] sm:$0xff] %v1064
                  %v1066 = vld [vmem:[%s766 + $0x950] sm:$0xff]
                  %1067 = vst [vmem:[%s767 + $0x4a8] sm:$0xff] %v1066
                  %v1068 = vld [vmem:[%s766 + $0x960] sm:$0xff]
                  %1069 = vst [vmem:[%s767 + $0x4b0] sm:$0xff] %v1068
                  %v1070 = vld [vmem:[%s766 + $0x970] sm:$0xff]
                  %1071 = vst [vmem:[%s767 + $0x4b8] sm:$0xff] %v1070
                  %v1072 = vld [vmem:[%s766 + $0x980] sm:$0xff]
                  %1073 = vst [vmem:[%s767 + $0x4c0] sm:$0xff] %v1072
                  %v1074 = vld [vmem:[%s766 + $0x990] sm:$0xff]
                  %1075 = vst [vmem:[%s767 + $0x4c8] sm:$0xff] %v1074
                  %v1076 = vld [vmem:[%s766 + $0x9a0] sm:$0xff]
                  %1077 = vst [vmem:[%s767 + $0x4d0] sm:$0xff] %v1076
                  %v1078 = vld [vmem:[%s766 + $0x9b0] sm:$0xff]
                  %1079 = vst [vmem:[%s767 + $0x4d8] sm:$0xff] %v1078
                  %v1080 = vld [vmem:[%s766 + $0x9c0] sm:$0xff]
                  %1081 = vst [vmem:[%s767 + $0x4e0] sm:$0xff] %v1080
                  %v1082 = vld [vmem:[%s766 + $0x9d0] sm:$0xff]
                  %1083 = vst [vmem:[%s767 + $0x4e8] sm:$0xff] %v1082
                  %v1084 = vld [vmem:[%s766 + $0x9e0] sm:$0xff]
                  %1085 = vst [vmem:[%s767 + $0x4f0] sm:$0xff] %v1084
                  %v1086 = vld [vmem:[%s766 + $0x9f0] sm:$0xff]
                  %1087 = vst [vmem:[%s767 + $0x4f8] sm:$0xff] %v1086
                  %v1088 = vld [vmem:[%s766 + $0xa00] sm:$0xff]
                  %1089 = vst [vmem:[%s767 + $0x500] sm:$0xff] %v1088
                  %v1090 = vld [vmem:[%s766 + $0xa10] sm:$0xff]
                  %1091 = vst [vmem:[%s767 + $0x508] sm:$0xff] %v1090
                  %v1092 = vld [vmem:[%s766 + $0xa20] sm:$0xff]
                  %1093 = vst [vmem:[%s767 + $0x510] sm:$0xff] %v1092
                  %v1094 = vld [vmem:[%s766 + $0xa30] sm:$0xff]
                  %1095 = vst [vmem:[%s767 + $0x518] sm:$0xff] %v1094
                  %v1096 = vld [vmem:[%s766 + $0xa40] sm:$0xff]
                  %1097 = vst [vmem:[%s767 + $0x520] sm:$0xff] %v1096
                  %v1098 = vld [vmem:[%s766 + $0xa50] sm:$0xff]
                  %1099 = vst [vmem:[%s767 + $0x528] sm:$0xff] %v1098
                  %v1100 = vld [vmem:[%s766 + $0xa60] sm:$0xff]
                  %1101 = vst [vmem:[%s767 + $0x530] sm:$0xff] %v1100
                  %v1102 = vld [vmem:[%s766 + $0xa70] sm:$0xff]
                  %1103 = vst [vmem:[%s767 + $0x538] sm:$0xff] %v1102
                  %v1104 = vld [vmem:[%s766 + $0xa80] sm:$0xff]
                  %1105 = vst [vmem:[%s767 + $0x540] sm:$0xff] %v1104
                  %v1106 = vld [vmem:[%s766 + $0xa90] sm:$0xff]
                  %1107 = vst [vmem:[%s767 + $0x548] sm:$0xff] %v1106
                  %v1108 = vld [vmem:[%s766 + $0xaa0] sm:$0xff]
                  %1109 = vst [vmem:[%s767 + $0x550] sm:$0xff] %v1108
                  %v1110 = vld [vmem:[%s766 + $0xab0] sm:$0xff]
                  %1111 = vst [vmem:[%s767 + $0x558] sm:$0xff] %v1110
                  %v1112 = vld [vmem:[%s766 + $0xac0] sm:$0xff]
                  %1113 = vst [vmem:[%s767 + $0x560] sm:$0xff] %v1112
                  %v1114 = vld [vmem:[%s766 + $0xad0] sm:$0xff]
                  %1115 = vst [vmem:[%s767 + $0x568] sm:$0xff] %v1114
                  %v1116 = vld [vmem:[%s766 + $0xae0] sm:$0xff]
                  %1117 = vst [vmem:[%s767 + $0x570] sm:$0xff] %v1116
                  %v1118 = vld [vmem:[%s766 + $0xaf0] sm:$0xff]
                  %1119 = vst [vmem:[%s767 + $0x578] sm:$0xff] %v1118
                  %v1120 = vld [vmem:[%s766 + $0xb00] sm:$0xff]
                  %1121 = vst [vmem:[%s767 + $0x580] sm:$0xff] %v1120
                  %v1122 = vld [vmem:[%s766 + $0xb10] sm:$0xff]
                  %1123 = vst [vmem:[%s767 + $0x588] sm:$0xff] %v1122
                  %v1124 = vld [vmem:[%s766 + $0xb20] sm:$0xff]
                  %1125 = vst [vmem:[%s767 + $0x590] sm:$0xff] %v1124
                  %v1126 = vld [vmem:[%s766 + $0xb30] sm:$0xff]
                  %1127 = vst [vmem:[%s767 + $0x598] sm:$0xff] %v1126
                  %v1128 = vld [vmem:[%s766 + $0xb40] sm:$0xff]
                  %1129 = vst [vmem:[%s767 + $0x5a0] sm:$0xff] %v1128
                  %v1130 = vld [vmem:[%s766 + $0xb50] sm:$0xff]
                  %1131 = vst [vmem:[%s767 + $0x5a8] sm:$0xff] %v1130
                  %v1132 = vld [vmem:[%s766 + $0xb60] sm:$0xff]
                  %1133 = vst [vmem:[%s767 + $0x5b0] sm:$0xff] %v1132
                  %v1134 = vld [vmem:[%s766 + $0xb70] sm:$0xff]
                  %1135 = vst [vmem:[%s767 + $0x5b8] sm:$0xff] %v1134
                  %v1136 = vld [vmem:[%s766 + $0xb80] sm:$0xff]
                  %1137 = vst [vmem:[%s767 + $0x5c0] sm:$0xff] %v1136
                  %v1138 = vld [vmem:[%s766 + $0xb90] sm:$0xff]
                  %1139 = vst [vmem:[%s767 + $0x5c8] sm:$0xff] %v1138
                  %v1140 = vld [vmem:[%s766 + $0xba0] sm:$0xff]
                  %1141 = vst [vmem:[%s767 + $0x5d0] sm:$0xff] %v1140
                  %v1142 = vld [vmem:[%s766 + $0xbb0] sm:$0xff]
                  %1143 = vst [vmem:[%s767 + $0x5d8] sm:$0xff] %v1142
                  %v1144 = vld [vmem:[%s766 + $0xbc0] sm:$0xff]
                  %1145 = vst [vmem:[%s767 + $0x5e0] sm:$0xff] %v1144
                  %v1146 = vld [vmem:[%s766 + $0xbd0] sm:$0xff]
                  %1147 = vst [vmem:[%s767 + $0x5e8] sm:$0xff] %v1146
                  %v1148 = vld [vmem:[%s766 + $0xbe0] sm:$0xff]
                  %1149 = vst [vmem:[%s767 + $0x5f0] sm:$0xff] %v1148
                  %v1150 = vld [vmem:[%s766 + $0xbf0] sm:$0xff]
                  %1151 = vst [vmem:[%s767 + $0x5f8] sm:$0xff] %v1150
                  %v1152 = vld [vmem:[%s766 + $0xc00] sm:$0xff]
                  %1153 = vst [vmem:[%s767 + $0x600] sm:$0xff] %v1152
                  %v1154 = vld [vmem:[%s766 + $0xc10] sm:$0xff]
                  %1155 = vst [vmem:[%s767 + $0x608] sm:$0xff] %v1154
                  %v1156 = vld [vmem:[%s766 + $0xc20] sm:$0xff]
                  %1157 = vst [vmem:[%s767 + $0x610] sm:$0xff] %v1156
                  %v1158 = vld [vmem:[%s766 + $0xc30] sm:$0xff]
                  %1159 = vst [vmem:[%s767 + $0x618] sm:$0xff] %v1158
                  %v1160 = vld [vmem:[%s766 + $0xc40] sm:$0xff]
                  %1161 = vst [vmem:[%s767 + $0x620] sm:$0xff] %v1160
                  %v1162 = vld [vmem:[%s766 + $0xc50] sm:$0xff]
                  %1163 = vst [vmem:[%s767 + $0x628] sm:$0xff] %v1162
                  %v1164 = vld [vmem:[%s766 + $0xc60] sm:$0xff]
                  %1165 = vst [vmem:[%s767 + $0x630] sm:$0xff] %v1164
                  %v1166 = vld [vmem:[%s766 + $0xc70] sm:$0xff]
                  %1167 = vst [vmem:[%s767 + $0x638] sm:$0xff] %v1166
                  %v1168 = vld [vmem:[%s766 + $0xc80] sm:$0xff]
                  %1169 = vst [vmem:[%s767 + $0x640] sm:$0xff] %v1168
                  %v1170 = vld [vmem:[%s766 + $0xc90] sm:$0xff]
                  %1171 = vst [vmem:[%s767 + $0x648] sm:$0xff] %v1170
                  %v1172 = vld [vmem:[%s766 + $0xca0] sm:$0xff]
                  %1173 = vst [vmem:[%s767 + $0x650] sm:$0xff] %v1172
                  %v1174 = vld [vmem:[%s766 + $0xcb0] sm:$0xff]
                  %1175 = vst [vmem:[%s767 + $0x658] sm:$0xff] %v1174
                  %v1176 = vld [vmem:[%s766 + $0xcc0] sm:$0xff]
                  %1177 = vst [vmem:[%s767 + $0x660] sm:$0xff] %v1176
                  %v1178 = vld [vmem:[%s766 + $0xcd0] sm:$0xff]
                  %1179 = vst [vmem:[%s767 + $0x668] sm:$0xff] %v1178
                  %v1180 = vld [vmem:[%s766 + $0xce0] sm:$0xff]
                  %1181 = vst [vmem:[%s767 + $0x670] sm:$0xff] %v1180
                  %v1182 = vld [vmem:[%s766 + $0xcf0] sm:$0xff]
                  %1183 = vst [vmem:[%s767 + $0x678] sm:$0xff] %v1182
                  %v1184 = vld [vmem:[%s766 + $0xd00] sm:$0xff]
                  %1185 = vst [vmem:[%s767 + $0x680] sm:$0xff] %v1184
                  %v1186 = vld [vmem:[%s766 + $0xd10] sm:$0xff]
                  %1187 = vst [vmem:[%s767 + $0x688] sm:$0xff] %v1186
                  %v1188 = vld [vmem:[%s766 + $0xd20] sm:$0xff]
                  %1189 = vst [vmem:[%s767 + $0x690] sm:$0xff] %v1188
                  %v1190 = vld [vmem:[%s766 + $0xd30] sm:$0xff]
                  %1191 = vst [vmem:[%s767 + $0x698] sm:$0xff] %v1190
                  %v1192 = vld [vmem:[%s766 + $0xd40] sm:$0xff]
                  %1193 = vst [vmem:[%s767 + $0x6a0] sm:$0xff] %v1192
                  %v1194 = vld [vmem:[%s766 + $0xd50] sm:$0xff]
                  %1195 = vst [vmem:[%s767 + $0x6a8] sm:$0xff] %v1194
                  %v1196 = vld [vmem:[%s766 + $0xd60] sm:$0xff]
                  %1197 = vst [vmem:[%s767 + $0x6b0] sm:$0xff] %v1196
                  %v1198 = vld [vmem:[%s766 + $0xd70] sm:$0xff]
                  %1199 = vst [vmem:[%s767 + $0x6b8] sm:$0xff] %v1198
                  %v1200 = vld [vmem:[%s766 + $0xd80] sm:$0xff]
                  %1201 = vst [vmem:[%s767 + $0x6c0] sm:$0xff] %v1200
                  %v1202 = vld [vmem:[%s766 + $0xd90] sm:$0xff]
                  %1203 = vst [vmem:[%s767 + $0x6c8] sm:$0xff] %v1202
                  %v1204 = vld [vmem:[%s766 + $0xda0] sm:$0xff]
                  %1205 = vst [vmem:[%s767 + $0x6d0] sm:$0xff] %v1204
                  %v1206 = vld [vmem:[%s766 + $0xdb0] sm:$0xff]
                  %1207 = vst [vmem:[%s767 + $0x6d8] sm:$0xff] %v1206
                  %v1208 = vld [vmem:[%s766 + $0xdc0] sm:$0xff]
                  %1209 = vst [vmem:[%s767 + $0x6e0] sm:$0xff] %v1208
                  %v1210 = vld [vmem:[%s766 + $0xdd0] sm:$0xff]
                  %1211 = vst [vmem:[%s767 + $0x6e8] sm:$0xff] %v1210
                  %v1212 = vld [vmem:[%s766 + $0xde0] sm:$0xff]
                  %1213 = vst [vmem:[%s767 + $0x6f0] sm:$0xff] %v1212
                  %v1214 = vld [vmem:[%s766 + $0xdf0] sm:$0xff]
                  %1215 = vst [vmem:[%s767 + $0x6f8] sm:$0xff] %v1214
                  %v1216 = vld [vmem:[%s766 + $0xe00] sm:$0xff]
                  %1217 = vst [vmem:[%s767 + $0x700] sm:$0xff] %v1216
                  %v1218 = vld [vmem:[%s766 + $0xe10] sm:$0xff]
                  %1219 = vst [vmem:[%s767 + $0x708] sm:$0xff] %v1218
                  %v1220 = vld [vmem:[%s766 + $0xe20] sm:$0xff]
                  %1221 = vst [vmem:[%s767 + $0x710] sm:$0xff] %v1220
                  %v1222 = vld [vmem:[%s766 + $0xe30] sm:$0xff]
                  %1223 = vst [vmem:[%s767 + $0x718] sm:$0xff] %v1222
                  %v1224 = vld [vmem:[%s766 + $0xe40] sm:$0xff]
                  %1225 = vst [vmem:[%s767 + $0x720] sm:$0xff] %v1224
                  %v1226 = vld [vmem:[%s766 + $0xe50] sm:$0xff]
                  %1227 = vst [vmem:[%s767 + $0x728] sm:$0xff] %v1226
                  %v1228 = vld [vmem:[%s766 + $0xe60] sm:$0xff]
                  %1229 = vst [vmem:[%s767 + $0x730] sm:$0xff] %v1228
                  %v1230 = vld [vmem:[%s766 + $0xe70] sm:$0xff]
                  %1231 = vst [vmem:[%s767 + $0x738] sm:$0xff] %v1230
                  %v1232 = vld [vmem:[%s766 + $0xe80] sm:$0xff]
                  %1233 = vst [vmem:[%s767 + $0x740] sm:$0xff] %v1232
                  %v1234 = vld [vmem:[%s766 + $0xe90] sm:$0xff]
                  %1235 = vst [vmem:[%s767 + $0x748] sm:$0xff] %v1234
                  %v1236 = vld [vmem:[%s766 + $0xea0] sm:$0xff]
                  %1237 = vst [vmem:[%s767 + $0x750] sm:$0xff] %v1236
                  %v1238 = vld [vmem:[%s766 + $0xeb0] sm:$0xff]
                  %1239 = vst [vmem:[%s767 + $0x758] sm:$0xff] %v1238
                  %v1240 = vld [vmem:[%s766 + $0xec0] sm:$0xff]
                  %1241 = vst [vmem:[%s767 + $0x760] sm:$0xff] %v1240
                  %v1242 = vld [vmem:[%s766 + $0xed0] sm:$0xff]
                  %1243 = vst [vmem:[%s767 + $0x768] sm:$0xff] %v1242
                  %v1244 = vld [vmem:[%s766 + $0xee0] sm:$0xff]
                  %1245 = vst [vmem:[%s767 + $0x770] sm:$0xff] %v1244
                  %v1246 = vld [vmem:[%s766 + $0xef0] sm:$0xff]
                  %1247 = vst [vmem:[%s767 + $0x778] sm:$0xff] %v1246
                  %v1248 = vld [vmem:[%s766 + $0xf00] sm:$0xff]
                  %1249 = vst [vmem:[%s767 + $0x780] sm:$0xff] %v1248
                  %v1250 = vld [vmem:[%s766 + $0xf10] sm:$0xff]
                  %1251 = vst [vmem:[%s767 + $0x788] sm:$0xff] %v1250
                  %v1252 = vld [vmem:[%s766 + $0xf20] sm:$0xff]
                  %1253 = vst [vmem:[%s767 + $0x790] sm:$0xff] %v1252
                  %v1254 = vld [vmem:[%s766 + $0xf30] sm:$0xff]
                  %1255 = vst [vmem:[%s767 + $0x798] sm:$0xff] %v1254
                  %v1256 = vld [vmem:[%s766 + $0xf40] sm:$0xff]
                  %1257 = vst [vmem:[%s767 + $0x7a0] sm:$0xff] %v1256
                  %v1258 = vld [vmem:[%s766 + $0xf50] sm:$0xff]
                  %1259 = vst [vmem:[%s767 + $0x7a8] sm:$0xff] %v1258
                  %v1260 = vld [vmem:[%s766 + $0xf60] sm:$0xff]
                  %1261 = vst [vmem:[%s767 + $0x7b0] sm:$0xff] %v1260
                  %v1262 = vld [vmem:[%s766 + $0xf70] sm:$0xff]
                  %1263 = vst [vmem:[%s767 + $0x7b8] sm:$0xff] %v1262
                  %v1264 = vld [vmem:[%s766 + $0xf80] sm:$0xff]
                  %1265 = vst [vmem:[%s767 + $0x7c0] sm:$0xff] %v1264
                  %v1266 = vld [vmem:[%s766 + $0xf90] sm:$0xff]
                  %1267 = vst [vmem:[%s767 + $0x7c8] sm:$0xff] %v1266
                  %v1268 = vld [vmem:[%s766 + $0xfa0] sm:$0xff]
                  %1269 = vst [vmem:[%s767 + $0x7d0] sm:$0xff] %v1268
                  %v1270 = vld [vmem:[%s766 + $0xfb0] sm:$0xff]
                  %1271 = vst [vmem:[%s767 + $0x7d8] sm:$0xff] %v1270
                  %v1272 = vld [vmem:[%s766 + $0xfc0] sm:$0xff]
                  %1273 = vst [vmem:[%s767 + $0x7e0] sm:$0xff] %v1272
                  %v1274 = vld [vmem:[%s766 + $0xfd0] sm:$0xff]
                  %1275 = vst [vmem:[%s767 + $0x7e8] sm:$0xff] %v1274
                  %v1276 = vld [vmem:[%s766 + $0xfe0] sm:$0xff]
                  %1277 = vst [vmem:[%s767 + $0x7f0] sm:$0xff] %v1276
                  %v1278 = vld [vmem:[%s766 + $0xff0] sm:$0xff]
                  %1279 = vst [vmem:[%s767 + $0x7f8] sm:$0xff] %v1278
                  %v1280 = vld [vmem:[%s766 + $0x1000] sm:$0xff]
                  %1281 = vst [vmem:[%s767 + $0x800] sm:$0xff] %v1280
                  %v1282 = vld [vmem:[%s766 + $0x1010] sm:$0xff]
                  %1283 = vst [vmem:[%s767 + $0x808] sm:$0xff] %v1282
                  %v1284 = vld [vmem:[%s766 + $0x1020] sm:$0xff]
                  %1285 = vst [vmem:[%s767 + $0x810] sm:$0xff] %v1284
                  %v1286 = vld [vmem:[%s766 + $0x1030] sm:$0xff]
                  %1287 = vst [vmem:[%s767 + $0x818] sm:$0xff] %v1286
                  %v1288 = vld [vmem:[%s766 + $0x1040] sm:$0xff]
                  %1289 = vst [vmem:[%s767 + $0x820] sm:$0xff] %v1288
                  %v1290 = vld [vmem:[%s766 + $0x1050] sm:$0xff]
                  %1291 = vst [vmem:[%s767 + $0x828] sm:$0xff] %v1290
                  %v1292 = vld [vmem:[%s766 + $0x1060] sm:$0xff]
                  %1293 = vst [vmem:[%s767 + $0x830] sm:$0xff] %v1292
                  %v1294 = vld [vmem:[%s766 + $0x1070] sm:$0xff]
                  %1295 = vst [vmem:[%s767 + $0x838] sm:$0xff] %v1294
                  %v1296 = vld [vmem:[%s766 + $0x1080] sm:$0xff]
                  %1297 = vst [vmem:[%s767 + $0x840] sm:$0xff] %v1296
                  %v1298 = vld [vmem:[%s766 + $0x1090] sm:$0xff]
                  %1299 = vst [vmem:[%s767 + $0x848] sm:$0xff] %v1298
                  %v1300 = vld [vmem:[%s766 + $0x10a0] sm:$0xff]
                  %1301 = vst [vmem:[%s767 + $0x850] sm:$0xff] %v1300
                  %v1302 = vld [vmem:[%s766 + $0x10b0] sm:$0xff]
                  %1303 = vst [vmem:[%s767 + $0x858] sm:$0xff] %v1302
                  %v1304 = vld [vmem:[%s766 + $0x10c0] sm:$0xff]
                  %1305 = vst [vmem:[%s767 + $0x860] sm:$0xff] %v1304
                  %v1306 = vld [vmem:[%s766 + $0x10d0] sm:$0xff]
                  %1307 = vst [vmem:[%s767 + $0x868] sm:$0xff] %v1306
                  %v1308 = vld [vmem:[%s766 + $0x10e0] sm:$0xff]
                  %1309 = vst [vmem:[%s767 + $0x870] sm:$0xff] %v1308
                  %v1310 = vld [vmem:[%s766 + $0x10f0] sm:$0xff]
                  %1311 = vst [vmem:[%s767 + $0x878] sm:$0xff] %v1310
                  %v1312 = vld [vmem:[%s766 + $0x1100] sm:$0xff]
                  %1313 = vst [vmem:[%s767 + $0x880] sm:$0xff] %v1312
                  %v1314 = vld [vmem:[%s766 + $0x1110] sm:$0xff]
                  %1315 = vst [vmem:[%s767 + $0x888] sm:$0xff] %v1314
                  %v1316 = vld [vmem:[%s766 + $0x1120] sm:$0xff]
                  %1317 = vst [vmem:[%s767 + $0x890] sm:$0xff] %v1316
                  %v1318 = vld [vmem:[%s766 + $0x1130] sm:$0xff]
                  %1319 = vst [vmem:[%s767 + $0x898] sm:$0xff] %v1318
                  %v1320 = vld [vmem:[%s766 + $0x1140] sm:$0xff]
                  %1321 = vst [vmem:[%s767 + $0x8a0] sm:$0xff] %v1320
                  %v1322 = vld [vmem:[%s766 + $0x1150] sm:$0xff]
                  %1323 = vst [vmem:[%s767 + $0x8a8] sm:$0xff] %v1322
                  %v1324 = vld [vmem:[%s766 + $0x1160] sm:$0xff]
                  %1325 = vst [vmem:[%s767 + $0x8b0] sm:$0xff] %v1324
                  %v1326 = vld [vmem:[%s766 + $0x1170] sm:$0xff]
                  %1327 = vst [vmem:[%s767 + $0x8b8] sm:$0xff] %v1326
                  %v1328 = vld [vmem:[%s766 + $0x1180] sm:$0xff]
                  %1329 = vst [vmem:[%s767 + $0x8c0] sm:$0xff] %v1328
                  %v1330 = vld [vmem:[%s766 + $0x1190] sm:$0xff]
                  %1331 = vst [vmem:[%s767 + $0x8c8] sm:$0xff] %v1330
                  %v1332 = vld [vmem:[%s766 + $0x11a0] sm:$0xff]
                  %1333 = vst [vmem:[%s767 + $0x8d0] sm:$0xff] %v1332
                  %v1334 = vld [vmem:[%s766 + $0x11b0] sm:$0xff]
                  %1335 = vst [vmem:[%s767 + $0x8d8] sm:$0xff] %v1334
                  %v1336 = vld [vmem:[%s766 + $0x11c0] sm:$0xff]
                  %1337 = vst [vmem:[%s767 + $0x8e0] sm:$0xff] %v1336
                  %v1338 = vld [vmem:[%s766 + $0x11d0] sm:$0xff]
                  %1339 = vst [vmem:[%s767 + $0x8e8] sm:$0xff] %v1338
                  %v1340 = vld [vmem:[%s766 + $0x11e0] sm:$0xff]
                  %1341 = vst [vmem:[%s767 + $0x8f0] sm:$0xff] %v1340
                  %v1342 = vld [vmem:[%s766 + $0x11f0] sm:$0xff]
                  %1343 = vst [vmem:[%s767 + $0x8f8] sm:$0xff] %v1342
                $region52: #{discriminator_forward.10} parent=46 // loop_footer
                  %s765 = sadd.s32 1, %s761
                $region53: #{discriminator_forward.10} parent=46 // loop_footer_branch
                  %760 = sbr.rel target = $region49
                $region54: #{discriminator_forward.10} parent=46 // loop_exit
                  _
              $region47: #{discriminator_forward.10} parent=31 // pred_fallthru
                _
              // Predicated region
              $region55: #{discriminator_forward.10} parent=31 // pred_check
                _
              $region56: #{discriminator_forward.10} parent=31 // pred_check_branch
                %1345 = sbr.rel target = $region58
              $region57: #{discriminator_forward.10} parent=31 // pred_region
                _
              $region58: #{discriminator_forward.10} parent=31 // pred_fallthru
                _
            $region32: #{discriminator_forward.10} parent=27 // pred_fallthru
              _
            // Predicated region
            $region33: #{discriminator_forward.10} parent=27 // pred_check
              _
            $region34: #{discriminator_forward.10} parent=27 // pred_check_branch
              %171 = sbr.rel target = $region36
            $region35: #{discriminator_forward.10} parent=27 // pred_region
              %s173 = ssub.s32 256, 1
              loop: start=0, step=1, limit=1
              $region37: #{discriminator_forward.10} parent=35 // loop_pre_header
                _
              $region38: #{discriminator_forward.10} parent=35 // loop_header
                %s175 = sphi 0, %s179
                %p176 = scmp.ge.s32.totalorder %s175, 1
                %s180 = sphi %s165, %s165
                %s181 = sphi %s162, %s162
              $region39: #{discriminator_forward.10} parent=35 // loop_header_branch
                %178 = sbr.rel (%p176) target = $region43
              $region40: #{discriminator_forward.10} parent=35 // loop_body
                %v182 = vld [vmem:[%s180] sm:%s173]
                %183 = vst [vmem:[%s181] sm:%s173] %v182
                %v184 = vld [vmem:[%s180 + $0x10] sm:%s173]
                %185 = vst [vmem:[%s181 + $0x8] sm:%s173] %v184
                %v186 = vld [vmem:[%s180 + $0x20] sm:%s173]
                %187 = vst [vmem:[%s181 + $0x10] sm:%s173] %v186
                %v188 = vld [vmem:[%s180 + $0x30] sm:%s173]
                %189 = vst [vmem:[%s181 + $0x18] sm:%s173] %v188
                %v190 = vld [vmem:[%s180 + $0x40] sm:%s173]
                %191 = vst [vmem:[%s181 + $0x20] sm:%s173] %v190
                %v192 = vld [vmem:[%s180 + $0x50] sm:%s173]
                %193 = vst [vmem:[%s181 + $0x28] sm:%s173] %v192
                %v194 = vld [vmem:[%s180 + $0x60] sm:%s173]
                %195 = vst [vmem:[%s181 + $0x30] sm:%s173] %v194
                %v196 = vld [vmem:[%s180 + $0x70] sm:%s173]
                %197 = vst [vmem:[%s181 + $0x38] sm:%s173] %v196
                %v198 = vld [vmem:[%s180 + $0x80] sm:%s173]
                %199 = vst [vmem:[%s181 + $0x40] sm:%s173] %v198
                %v200 = vld [vmem:[%s180 + $0x90] sm:%s173]
                %201 = vst [vmem:[%s181 + $0x48] sm:%s173] %v200
                %v202 = vld [vmem:[%s180 + $0xa0] sm:%s173]
                %203 = vst [vmem:[%s181 + $0x50] sm:%s173] %v202
                %v204 = vld [vmem:[%s180 + $0xb0] sm:%s173]
                %205 = vst [vmem:[%s181 + $0x58] sm:%s173] %v204
                %v206 = vld [vmem:[%s180 + $0xc0] sm:%s173]
                %207 = vst [vmem:[%s181 + $0x60] sm:%s173] %v206
                %v208 = vld [vmem:[%s180 + $0xd0] sm:%s173]
                %209 = vst [vmem:[%s181 + $0x68] sm:%s173] %v208
                %v210 = vld [vmem:[%s180 + $0xe0] sm:%s173]
                %211 = vst [vmem:[%s181 + $0x70] sm:%s173] %v210
                %v212 = vld [vmem:[%s180 + $0xf0] sm:%s173]
                %213 = vst [vmem:[%s181 + $0x78] sm:%s173] %v212
                %v214 = vld [vmem:[%s180 + $0x100] sm:%s173]
                %215 = vst [vmem:[%s181 + $0x80] sm:%s173] %v214
                %v216 = vld [vmem:[%s180 + $0x110] sm:%s173]
                %217 = vst [vmem:[%s181 + $0x88] sm:%s173] %v216
                %v218 = vld [vmem:[%s180 + $0x120] sm:%s173]
                %219 = vst [vmem:[%s181 + $0x90] sm:%s173] %v218
                %v220 = vld [vmem:[%s180 + $0x130] sm:%s173]
                %221 = vst [vmem:[%s181 + $0x98] sm:%s173] %v220
                %v222 = vld [vmem:[%s180 + $0x140] sm:%s173]
                %223 = vst [vmem:[%s181 + $0xa0] sm:%s173] %v222
                %v224 = vld [vmem:[%s180 + $0x150] sm:%s173]
                %225 = vst [vmem:[%s181 + $0xa8] sm:%s173] %v224
                %v226 = vld [vmem:[%s180 + $0x160] sm:%s173]
                %227 = vst [vmem:[%s181 + $0xb0] sm:%s173] %v226
                %v228 = vld [vmem:[%s180 + $0x170] sm:%s173]
                %229 = vst [vmem:[%s181 + $0xb8] sm:%s173] %v228
                %v230 = vld [vmem:[%s180 + $0x180] sm:%s173]
                %231 = vst [vmem:[%s181 + $0xc0] sm:%s173] %v230
                %v232 = vld [vmem:[%s180 + $0x190] sm:%s173]
                %233 = vst [vmem:[%s181 + $0xc8] sm:%s173] %v232
                %v234 = vld [vmem:[%s180 + $0x1a0] sm:%s173]
                %235 = vst [vmem:[%s181 + $0xd0] sm:%s173] %v234
                %v236 = vld [vmem:[%s180 + $0x1b0] sm:%s173]
                %237 = vst [vmem:[%s181 + $0xd8] sm:%s173] %v236
                %v238 = vld [vmem:[%s180 + $0x1c0] sm:%s173]
                %239 = vst [vmem:[%s181 + $0xe0] sm:%s173] %v238
                %v240 = vld [vmem:[%s180 + $0x1d0] sm:%s173]
                %241 = vst [vmem:[%s181 + $0xe8] sm:%s173] %v240
                %v242 = vld [vmem:[%s180 + $0x1e0] sm:%s173]
                %243 = vst [vmem:[%s181 + $0xf0] sm:%s173] %v242
                %v244 = vld [vmem:[%s180 + $0x1f0] sm:%s173]
                %245 = vst [vmem:[%s181 + $0xf8] sm:%s173] %v244
                %v246 = vld [vmem:[%s180 + $0x200] sm:%s173]
                %247 = vst [vmem:[%s181 + $0x100] sm:%s173] %v246
                %v248 = vld [vmem:[%s180 + $0x210] sm:%s173]
                %249 = vst [vmem:[%s181 + $0x108] sm:%s173] %v248
                %v250 = vld [vmem:[%s180 + $0x220] sm:%s173]
                %251 = vst [vmem:[%s181 + $0x110] sm:%s173] %v250
                %v252 = vld [vmem:[%s180 + $0x230] sm:%s173]
                %253 = vst [vmem:[%s181 + $0x118] sm:%s173] %v252
                %v254 = vld [vmem:[%s180 + $0x240] sm:%s173]
                %255 = vst [vmem:[%s181 + $0x120] sm:%s173] %v254
                %v256 = vld [vmem:[%s180 + $0x250] sm:%s173]
                %257 = vst [vmem:[%s181 + $0x128] sm:%s173] %v256
                %v258 = vld [vmem:[%s180 + $0x260] sm:%s173]
                %259 = vst [vmem:[%s181 + $0x130] sm:%s173] %v258
                %v260 = vld [vmem:[%s180 + $0x270] sm:%s173]
                %261 = vst [vmem:[%s181 + $0x138] sm:%s173] %v260
                %v262 = vld [vmem:[%s180 + $0x280] sm:%s173]
                %263 = vst [vmem:[%s181 + $0x140] sm:%s173] %v262
                %v264 = vld [vmem:[%s180 + $0x290] sm:%s173]
                %265 = vst [vmem:[%s181 + $0x148] sm:%s173] %v264
                %v266 = vld [vmem:[%s180 + $0x2a0] sm:%s173]
                %267 = vst [vmem:[%s181 + $0x150] sm:%s173] %v266
                %v268 = vld [vmem:[%s180 + $0x2b0] sm:%s173]
                %269 = vst [vmem:[%s181 + $0x158] sm:%s173] %v268
                %v270 = vld [vmem:[%s180 + $0x2c0] sm:%s173]
                %271 = vst [vmem:[%s181 + $0x160] sm:%s173] %v270
                %v272 = vld [vmem:[%s180 + $0x2d0] sm:%s173]
                %273 = vst [vmem:[%s181 + $0x168] sm:%s173] %v272
                %v274 = vld [vmem:[%s180 + $0x2e0] sm:%s173]
                %275 = vst [vmem:[%s181 + $0x170] sm:%s173] %v274
                %v276 = vld [vmem:[%s180 + $0x2f0] sm:%s173]
                %277 = vst [vmem:[%s181 + $0x178] sm:%s173] %v276
                %v278 = vld [vmem:[%s180 + $0x300] sm:%s173]
                %279 = vst [vmem:[%s181 + $0x180] sm:%s173] %v278
                %v280 = vld [vmem:[%s180 + $0x310] sm:%s173]
                %281 = vst [vmem:[%s181 + $0x188] sm:%s173] %v280
                %v282 = vld [vmem:[%s180 + $0x320] sm:%s173]
                %283 = vst [vmem:[%s181 + $0x190] sm:%s173] %v282
                %v284 = vld [vmem:[%s180 + $0x330] sm:%s173]
                %285 = vst [vmem:[%s181 + $0x198] sm:%s173] %v284
                %v286 = vld [vmem:[%s180 + $0x340] sm:%s173]
                %287 = vst [vmem:[%s181 + $0x1a0] sm:%s173] %v286
                %v288 = vld [vmem:[%s180 + $0x350] sm:%s173]
                %289 = vst [vmem:[%s181 + $0x1a8] sm:%s173] %v288
                %v290 = vld [vmem:[%s180 + $0x360] sm:%s173]
                %291 = vst [vmem:[%s181 + $0x1b0] sm:%s173] %v290
                %v292 = vld [vmem:[%s180 + $0x370] sm:%s173]
                %293 = vst [vmem:[%s181 + $0x1b8] sm:%s173] %v292
                %v294 = vld [vmem:[%s180 + $0x380] sm:%s173]
                %295 = vst [vmem:[%s181 + $0x1c0] sm:%s173] %v294
                %v296 = vld [vmem:[%s180 + $0x390] sm:%s173]
                %297 = vst [vmem:[%s181 + $0x1c8] sm:%s173] %v296
                %v298 = vld [vmem:[%s180 + $0x3a0] sm:%s173]
                %299 = vst [vmem:[%s181 + $0x1d0] sm:%s173] %v298
                %v300 = vld [vmem:[%s180 + $0x3b0] sm:%s173]
                %301 = vst [vmem:[%s181 + $0x1d8] sm:%s173] %v300
                %v302 = vld [vmem:[%s180 + $0x3c0] sm:%s173]
                %303 = vst [vmem:[%s181 + $0x1e0] sm:%s173] %v302
                %v304 = vld [vmem:[%s180 + $0x3d0] sm:%s173]
                %305 = vst [vmem:[%s181 + $0x1e8] sm:%s173] %v304
                %v306 = vld [vmem:[%s180 + $0x3e0] sm:%s173]
                %307 = vst [vmem:[%s181 + $0x1f0] sm:%s173] %v306
                %v308 = vld [vmem:[%s180 + $0x3f0] sm:%s173]
                %309 = vst [vmem:[%s181 + $0x1f8] sm:%s173] %v308
                %v310 = vld [vmem:[%s180 + $0x400] sm:%s173]
                %311 = vst [vmem:[%s181 + $0x200] sm:%s173] %v310
                %v312 = vld [vmem:[%s180 + $0x410] sm:%s173]
                %313 = vst [vmem:[%s181 + $0x208] sm:%s173] %v312
                %v314 = vld [vmem:[%s180 + $0x420] sm:%s173]
                %315 = vst [vmem:[%s181 + $0x210] sm:%s173] %v314
                %v316 = vld [vmem:[%s180 + $0x430] sm:%s173]
                %317 = vst [vmem:[%s181 + $0x218] sm:%s173] %v316
                %v318 = vld [vmem:[%s180 + $0x440] sm:%s173]
                %319 = vst [vmem:[%s181 + $0x220] sm:%s173] %v318
                %v320 = vld [vmem:[%s180 + $0x450] sm:%s173]
                %321 = vst [vmem:[%s181 + $0x228] sm:%s173] %v320
                %v322 = vld [vmem:[%s180 + $0x460] sm:%s173]
                %323 = vst [vmem:[%s181 + $0x230] sm:%s173] %v322
                %v324 = vld [vmem:[%s180 + $0x470] sm:%s173]
                %325 = vst [vmem:[%s181 + $0x238] sm:%s173] %v324
                %v326 = vld [vmem:[%s180 + $0x480] sm:%s173]
                %327 = vst [vmem:[%s181 + $0x240] sm:%s173] %v326
                %v328 = vld [vmem:[%s180 + $0x490] sm:%s173]
                %329 = vst [vmem:[%s181 + $0x248] sm:%s173] %v328
                %v330 = vld [vmem:[%s180 + $0x4a0] sm:%s173]
                %331 = vst [vmem:[%s181 + $0x250] sm:%s173] %v330
                %v332 = vld [vmem:[%s180 + $0x4b0] sm:%s173]
                %333 = vst [vmem:[%s181 + $0x258] sm:%s173] %v332
                %v334 = vld [vmem:[%s180 + $0x4c0] sm:%s173]
                %335 = vst [vmem:[%s181 + $0x260] sm:%s173] %v334
                %v336 = vld [vmem:[%s180 + $0x4d0] sm:%s173]
                %337 = vst [vmem:[%s181 + $0x268] sm:%s173] %v336
                %v338 = vld [vmem:[%s180 + $0x4e0] sm:%s173]
                %339 = vst [vmem:[%s181 + $0x270] sm:%s173] %v338
                %v340 = vld [vmem:[%s180 + $0x4f0] sm:%s173]
                %341 = vst [vmem:[%s181 + $0x278] sm:%s173] %v340
                %v342 = vld [vmem:[%s180 + $0x500] sm:%s173]
                %343 = vst [vmem:[%s181 + $0x280] sm:%s173] %v342
                %v344 = vld [vmem:[%s180 + $0x510] sm:%s173]
                %345 = vst [vmem:[%s181 + $0x288] sm:%s173] %v344
                %v346 = vld [vmem:[%s180 + $0x520] sm:%s173]
                %347 = vst [vmem:[%s181 + $0x290] sm:%s173] %v346
                %v348 = vld [vmem:[%s180 + $0x530] sm:%s173]
                %349 = vst [vmem:[%s181 + $0x298] sm:%s173] %v348
                %v350 = vld [vmem:[%s180 + $0x540] sm:%s173]
                %351 = vst [vmem:[%s181 + $0x2a0] sm:%s173] %v350
                %v352 = vld [vmem:[%s180 + $0x550] sm:%s173]
                %353 = vst [vmem:[%s181 + $0x2a8] sm:%s173] %v352
                %v354 = vld [vmem:[%s180 + $0x560] sm:%s173]
                %355 = vst [vmem:[%s181 + $0x2b0] sm:%s173] %v354
                %v356 = vld [vmem:[%s180 + $0x570] sm:%s173]
                %357 = vst [vmem:[%s181 + $0x2b8] sm:%s173] %v356
                %v358 = vld [vmem:[%s180 + $0x580] sm:%s173]
                %359 = vst [vmem:[%s181 + $0x2c0] sm:%s173] %v358
                %v360 = vld [vmem:[%s180 + $0x590] sm:%s173]
                %361 = vst [vmem:[%s181 + $0x2c8] sm:%s173] %v360
                %v362 = vld [vmem:[%s180 + $0x5a0] sm:%s173]
                %363 = vst [vmem:[%s181 + $0x2d0] sm:%s173] %v362
                %v364 = vld [vmem:[%s180 + $0x5b0] sm:%s173]
                %365 = vst [vmem:[%s181 + $0x2d8] sm:%s173] %v364
                %v366 = vld [vmem:[%s180 + $0x5c0] sm:%s173]
                %367 = vst [vmem:[%s181 + $0x2e0] sm:%s173] %v366
                %v368 = vld [vmem:[%s180 + $0x5d0] sm:%s173]
                %369 = vst [vmem:[%s181 + $0x2e8] sm:%s173] %v368
                %v370 = vld [vmem:[%s180 + $0x5e0] sm:%s173]
                %371 = vst [vmem:[%s181 + $0x2f0] sm:%s173] %v370
                %v372 = vld [vmem:[%s180 + $0x5f0] sm:%s173]
                %373 = vst [vmem:[%s181 + $0x2f8] sm:%s173] %v372
                %v374 = vld [vmem:[%s180 + $0x600] sm:%s173]
                %375 = vst [vmem:[%s181 + $0x300] sm:%s173] %v374
                %v376 = vld [vmem:[%s180 + $0x610] sm:%s173]
                %377 = vst [vmem:[%s181 + $0x308] sm:%s173] %v376
                %v378 = vld [vmem:[%s180 + $0x620] sm:%s173]
                %379 = vst [vmem:[%s181 + $0x310] sm:%s173] %v378
                %v380 = vld [vmem:[%s180 + $0x630] sm:%s173]
                %381 = vst [vmem:[%s181 + $0x318] sm:%s173] %v380
                %v382 = vld [vmem:[%s180 + $0x640] sm:%s173]
                %383 = vst [vmem:[%s181 + $0x320] sm:%s173] %v382
                %v384 = vld [vmem:[%s180 + $0x650] sm:%s173]
                %385 = vst [vmem:[%s181 + $0x328] sm:%s173] %v384
                %v386 = vld [vmem:[%s180 + $0x660] sm:%s173]
                %387 = vst [vmem:[%s181 + $0x330] sm:%s173] %v386
                %v388 = vld [vmem:[%s180 + $0x670] sm:%s173]
                %389 = vst [vmem:[%s181 + $0x338] sm:%s173] %v388
                %v390 = vld [vmem:[%s180 + $0x680] sm:%s173]
                %391 = vst [vmem:[%s181 + $0x340] sm:%s173] %v390
                %v392 = vld [vmem:[%s180 + $0x690] sm:%s173]
                %393 = vst [vmem:[%s181 + $0x348] sm:%s173] %v392
                %v394 = vld [vmem:[%s180 + $0x6a0] sm:%s173]
                %395 = vst [vmem:[%s181 + $0x350] sm:%s173] %v394
                %v396 = vld [vmem:[%s180 + $0x6b0] sm:%s173]
                %397 = vst [vmem:[%s181 + $0x358] sm:%s173] %v396
                %v398 = vld [vmem:[%s180 + $0x6c0] sm:%s173]
                %399 = vst [vmem:[%s181 + $0x360] sm:%s173] %v398
                %v400 = vld [vmem:[%s180 + $0x6d0] sm:%s173]
                %401 = vst [vmem:[%s181 + $0x368] sm:%s173] %v400
                %v402 = vld [vmem:[%s180 + $0x6e0] sm:%s173]
                %403 = vst [vmem:[%s181 + $0x370] sm:%s173] %v402
                %v404 = vld [vmem:[%s180 + $0x6f0] sm:%s173]
                %405 = vst [vmem:[%s181 + $0x378] sm:%s173] %v404
                %v406 = vld [vmem:[%s180 + $0x700] sm:%s173]
                %407 = vst [vmem:[%s181 + $0x380] sm:%s173] %v406
                %v408 = vld [vmem:[%s180 + $0x710] sm:%s173]
                %409 = vst [vmem:[%s181 + $0x388] sm:%s173] %v408
                %v410 = vld [vmem:[%s180 + $0x720] sm:%s173]
                %411 = vst [vmem:[%s181 + $0x390] sm:%s173] %v410
                %v412 = vld [vmem:[%s180 + $0x730] sm:%s173]
                %413 = vst [vmem:[%s181 + $0x398] sm:%s173] %v412
                %v414 = vld [vmem:[%s180 + $0x740] sm:%s173]
                %415 = vst [vmem:[%s181 + $0x3a0] sm:%s173] %v414
                %v416 = vld [vmem:[%s180 + $0x750] sm:%s173]
                %417 = vst [vmem:[%s181 + $0x3a8] sm:%s173] %v416
                %v418 = vld [vmem:[%s180 + $0x760] sm:%s173]
                %419 = vst [vmem:[%s181 + $0x3b0] sm:%s173] %v418
                %v420 = vld [vmem:[%s180 + $0x770] sm:%s173]
                %421 = vst [vmem:[%s181 + $0x3b8] sm:%s173] %v420
                %v422 = vld [vmem:[%s180 + $0x780] sm:%s173]
                %423 = vst [vmem:[%s181 + $0x3c0] sm:%s173] %v422
                %v424 = vld [vmem:[%s180 + $0x790] sm:%s173]
                %425 = vst [vmem:[%s181 + $0x3c8] sm:%s173] %v424
                %v426 = vld [vmem:[%s180 + $0x7a0] sm:%s173]
                %427 = vst [vmem:[%s181 + $0x3d0] sm:%s173] %v426
                %v428 = vld [vmem:[%s180 + $0x7b0] sm:%s173]
                %429 = vst [vmem:[%s181 + $0x3d8] sm:%s173] %v428
                %v430 = vld [vmem:[%s180 + $0x7c0] sm:%s173]
                %431 = vst [vmem:[%s181 + $0x3e0] sm:%s173] %v430
                %v432 = vld [vmem:[%s180 + $0x7d0] sm:%s173]
                %433 = vst [vmem:[%s181 + $0x3e8] sm:%s173] %v432
                %v434 = vld [vmem:[%s180 + $0x7e0] sm:%s173]
                %435 = vst [vmem:[%s181 + $0x3f0] sm:%s173] %v434
                %v436 = vld [vmem:[%s180 + $0x7f0] sm:%s173]
                %437 = vst [vmem:[%s181 + $0x3f8] sm:%s173] %v436
                %v438 = vld [vmem:[%s180 + $0x800] sm:%s173]
                %439 = vst [vmem:[%s181 + $0x400] sm:%s173] %v438
                %v440 = vld [vmem:[%s180 + $0x810] sm:%s173]
                %441 = vst [vmem:[%s181 + $0x408] sm:%s173] %v440
                %v442 = vld [vmem:[%s180 + $0x820] sm:%s173]
                %443 = vst [vmem:[%s181 + $0x410] sm:%s173] %v442
                %v444 = vld [vmem:[%s180 + $0x830] sm:%s173]
                %445 = vst [vmem:[%s181 + $0x418] sm:%s173] %v444
                %v446 = vld [vmem:[%s180 + $0x840] sm:%s173]
                %447 = vst [vmem:[%s181 + $0x420] sm:%s173] %v446
                %v448 = vld [vmem:[%s180 + $0x850] sm:%s173]
                %449 = vst [vmem:[%s181 + $0x428] sm:%s173] %v448
                %v450 = vld [vmem:[%s180 + $0x860] sm:%s173]
                %451 = vst [vmem:[%s181 + $0x430] sm:%s173] %v450
                %v452 = vld [vmem:[%s180 + $0x870] sm:%s173]
                %453 = vst [vmem:[%s181 + $0x438] sm:%s173] %v452
                %v454 = vld [vmem:[%s180 + $0x880] sm:%s173]
                %455 = vst [vmem:[%s181 + $0x440] sm:%s173] %v454
                %v456 = vld [vmem:[%s180 + $0x890] sm:%s173]
                %457 = vst [vmem:[%s181 + $0x448] sm:%s173] %v456
                %v458 = vld [vmem:[%s180 + $0x8a0] sm:%s173]
                %459 = vst [vmem:[%s181 + $0x450] sm:%s173] %v458
                %v460 = vld [vmem:[%s180 + $0x8b0] sm:%s173]
                %461 = vst [vmem:[%s181 + $0x458] sm:%s173] %v460
                %v462 = vld [vmem:[%s180 + $0x8c0] sm:%s173]
                %463 = vst [vmem:[%s181 + $0x460] sm:%s173] %v462
                %v464 = vld [vmem:[%s180 + $0x8d0] sm:%s173]
                %465 = vst [vmem:[%s181 + $0x468] sm:%s173] %v464
                %v466 = vld [vmem:[%s180 + $0x8e0] sm:%s173]
                %467 = vst [vmem:[%s181 + $0x470] sm:%s173] %v466
                %v468 = vld [vmem:[%s180 + $0x8f0] sm:%s173]
                %469 = vst [vmem:[%s181 + $0x478] sm:%s173] %v468
                %v470 = vld [vmem:[%s180 + $0x900] sm:%s173]
                %471 = vst [vmem:[%s181 + $0x480] sm:%s173] %v470
                %v472 = vld [vmem:[%s180 + $0x910] sm:%s173]
                %473 = vst [vmem:[%s181 + $0x488] sm:%s173] %v472
                %v474 = vld [vmem:[%s180 + $0x920] sm:%s173]
                %475 = vst [vmem:[%s181 + $0x490] sm:%s173] %v474
                %v476 = vld [vmem:[%s180 + $0x930] sm:%s173]
                %477 = vst [vmem:[%s181 + $0x498] sm:%s173] %v476
                %v478 = vld [vmem:[%s180 + $0x940] sm:%s173]
                %479 = vst [vmem:[%s181 + $0x4a0] sm:%s173] %v478
                %v480 = vld [vmem:[%s180 + $0x950] sm:%s173]
                %481 = vst [vmem:[%s181 + $0x4a8] sm:%s173] %v480
                %v482 = vld [vmem:[%s180 + $0x960] sm:%s173]
                %483 = vst [vmem:[%s181 + $0x4b0] sm:%s173] %v482
                %v484 = vld [vmem:[%s180 + $0x970] sm:%s173]
                %485 = vst [vmem:[%s181 + $0x4b8] sm:%s173] %v484
                %v486 = vld [vmem:[%s180 + $0x980] sm:%s173]
                %487 = vst [vmem:[%s181 + $0x4c0] sm:%s173] %v486
                %v488 = vld [vmem:[%s180 + $0x990] sm:%s173]
                %489 = vst [vmem:[%s181 + $0x4c8] sm:%s173] %v488
                %v490 = vld [vmem:[%s180 + $0x9a0] sm:%s173]
                %491 = vst [vmem:[%s181 + $0x4d0] sm:%s173] %v490
                %v492 = vld [vmem:[%s180 + $0x9b0] sm:%s173]
                %493 = vst [vmem:[%s181 + $0x4d8] sm:%s173] %v492
                %v494 = vld [vmem:[%s180 + $0x9c0] sm:%s173]
                %495 = vst [vmem:[%s181 + $0x4e0] sm:%s173] %v494
                %v496 = vld [vmem:[%s180 + $0x9d0] sm:%s173]
                %497 = vst [vmem:[%s181 + $0x4e8] sm:%s173] %v496
                %v498 = vld [vmem:[%s180 + $0x9e0] sm:%s173]
                %499 = vst [vmem:[%s181 + $0x4f0] sm:%s173] %v498
                %v500 = vld [vmem:[%s180 + $0x9f0] sm:%s173]
                %501 = vst [vmem:[%s181 + $0x4f8] sm:%s173] %v500
                %v502 = vld [vmem:[%s180 + $0xa00] sm:%s173]
                %503 = vst [vmem:[%s181 + $0x500] sm:%s173] %v502
                %v504 = vld [vmem:[%s180 + $0xa10] sm:%s173]
                %505 = vst [vmem:[%s181 + $0x508] sm:%s173] %v504
                %v506 = vld [vmem:[%s180 + $0xa20] sm:%s173]
                %507 = vst [vmem:[%s181 + $0x510] sm:%s173] %v506
                %v508 = vld [vmem:[%s180 + $0xa30] sm:%s173]
                %509 = vst [vmem:[%s181 + $0x518] sm:%s173] %v508
                %v510 = vld [vmem:[%s180 + $0xa40] sm:%s173]
                %511 = vst [vmem:[%s181 + $0x520] sm:%s173] %v510
                %v512 = vld [vmem:[%s180 + $0xa50] sm:%s173]
                %513 = vst [vmem:[%s181 + $0x528] sm:%s173] %v512
                %v514 = vld [vmem:[%s180 + $0xa60] sm:%s173]
                %515 = vst [vmem:[%s181 + $0x530] sm:%s173] %v514
                %v516 = vld [vmem:[%s180 + $0xa70] sm:%s173]
                %517 = vst [vmem:[%s181 + $0x538] sm:%s173] %v516
                %v518 = vld [vmem:[%s180 + $0xa80] sm:%s173]
                %519 = vst [vmem:[%s181 + $0x540] sm:%s173] %v518
                %v520 = vld [vmem:[%s180 + $0xa90] sm:%s173]
                %521 = vst [vmem:[%s181 + $0x548] sm:%s173] %v520
                %v522 = vld [vmem:[%s180 + $0xaa0] sm:%s173]
                %523 = vst [vmem:[%s181 + $0x550] sm:%s173] %v522
                %v524 = vld [vmem:[%s180 + $0xab0] sm:%s173]
                %525 = vst [vmem:[%s181 + $0x558] sm:%s173] %v524
                %v526 = vld [vmem:[%s180 + $0xac0] sm:%s173]
                %527 = vst [vmem:[%s181 + $0x560] sm:%s173] %v526
                %v528 = vld [vmem:[%s180 + $0xad0] sm:%s173]
                %529 = vst [vmem:[%s181 + $0x568] sm:%s173] %v528
                %v530 = vld [vmem:[%s180 + $0xae0] sm:%s173]
                %531 = vst [vmem:[%s181 + $0x570] sm:%s173] %v530
                %v532 = vld [vmem:[%s180 + $0xaf0] sm:%s173]
                %533 = vst [vmem:[%s181 + $0x578] sm:%s173] %v532
                %v534 = vld [vmem:[%s180 + $0xb00] sm:%s173]
                %535 = vst [vmem:[%s181 + $0x580] sm:%s173] %v534
                %v536 = vld [vmem:[%s180 + $0xb10] sm:%s173]
                %537 = vst [vmem:[%s181 + $0x588] sm:%s173] %v536
                %v538 = vld [vmem:[%s180 + $0xb20] sm:%s173]
                %539 = vst [vmem:[%s181 + $0x590] sm:%s173] %v538
                %v540 = vld [vmem:[%s180 + $0xb30] sm:%s173]
                %541 = vst [vmem:[%s181 + $0x598] sm:%s173] %v540
                %v542 = vld [vmem:[%s180 + $0xb40] sm:%s173]
                %543 = vst [vmem:[%s181 + $0x5a0] sm:%s173] %v542
                %v544 = vld [vmem:[%s180 + $0xb50] sm:%s173]
                %545 = vst [vmem:[%s181 + $0x5a8] sm:%s173] %v544
                %v546 = vld [vmem:[%s180 + $0xb60] sm:%s173]
                %547 = vst [vmem:[%s181 + $0x5b0] sm:%s173] %v546
                %v548 = vld [vmem:[%s180 + $0xb70] sm:%s173]
                %549 = vst [vmem:[%s181 + $0x5b8] sm:%s173] %v548
                %v550 = vld [vmem:[%s180 + $0xb80] sm:%s173]
                %551 = vst [vmem:[%s181 + $0x5c0] sm:%s173] %v550
                %v552 = vld [vmem:[%s180 + $0xb90] sm:%s173]
                %553 = vst [vmem:[%s181 + $0x5c8] sm:%s173] %v552
                %v554 = vld [vmem:[%s180 + $0xba0] sm:%s173]
                %555 = vst [vmem:[%s181 + $0x5d0] sm:%s173] %v554
                %v556 = vld [vmem:[%s180 + $0xbb0] sm:%s173]
                %557 = vst [vmem:[%s181 + $0x5d8] sm:%s173] %v556
                %v558 = vld [vmem:[%s180 + $0xbc0] sm:%s173]
                %559 = vst [vmem:[%s181 + $0x5e0] sm:%s173] %v558
                %v560 = vld [vmem:[%s180 + $0xbd0] sm:%s173]
                %561 = vst [vmem:[%s181 + $0x5e8] sm:%s173] %v560
                %v562 = vld [vmem:[%s180 + $0xbe0] sm:%s173]
                %563 = vst [vmem:[%s181 + $0x5f0] sm:%s173] %v562
                %v564 = vld [vmem:[%s180 + $0xbf0] sm:%s173]
                %565 = vst [vmem:[%s181 + $0x5f8] sm:%s173] %v564
                %v566 = vld [vmem:[%s180 + $0xc00] sm:%s173]
                %567 = vst [vmem:[%s181 + $0x600] sm:%s173] %v566
                %v568 = vld [vmem:[%s180 + $0xc10] sm:%s173]
                %569 = vst [vmem:[%s181 + $0x608] sm:%s173] %v568
                %v570 = vld [vmem:[%s180 + $0xc20] sm:%s173]
                %571 = vst [vmem:[%s181 + $0x610] sm:%s173] %v570
                %v572 = vld [vmem:[%s180 + $0xc30] sm:%s173]
                %573 = vst [vmem:[%s181 + $0x618] sm:%s173] %v572
                %v574 = vld [vmem:[%s180 + $0xc40] sm:%s173]
                %575 = vst [vmem:[%s181 + $0x620] sm:%s173] %v574
                %v576 = vld [vmem:[%s180 + $0xc50] sm:%s173]
                %577 = vst [vmem:[%s181 + $0x628] sm:%s173] %v576
                %v578 = vld [vmem:[%s180 + $0xc60] sm:%s173]
                %579 = vst [vmem:[%s181 + $0x630] sm:%s173] %v578
                %v580 = vld [vmem:[%s180 + $0xc70] sm:%s173]
                %581 = vst [vmem:[%s181 + $0x638] sm:%s173] %v580
                %v582 = vld [vmem:[%s180 + $0xc80] sm:%s173]
                %583 = vst [vmem:[%s181 + $0x640] sm:%s173] %v582
                %v584 = vld [vmem:[%s180 + $0xc90] sm:%s173]
                %585 = vst [vmem:[%s181 + $0x648] sm:%s173] %v584
                %v586 = vld [vmem:[%s180 + $0xca0] sm:%s173]
                %587 = vst [vmem:[%s181 + $0x650] sm:%s173] %v586
                %v588 = vld [vmem:[%s180 + $0xcb0] sm:%s173]
                %589 = vst [vmem:[%s181 + $0x658] sm:%s173] %v588
                %v590 = vld [vmem:[%s180 + $0xcc0] sm:%s173]
                %591 = vst [vmem:[%s181 + $0x660] sm:%s173] %v590
                %v592 = vld [vmem:[%s180 + $0xcd0] sm:%s173]
                %593 = vst [vmem:[%s181 + $0x668] sm:%s173] %v592
                %v594 = vld [vmem:[%s180 + $0xce0] sm:%s173]
                %595 = vst [vmem:[%s181 + $0x670] sm:%s173] %v594
                %v596 = vld [vmem:[%s180 + $0xcf0] sm:%s173]
                %597 = vst [vmem:[%s181 + $0x678] sm:%s173] %v596
                %v598 = vld [vmem:[%s180 + $0xd00] sm:%s173]
                %599 = vst [vmem:[%s181 + $0x680] sm:%s173] %v598
                %v600 = vld [vmem:[%s180 + $0xd10] sm:%s173]
                %601 = vst [vmem:[%s181 + $0x688] sm:%s173] %v600
                %v602 = vld [vmem:[%s180 + $0xd20] sm:%s173]
                %603 = vst [vmem:[%s181 + $0x690] sm:%s173] %v602
                %v604 = vld [vmem:[%s180 + $0xd30] sm:%s173]
                %605 = vst [vmem:[%s181 + $0x698] sm:%s173] %v604
                %v606 = vld [vmem:[%s180 + $0xd40] sm:%s173]
                %607 = vst [vmem:[%s181 + $0x6a0] sm:%s173] %v606
                %v608 = vld [vmem:[%s180 + $0xd50] sm:%s173]
                %609 = vst [vmem:[%s181 + $0x6a8] sm:%s173] %v608
                %v610 = vld [vmem:[%s180 + $0xd60] sm:%s173]
                %611 = vst [vmem:[%s181 + $0x6b0] sm:%s173] %v610
                %v612 = vld [vmem:[%s180 + $0xd70] sm:%s173]
                %613 = vst [vmem:[%s181 + $0x6b8] sm:%s173] %v612
                %v614 = vld [vmem:[%s180 + $0xd80] sm:%s173]
                %615 = vst [vmem:[%s181 + $0x6c0] sm:%s173] %v614
                %v616 = vld [vmem:[%s180 + $0xd90] sm:%s173]
                %617 = vst [vmem:[%s181 + $0x6c8] sm:%s173] %v616
                %v618 = vld [vmem:[%s180 + $0xda0] sm:%s173]
                %619 = vst [vmem:[%s181 + $0x6d0] sm:%s173] %v618
                %v620 = vld [vmem:[%s180 + $0xdb0] sm:%s173]
                %621 = vst [vmem:[%s181 + $0x6d8] sm:%s173] %v620
                %v622 = vld [vmem:[%s180 + $0xdc0] sm:%s173]
                %623 = vst [vmem:[%s181 + $0x6e0] sm:%s173] %v622
                %v624 = vld [vmem:[%s180 + $0xdd0] sm:%s173]
                %625 = vst [vmem:[%s181 + $0x6e8] sm:%s173] %v624
                %v626 = vld [vmem:[%s180 + $0xde0] sm:%s173]
                %627 = vst [vmem:[%s181 + $0x6f0] sm:%s173] %v626
                %v628 = vld [vmem:[%s180 + $0xdf0] sm:%s173]
                %629 = vst [vmem:[%s181 + $0x6f8] sm:%s173] %v628
                %v630 = vld [vmem:[%s180 + $0xe00] sm:%s173]
                %631 = vst [vmem:[%s181 + $0x700] sm:%s173] %v630
                %v632 = vld [vmem:[%s180 + $0xe10] sm:%s173]
                %633 = vst [vmem:[%s181 + $0x708] sm:%s173] %v632
                %v634 = vld [vmem:[%s180 + $0xe20] sm:%s173]
                %635 = vst [vmem:[%s181 + $0x710] sm:%s173] %v634
                %v636 = vld [vmem:[%s180 + $0xe30] sm:%s173]
                %637 = vst [vmem:[%s181 + $0x718] sm:%s173] %v636
                %v638 = vld [vmem:[%s180 + $0xe40] sm:%s173]
                %639 = vst [vmem:[%s181 + $0x720] sm:%s173] %v638
                %v640 = vld [vmem:[%s180 + $0xe50] sm:%s173]
                %641 = vst [vmem:[%s181 + $0x728] sm:%s173] %v640
                %v642 = vld [vmem:[%s180 + $0xe60] sm:%s173]
                %643 = vst [vmem:[%s181 + $0x730] sm:%s173] %v642
                %v644 = vld [vmem:[%s180 + $0xe70] sm:%s173]
                %645 = vst [vmem:[%s181 + $0x738] sm:%s173] %v644
                %v646 = vld [vmem:[%s180 + $0xe80] sm:%s173]
                %647 = vst [vmem:[%s181 + $0x740] sm:%s173] %v646
                %v648 = vld [vmem:[%s180 + $0xe90] sm:%s173]
                %649 = vst [vmem:[%s181 + $0x748] sm:%s173] %v648
                %v650 = vld [vmem:[%s180 + $0xea0] sm:%s173]
                %651 = vst [vmem:[%s181 + $0x750] sm:%s173] %v650
                %v652 = vld [vmem:[%s180 + $0xeb0] sm:%s173]
                %653 = vst [vmem:[%s181 + $0x758] sm:%s173] %v652
                %v654 = vld [vmem:[%s180 + $0xec0] sm:%s173]
                %655 = vst [vmem:[%s181 + $0x760] sm:%s173] %v654
                %v656 = vld [vmem:[%s180 + $0xed0] sm:%s173]
                %657 = vst [vmem:[%s181 + $0x768] sm:%s173] %v656
                %v658 = vld [vmem:[%s180 + $0xee0] sm:%s173]
                %659 = vst [vmem:[%s181 + $0x770] sm:%s173] %v658
                %v660 = vld [vmem:[%s180 + $0xef0] sm:%s173]
                %661 = vst [vmem:[%s181 + $0x778] sm:%s173] %v660
                %v662 = vld [vmem:[%s180 + $0xf00] sm:%s173]
                %663 = vst [vmem:[%s181 + $0x780] sm:%s173] %v662
                %v664 = vld [vmem:[%s180 + $0xf10] sm:%s173]
                %665 = vst [vmem:[%s181 + $0x788] sm:%s173] %v664
                %v666 = vld [vmem:[%s180 + $0xf20] sm:%s173]
                %667 = vst [vmem:[%s181 + $0x790] sm:%s173] %v666
                %v668 = vld [vmem:[%s180 + $0xf30] sm:%s173]
                %669 = vst [vmem:[%s181 + $0x798] sm:%s173] %v668
                %v670 = vld [vmem:[%s180 + $0xf40] sm:%s173]
                %671 = vst [vmem:[%s181 + $0x7a0] sm:%s173] %v670
                %v672 = vld [vmem:[%s180 + $0xf50] sm:%s173]
                %673 = vst [vmem:[%s181 + $0x7a8] sm:%s173] %v672
                %v674 = vld [vmem:[%s180 + $0xf60] sm:%s173]
                %675 = vst [vmem:[%s181 + $0x7b0] sm:%s173] %v674
                %v676 = vld [vmem:[%s180 + $0xf70] sm:%s173]
                %677 = vst [vmem:[%s181 + $0x7b8] sm:%s173] %v676
                %v678 = vld [vmem:[%s180 + $0xf80] sm:%s173]
                %679 = vst [vmem:[%s181 + $0x7c0] sm:%s173] %v678
                %v680 = vld [vmem:[%s180 + $0xf90] sm:%s173]
                %681 = vst [vmem:[%s181 + $0x7c8] sm:%s173] %v680
                %v682 = vld [vmem:[%s180 + $0xfa0] sm:%s173]
                %683 = vst [vmem:[%s181 + $0x7d0] sm:%s173] %v682
                %v684 = vld [vmem:[%s180 + $0xfb0] sm:%s173]
                %685 = vst [vmem:[%s181 + $0x7d8] sm:%s173] %v684
                %v686 = vld [vmem:[%s180 + $0xfc0] sm:%s173]
                %687 = vst [vmem:[%s181 + $0x7e0] sm:%s173] %v686
                %v688 = vld [vmem:[%s180 + $0xfd0] sm:%s173]
                %689 = vst [vmem:[%s181 + $0x7e8] sm:%s173] %v688
                %v690 = vld [vmem:[%s180 + $0xfe0] sm:%s173]
                %691 = vst [vmem:[%s181 + $0x7f0] sm:%s173] %v690
                %v692 = vld [vmem:[%s180 + $0xff0] sm:%s173]
                %693 = vst [vmem:[%s181 + $0x7f8] sm:%s173] %v692
                %v694 = vld [vmem:[%s180 + $0x1000] sm:%s173]
                %695 = vst [vmem:[%s181 + $0x800] sm:%s173] %v694
                %v696 = vld [vmem:[%s180 + $0x1010] sm:%s173]
                %697 = vst [vmem:[%s181 + $0x808] sm:%s173] %v696
                %v698 = vld [vmem:[%s180 + $0x1020] sm:%s173]
                %699 = vst [vmem:[%s181 + $0x810] sm:%s173] %v698
                %v700 = vld [vmem:[%s180 + $0x1030] sm:%s173]
                %701 = vst [vmem:[%s181 + $0x818] sm:%s173] %v700
                %v702 = vld [vmem:[%s180 + $0x1040] sm:%s173]
                %703 = vst [vmem:[%s181 + $0x820] sm:%s173] %v702
                %v704 = vld [vmem:[%s180 + $0x1050] sm:%s173]
                %705 = vst [vmem:[%s181 + $0x828] sm:%s173] %v704
                %v706 = vld [vmem:[%s180 + $0x1060] sm:%s173]
                %707 = vst [vmem:[%s181 + $0x830] sm:%s173] %v706
                %v708 = vld [vmem:[%s180 + $0x1070] sm:%s173]
                %709 = vst [vmem:[%s181 + $0x838] sm:%s173] %v708
                %v710 = vld [vmem:[%s180 + $0x1080] sm:%s173]
                %711 = vst [vmem:[%s181 + $0x840] sm:%s173] %v710
                %v712 = vld [vmem:[%s180 + $0x1090] sm:%s173]
                %713 = vst [vmem:[%s181 + $0x848] sm:%s173] %v712
                %v714 = vld [vmem:[%s180 + $0x10a0] sm:%s173]
                %715 = vst [vmem:[%s181 + $0x850] sm:%s173] %v714
                %v716 = vld [vmem:[%s180 + $0x10b0] sm:%s173]
                %717 = vst [vmem:[%s181 + $0x858] sm:%s173] %v716
                %v718 = vld [vmem:[%s180 + $0x10c0] sm:%s173]
                %719 = vst [vmem:[%s181 + $0x860] sm:%s173] %v718
                %v720 = vld [vmem:[%s180 + $0x10d0] sm:%s173]
                %721 = vst [vmem:[%s181 + $0x868] sm:%s173] %v720
                %v722 = vld [vmem:[%s180 + $0x10e0] sm:%s173]
                %723 = vst [vmem:[%s181 + $0x870] sm:%s173] %v722
                %v724 = vld [vmem:[%s180 + $0x10f0] sm:%s173]
                %725 = vst [vmem:[%s181 + $0x878] sm:%s173] %v724
                %v726 = vld [vmem:[%s180 + $0x1100] sm:%s173]
                %727 = vst [vmem:[%s181 + $0x880] sm:%s173] %v726
                %v728 = vld [vmem:[%s180 + $0x1110] sm:%s173]
                %729 = vst [vmem:[%s181 + $0x888] sm:%s173] %v728
                %v730 = vld [vmem:[%s180 + $0x1120] sm:%s173]
                %731 = vst [vmem:[%s181 + $0x890] sm:%s173] %v730
                %v732 = vld [vmem:[%s180 + $0x1130] sm:%s173]
                %733 = vst [vmem:[%s181 + $0x898] sm:%s173] %v732
                %v734 = vld [vmem:[%s180 + $0x1140] sm:%s173]
                %735 = vst [vmem:[%s181 + $0x8a0] sm:%s173] %v734
                %v736 = vld [vmem:[%s180 + $0x1150] sm:%s173]
                %737 = vst [vmem:[%s181 + $0x8a8] sm:%s173] %v736
                %v738 = vld [vmem:[%s180 + $0x1160] sm:%s173]
                %739 = vst [vmem:[%s181 + $0x8b0] sm:%s173] %v738
                %v740 = vld [vmem:[%s180 + $0x1170] sm:%s173]
                %741 = vst [vmem:[%s181 + $0x8b8] sm:%s173] %v740
                %v742 = vld [vmem:[%s180 + $0x1180] sm:%s173]
                %743 = vst [vmem:[%s181 + $0x8c0] sm:%s173] %v742
                %v744 = vld [vmem:[%s180 + $0x1190] sm:%s173]
                %745 = vst [vmem:[%s181 + $0x8c8] sm:%s173] %v744
                %v746 = vld [vmem:[%s180 + $0x11a0] sm:%s173]
                %747 = vst [vmem:[%s181 + $0x8d0] sm:%s173] %v746
                %v748 = vld [vmem:[%s180 + $0x11b0] sm:%s173]
                %749 = vst [vmem:[%s181 + $0x8d8] sm:%s173] %v748
                %v750 = vld [vmem:[%s180 + $0x11c0] sm:%s173]
                %751 = vst [vmem:[%s181 + $0x8e0] sm:%s173] %v750
                %v752 = vld [vmem:[%s180 + $0x11d0] sm:%s173]
                %753 = vst [vmem:[%s181 + $0x8e8] sm:%s173] %v752
                %v754 = vld [vmem:[%s180 + $0x11e0] sm:%s173]
                %755 = vst [vmem:[%s181 + $0x8f0] sm:%s173] %v754
                %v756 = vld [vmem:[%s180 + $0x11f0] sm:%s173]
                %757 = vst [vmem:[%s181 + $0x8f8] sm:%s173] %v756
              $region41: #{discriminator_forward.10} parent=35 // loop_footer
                %s179 = sadd.s32 1, %s175
              $region42: #{discriminator_forward.10} parent=35 // loop_footer_branch
                %174 = sbr.rel target = $region38
              $region43: #{discriminator_forward.10} parent=35 // loop_exit
                _
            $region36: #{discriminator_forward.10} parent=27 // pred_fallthru
              _
          $region28: #{discriminator_forward.10} parent=23 // pred_fallthru
            _
          %1346 = vnop
        $region24: #{discriminator_forward.10} parent=19 // pred_fallthru
          _
        // Predicated region
        $region59: #{discriminator_forward.10} parent=19 // pred_check
          %p1347 = pneg %p93
        $region60: #{discriminator_forward.10} parent=19 // pred_check_branch
          %1349 = sbr.rel (%p1347) target = $region62
        $region61: #{discriminator_forward.10} parent=19 // pred_region
          %s1350 = smul.u32 2, %s17
          %p1351 = scmp.lt.s32.totalorder %s1350, 3
          %s1352 = scalar_select %p1351, %s1350, 3
          %s1353 = scalar_lea.vmem %s2, %s1352
          %s1354 = smul.u32 2, %s17
        $region62: #{discriminator_forward.10} parent=19 // pred_fallthru
          _
      $region20: #{discriminator_forward.10} parent=5 // pred_fallthru
        _
      %p1355 = scmp.le.s32.totalorder 1, %s9
      %p1356 = scmp.lt.s32.totalorder %s9, 3
      %p1357 = pnand %p1355, %p1356
      %p1358 = pneg %p1357
      // Predicated region
      $region63: #{discriminator_forward.10} parent=5 // pred_check
        _
      $region64: #{discriminator_forward.10} parent=5 // pred_check_branch
        %1360 = sbr.rel (%p1357) target = $region66
      $region65: #{discriminator_forward.10} parent=5 // pred_region
        %s1361 = ssub.s32 %s9, 1
        %s1362 = sand.u32 %s60, 1
        %s1363 = sand.u32 %s60, 1
        %s1364 = smul.addr %s1363, 2304
        %s1365 = scalar_lea.vmem [#allocation2], %s1364
        // Predicated region
        $region67: #{discriminator_forward.10} parent=65 // pred_check
          %p1366 = pneg %p73
        $region68: #{discriminator_forward.10} parent=65 // pred_check_branch
          %1368 = sbr.rel (%p1366) target = $region70
        $region69: #{discriminator_forward.10} parent=65 // pred_region
          _
        $region70: #{discriminator_forward.10} parent=65 // pred_fallthru
          _
        %s1369 = smul.u32 4, %s18
        %p1370 = scmp.lt.s32.totalorder %s1369, 3
        %s1371 = scalar_select %p1370, %s1369, 3
        %s1372 = smul.addr %s1371, 18
        %s1373 = smul.addr %s1372, 4
        %s1374 = scalar_lea.vmem %s0, %s1373
        %p1375 = pneg %p47
        %p1376 = pneg %p44
        %s1377 = sand.u32 %s60, 1
        %s1378 = sand.u32 %s60, 1
        %s1379 = smul.addr %s1378, 2304
        %s1380 = scalar_lea.vmem [#allocation2], %s1379
        %p1381 = pneg %p73
        %p1382 = pneg %p70
        %s1383 = smul.u32 2, %s19
        %p1384 = scmp.lt.s32.totalorder %s1383, 3
        %s1385 = scalar_select %p1384, %s1383, 3
        %s1386 = scalar_lea.vmem %s2, %s1385
        %p1387 = pneg %p99
        %p1388 = pneg %p96
        %p1389 = pneg %p127
        %p1390 = pneg %p124
        %s1391 = sand.u32 %s114, 1
        %s1392 = sand.u32 %s114, 1
        %s1393 = smul.addr %s1392, 32
        %s1394 = scalar_lea.vmem [#allocation3], %s1393
        %s1395 = smul.u32 4, %s18
        %p1396 = scmp.lt.s32.totalorder %s1395, 3
        %s1397 = scalar_select %p1396, %s1395, 3
        %s1398 = smul.addr %s1397, 18
        %s1399 = smul.addr %s1398, 4
        %s1400 = scalar_lea.vmem %s0, %s1399
        %s1401 = smul.u32 4, %s18
        %s1402 = smul.u32 2, %s19
        %s1403 = smul.u32 2, %s19
        %p1404 = scmp.lt.s32.totalorder %s1403, 3
        %s1405 = scalar_select %p1404, %s1403, 3
        %s1406 = scalar_lea.vmem %s2, %s1405
        %s1407 = smul.u32 2, %s19
        %s1408 = smul.u32 4, %s18
        %s1409 = smul.u32 2, %s19
        %v1410 = vld [vmem:[%s1400] sm:$0xff]
        %v1411 = vld [vmem:[%s1400 + $0x8] sm:$0xff]
        %v1412 = vld [vmem:[%s1400 + $0x10] sm:$0xff]
        %v1413 = vld [vmem:[%s1400 + $0x18] sm:$0xff]
        %v1414 = vld [vmem:[%s1400 + $0x20] sm:$0xff]
        %v1415 = vld [vmem:[%s1400 + $0x28] sm:$0xff]
        %v1416 = vld [vmem:[%s1400 + $0x30] sm:$0xff]
        %v1417 = vld [vmem:[%s1400 + $0x38] sm:$0xff]
        %v1418 = vld [vmem:[%s1400 + $0x40] sm:$0xff]
        %v1419 = vld [vmem:[%s1400 + $0x48] sm:$0xff]
        %v1420 = vld [vmem:[%s1400 + $0x50] sm:$0xff]
        %v1421 = vld [vmem:[%s1400 + $0x58] sm:$0xff]
        %v1422 = vld [vmem:[%s1400 + $0x60] sm:$0xff]
        %v1423 = vld [vmem:[%s1400 + $0x68] sm:$0xff]
        %v1424 = vld [vmem:[%s1400 + $0x70] sm:$0xff]
        %v1425 = vld [vmem:[%s1400 + $0x78] sm:$0xff]
        %v1426 = vld [vmem:[%s1400 + $0x80] sm:$0xff]
        %v1427 = vld [vmem:[%s1400 + $0x88] sm:$0xff]
        %v1428 = vld [vmem:[%s1400 + $0x90] sm:$0xff]
        %v1429 = vld [vmem:[%s1400 + $0x98] sm:$0xff]
        %v1430 = vld [vmem:[%s1400 + $0xa0] sm:$0xff]
        %v1431 = vld [vmem:[%s1400 + $0xa8] sm:$0xff]
        %v1432 = vld [vmem:[%s1400 + $0xb0] sm:$0xff]
        %v1433 = vld [vmem:[%s1400 + $0xb8] sm:$0xff]
        %v1434 = vld [vmem:[%s1400 + $0xc0] sm:$0xff]
        %v1435 = vld [vmem:[%s1400 + $0xc8] sm:$0xff]
        %v1436 = vld [vmem:[%s1400 + $0xd0] sm:$0xff]
        %v1437 = vld [vmem:[%s1400 + $0xd8] sm:$0xff]
        %v1438 = vld [vmem:[%s1400 + $0xe0] sm:$0xff]
        %v1439 = vld [vmem:[%s1400 + $0xe8] sm:$0xff]
        %v1440 = vld [vmem:[%s1400 + $0xf0] sm:$0xff]
        %v1441 = vld [vmem:[%s1400 + $0xf8] sm:$0xff]
        %v1442 = vld [vmem:[%s1400 + $0x100] sm:$0xff]
        %v1443 = vld [vmem:[%s1400 + $0x108] sm:$0xff]
        %v1444 = vld [vmem:[%s1400 + $0x110] sm:$0xff]
        %v1445 = vld [vmem:[%s1400 + $0x118] sm:$0xff]
        %v1446 = vld [vmem:[%s1365] sm:$0xff]
        %v1447 = vld [vmem:[%s1365 + $0x8] sm:$0xff]
        %v1448 = vld [vmem:[%s1365 + $0x10] sm:$0xff]
        %v1449 = vld [vmem:[%s1365 + $0x18] sm:$0xff]
        %v1450 = vld [vmem:[%s1365 + $0x20] sm:$0xff]
        %v1451 = vld [vmem:[%s1365 + $0x28] sm:$0xff]
        %v1452 = vld [vmem:[%s1365 + $0x30] sm:$0xff]
        %v1453 = vld [vmem:[%s1365 + $0x38] sm:$0xff]
        %v1454 = vld [vmem:[%s1365 + $0x40] sm:$0xff]
        %v1455 = vld [vmem:[%s1365 + $0x48] sm:$0xff]
        %v1456 = vld [vmem:[%s1365 + $0x50] sm:$0xff]
        %v1457 = vld [vmem:[%s1365 + $0x58] sm:$0xff]
        %v1458 = vld [vmem:[%s1365 + $0x60] sm:$0xff]
        %v1459 = vld [vmem:[%s1365 + $0x68] sm:$0xff]
        %v1460 = vld [vmem:[%s1365 + $0x70] sm:$0xff]
        %v1461 = vld [vmem:[%s1365 + $0x78] sm:$0xff]
        %v1462 = vld [vmem:[%s1365 + $0x80] sm:$0xff]
        %v1463 = vld [vmem:[%s1365 + $0x88] sm:$0xff]
        %v1464 = vld [vmem:[%s1365 + $0x90] sm:$0xff]
        %v1465 = vld [vmem:[%s1365 + $0x98] sm:$0xff]
        %v1466 = vld [vmem:[%s1365 + $0xa0] sm:$0xff]
        %v1467 = vld [vmem:[%s1365 + $0xa8] sm:$0xff]
        %v1468 = vld [vmem:[%s1365 + $0xb0] sm:$0xff]
        %v1469 = vld [vmem:[%s1365 + $0xb8] sm:$0xff]
        %v1470 = vld [vmem:[%s1365 + $0xc0] sm:$0xff]
        %v1471 = vld [vmem:[%s1365 + $0xc8] sm:$0xff]
        %v1472 = vld [vmem:[%s1365 + $0xd0] sm:$0xff]
        %v1473 = vld [vmem:[%s1365 + $0xd8] sm:$0xff]
        %v1474 = vld [vmem:[%s1365 + $0xe0] sm:$0xff]
        %v1475 = vld [vmem:[%s1365 + $0xe8] sm:$0xff]
        %v1476 = vld [vmem:[%s1365 + $0xf0] sm:$0xff]
        %v1477 = vld [vmem:[%s1365 + $0xf8] sm:$0xff]
        %v1478 = vld [vmem:[%s1365 + $0x100] sm:$0xff]
        %v1479 = vld [vmem:[%s1365 + $0x108] sm:$0xff]
        %v1480 = vld [vmem:[%s1365 + $0x110] sm:$0xff]
        %v1481 = vld [vmem:[%s1365 + $0x118] sm:$0xff]
        %v1482 = vld [vmem:[%s1365 + $0x120] sm:$0xff]
        %v1483 = vld [vmem:[%s1365 + $0x128] sm:$0xff]
        %v1484 = vld [vmem:[%s1365 + $0x130] sm:$0xff]
        %v1485 = vld [vmem:[%s1365 + $0x138] sm:$0xff]
        %v1486 = vld [vmem:[%s1365 + $0x140] sm:$0xff]
        %v1487 = vld [vmem:[%s1365 + $0x148] sm:$0xff]
        %v1488 = vld [vmem:[%s1365 + $0x150] sm:$0xff]
        %v1489 = vld [vmem:[%s1365 + $0x158] sm:$0xff]
        %v1490 = vld [vmem:[%s1365 + $0x160] sm:$0xff]
        %v1491 = vld [vmem:[%s1365 + $0x168] sm:$0xff]
        %v1492 = vld [vmem:[%s1365 + $0x170] sm:$0xff]
        %v1493 = vld [vmem:[%s1365 + $0x178] sm:$0xff]
        %v1494 = vld [vmem:[%s1365 + $0x180] sm:$0xff]
        %v1495 = vld [vmem:[%s1365 + $0x188] sm:$0xff]
        %v1496 = vld [vmem:[%s1365 + $0x190] sm:$0xff]
        %v1497 = vld [vmem:[%s1365 + $0x198] sm:$0xff]
        %v1498 = vld [vmem:[%s1365 + $0x1a0] sm:$0xff]
        %v1499 = vld [vmem:[%s1365 + $0x1a8] sm:$0xff]
        %v1500 = vld [vmem:[%s1365 + $0x1b0] sm:$0xff]
        %v1501 = vld [vmem:[%s1365 + $0x1b8] sm:$0xff]
        %v1502 = vld [vmem:[%s1365 + $0x1c0] sm:$0xff]
        %v1503 = vld [vmem:[%s1365 + $0x1c8] sm:$0xff]
        %v1504 = vld [vmem:[%s1365 + $0x1d0] sm:$0xff]
        %v1505 = vld [vmem:[%s1365 + $0x1d8] sm:$0xff]
        %v1506 = vld [vmem:[%s1365 + $0x1e0] sm:$0xff]
        %v1507 = vld [vmem:[%s1365 + $0x1e8] sm:$0xff]
        %v1508 = vld [vmem:[%s1365 + $0x1f0] sm:$0xff]
        %v1509 = vld [vmem:[%s1365 + $0x1f8] sm:$0xff]
        %v1510 = vld [vmem:[%s1365 + $0x200] sm:$0xff]
        %v1511 = vld [vmem:[%s1365 + $0x208] sm:$0xff]
        %v1512 = vld [vmem:[%s1365 + $0x210] sm:$0xff]
        %v1513 = vld [vmem:[%s1365 + $0x218] sm:$0xff]
        %v1514 = vld [vmem:[%s1365 + $0x220] sm:$0xff]
        %v1515 = vld [vmem:[%s1365 + $0x228] sm:$0xff]
        %v1516 = vld [vmem:[%s1365 + $0x230] sm:$0xff]
        %v1517 = vld [vmem:[%s1365 + $0x238] sm:$0xff]
        %v1518 = vld [vmem:[%s1365 + $0x240] sm:$0xff]
        %v1519 = vld [vmem:[%s1365 + $0x248] sm:$0xff]
        %v1520 = vld [vmem:[%s1365 + $0x250] sm:$0xff]
        %v1521 = vld [vmem:[%s1365 + $0x258] sm:$0xff]
        %v1522 = vld [vmem:[%s1365 + $0x260] sm:$0xff]
        %v1523 = vld [vmem:[%s1365 + $0x268] sm:$0xff]
        %v1524 = vld [vmem:[%s1365 + $0x270] sm:$0xff]
        %v1525 = vld [vmem:[%s1365 + $0x278] sm:$0xff]
        %v1526 = vld [vmem:[%s1365 + $0x280] sm:$0xff]
        %v1527 = vld [vmem:[%s1365 + $0x288] sm:$0xff]
        %v1528 = vld [vmem:[%s1365 + $0x290] sm:$0xff]
        %v1529 = vld [vmem:[%s1365 + $0x298] sm:$0xff]
        %v1530 = vld [vmem:[%s1365 + $0x2a0] sm:$0xff]
        %v1531 = vld [vmem:[%s1365 + $0x2a8] sm:$0xff]
        %v1532 = vld [vmem:[%s1365 + $0x2b0] sm:$0xff]
        %v1533 = vld [vmem:[%s1365 + $0x2b8] sm:$0xff]
        %v1534 = vld [vmem:[%s1365 + $0x2c0] sm:$0xff]
        %v1535 = vld [vmem:[%s1365 + $0x2c8] sm:$0xff]
        %v1536 = vld [vmem:[%s1365 + $0x2d0] sm:$0xff]
        %v1537 = vld [vmem:[%s1365 + $0x2d8] sm:$0xff]
        %v1538 = vld [vmem:[%s1365 + $0x2e0] sm:$0xff]
        %v1539 = vld [vmem:[%s1365 + $0x2e8] sm:$0xff]
        %v1540 = vld [vmem:[%s1365 + $0x2f0] sm:$0xff]
        %v1541 = vld [vmem:[%s1365 + $0x2f8] sm:$0xff]
        %v1542 = vld [vmem:[%s1365 + $0x300] sm:$0xff]
        %v1543 = vld [vmem:[%s1365 + $0x308] sm:$0xff]
        %v1544 = vld [vmem:[%s1365 + $0x310] sm:$0xff]
        %v1545 = vld [vmem:[%s1365 + $0x318] sm:$0xff]
        %v1546 = vld [vmem:[%s1365 + $0x320] sm:$0xff]
        %v1547 = vld [vmem:[%s1365 + $0x328] sm:$0xff]
        %v1548 = vld [vmem:[%s1365 + $0x330] sm:$0xff]
        %v1549 = vld [vmem:[%s1365 + $0x338] sm:$0xff]
        %v1550 = vld [vmem:[%s1365 + $0x340] sm:$0xff]
        %v1551 = vld [vmem:[%s1365 + $0x348] sm:$0xff]
        %v1552 = vld [vmem:[%s1365 + $0x350] sm:$0xff]
        %v1553 = vld [vmem:[%s1365 + $0x358] sm:$0xff]
        %v1554 = vld [vmem:[%s1365 + $0x360] sm:$0xff]
        %v1555 = vld [vmem:[%s1365 + $0x368] sm:$0xff]
        %v1556 = vld [vmem:[%s1365 + $0x370] sm:$0xff]
        %v1557 = vld [vmem:[%s1365 + $0x378] sm:$0xff]
        %v1558 = vld [vmem:[%s1365 + $0x380] sm:$0xff]
        %v1559 = vld [vmem:[%s1365 + $0x388] sm:$0xff]
        %v1560 = vld [vmem:[%s1365 + $0x390] sm:$0xff]
        %v1561 = vld [vmem:[%s1365 + $0x398] sm:$0xff]
        %v1562 = vld [vmem:[%s1365 + $0x3a0] sm:$0xff]
        %v1563 = vld [vmem:[%s1365 + $0x3a8] sm:$0xff]
        %v1564 = vld [vmem:[%s1365 + $0x3b0] sm:$0xff]
        %v1565 = vld [vmem:[%s1365 + $0x3b8] sm:$0xff]
        %v1566 = vld [vmem:[%s1365 + $0x3c0] sm:$0xff]
        %v1567 = vld [vmem:[%s1365 + $0x3c8] sm:$0xff]
        %v1568 = vld [vmem:[%s1365 + $0x3d0] sm:$0xff]
        %v1569 = vld [vmem:[%s1365 + $0x3d8] sm:$0xff]
        %v1570 = vld [vmem:[%s1365 + $0x3e0] sm:$0xff]
        %v1571 = vld [vmem:[%s1365 + $0x3e8] sm:$0xff]
        %v1572 = vld [vmem:[%s1365 + $0x3f0] sm:$0xff]
        %v1573 = vld [vmem:[%s1365 + $0x3f8] sm:$0xff]
        %v1574 = vld [vmem:[%s1365 + $0x400] sm:$0xff]
        %v1575 = vld [vmem:[%s1365 + $0x408] sm:$0xff]
        %v1576 = vld [vmem:[%s1365 + $0x410] sm:$0xff]
        %v1577 = vld [vmem:[%s1365 + $0x418] sm:$0xff]
        %v1578 = vld [vmem:[%s1365 + $0x420] sm:$0xff]
        %v1579 = vld [vmem:[%s1365 + $0x428] sm:$0xff]
        %v1580 = vld [vmem:[%s1365 + $0x430] sm:$0xff]
        %v1581 = vld [vmem:[%s1365 + $0x438] sm:$0xff]
        %v1582 = vld [vmem:[%s1365 + $0x440] sm:$0xff]
        %v1583 = vld [vmem:[%s1365 + $0x448] sm:$0xff]
        %v1584 = vld [vmem:[%s1365 + $0x450] sm:$0xff]
        %v1585 = vld [vmem:[%s1365 + $0x458] sm:$0xff]
        %v1586 = vld [vmem:[%s1365 + $0x460] sm:$0xff]
        %v1587 = vld [vmem:[%s1365 + $0x468] sm:$0xff]
        %v1588 = vld [vmem:[%s1365 + $0x470] sm:$0xff]
        %v1589 = vld [vmem:[%s1365 + $0x478] sm:$0xff]
        %v1590 = vld [vmem:[%s1365 + $0x480] sm:$0xff]
        %v1591 = vld [vmem:[%s1365 + $0x488] sm:$0xff]
        %v1592 = vld [vmem:[%s1365 + $0x490] sm:$0xff]
        %v1593 = vld [vmem:[%s1365 + $0x498] sm:$0xff]
        %v1594 = vld [vmem:[%s1365 + $0x4a0] sm:$0xff]
        %v1595 = vld [vmem:[%s1365 + $0x4a8] sm:$0xff]
        %v1596 = vld [vmem:[%s1365 + $0x4b0] sm:$0xff]
        %v1597 = vld [vmem:[%s1365 + $0x4b8] sm:$0xff]
        %v1598 = vld [vmem:[%s1365 + $0x4c0] sm:$0xff]
        %v1599 = vld [vmem:[%s1365 + $0x4c8] sm:$0xff]
        %v1600 = vld [vmem:[%s1365 + $0x4d0] sm:$0xff]
        %v1601 = vld [vmem:[%s1365 + $0x4d8] sm:$0xff]
        %v1602 = vld [vmem:[%s1365 + $0x4e0] sm:$0xff]
        %v1603 = vld [vmem:[%s1365 + $0x4e8] sm:$0xff]
        %v1604 = vld [vmem:[%s1365 + $0x4f0] sm:$0xff]
        %v1605 = vld [vmem:[%s1365 + $0x4f8] sm:$0xff]
        %v1606 = vld [vmem:[%s1365 + $0x500] sm:$0xff]
        %v1607 = vld [vmem:[%s1365 + $0x508] sm:$0xff]
        %v1608 = vld [vmem:[%s1365 + $0x510] sm:$0xff]
        %v1609 = vld [vmem:[%s1365 + $0x518] sm:$0xff]
        %v1610 = vld [vmem:[%s1365 + $0x520] sm:$0xff]
        %v1611 = vld [vmem:[%s1365 + $0x528] sm:$0xff]
        %v1612 = vld [vmem:[%s1365 + $0x530] sm:$0xff]
        %v1613 = vld [vmem:[%s1365 + $0x538] sm:$0xff]
        %v1614 = vld [vmem:[%s1365 + $0x540] sm:$0xff]
        %v1615 = vld [vmem:[%s1365 + $0x548] sm:$0xff]
        %v1616 = vld [vmem:[%s1365 + $0x550] sm:$0xff]
        %v1617 = vld [vmem:[%s1365 + $0x558] sm:$0xff]
        %v1618 = vld [vmem:[%s1365 + $0x560] sm:$0xff]
        %v1619 = vld [vmem:[%s1365 + $0x568] sm:$0xff]
        %v1620 = vld [vmem:[%s1365 + $0x570] sm:$0xff]
        %v1621 = vld [vmem:[%s1365 + $0x578] sm:$0xff]
        %v1622 = vld [vmem:[%s1365 + $0x580] sm:$0xff]
        %v1623 = vld [vmem:[%s1365 + $0x588] sm:$0xff]
        %v1624 = vld [vmem:[%s1365 + $0x590] sm:$0xff]
        %v1625 = vld [vmem:[%s1365 + $0x598] sm:$0xff]
        %v1626 = vld [vmem:[%s1365 + $0x5a0] sm:$0xff]
        %v1627 = vld [vmem:[%s1365 + $0x5a8] sm:$0xff]
        %v1628 = vld [vmem:[%s1365 + $0x5b0] sm:$0xff]
        %v1629 = vld [vmem:[%s1365 + $0x5b8] sm:$0xff]
        %v1630 = vld [vmem:[%s1365 + $0x5c0] sm:$0xff]
        %v1631 = vld [vmem:[%s1365 + $0x5c8] sm:$0xff]
        %v1632 = vld [vmem:[%s1365 + $0x5d0] sm:$0xff]
        %v1633 = vld [vmem:[%s1365 + $0x5d8] sm:$0xff]
        %v1634 = vld [vmem:[%s1365 + $0x5e0] sm:$0xff]
        %v1635 = vld [vmem:[%s1365 + $0x5e8] sm:$0xff]
        %v1636 = vld [vmem:[%s1365 + $0x5f0] sm:$0xff]
        %v1637 = vld [vmem:[%s1365 + $0x5f8] sm:$0xff]
        %v1638 = vld [vmem:[%s1365 + $0x600] sm:$0xff]
        %v1639 = vld [vmem:[%s1365 + $0x608] sm:$0xff]
        %v1640 = vld [vmem:[%s1365 + $0x610] sm:$0xff]
        %v1641 = vld [vmem:[%s1365 + $0x618] sm:$0xff]
        %v1642 = vld [vmem:[%s1365 + $0x620] sm:$0xff]
        %v1643 = vld [vmem:[%s1365 + $0x628] sm:$0xff]
        %v1644 = vld [vmem:[%s1365 + $0x630] sm:$0xff]
        %v1645 = vld [vmem:[%s1365 + $0x638] sm:$0xff]
        %v1646 = vld [vmem:[%s1365 + $0x640] sm:$0xff]
        %v1647 = vld [vmem:[%s1365 + $0x648] sm:$0xff]
        %v1648 = vld [vmem:[%s1365 + $0x650] sm:$0xff]
        %v1649 = vld [vmem:[%s1365 + $0x658] sm:$0xff]
        %v1650 = vld [vmem:[%s1365 + $0x660] sm:$0xff]
        %v1651 = vld [vmem:[%s1365 + $0x668] sm:$0xff]
        %v1652 = vld [vmem:[%s1365 + $0x670] sm:$0xff]
        %v1653 = vld [vmem:[%s1365 + $0x678] sm:$0xff]
        %v1654 = vld [vmem:[%s1365 + $0x680] sm:$0xff]
        %v1655 = vld [vmem:[%s1365 + $0x688] sm:$0xff]
        %v1656 = vld [vmem:[%s1365 + $0x690] sm:$0xff]
        %v1657 = vld [vmem:[%s1365 + $0x698] sm:$0xff]
        %v1658 = vld [vmem:[%s1365 + $0x6a0] sm:$0xff]
        %v1659 = vld [vmem:[%s1365 + $0x6a8] sm:$0xff]
        %v1660 = vld [vmem:[%s1365 + $0x6b0] sm:$0xff]
        %v1661 = vld [vmem:[%s1365 + $0x6b8] sm:$0xff]
        %v1662 = vld [vmem:[%s1365 + $0x6c0] sm:$0xff]
        %v1663 = vld [vmem:[%s1365 + $0x6c8] sm:$0xff]
        %v1664 = vld [vmem:[%s1365 + $0x6d0] sm:$0xff]
        %v1665 = vld [vmem:[%s1365 + $0x6d8] sm:$0xff]
        %v1666 = vld [vmem:[%s1365 + $0x6e0] sm:$0xff]
        %v1667 = vld [vmem:[%s1365 + $0x6e8] sm:$0xff]
        %v1668 = vld [vmem:[%s1365 + $0x6f0] sm:$0xff]
        %v1669 = vld [vmem:[%s1365 + $0x6f8] sm:$0xff]
        %v1670 = vld [vmem:[%s1365 + $0x700] sm:$0xff]
        %v1671 = vld [vmem:[%s1365 + $0x708] sm:$0xff]
        %v1672 = vld [vmem:[%s1365 + $0x710] sm:$0xff]
        %v1673 = vld [vmem:[%s1365 + $0x718] sm:$0xff]
        %v1674 = vld [vmem:[%s1365 + $0x720] sm:$0xff]
        %v1675 = vld [vmem:[%s1365 + $0x728] sm:$0xff]
        %v1676 = vld [vmem:[%s1365 + $0x730] sm:$0xff]
        %v1677 = vld [vmem:[%s1365 + $0x738] sm:$0xff]
        %v1678 = vld [vmem:[%s1365 + $0x740] sm:$0xff]
        %v1679 = vld [vmem:[%s1365 + $0x748] sm:$0xff]
        %v1680 = vld [vmem:[%s1365 + $0x750] sm:$0xff]
        %v1681 = vld [vmem:[%s1365 + $0x758] sm:$0xff]
        %v1682 = vld [vmem:[%s1365 + $0x760] sm:$0xff]
        %v1683 = vld [vmem:[%s1365 + $0x768] sm:$0xff]
        %v1684 = vld [vmem:[%s1365 + $0x770] sm:$0xff]
        %v1685 = vld [vmem:[%s1365 + $0x778] sm:$0xff]
        %v1686 = vld [vmem:[%s1365 + $0x780] sm:$0xff]
        %v1687 = vld [vmem:[%s1365 + $0x788] sm:$0xff]
        %v1688 = vld [vmem:[%s1365 + $0x790] sm:$0xff]
        %v1689 = vld [vmem:[%s1365 + $0x798] sm:$0xff]
        %v1690 = vld [vmem:[%s1365 + $0x7a0] sm:$0xff]
        %v1691 = vld [vmem:[%s1365 + $0x7a8] sm:$0xff]
        %v1692 = vld [vmem:[%s1365 + $0x7b0] sm:$0xff]
        %v1693 = vld [vmem:[%s1365 + $0x7b8] sm:$0xff]
        %v1694 = vld [vmem:[%s1365 + $0x7c0] sm:$0xff]
        %v1695 = vld [vmem:[%s1365 + $0x7c8] sm:$0xff]
        %v1696 = vld [vmem:[%s1365 + $0x7d0] sm:$0xff]
        %v1697 = vld [vmem:[%s1365 + $0x7d8] sm:$0xff]
        %v1698 = vld [vmem:[%s1365 + $0x7e0] sm:$0xff]
        %v1699 = vld [vmem:[%s1365 + $0x7e8] sm:$0xff]
        %v1700 = vld [vmem:[%s1365 + $0x7f0] sm:$0xff]
        %v1701 = vld [vmem:[%s1365 + $0x7f8] sm:$0xff]
        %v1702 = vld [vmem:[%s1365 + $0x800] sm:$0xff]
        %v1703 = vld [vmem:[%s1365 + $0x808] sm:$0xff]
        %v1704 = vld [vmem:[%s1365 + $0x810] sm:$0xff]
        %v1705 = vld [vmem:[%s1365 + $0x818] sm:$0xff]
        %v1706 = vld [vmem:[%s1365 + $0x820] sm:$0xff]
        %v1707 = vld [vmem:[%s1365 + $0x828] sm:$0xff]
        %v1708 = vld [vmem:[%s1365 + $0x830] sm:$0xff]
        %v1709 = vld [vmem:[%s1365 + $0x838] sm:$0xff]
        %v1710 = vld [vmem:[%s1365 + $0x840] sm:$0xff]
        %v1711 = vld [vmem:[%s1365 + $0x848] sm:$0xff]
        %v1712 = vld [vmem:[%s1365 + $0x850] sm:$0xff]
        %v1713 = vld [vmem:[%s1365 + $0x858] sm:$0xff]
        %v1714 = vld [vmem:[%s1365 + $0x860] sm:$0xff]
        %v1715 = vld [vmem:[%s1365 + $0x868] sm:$0xff]
        %v1716 = vld [vmem:[%s1365 + $0x870] sm:$0xff]
        %v1717 = vld [vmem:[%s1365 + $0x878] sm:$0xff]
        %v1718 = vld [vmem:[%s1365 + $0x880] sm:$0xff]
        %v1719 = vld [vmem:[%s1365 + $0x888] sm:$0xff]
        %v1720 = vld [vmem:[%s1365 + $0x890] sm:$0xff]
        %v1721 = vld [vmem:[%s1365 + $0x898] sm:$0xff]
        %v1722 = vld [vmem:[%s1365 + $0x8a0] sm:$0xff]
        %v1723 = vld [vmem:[%s1365 + $0x8a8] sm:$0xff]
        %v1724 = vld [vmem:[%s1365 + $0x8b0] sm:$0xff]
        %v1725 = vld [vmem:[%s1365 + $0x8b8] sm:$0xff]
        %v1726 = vld [vmem:[%s1365 + $0x8c0] sm:$0xff]
        %v1727 = vld [vmem:[%s1365 + $0x8c8] sm:$0xff]
        %v1728 = vld [vmem:[%s1365 + $0x8d0] sm:$0xff]
        %v1729 = vld [vmem:[%s1365 + $0x8d8] sm:$0xff]
        %v1730 = vld [vmem:[%s1365 + $0x8e0] sm:$0xff]
        %v1731 = vld [vmem:[%s1365 + $0x8e8] sm:$0xff]
        %v1732 = vld [vmem:[%s1365 + $0x8f0] sm:$0xff]
        %v1733 = vld [vmem:[%s1365 + $0x8f8] sm:$0xff]
        %v1734 = vld [vmem:[%s1406] sm:$0x3]
        %v1736 = vlaneseq
        %v1737 = vshrl.u32 %v1736, 7
        %v1738 = vsub.s32 0, %v1737
        %v1739 = vrot.slane %v1734, %v1738
        %v1740 = vlaneseq
        %v1741 = vshrl.u32 %v1740, 7
        %v1742 = vsub.s32 1, %v1741
        %v1743 = vrot.slane %v1734, %v1742
        %v1782 = vunpack.c.l.b16 %v1410
        %v1783 = vunpack.c.h.b16 %v1410
        %v1784 = vunpack.c.l.b16 %v1411
        %v1785 = vunpack.c.h.b16 %v1411
        %v1786 = vunpack.c.l.b16 %v1412
        %v1787 = vunpack.c.h.b16 %v1412
        %v1788 = vunpack.c.l.b16 %v1413
        %v1789 = vunpack.c.h.b16 %v1413
        %v1790 = vunpack.c.l.b16 %v1414
        %v1791 = vunpack.c.h.b16 %v1414
        %v1792 = vunpack.c.l.b16 %v1415
        %v1793 = vunpack.c.h.b16 %v1415
        %v1794 = vunpack.c.l.b16 %v1416
        %v1795 = vunpack.c.h.b16 %v1416
        %v1796 = vunpack.c.l.b16 %v1417
        %v1797 = vunpack.c.h.b16 %v1417
        %v1798 = vunpack.c.l.b16 %v1418
        %v1799 = vunpack.c.h.b16 %v1418
        %v1800 = vunpack.c.l.b16 %v1419
        %v1801 = vunpack.c.h.b16 %v1419
        %v1802 = vunpack.c.l.b16 %v1420
        %v1803 = vunpack.c.h.b16 %v1420
        %v1804 = vunpack.c.l.b16 %v1421
        %v1805 = vunpack.c.h.b16 %v1421
        %v1806 = vunpack.c.l.b16 %v1422
        %v1807 = vunpack.c.h.b16 %v1422
        %v1808 = vunpack.c.l.b16 %v1423
        %v1809 = vunpack.c.h.b16 %v1423
        %v1810 = vunpack.c.l.b16 %v1424
        %v1811 = vunpack.c.h.b16 %v1424
        %v1812 = vunpack.c.l.b16 %v1425
        %v1813 = vunpack.c.h.b16 %v1425
        %v1814 = vunpack.c.l.b16 %v1426
        %v1815 = vunpack.c.h.b16 %v1426
        %v1816 = vunpack.c.l.b16 %v1427
        %v1817 = vunpack.c.h.b16 %v1427
        %v1818 = vunpack.c.l.b16 %v1428
        %v1819 = vunpack.c.h.b16 %v1428
        %v1820 = vunpack.c.l.b16 %v1429
        %v1821 = vunpack.c.h.b16 %v1429
        %v1822 = vunpack.c.l.b16 %v1430
        %v1823 = vunpack.c.h.b16 %v1430
        %v1824 = vunpack.c.l.b16 %v1431
        %v1825 = vunpack.c.h.b16 %v1431
        %v1826 = vunpack.c.l.b16 %v1432
        %v1827 = vunpack.c.h.b16 %v1432
        %v1828 = vunpack.c.l.b16 %v1433
        %v1829 = vunpack.c.h.b16 %v1433
        %v1830 = vunpack.c.l.b16 %v1434
        %v1831 = vunpack.c.h.b16 %v1434
        %v1832 = vunpack.c.l.b16 %v1435
        %v1833 = vunpack.c.h.b16 %v1435
        %v1834 = vunpack.c.l.b16 %v1436
        %v1835 = vunpack.c.h.b16 %v1436
        %v1836 = vunpack.c.l.b16 %v1437
        %v1837 = vunpack.c.h.b16 %v1437
        %v1838 = vunpack.c.l.b16 %v1438
        %v1839 = vunpack.c.h.b16 %v1438
        %v1840 = vunpack.c.l.b16 %v1439
        %v1841 = vunpack.c.h.b16 %v1439
        %v1842 = vunpack.c.l.b16 %v1440
        %v1843 = vunpack.c.h.b16 %v1440
        %v1844 = vunpack.c.l.b16 %v1441
        %v1845 = vunpack.c.h.b16 %v1441
        %v1846 = vunpack.c.l.b16 %v1442
        %v1847 = vunpack.c.h.b16 %v1442
        %v1848 = vunpack.c.l.b16 %v1443
        %v1849 = vunpack.c.h.b16 %v1443
        %v1850 = vunpack.c.l.b16 %v1444
        %v1851 = vunpack.c.h.b16 %v1444
        %v1852 = vunpack.c.l.b16 %v1445
        %v1853 = vunpack.c.h.b16 %v1445
        %v1854 = vpack.c.b16 %v1800, %v1782
        %v1855 = vpack.c.b16 %v1801, %v1783
        %v1856 = vpack.c.b16 %v1802, %v1784
        %v1857 = vpack.c.b16 %v1803, %v1785
        %v1858 = vpack.c.b16 %v1804, %v1786
        %v1859 = vpack.c.b16 %v1805, %v1787
        %v1860 = vpack.c.b16 %v1806, %v1788
        %v1861 = vpack.c.b16 %v1807, %v1789
        %v1862 = vpack.c.b16 %v1808, %v1790
        %v1863 = vpack.c.b16 %v1809, %v1791
        %v1864 = vpack.c.b16 %v1810, %v1792
        %v1865 = vpack.c.b16 %v1811, %v1793
        %v1866 = vpack.c.b16 %v1812, %v1794
        %v1867 = vpack.c.b16 %v1813, %v1795
        %v1868 = vpack.c.b16 %v1814, %v1796
        %v1869 = vpack.c.b16 %v1815, %v1797
        %v1870 = vpack.c.b16 %v1816, %v1798
        %v1871 = vpack.c.b16 %v1817, %v1799
        %v1872 = vpack.c.b16 %v1836, %v1818
        %v1873 = vpack.c.b16 %v1837, %v1819
        %v1874 = vpack.c.b16 %v1838, %v1820
        %v1875 = vpack.c.b16 %v1839, %v1821
        %v1876 = vpack.c.b16 %v1840, %v1822
        %v1877 = vpack.c.b16 %v1841, %v1823
        %v1878 = vpack.c.b16 %v1842, %v1824
        %v1879 = vpack.c.b16 %v1843, %v1825
        %v1880 = vpack.c.b16 %v1844, %v1826
        %v1881 = vpack.c.b16 %v1845, %v1827
        %v1882 = vpack.c.b16 %v1846, %v1828
        %v1883 = vpack.c.b16 %v1847, %v1829
        %v1884 = vpack.c.b16 %v1848, %v1830
        %v1885 = vpack.c.b16 %v1849, %v1831
        %v1886 = vpack.c.b16 %v1850, %v1832
        %v1887 = vpack.c.b16 %v1851, %v1833
        %v1888 = vpack.c.b16 %v1852, %v1834
        %v1889 = vpack.c.b16 %v1853, %v1835
        %v2214 = vunpack.c.l.b16 %v1446
        %v2215 = vunpack.c.h.b16 %v1446
        %v2216 = vunpack.c.l.b16 %v1447
        %v2217 = vunpack.c.h.b16 %v1447
        %v2218 = vunpack.c.l.b16 %v1448
        %v2219 = vunpack.c.h.b16 %v1448
        %v2220 = vunpack.c.l.b16 %v1449
        %v2221 = vunpack.c.h.b16 %v1449
        %v2222 = vunpack.c.l.b16 %v1450
        %v2223 = vunpack.c.h.b16 %v1450
        %v2224 = vunpack.c.l.b16 %v1451
        %v2225 = vunpack.c.h.b16 %v1451
        %v2226 = vunpack.c.l.b16 %v1452
        %v2227 = vunpack.c.h.b16 %v1452
        %v2228 = vunpack.c.l.b16 %v1453
        %v2229 = vunpack.c.h.b16 %v1453
        %v2230 = vunpack.c.l.b16 %v1454
        %v2231 = vunpack.c.h.b16 %v1454
        %v2232 = vunpack.c.l.b16 %v1455
        %v2233 = vunpack.c.h.b16 %v1455
        %v2234 = vunpack.c.l.b16 %v1456
        %v2235 = vunpack.c.h.b16 %v1456
        %v2236 = vunpack.c.l.b16 %v1457
        %v2237 = vunpack.c.h.b16 %v1457
        %v2238 = vunpack.c.l.b16 %v1458
        %v2239 = vunpack.c.h.b16 %v1458
        %v2240 = vunpack.c.l.b16 %v1459
        %v2241 = vunpack.c.h.b16 %v1459
        %v2242 = vunpack.c.l.b16 %v1460
        %v2243 = vunpack.c.h.b16 %v1460
        %v2244 = vunpack.c.l.b16 %v1461
        %v2245 = vunpack.c.h.b16 %v1461
        %v2246 = vunpack.c.l.b16 %v1462
        %v2247 = vunpack.c.h.b16 %v1462
        %v2248 = vunpack.c.l.b16 %v1463
        %v2249 = vunpack.c.h.b16 %v1463
        %v2250 = vunpack.c.l.b16 %v1464
        %v2251 = vunpack.c.h.b16 %v1464
        %v2252 = vunpack.c.l.b16 %v1465
        %v2253 = vunpack.c.h.b16 %v1465
        %v2254 = vunpack.c.l.b16 %v1466
        %v2255 = vunpack.c.h.b16 %v1466
        %v2256 = vunpack.c.l.b16 %v1467
        %v2257 = vunpack.c.h.b16 %v1467
        %v2258 = vunpack.c.l.b16 %v1468
        %v2259 = vunpack.c.h.b16 %v1468
        %v2260 = vunpack.c.l.b16 %v1469
        %v2261 = vunpack.c.h.b16 %v1469
        %v2262 = vunpack.c.l.b16 %v1470
        %v2263 = vunpack.c.h.b16 %v1470
        %v2264 = vunpack.c.l.b16 %v1471
        %v2265 = vunpack.c.h.b16 %v1471
        %v2266 = vunpack.c.l.b16 %v1472
        %v2267 = vunpack.c.h.b16 %v1472
        %v2268 = vunpack.c.l.b16 %v1473
        %v2269 = vunpack.c.h.b16 %v1473
        %v2270 = vunpack.c.l.b16 %v1474
        %v2271 = vunpack.c.h.b16 %v1474
        %v2272 = vunpack.c.l.b16 %v1475
        %v2273 = vunpack.c.h.b16 %v1475
        %v2274 = vunpack.c.l.b16 %v1476
        %v2275 = vunpack.c.h.b16 %v1476
        %v2276 = vunpack.c.l.b16 %v1477
        %v2277 = vunpack.c.h.b16 %v1477
        %v2278 = vunpack.c.l.b16 %v1478
        %v2279 = vunpack.c.h.b16 %v1478
        %v2280 = vunpack.c.l.b16 %v1479
        %v2281 = vunpack.c.h.b16 %v1479
        %v2282 = vunpack.c.l.b16 %v1480
        %v2283 = vunpack.c.h.b16 %v1480
        %v2284 = vunpack.c.l.b16 %v1481
        %v2285 = vunpack.c.h.b16 %v1481
        %v2286 = vunpack.c.l.b16 %v1482
        %v2287 = vunpack.c.h.b16 %v1482
        %v2288 = vunpack.c.l.b16 %v1483
        %v2289 = vunpack.c.h.b16 %v1483
        %v2290 = vunpack.c.l.b16 %v1484
        %v2291 = vunpack.c.h.b16 %v1484
        %v2292 = vunpack.c.l.b16 %v1485
        %v2293 = vunpack.c.h.b16 %v1485
        %v2294 = vunpack.c.l.b16 %v1486
        %v2295 = vunpack.c.h.b16 %v1486
        %v2296 = vunpack.c.l.b16 %v1487
        %v2297 = vunpack.c.h.b16 %v1487
        %v2298 = vunpack.c.l.b16 %v1488
        %v2299 = vunpack.c.h.b16 %v1488
        %v2300 = vunpack.c.l.b16 %v1489
        %v2301 = vunpack.c.h.b16 %v1489
        %v2302 = vunpack.c.l.b16 %v1490
        %v2303 = vunpack.c.h.b16 %v1490
        %v2304 = vunpack.c.l.b16 %v1491
        %v2305 = vunpack.c.h.b16 %v1491
        %v2306 = vunpack.c.l.b16 %v1492
        %v2307 = vunpack.c.h.b16 %v1492
        %v2308 = vunpack.c.l.b16 %v1493
        %v2309 = vunpack.c.h.b16 %v1493
        %v2310 = vunpack.c.l.b16 %v1494
        %v2311 = vunpack.c.h.b16 %v1494
        %v2312 = vunpack.c.l.b16 %v1495
        %v2313 = vunpack.c.h.b16 %v1495
        %v2314 = vunpack.c.l.b16 %v1496
        %v2315 = vunpack.c.h.b16 %v1496
        %v2316 = vunpack.c.l.b16 %v1497
        %v2317 = vunpack.c.h.b16 %v1497
        %v2318 = vunpack.c.l.b16 %v1498
        %v2319 = vunpack.c.h.b16 %v1498
        %v2320 = vunpack.c.l.b16 %v1499
        %v2321 = vunpack.c.h.b16 %v1499
        %v2322 = vunpack.c.l.b16 %v1500
        %v2323 = vunpack.c.h.b16 %v1500
        %v2324 = vunpack.c.l.b16 %v1501
        %v2325 = vunpack.c.h.b16 %v1501
        %v2326 = vunpack.c.l.b16 %v1502
        %v2327 = vunpack.c.h.b16 %v1502
        %v2328 = vunpack.c.l.b16 %v1503
        %v2329 = vunpack.c.h.b16 %v1503
        %v2330 = vunpack.c.l.b16 %v1504
        %v2331 = vunpack.c.h.b16 %v1504
        %v2332 = vunpack.c.l.b16 %v1505
        %v2333 = vunpack.c.h.b16 %v1505
        %v2334 = vunpack.c.l.b16 %v1506
        %v2335 = vunpack.c.h.b16 %v1506
        %v2336 = vunpack.c.l.b16 %v1507
        %v2337 = vunpack.c.h.b16 %v1507
        %v2338 = vunpack.c.l.b16 %v1508
        %v2339 = vunpack.c.h.b16 %v1508
        %v2340 = vunpack.c.l.b16 %v1509
        %v2341 = vunpack.c.h.b16 %v1509
        %v2342 = vunpack.c.l.b16 %v1510
        %v2343 = vunpack.c.h.b16 %v1510
        %v2344 = vunpack.c.l.b16 %v1511
        %v2345 = vunpack.c.h.b16 %v1511
        %v2346 = vunpack.c.l.b16 %v1512
        %v2347 = vunpack.c.h.b16 %v1512
        %v2348 = vunpack.c.l.b16 %v1513
        %v2349 = vunpack.c.h.b16 %v1513
        %v2350 = vunpack.c.l.b16 %v1514
        %v2351 = vunpack.c.h.b16 %v1514
        %v2352 = vunpack.c.l.b16 %v1515
        %v2353 = vunpack.c.h.b16 %v1515
        %v2354 = vunpack.c.l.b16 %v1516
        %v2355 = vunpack.c.h.b16 %v1516
        %v2356 = vunpack.c.l.b16 %v1517
        %v2357 = vunpack.c.h.b16 %v1517
        %v2358 = vunpack.c.l.b16 %v1518
        %v2359 = vunpack.c.h.b16 %v1518
        %v2360 = vunpack.c.l.b16 %v1519
        %v2361 = vunpack.c.h.b16 %v1519
        %v2362 = vunpack.c.l.b16 %v1520
        %v2363 = vunpack.c.h.b16 %v1520
        %v2364 = vunpack.c.l.b16 %v1521
        %v2365 = vunpack.c.h.b16 %v1521
        %v2366 = vunpack.c.l.b16 %v1522
        %v2367 = vunpack.c.h.b16 %v1522
        %v2368 = vunpack.c.l.b16 %v1523
        %v2369 = vunpack.c.h.b16 %v1523
        %v2370 = vunpack.c.l.b16 %v1524
        %v2371 = vunpack.c.h.b16 %v1524
        %v2372 = vunpack.c.l.b16 %v1525
        %v2373 = vunpack.c.h.b16 %v1525
        %v2374 = vunpack.c.l.b16 %v1526
        %v2375 = vunpack.c.h.b16 %v1526
        %v2376 = vunpack.c.l.b16 %v1527
        %v2377 = vunpack.c.h.b16 %v1527
        %v2378 = vunpack.c.l.b16 %v1528
        %v2379 = vunpack.c.h.b16 %v1528
        %v2380 = vunpack.c.l.b16 %v1529
        %v2381 = vunpack.c.h.b16 %v1529
        %v2382 = vunpack.c.l.b16 %v1530
        %v2383 = vunpack.c.h.b16 %v1530
        %v2384 = vunpack.c.l.b16 %v1531
        %v2385 = vunpack.c.h.b16 %v1531
        %v2386 = vunpack.c.l.b16 %v1532
        %v2387 = vunpack.c.h.b16 %v1532
        %v2388 = vunpack.c.l.b16 %v1533
        %v2389 = vunpack.c.h.b16 %v1533
        %v2390 = vunpack.c.l.b16 %v1534
        %v2391 = vunpack.c.h.b16 %v1534
        %v2392 = vunpack.c.l.b16 %v1535
        %v2393 = vunpack.c.h.b16 %v1535
        %v2394 = vunpack.c.l.b16 %v1536
        %v2395 = vunpack.c.h.b16 %v1536
        %v2396 = vunpack.c.l.b16 %v1537
        %v2397 = vunpack.c.h.b16 %v1537
        %v2398 = vunpack.c.l.b16 %v1538
        %v2399 = vunpack.c.h.b16 %v1538
        %v2400 = vunpack.c.l.b16 %v1539
        %v2401 = vunpack.c.h.b16 %v1539
        %v2402 = vunpack.c.l.b16 %v1540
        %v2403 = vunpack.c.h.b16 %v1540
        %v2404 = vunpack.c.l.b16 %v1541
        %v2405 = vunpack.c.h.b16 %v1541
        %v2406 = vunpack.c.l.b16 %v1542
        %v2407 = vunpack.c.h.b16 %v1542
        %v2408 = vunpack.c.l.b16 %v1543
        %v2409 = vunpack.c.h.b16 %v1543
        %v2410 = vunpack.c.l.b16 %v1544
        %v2411 = vunpack.c.h.b16 %v1544
        %v2412 = vunpack.c.l.b16 %v1545
        %v2413 = vunpack.c.h.b16 %v1545
        %v2414 = vunpack.c.l.b16 %v1546
        %v2415 = vunpack.c.h.b16 %v1546
        %v2416 = vunpack.c.l.b16 %v1547
        %v2417 = vunpack.c.h.b16 %v1547
        %v2418 = vunpack.c.l.b16 %v1548
        %v2419 = vunpack.c.h.b16 %v1548
        %v2420 = vunpack.c.l.b16 %v1549
        %v2421 = vunpack.c.h.b16 %v1549
        %v2422 = vunpack.c.l.b16 %v1550
        %v2423 = vunpack.c.h.b16 %v1550
        %v2424 = vunpack.c.l.b16 %v1551
        %v2425 = vunpack.c.h.b16 %v1551
        %v2426 = vunpack.c.l.b16 %v1552
        %v2427 = vunpack.c.h.b16 %v1552
        %v2428 = vunpack.c.l.b16 %v1553
        %v2429 = vunpack.c.h.b16 %v1553
        %v2430 = vunpack.c.l.b16 %v1554
        %v2431 = vunpack.c.h.b16 %v1554
        %v2432 = vunpack.c.l.b16 %v1555
        %v2433 = vunpack.c.h.b16 %v1555
        %v2434 = vunpack.c.l.b16 %v1556
        %v2435 = vunpack.c.h.b16 %v1556
        %v2436 = vunpack.c.l.b16 %v1557
        %v2437 = vunpack.c.h.b16 %v1557
        %v2438 = vunpack.c.l.b16 %v1558
        %v2439 = vunpack.c.h.b16 %v1558
        %v2440 = vunpack.c.l.b16 %v1559
        %v2441 = vunpack.c.h.b16 %v1559
        %v2442 = vunpack.c.l.b16 %v1560
        %v2443 = vunpack.c.h.b16 %v1560
        %v2444 = vunpack.c.l.b16 %v1561
        %v2445 = vunpack.c.h.b16 %v1561
        %v2446 = vunpack.c.l.b16 %v1562
        %v2447 = vunpack.c.h.b16 %v1562
        %v2448 = vunpack.c.l.b16 %v1563
        %v2449 = vunpack.c.h.b16 %v1563
        %v2450 = vunpack.c.l.b16 %v1564
        %v2451 = vunpack.c.h.b16 %v1564
        %v2452 = vunpack.c.l.b16 %v1565
        %v2453 = vunpack.c.h.b16 %v1565
        %v2454 = vunpack.c.l.b16 %v1566
        %v2455 = vunpack.c.h.b16 %v1566
        %v2456 = vunpack.c.l.b16 %v1567
        %v2457 = vunpack.c.h.b16 %v1567
        %v2458 = vunpack.c.l.b16 %v1568
        %v2459 = vunpack.c.h.b16 %v1568
        %v2460 = vunpack.c.l.b16 %v1569
        %v2461 = vunpack.c.h.b16 %v1569
        %v2462 = vunpack.c.l.b16 %v1570
        %v2463 = vunpack.c.h.b16 %v1570
        %v2464 = vunpack.c.l.b16 %v1571
        %v2465 = vunpack.c.h.b16 %v1571
        %v2466 = vunpack.c.l.b16 %v1572
        %v2467 = vunpack.c.h.b16 %v1572
        %v2468 = vunpack.c.l.b16 %v1573
        %v2469 = vunpack.c.h.b16 %v1573
        %v2470 = vunpack.c.l.b16 %v1574
        %v2471 = vunpack.c.h.b16 %v1574
        %v2472 = vunpack.c.l.b16 %v1575
        %v2473 = vunpack.c.h.b16 %v1575
        %v2474 = vunpack.c.l.b16 %v1576
        %v2475 = vunpack.c.h.b16 %v1576
        %v2476 = vunpack.c.l.b16 %v1577
        %v2477 = vunpack.c.h.b16 %v1577
        %v2478 = vunpack.c.l.b16 %v1578
        %v2479 = vunpack.c.h.b16 %v1578
        %v2480 = vunpack.c.l.b16 %v1579
        %v2481 = vunpack.c.h.b16 %v1579
        %v2482 = vunpack.c.l.b16 %v1580
        %v2483 = vunpack.c.h.b16 %v1580
        %v2484 = vunpack.c.l.b16 %v1581
        %v2485 = vunpack.c.h.b16 %v1581
        %v2486 = vunpack.c.l.b16 %v1582
        %v2487 = vunpack.c.h.b16 %v1582
        %v2488 = vunpack.c.l.b16 %v1583
        %v2489 = vunpack.c.h.b16 %v1583
        %v2490 = vunpack.c.l.b16 %v1584
        %v2491 = vunpack.c.h.b16 %v1584
        %v2492 = vunpack.c.l.b16 %v1585
        %v2493 = vunpack.c.h.b16 %v1585
        %v2494 = vunpack.c.l.b16 %v1586
        %v2495 = vunpack.c.h.b16 %v1586
        %v2496 = vunpack.c.l.b16 %v1587
        %v2497 = vunpack.c.h.b16 %v1587
        %v2498 = vunpack.c.l.b16 %v1588
        %v2499 = vunpack.c.h.b16 %v1588
        %v2500 = vunpack.c.l.b16 %v1589
        %v2501 = vunpack.c.h.b16 %v1589
        %v2502 = vunpack.c.l.b16 %v1590
        %v2503 = vunpack.c.h.b16 %v1590
        %v2504 = vunpack.c.l.b16 %v1591
        %v2505 = vunpack.c.h.b16 %v1591
        %v2506 = vunpack.c.l.b16 %v1592
        %v2507 = vunpack.c.h.b16 %v1592
        %v2508 = vunpack.c.l.b16 %v1593
        %v2509 = vunpack.c.h.b16 %v1593
        %v2510 = vunpack.c.l.b16 %v1594
        %v2511 = vunpack.c.h.b16 %v1594
        %v2512 = vunpack.c.l.b16 %v1595
        %v2513 = vunpack.c.h.b16 %v1595
        %v2514 = vunpack.c.l.b16 %v1596
        %v2515 = vunpack.c.h.b16 %v1596
        %v2516 = vunpack.c.l.b16 %v1597
        %v2517 = vunpack.c.h.b16 %v1597
        %v2518 = vunpack.c.l.b16 %v1598
        %v2519 = vunpack.c.h.b16 %v1598
        %v2520 = vunpack.c.l.b16 %v1599
        %v2521 = vunpack.c.h.b16 %v1599
        %v2522 = vunpack.c.l.b16 %v1600
        %v2523 = vunpack.c.h.b16 %v1600
        %v2524 = vunpack.c.l.b16 %v1601
        %v2525 = vunpack.c.h.b16 %v1601
        %v2526 = vunpack.c.l.b16 %v1602
        %v2527 = vunpack.c.h.b16 %v1602
        %v2528 = vunpack.c.l.b16 %v1603
        %v2529 = vunpack.c.h.b16 %v1603
        %v2530 = vunpack.c.l.b16 %v1604
        %v2531 = vunpack.c.h.b16 %v1604
        %v2532 = vunpack.c.l.b16 %v1605
        %v2533 = vunpack.c.h.b16 %v1605
        %v2534 = vunpack.c.l.b16 %v1606
        %v2535 = vunpack.c.h.b16 %v1606
        %v2536 = vunpack.c.l.b16 %v1607
        %v2537 = vunpack.c.h.b16 %v1607
        %v2538 = vunpack.c.l.b16 %v1608
        %v2539 = vunpack.c.h.b16 %v1608
        %v2540 = vunpack.c.l.b16 %v1609
        %v2541 = vunpack.c.h.b16 %v1609
        %v2542 = vunpack.c.l.b16 %v1610
        %v2543 = vunpack.c.h.b16 %v1610
        %v2544 = vunpack.c.l.b16 %v1611
        %v2545 = vunpack.c.h.b16 %v1611
        %v2546 = vunpack.c.l.b16 %v1612
        %v2547 = vunpack.c.h.b16 %v1612
        %v2548 = vunpack.c.l.b16 %v1613
        %v2549 = vunpack.c.h.b16 %v1613
        %v2550 = vunpack.c.l.b16 %v1614
        %v2551 = vunpack.c.h.b16 %v1614
        %v2552 = vunpack.c.l.b16 %v1615
        %v2553 = vunpack.c.h.b16 %v1615
        %v2554 = vunpack.c.l.b16 %v1616
        %v2555 = vunpack.c.h.b16 %v1616
        %v2556 = vunpack.c.l.b16 %v1617
        %v2557 = vunpack.c.h.b16 %v1617
        %v2558 = vunpack.c.l.b16 %v1618
        %v2559 = vunpack.c.h.b16 %v1618
        %v2560 = vunpack.c.l.b16 %v1619
        %v2561 = vunpack.c.h.b16 %v1619
        %v2562 = vunpack.c.l.b16 %v1620
        %v2563 = vunpack.c.h.b16 %v1620
        %v2564 = vunpack.c.l.b16 %v1621
        %v2565 = vunpack.c.h.b16 %v1621
        %v2566 = vunpack.c.l.b16 %v1622
        %v2567 = vunpack.c.h.b16 %v1622
        %v2568 = vunpack.c.l.b16 %v1623
        %v2569 = vunpack.c.h.b16 %v1623
        %v2570 = vunpack.c.l.b16 %v1624
        %v2571 = vunpack.c.h.b16 %v1624
        %v2572 = vunpack.c.l.b16 %v1625
        %v2573 = vunpack.c.h.b16 %v1625
        %v2574 = vunpack.c.l.b16 %v1626
        %v2575 = vunpack.c.h.b16 %v1626
        %v2576 = vunpack.c.l.b16 %v1627
        %v2577 = vunpack.c.h.b16 %v1627
        %v2578 = vunpack.c.l.b16 %v1628
        %v2579 = vunpack.c.h.b16 %v1628
        %v2580 = vunpack.c.l.b16 %v1629
        %v2581 = vunpack.c.h.b16 %v1629
        %v2582 = vunpack.c.l.b16 %v1630
        %v2583 = vunpack.c.h.b16 %v1630
        %v2584 = vunpack.c.l.b16 %v1631
        %v2585 = vunpack.c.h.b16 %v1631
        %v2586 = vunpack.c.l.b16 %v1632
        %v2587 = vunpack.c.h.b16 %v1632
        %v2588 = vunpack.c.l.b16 %v1633
        %v2589 = vunpack.c.h.b16 %v1633
        %v2590 = vunpack.c.l.b16 %v1634
        %v2591 = vunpack.c.h.b16 %v1634
        %v2592 = vunpack.c.l.b16 %v1635
        %v2593 = vunpack.c.h.b16 %v1635
        %v2594 = vunpack.c.l.b16 %v1636
        %v2595 = vunpack.c.h.b16 %v1636
        %v2596 = vunpack.c.l.b16 %v1637
        %v2597 = vunpack.c.h.b16 %v1637
        %v2598 = vunpack.c.l.b16 %v1638
        %v2599 = vunpack.c.h.b16 %v1638
        %v2600 = vunpack.c.l.b16 %v1639
        %v2601 = vunpack.c.h.b16 %v1639
        %v2602 = vunpack.c.l.b16 %v1640
        %v2603 = vunpack.c.h.b16 %v1640
        %v2604 = vunpack.c.l.b16 %v1641
        %v2605 = vunpack.c.h.b16 %v1641
        %v2606 = vunpack.c.l.b16 %v1642
        %v2607 = vunpack.c.h.b16 %v1642
        %v2608 = vunpack.c.l.b16 %v1643
        %v2609 = vunpack.c.h.b16 %v1643
        %v2610 = vunpack.c.l.b16 %v1644
        %v2611 = vunpack.c.h.b16 %v1644
        %v2612 = vunpack.c.l.b16 %v1645
        %v2613 = vunpack.c.h.b16 %v1645
        %v2614 = vunpack.c.l.b16 %v1646
        %v2615 = vunpack.c.h.b16 %v1646
        %v2616 = vunpack.c.l.b16 %v1647
        %v2617 = vunpack.c.h.b16 %v1647
        %v2618 = vunpack.c.l.b16 %v1648
        %v2619 = vunpack.c.h.b16 %v1648
        %v2620 = vunpack.c.l.b16 %v1649
        %v2621 = vunpack.c.h.b16 %v1649
        %v2622 = vunpack.c.l.b16 %v1650
        %v2623 = vunpack.c.h.b16 %v1650
        %v2624 = vunpack.c.l.b16 %v1651
        %v2625 = vunpack.c.h.b16 %v1651
        %v2626 = vunpack.c.l.b16 %v1652
        %v2627 = vunpack.c.h.b16 %v1652
        %v2628 = vunpack.c.l.b16 %v1653
        %v2629 = vunpack.c.h.b16 %v1653
        %v2630 = vunpack.c.l.b16 %v1654
        %v2631 = vunpack.c.h.b16 %v1654
        %v2632 = vunpack.c.l.b16 %v1655
        %v2633 = vunpack.c.h.b16 %v1655
        %v2634 = vunpack.c.l.b16 %v1656
        %v2635 = vunpack.c.h.b16 %v1656
        %v2636 = vunpack.c.l.b16 %v1657
        %v2637 = vunpack.c.h.b16 %v1657
        %v2638 = vunpack.c.l.b16 %v1658
        %v2639 = vunpack.c.h.b16 %v1658
        %v2640 = vunpack.c.l.b16 %v1659
        %v2641 = vunpack.c.h.b16 %v1659
        %v2642 = vunpack.c.l.b16 %v1660
        %v2643 = vunpack.c.h.b16 %v1660
        %v2644 = vunpack.c.l.b16 %v1661
        %v2645 = vunpack.c.h.b16 %v1661
        %v2646 = vunpack.c.l.b16 %v1662
        %v2647 = vunpack.c.h.b16 %v1662
        %v2648 = vunpack.c.l.b16 %v1663
        %v2649 = vunpack.c.h.b16 %v1663
        %v2650 = vunpack.c.l.b16 %v1664
        %v2651 = vunpack.c.h.b16 %v1664
        %v2652 = vunpack.c.l.b16 %v1665
        %v2653 = vunpack.c.h.b16 %v1665
        %v2654 = vunpack.c.l.b16 %v1666
        %v2655 = vunpack.c.h.b16 %v1666
        %v2656 = vunpack.c.l.b16 %v1667
        %v2657 = vunpack.c.h.b16 %v1667
        %v2658 = vunpack.c.l.b16 %v1668
        %v2659 = vunpack.c.h.b16 %v1668
        %v2660 = vunpack.c.l.b16 %v1669
        %v2661 = vunpack.c.h.b16 %v1669
        %v2662 = vunpack.c.l.b16 %v1670
        %v2663 = vunpack.c.h.b16 %v1670
        %v2664 = vunpack.c.l.b16 %v1671
        %v2665 = vunpack.c.h.b16 %v1671
        %v2666 = vunpack.c.l.b16 %v1672
        %v2667 = vunpack.c.h.b16 %v1672
        %v2668 = vunpack.c.l.b16 %v1673
        %v2669 = vunpack.c.h.b16 %v1673
        %v2670 = vunpack.c.l.b16 %v1674
        %v2671 = vunpack.c.h.b16 %v1674
        %v2672 = vunpack.c.l.b16 %v1675
        %v2673 = vunpack.c.h.b16 %v1675
        %v2674 = vunpack.c.l.b16 %v1676
        %v2675 = vunpack.c.h.b16 %v1676
        %v2676 = vunpack.c.l.b16 %v1677
        %v2677 = vunpack.c.h.b16 %v1677
        %v2678 = vunpack.c.l.b16 %v1678
        %v2679 = vunpack.c.h.b16 %v1678
        %v2680 = vunpack.c.l.b16 %v1679
        %v2681 = vunpack.c.h.b16 %v1679
        %v2682 = vunpack.c.l.b16 %v1680
        %v2683 = vunpack.c.h.b16 %v1680
        %v2684 = vunpack.c.l.b16 %v1681
        %v2685 = vunpack.c.h.b16 %v1681
        %v2686 = vunpack.c.l.b16 %v1682
        %v2687 = vunpack.c.h.b16 %v1682
        %v2688 = vunpack.c.l.b16 %v1683
        %v2689 = vunpack.c.h.b16 %v1683
        %v2690 = vunpack.c.l.b16 %v1684
        %v2691 = vunpack.c.h.b16 %v1684
        %v2692 = vunpack.c.l.b16 %v1685
        %v2693 = vunpack.c.h.b16 %v1685
        %v2694 = vunpack.c.l.b16 %v1686
        %v2695 = vunpack.c.h.b16 %v1686
        %v2696 = vunpack.c.l.b16 %v1687
        %v2697 = vunpack.c.h.b16 %v1687
        %v2698 = vunpack.c.l.b16 %v1688
        %v2699 = vunpack.c.h.b16 %v1688
        %v2700 = vunpack.c.l.b16 %v1689
        %v2701 = vunpack.c.h.b16 %v1689
        %v2702 = vunpack.c.l.b16 %v1690
        %v2703 = vunpack.c.h.b16 %v1690
        %v2704 = vunpack.c.l.b16 %v1691
        %v2705 = vunpack.c.h.b16 %v1691
        %v2706 = vunpack.c.l.b16 %v1692
        %v2707 = vunpack.c.h.b16 %v1692
        %v2708 = vunpack.c.l.b16 %v1693
        %v2709 = vunpack.c.h.b16 %v1693
        %v2710 = vunpack.c.l.b16 %v1694
        %v2711 = vunpack.c.h.b16 %v1694
        %v2712 = vunpack.c.l.b16 %v1695
        %v2713 = vunpack.c.h.b16 %v1695
        %v2714 = vunpack.c.l.b16 %v1696
        %v2715 = vunpack.c.h.b16 %v1696
        %v2716 = vunpack.c.l.b16 %v1697
        %v2717 = vunpack.c.h.b16 %v1697
        %v2718 = vunpack.c.l.b16 %v1698
        %v2719 = vunpack.c.h.b16 %v1698
        %v2720 = vunpack.c.l.b16 %v1699
        %v2721 = vunpack.c.h.b16 %v1699
        %v2722 = vunpack.c.l.b16 %v1700
        %v2723 = vunpack.c.h.b16 %v1700
        %v2724 = vunpack.c.l.b16 %v1701
        %v2725 = vunpack.c.h.b16 %v1701
        %v2726 = vunpack.c.l.b16 %v1702
        %v2727 = vunpack.c.h.b16 %v1702
        %v2728 = vunpack.c.l.b16 %v1703
        %v2729 = vunpack.c.h.b16 %v1703
        %v2730 = vunpack.c.l.b16 %v1704
        %v2731 = vunpack.c.h.b16 %v1704
        %v2732 = vunpack.c.l.b16 %v1705
        %v2733 = vunpack.c.h.b16 %v1705
        %v2734 = vunpack.c.l.b16 %v1706
        %v2735 = vunpack.c.h.b16 %v1706
        %v2736 = vunpack.c.l.b16 %v1707
        %v2737 = vunpack.c.h.b16 %v1707
        %v2738 = vunpack.c.l.b16 %v1708
        %v2739 = vunpack.c.h.b16 %v1708
        %v2740 = vunpack.c.l.b16 %v1709
        %v2741 = vunpack.c.h.b16 %v1709
        %v2742 = vunpack.c.l.b16 %v1710
        %v2743 = vunpack.c.h.b16 %v1710
        %v2744 = vunpack.c.l.b16 %v1711
        %v2745 = vunpack.c.h.b16 %v1711
        %v2746 = vunpack.c.l.b16 %v1712
        %v2747 = vunpack.c.h.b16 %v1712
        %v2748 = vunpack.c.l.b16 %v1713
        %v2749 = vunpack.c.h.b16 %v1713
        %v2750 = vunpack.c.l.b16 %v1714
        %v2751 = vunpack.c.h.b16 %v1714
        %v2752 = vunpack.c.l.b16 %v1715
        %v2753 = vunpack.c.h.b16 %v1715
        %v2754 = vunpack.c.l.b16 %v1716
        %v2755 = vunpack.c.h.b16 %v1716
        %v2756 = vunpack.c.l.b16 %v1717
        %v2757 = vunpack.c.h.b16 %v1717
        %v2758 = vunpack.c.l.b16 %v1718
        %v2759 = vunpack.c.h.b16 %v1718
        %v2760 = vunpack.c.l.b16 %v1719
        %v2761 = vunpack.c.h.b16 %v1719
        %v2762 = vunpack.c.l.b16 %v1720
        %v2763 = vunpack.c.h.b16 %v1720
        %v2764 = vunpack.c.l.b16 %v1721
        %v2765 = vunpack.c.h.b16 %v1721
        %v2766 = vunpack.c.l.b16 %v1722
        %v2767 = vunpack.c.h.b16 %v1722
        %v2768 = vunpack.c.l.b16 %v1723
        %v2769 = vunpack.c.h.b16 %v1723
        %v2770 = vunpack.c.l.b16 %v1724
        %v2771 = vunpack.c.h.b16 %v1724
        %v2772 = vunpack.c.l.b16 %v1725
        %v2773 = vunpack.c.h.b16 %v1725
        %v2774 = vunpack.c.l.b16 %v1726
        %v2775 = vunpack.c.h.b16 %v1726
        %v2776 = vunpack.c.l.b16 %v1727
        %v2777 = vunpack.c.h.b16 %v1727
        %v2778 = vunpack.c.l.b16 %v1728
        %v2779 = vunpack.c.h.b16 %v1728
        %v2780 = vunpack.c.l.b16 %v1729
        %v2781 = vunpack.c.h.b16 %v1729
        %v2782 = vunpack.c.l.b16 %v1730
        %v2783 = vunpack.c.h.b16 %v1730
        %v2784 = vunpack.c.l.b16 %v1731
        %v2785 = vunpack.c.h.b16 %v1731
        %v2786 = vunpack.c.l.b16 %v1732
        %v2787 = vunpack.c.h.b16 %v1732
        %v2788 = vunpack.c.l.b16 %v1733
        %v2789 = vunpack.c.h.b16 %v1733
        %v2790 = vpack.c.b16 %v2216, %v2214
        %v2791 = vpack.c.b16 %v2217, %v2215
        %v2792 = vpack.c.b16 %v2220, %v2218
        %v2793 = vpack.c.b16 %v2221, %v2219
        %v2794 = vpack.c.b16 %v2224, %v2222
        %v2795 = vpack.c.b16 %v2225, %v2223
        %v2796 = vpack.c.b16 %v2228, %v2226
        %v2797 = vpack.c.b16 %v2229, %v2227
        %v2798 = vpack.c.b16 %v2232, %v2230
        %v2799 = vpack.c.b16 %v2233, %v2231
        %v2800 = vpack.c.b16 %v2236, %v2234
        %v2801 = vpack.c.b16 %v2237, %v2235
        %v2802 = vpack.c.b16 %v2240, %v2238
        %v2803 = vpack.c.b16 %v2241, %v2239
        %v2804 = vpack.c.b16 %v2244, %v2242
        %v2805 = vpack.c.b16 %v2245, %v2243
        %v2806 = vpack.c.b16 %v2248, %v2246
        %v2807 = vpack.c.b16 %v2249, %v2247
        %v2808 = vpack.c.b16 %v2252, %v2250
        %v2809 = vpack.c.b16 %v2253, %v2251
        %v2810 = vpack.c.b16 %v2256, %v2254
        %v2811 = vpack.c.b16 %v2257, %v2255
        %v2812 = vpack.c.b16 %v2260, %v2258
        %v2813 = vpack.c.b16 %v2261, %v2259
        %v2814 = vpack.c.b16 %v2264, %v2262
        %v2815 = vpack.c.b16 %v2265, %v2263
        %v2816 = vpack.c.b16 %v2268, %v2266
        %v2817 = vpack.c.b16 %v2269, %v2267
        %v2818 = vpack.c.b16 %v2272, %v2270
        %v2819 = vpack.c.b16 %v2273, %v2271
        %v2820 = vpack.c.b16 %v2276, %v2274
        %v2821 = vpack.c.b16 %v2277, %v2275
        %v2822 = vpack.c.b16 %v2280, %v2278
        %v2823 = vpack.c.b16 %v2281, %v2279
        %v2824 = vpack.c.b16 %v2284, %v2282
        %v2825 = vpack.c.b16 %v2285, %v2283
        %v2826 = vpack.c.b16 %v2288, %v2286
        %v2827 = vpack.c.b16 %v2289, %v2287
        %v2828 = vpack.c.b16 %v2292, %v2290
        %v2829 = vpack.c.b16 %v2293, %v2291
        %v2830 = vpack.c.b16 %v2296, %v2294
        %v2831 = vpack.c.b16 %v2297, %v2295
        %v2832 = vpack.c.b16 %v2300, %v2298
        %v2833 = vpack.c.b16 %v2301, %v2299
        %v2834 = vpack.c.b16 %v2304, %v2302
        %v2835 = vpack.c.b16 %v2305, %v2303
        %v2836 = vpack.c.b16 %v2308, %v2306
        %v2837 = vpack.c.b16 %v2309, %v2307
        %v2838 = vpack.c.b16 %v2312, %v2310
        %v2839 = vpack.c.b16 %v2313, %v2311
        %v2840 = vpack.c.b16 %v2316, %v2314
        %v2841 = vpack.c.b16 %v2317, %v2315
        %v2842 = vpack.c.b16 %v2320, %v2318
        %v2843 = vpack.c.b16 %v2321, %v2319
        %v2844 = vpack.c.b16 %v2324, %v2322
        %v2845 = vpack.c.b16 %v2325, %v2323
        %v2846 = vpack.c.b16 %v2328, %v2326
        %v2847 = vpack.c.b16 %v2329, %v2327
        %v2848 = vpack.c.b16 %v2332, %v2330
        %v2849 = vpack.c.b16 %v2333, %v2331
        %v2850 = vpack.c.b16 %v2336, %v2334
        %v2851 = vpack.c.b16 %v2337, %v2335
        %v2852 = vpack.c.b16 %v2340, %v2338
        %v2853 = vpack.c.b16 %v2341, %v2339
        %v2854 = vpack.c.b16 %v2344, %v2342
        %v2855 = vpack.c.b16 %v2345, %v2343
        %v2856 = vpack.c.b16 %v2348, %v2346
        %v2857 = vpack.c.b16 %v2349, %v2347
        %v2858 = vpack.c.b16 %v2352, %v2350
        %v2859 = vpack.c.b16 %v2353, %v2351
        %v2860 = vpack.c.b16 %v2356, %v2354
        %v2861 = vpack.c.b16 %v2357, %v2355
        %v2862 = vpack.c.b16 %v2360, %v2358
        %v2863 = vpack.c.b16 %v2361, %v2359
        %v2864 = vpack.c.b16 %v2364, %v2362
        %v2865 = vpack.c.b16 %v2365, %v2363
        %v2866 = vpack.c.b16 %v2368, %v2366
        %v2867 = vpack.c.b16 %v2369, %v2367
        %v2868 = vpack.c.b16 %v2372, %v2370
        %v2869 = vpack.c.b16 %v2373, %v2371
        %v2870 = vpack.c.b16 %v2376, %v2374
        %v2871 = vpack.c.b16 %v2377, %v2375
        %v2872 = vpack.c.b16 %v2380, %v2378
        %v2873 = vpack.c.b16 %v2381, %v2379
        %v2874 = vpack.c.b16 %v2384, %v2382
        %v2875 = vpack.c.b16 %v2385, %v2383
        %v2876 = vpack.c.b16 %v2388, %v2386
        %v2877 = vpack.c.b16 %v2389, %v2387
        %v2878 = vpack.c.b16 %v2392, %v2390
        %v2879 = vpack.c.b16 %v2393, %v2391
        %v2880 = vpack.c.b16 %v2396, %v2394
        %v2881 = vpack.c.b16 %v2397, %v2395
        %v2882 = vpack.c.b16 %v2400, %v2398
        %v2883 = vpack.c.b16 %v2401, %v2399
        %v2884 = vpack.c.b16 %v2404, %v2402
        %v2885 = vpack.c.b16 %v2405, %v2403
        %v2886 = vpack.c.b16 %v2408, %v2406
        %v2887 = vpack.c.b16 %v2409, %v2407
        %v2888 = vpack.c.b16 %v2412, %v2410
        %v2889 = vpack.c.b16 %v2413, %v2411
        %v2890 = vpack.c.b16 %v2416, %v2414
        %v2891 = vpack.c.b16 %v2417, %v2415
        %v2892 = vpack.c.b16 %v2420, %v2418
        %v2893 = vpack.c.b16 %v2421, %v2419
        %v2894 = vpack.c.b16 %v2424, %v2422
        %v2895 = vpack.c.b16 %v2425, %v2423
        %v2896 = vpack.c.b16 %v2428, %v2426
        %v2897 = vpack.c.b16 %v2429, %v2427
        %v2898 = vpack.c.b16 %v2432, %v2430
        %v2899 = vpack.c.b16 %v2433, %v2431
        %v2900 = vpack.c.b16 %v2436, %v2434
        %v2901 = vpack.c.b16 %v2437, %v2435
        %v2902 = vpack.c.b16 %v2440, %v2438
        %v2903 = vpack.c.b16 %v2441, %v2439
        %v2904 = vpack.c.b16 %v2444, %v2442
        %v2905 = vpack.c.b16 %v2445, %v2443
        %v2906 = vpack.c.b16 %v2448, %v2446
        %v2907 = vpack.c.b16 %v2449, %v2447
        %v2908 = vpack.c.b16 %v2452, %v2450
        %v2909 = vpack.c.b16 %v2453, %v2451
        %v2910 = vpack.c.b16 %v2456, %v2454
        %v2911 = vpack.c.b16 %v2457, %v2455
        %v2912 = vpack.c.b16 %v2460, %v2458
        %v2913 = vpack.c.b16 %v2461, %v2459
        %v2914 = vpack.c.b16 %v2464, %v2462
        %v2915 = vpack.c.b16 %v2465, %v2463
        %v2916 = vpack.c.b16 %v2468, %v2466
        %v2917 = vpack.c.b16 %v2469, %v2467
        %v2918 = vpack.c.b16 %v2472, %v2470
        %v2919 = vpack.c.b16 %v2473, %v2471
        %v2920 = vpack.c.b16 %v2476, %v2474
        %v2921 = vpack.c.b16 %v2477, %v2475
        %v2922 = vpack.c.b16 %v2480, %v2478
        %v2923 = vpack.c.b16 %v2481, %v2479
        %v2924 = vpack.c.b16 %v2484, %v2482
        %v2925 = vpack.c.b16 %v2485, %v2483
        %v2926 = vpack.c.b16 %v2488, %v2486
        %v2927 = vpack.c.b16 %v2489, %v2487
        %v2928 = vpack.c.b16 %v2492, %v2490
        %v2929 = vpack.c.b16 %v2493, %v2491
        %v2930 = vpack.c.b16 %v2496, %v2494
        %v2931 = vpack.c.b16 %v2497, %v2495
        %v2932 = vpack.c.b16 %v2500, %v2498
        %v2933 = vpack.c.b16 %v2501, %v2499
        %v2934 = vpack.c.b16 %v2504, %v2502
        %v2935 = vpack.c.b16 %v2505, %v2503
        %v2936 = vpack.c.b16 %v2508, %v2506
        %v2937 = vpack.c.b16 %v2509, %v2507
        %v2938 = vpack.c.b16 %v2512, %v2510
        %v2939 = vpack.c.b16 %v2513, %v2511
        %v2940 = vpack.c.b16 %v2516, %v2514
        %v2941 = vpack.c.b16 %v2517, %v2515
        %v2942 = vpack.c.b16 %v2520, %v2518
        %v2943 = vpack.c.b16 %v2521, %v2519
        %v2944 = vpack.c.b16 %v2524, %v2522
        %v2945 = vpack.c.b16 %v2525, %v2523
        %v2946 = vpack.c.b16 %v2528, %v2526
        %v2947 = vpack.c.b16 %v2529, %v2527
        %v2948 = vpack.c.b16 %v2532, %v2530
        %v2949 = vpack.c.b16 %v2533, %v2531
        %v2950 = vpack.c.b16 %v2536, %v2534
        %v2951 = vpack.c.b16 %v2537, %v2535
        %v2952 = vpack.c.b16 %v2540, %v2538
        %v2953 = vpack.c.b16 %v2541, %v2539
        %v2954 = vpack.c.b16 %v2544, %v2542
        %v2955 = vpack.c.b16 %v2545, %v2543
        %v2956 = vpack.c.b16 %v2548, %v2546
        %v2957 = vpack.c.b16 %v2549, %v2547
        %v2958 = vpack.c.b16 %v2552, %v2550
        %v2959 = vpack.c.b16 %v2553, %v2551
        %v2960 = vpack.c.b16 %v2556, %v2554
        %v2961 = vpack.c.b16 %v2557, %v2555
        %v2962 = vpack.c.b16 %v2560, %v2558
        %v2963 = vpack.c.b16 %v2561, %v2559
        %v2964 = vpack.c.b16 %v2564, %v2562
        %v2965 = vpack.c.b16 %v2565, %v2563
        %v2966 = vpack.c.b16 %v2568, %v2566
        %v2967 = vpack.c.b16 %v2569, %v2567
        %v2968 = vpack.c.b16 %v2572, %v2570
        %v2969 = vpack.c.b16 %v2573, %v2571
        %v2970 = vpack.c.b16 %v2576, %v2574
        %v2971 = vpack.c.b16 %v2577, %v2575
        %v2972 = vpack.c.b16 %v2580, %v2578
        %v2973 = vpack.c.b16 %v2581, %v2579
        %v2974 = vpack.c.b16 %v2584, %v2582
        %v2975 = vpack.c.b16 %v2585, %v2583
        %v2976 = vpack.c.b16 %v2588, %v2586
        %v2977 = vpack.c.b16 %v2589, %v2587
        %v2978 = vpack.c.b16 %v2592, %v2590
        %v2979 = vpack.c.b16 %v2593, %v2591
        %v2980 = vpack.c.b16 %v2596, %v2594
        %v2981 = vpack.c.b16 %v2597, %v2595
        %v2982 = vpack.c.b16 %v2600, %v2598
        %v2983 = vpack.c.b16 %v2601, %v2599
        %v2984 = vpack.c.b16 %v2604, %v2602
        %v2985 = vpack.c.b16 %v2605, %v2603
        %v2986 = vpack.c.b16 %v2608, %v2606
        %v2987 = vpack.c.b16 %v2609, %v2607
        %v2988 = vpack.c.b16 %v2612, %v2610
        %v2989 = vpack.c.b16 %v2613, %v2611
        %v2990 = vpack.c.b16 %v2616, %v2614
        %v2991 = vpack.c.b16 %v2617, %v2615
        %v2992 = vpack.c.b16 %v2620, %v2618
        %v2993 = vpack.c.b16 %v2621, %v2619
        %v2994 = vpack.c.b16 %v2624, %v2622
        %v2995 = vpack.c.b16 %v2625, %v2623
        %v2996 = vpack.c.b16 %v2628, %v2626
        %v2997 = vpack.c.b16 %v2629, %v2627
        %v2998 = vpack.c.b16 %v2632, %v2630
        %v2999 = vpack.c.b16 %v2633, %v2631
        %v3000 = vpack.c.b16 %v2636, %v2634
        %v3001 = vpack.c.b16 %v2637, %v2635
        %v3002 = vpack.c.b16 %v2640, %v2638
        %v3003 = vpack.c.b16 %v2641, %v2639
        %v3004 = vpack.c.b16 %v2644, %v2642
        %v3005 = vpack.c.b16 %v2645, %v2643
        %v3006 = vpack.c.b16 %v2648, %v2646
        %v3007 = vpack.c.b16 %v2649, %v2647
        %v3008 = vpack.c.b16 %v2652, %v2650
        %v3009 = vpack.c.b16 %v2653, %v2651
        %v3010 = vpack.c.b16 %v2656, %v2654
        %v3011 = vpack.c.b16 %v2657, %v2655
        %v3012 = vpack.c.b16 %v2660, %v2658
        %v3013 = vpack.c.b16 %v2661, %v2659
        %v3014 = vpack.c.b16 %v2664, %v2662
        %v3015 = vpack.c.b16 %v2665, %v2663
        %v3016 = vpack.c.b16 %v2668, %v2666
        %v3017 = vpack.c.b16 %v2669, %v2667
        %v3018 = vpack.c.b16 %v2672, %v2670
        %v3019 = vpack.c.b16 %v2673, %v2671
        %v3020 = vpack.c.b16 %v2676, %v2674
        %v3021 = vpack.c.b16 %v2677, %v2675
        %v3022 = vpack.c.b16 %v2680, %v2678
        %v3023 = vpack.c.b16 %v2681, %v2679
        %v3024 = vpack.c.b16 %v2684, %v2682
        %v3025 = vpack.c.b16 %v2685, %v2683
        %v3026 = vpack.c.b16 %v2688, %v2686
        %v3027 = vpack.c.b16 %v2689, %v2687
        %v3028 = vpack.c.b16 %v2692, %v2690
        %v3029 = vpack.c.b16 %v2693, %v2691
        %v3030 = vpack.c.b16 %v2696, %v2694
        %v3031 = vpack.c.b16 %v2697, %v2695
        %v3032 = vpack.c.b16 %v2700, %v2698
        %v3033 = vpack.c.b16 %v2701, %v2699
        %v3034 = vpack.c.b16 %v2704, %v2702
        %v3035 = vpack.c.b16 %v2705, %v2703
        %v3036 = vpack.c.b16 %v2708, %v2706
        %v3037 = vpack.c.b16 %v2709, %v2707
        %v3038 = vpack.c.b16 %v2712, %v2710
        %v3039 = vpack.c.b16 %v2713, %v2711
        %v3040 = vpack.c.b16 %v2716, %v2714
        %v3041 = vpack.c.b16 %v2717, %v2715
        %v3042 = vpack.c.b16 %v2720, %v2718
        %v3043 = vpack.c.b16 %v2721, %v2719
        %v3044 = vpack.c.b16 %v2724, %v2722
        %v3045 = vpack.c.b16 %v2725, %v2723
        %v3046 = vpack.c.b16 %v2728, %v2726
        %v3047 = vpack.c.b16 %v2729, %v2727
        %v3048 = vpack.c.b16 %v2732, %v2730
        %v3049 = vpack.c.b16 %v2733, %v2731
        %v3050 = vpack.c.b16 %v2736, %v2734
        %v3051 = vpack.c.b16 %v2737, %v2735
        %v3052 = vpack.c.b16 %v2740, %v2738
        %v3053 = vpack.c.b16 %v2741, %v2739
        %v3054 = vpack.c.b16 %v2744, %v2742
        %v3055 = vpack.c.b16 %v2745, %v2743
        %v3056 = vpack.c.b16 %v2748, %v2746
        %v3057 = vpack.c.b16 %v2749, %v2747
        %v3058 = vpack.c.b16 %v2752, %v2750
        %v3059 = vpack.c.b16 %v2753, %v2751
        %v3060 = vpack.c.b16 %v2756, %v2754
        %v3061 = vpack.c.b16 %v2757, %v2755
        %v3062 = vpack.c.b16 %v2760, %v2758
        %v3063 = vpack.c.b16 %v2761, %v2759
        %v3064 = vpack.c.b16 %v2764, %v2762
        %v3065 = vpack.c.b16 %v2765, %v2763
        %v3066 = vpack.c.b16 %v2768, %v2766
        %v3067 = vpack.c.b16 %v2769, %v2767
        %v3068 = vpack.c.b16 %v2772, %v2770
        %v3069 = vpack.c.b16 %v2773, %v2771
        %v3070 = vpack.c.b16 %v2776, %v2774
        %v3071 = vpack.c.b16 %v2777, %v2775
        %v3072 = vpack.c.b16 %v2780, %v2778
        %v3073 = vpack.c.b16 %v2781, %v2779
        %v3074 = vpack.c.b16 %v2784, %v2782
        %v3075 = vpack.c.b16 %v2785, %v2783
        %v3076 = vpack.c.b16 %v2788, %v2786
        %v3077 = vpack.c.b16 %v2789, %v2787
        %3366 = vmatprep.subr.bf16.mxu0 %v2805
        %3367 = vmatpush1.bf16.msra.mxu0 %v2804
        %3368 = vmatprep.subr.bf16.mxu0 %v2803
        %3369 = vmatpush1.bf16.msra.mxu0 %v2802
        %3370 = vmatprep.subr.bf16.mxu0 %v2801
        %3371 = vmatpush1.bf16.msra.mxu0 %v2800
        %3372 = vmatprep.subr.bf16.mxu0 %v2799
        %3373 = vmatpush1.bf16.msra.mxu0 %v2798
        %3374 = vmatprep.subr.bf16.mxu0 %v2797
        %3375 = vmatpush1.bf16.msra.mxu0 %v2796
        %3376 = vmatprep.subr.bf16.mxu0 %v2795
        %3377 = vmatpush1.bf16.msra.mxu0 %v2794
        %3378 = vmatprep.subr.bf16.mxu0 %v2793
        %3379 = vmatpush1.bf16.msra.mxu0 %v2792
        %3380 = vmatprep.subr.bf16.mxu0 %v2791
        %3381 = vmatpush1.bf16.msra.mxu0 %v2790
        %3382 = vmatprep.subr.bf16.mxu0 %v2821
        %3383 = vmatpush2.bf16.msra.mxu0 %v2820
        %3384 = vmatprep.subr.bf16.mxu0 %v2819
        %3385 = vmatpush2.bf16.msra.mxu0 %v2818
        %3386 = vmatprep.subr.bf16.mxu0 %v2817
        %3387 = vmatpush2.bf16.msra.mxu0 %v2816
        %3388 = vmatprep.subr.bf16.mxu0 %v2815
        %3389 = vmatpush2.bf16.msra.mxu0 %v2814
        %3390 = vmatprep.subr.bf16.mxu0 %v2813
        %3391 = vmatpush2.bf16.msra.mxu0 %v2812
        %3392 = vmatprep.subr.bf16.mxu0 %v2811
        %3393 = vmatpush2.bf16.msra.mxu0 %v2810
        %3394 = vmatprep.subr.bf16.mxu0 %v2809
        %3395 = vmatpush2.bf16.msra.mxu0 %v2808
        %3396 = vmatprep.subr.bf16.mxu0 %v2807
        %3397 = vmatpush2.bf16.msra.mxu0 %v2806
        %3398 = vmatprep.mubr.bf16.mxu0 %v1855
        %3399 = vmatmul.mubr.bf16.gmra.mxu0 %v1854
        %v3400 = vpop.f32.mrf.mxu0
        %v3401 = vadd.f32 %v1739, %v3400
        %v3402 = vpop.f32.mrf.mxu0
        %v3403 = vadd.f32 %v1743, %v3402
        %v3404 = vpop.f32.mrf.mxu0
        %v3405 = vadd.f32 %v1739, %v3404
        %v3406 = vpop.f32.mrf.mxu0
        %v3407 = vadd.f32 %v1743, %v3406
        %3408 = vmatprep.mubr.bf16.mxu0 %v1873
        %3409 = vmatmul.mubr.bf16.gmra.mxu0 %v1872
        %v3410 = vpop.f32.mrf.mxu0
        %v3411 = vadd.f32 %v1739, %v3410
        %v3412 = vpop.f32.mrf.mxu0
        %v3413 = vadd.f32 %v1743, %v3412
        %v3414 = vpop.f32.mrf.mxu0
        %v3415 = vadd.f32 %v1739, %v3414
        %v3416 = vpop.f32.mrf.mxu0
        %v3417 = vadd.f32 %v1743, %v3416
        %3418 = vdwg.mxu0
        %3419 = vmatprep.subr.bf16.mxu0 %v2837
        %3420 = vmatpush1.bf16.msra.mxu0 %v2836
        %3421 = vmatprep.subr.bf16.mxu0 %v2835
        %3422 = vmatpush1.bf16.msra.mxu0 %v2834
        %3423 = vmatprep.subr.bf16.mxu0 %v2833
        %3424 = vmatpush1.bf16.msra.mxu0 %v2832
        %3425 = vmatprep.subr.bf16.mxu0 %v2831
        %3426 = vmatpush1.bf16.msra.mxu0 %v2830
        %3427 = vmatprep.subr.bf16.mxu0 %v2829
        %3428 = vmatpush1.bf16.msra.mxu0 %v2828
        %3429 = vmatprep.subr.bf16.mxu0 %v2827
        %3430 = vmatpush1.bf16.msra.mxu0 %v2826
        %3431 = vmatprep.subr.bf16.mxu0 %v2825
        %3432 = vmatpush1.bf16.msra.mxu0 %v2824
        %3433 = vmatprep.subr.bf16.mxu0 %v2823
        %3434 = vmatpush1.bf16.msra.mxu0 %v2822
        %3435 = vmatprep.subr.bf16.mxu0 %v2853
        %3436 = vmatpush2.bf16.msra.mxu0 %v2852
        %3437 = vmatprep.subr.bf16.mxu0 %v2851
        %3438 = vmatpush2.bf16.msra.mxu0 %v2850
        %3439 = vmatprep.subr.bf16.mxu0 %v2849
        %3440 = vmatpush2.bf16.msra.mxu0 %v2848
        %3441 = vmatprep.subr.bf16.mxu0 %v2847
        %3442 = vmatpush2.bf16.msra.mxu0 %v2846
        %3443 = vmatprep.subr.bf16.mxu0 %v2845
        %3444 = vmatpush2.bf16.msra.mxu0 %v2844
        %3445 = vmatprep.subr.bf16.mxu0 %v2843
        %3446 = vmatpush2.bf16.msra.mxu0 %v2842
        %3447 = vmatprep.subr.bf16.mxu0 %v2841
        %3448 = vmatpush2.bf16.msra.mxu0 %v2840
        %3449 = vmatprep.subr.bf16.mxu0 %v2839
        %3450 = vmatpush2.bf16.msra.mxu0 %v2838
        %3451 = vmatprep.mubr.bf16.mxu0 %v1857
        %3452 = vmatmul.mubr.bf16.gmra.mxu0 %v1856
        %v3453 = vpop.f32.mrf.mxu0
        %v3454 = vadd.f32 %v3401, %v3453
        %v3455 = vpop.f32.mrf.mxu0
        %v3456 = vadd.f32 %v3403, %v3455
        %v3457 = vpop.f32.mrf.mxu0
        %v3458 = vadd.f32 %v3405, %v3457
        %v3459 = vpop.f32.mrf.mxu0
        %v3460 = vadd.f32 %v3407, %v3459
        %3461 = vmatprep.mubr.bf16.mxu0 %v1875
        %3462 = vmatmul.mubr.bf16.gmra.mxu0 %v1874
        %v3463 = vpop.f32.mrf.mxu0
        %v3464 = vadd.f32 %v3411, %v3463
        %v3465 = vpop.f32.mrf.mxu0
        %v3466 = vadd.f32 %v3413, %v3465
        %v3467 = vpop.f32.mrf.mxu0
        %v3468 = vadd.f32 %v3415, %v3467
        %v3469 = vpop.f32.mrf.mxu0
        %v3470 = vadd.f32 %v3417, %v3469
        %3471 = vdwg.mxu0
        %3472 = vmatprep.subr.bf16.mxu0 %v2869
        %3473 = vmatpush1.bf16.msra.mxu0 %v2868
        %3474 = vmatprep.subr.bf16.mxu0 %v2867
        %3475 = vmatpush1.bf16.msra.mxu0 %v2866
        %3476 = vmatprep.subr.bf16.mxu0 %v2865
        %3477 = vmatpush1.bf16.msra.mxu0 %v2864
        %3478 = vmatprep.subr.bf16.mxu0 %v2863
        %3479 = vmatpush1.bf16.msra.mxu0 %v2862
        %3480 = vmatprep.subr.bf16.mxu0 %v2861
        %3481 = vmatpush1.bf16.msra.mxu0 %v2860
        %3482 = vmatprep.subr.bf16.mxu0 %v2859
        %3483 = vmatpush1.bf16.msra.mxu0 %v2858
        %3484 = vmatprep.subr.bf16.mxu0 %v2857
        %3485 = vmatpush1.bf16.msra.mxu0 %v2856
        %3486 = vmatprep.subr.bf16.mxu0 %v2855
        %3487 = vmatpush1.bf16.msra.mxu0 %v2854
        %3488 = vmatprep.subr.bf16.mxu0 %v2885
        %3489 = vmatpush2.bf16.msra.mxu0 %v2884
        %3490 = vmatprep.subr.bf16.mxu0 %v2883
        %3491 = vmatpush2.bf16.msra.mxu0 %v2882
        %3492 = vmatprep.subr.bf16.mxu0 %v2881
        %3493 = vmatpush2.bf16.msra.mxu0 %v2880
        %3494 = vmatprep.subr.bf16.mxu0 %v2879
        %3495 = vmatpush2.bf16.msra.mxu0 %v2878
        %3496 = vmatprep.subr.bf16.mxu0 %v2877
        %3497 = vmatpush2.bf16.msra.mxu0 %v2876
        %3498 = vmatprep.subr.bf16.mxu0 %v2875
        %3499 = vmatpush2.bf16.msra.mxu0 %v2874
        %3500 = vmatprep.subr.bf16.mxu0 %v2873
        %3501 = vmatpush2.bf16.msra.mxu0 %v2872
        %3502 = vmatprep.subr.bf16.mxu0 %v2871
        %3503 = vmatpush2.bf16.msra.mxu0 %v2870
        %3504 = vmatprep.mubr.bf16.mxu0 %v1859
        %3505 = vmatmul.mubr.bf16.gmra.mxu0 %v1858
        %v3506 = vpop.f32.mrf.mxu0
        %v3507 = vadd.f32 %v3454, %v3506
        %v3508 = vpop.f32.mrf.mxu0
        %v3509 = vadd.f32 %v3456, %v3508
        %v3510 = vpop.f32.mrf.mxu0
        %v3511 = vadd.f32 %v3458, %v3510
        %v3512 = vpop.f32.mrf.mxu0
        %v3513 = vadd.f32 %v3460, %v3512
        %3514 = vmatprep.mubr.bf16.mxu0 %v1877
        %3515 = vmatmul.mubr.bf16.gmra.mxu0 %v1876
        %v3516 = vpop.f32.mrf.mxu0
        %v3517 = vadd.f32 %v3464, %v3516
        %v3518 = vpop.f32.mrf.mxu0
        %v3519 = vadd.f32 %v3466, %v3518
        %v3520 = vpop.f32.mrf.mxu0
        %v3521 = vadd.f32 %v3468, %v3520
        %v3522 = vpop.f32.mrf.mxu0
        %v3523 = vadd.f32 %v3470, %v3522
        %3524 = vdwg.mxu0
        %3525 = vmatprep.subr.bf16.mxu0 %v2901
        %3526 = vmatpush1.bf16.msra.mxu0 %v2900
        %3527 = vmatprep.subr.bf16.mxu0 %v2899
        %3528 = vmatpush1.bf16.msra.mxu0 %v2898
        %3529 = vmatprep.subr.bf16.mxu0 %v2897
        %3530 = vmatpush1.bf16.msra.mxu0 %v2896
        %3531 = vmatprep.subr.bf16.mxu0 %v2895
        %3532 = vmatpush1.bf16.msra.mxu0 %v2894
        %3533 = vmatprep.subr.bf16.mxu0 %v2893
        %3534 = vmatpush1.bf16.msra.mxu0 %v2892
        %3535 = vmatprep.subr.bf16.mxu0 %v2891
        %3536 = vmatpush1.bf16.msra.mxu0 %v2890
        %3537 = vmatprep.subr.bf16.mxu0 %v2889
        %3538 = vmatpush1.bf16.msra.mxu0 %v2888
        %3539 = vmatprep.subr.bf16.mxu0 %v2887
        %3540 = vmatpush1.bf16.msra.mxu0 %v2886
        %3541 = vmatprep.subr.bf16.mxu0 %v2917
        %3542 = vmatpush2.bf16.msra.mxu0 %v2916
        %3543 = vmatprep.subr.bf16.mxu0 %v2915
        %3544 = vmatpush2.bf16.msra.mxu0 %v2914
        %3545 = vmatprep.subr.bf16.mxu0 %v2913
        %3546 = vmatpush2.bf16.msra.mxu0 %v2912
        %3547 = vmatprep.subr.bf16.mxu0 %v2911
        %3548 = vmatpush2.bf16.msra.mxu0 %v2910
        %3549 = vmatprep.subr.bf16.mxu0 %v2909
        %3550 = vmatpush2.bf16.msra.mxu0 %v2908
        %3551 = vmatprep.subr.bf16.mxu0 %v2907
        %3552 = vmatpush2.bf16.msra.mxu0 %v2906
        %3553 = vmatprep.subr.bf16.mxu0 %v2905
        %3554 = vmatpush2.bf16.msra.mxu0 %v2904
        %3555 = vmatprep.subr.bf16.mxu0 %v2903
        %3556 = vmatpush2.bf16.msra.mxu0 %v2902
        %3557 = vmatprep.mubr.bf16.mxu0 %v1861
        %3558 = vmatmul.mubr.bf16.gmra.mxu0 %v1860
        %v3559 = vpop.f32.mrf.mxu0
        %v3560 = vadd.f32 %v3507, %v3559
        %v3561 = vpop.f32.mrf.mxu0
        %v3562 = vadd.f32 %v3509, %v3561
        %v3563 = vpop.f32.mrf.mxu0
        %v3564 = vadd.f32 %v3511, %v3563
        %v3565 = vpop.f32.mrf.mxu0
        %v3566 = vadd.f32 %v3513, %v3565
        %3567 = vmatprep.mubr.bf16.mxu0 %v1879
        %3568 = vmatmul.mubr.bf16.gmra.mxu0 %v1878
        %v3569 = vpop.f32.mrf.mxu0
        %v3570 = vadd.f32 %v3517, %v3569
        %v3571 = vpop.f32.mrf.mxu0
        %v3572 = vadd.f32 %v3519, %v3571
        %v3573 = vpop.f32.mrf.mxu0
        %v3574 = vadd.f32 %v3521, %v3573
        %v3575 = vpop.f32.mrf.mxu0
        %v3576 = vadd.f32 %v3523, %v3575
        %3577 = vdwg.mxu0
        %3578 = vmatprep.subr.bf16.mxu0 %v2933
        %3579 = vmatpush1.bf16.msra.mxu0 %v2932
        %3580 = vmatprep.subr.bf16.mxu0 %v2931
        %3581 = vmatpush1.bf16.msra.mxu0 %v2930
        %3582 = vmatprep.subr.bf16.mxu0 %v2929
        %3583 = vmatpush1.bf16.msra.mxu0 %v2928
        %3584 = vmatprep.subr.bf16.mxu0 %v2927
        %3585 = vmatpush1.bf16.msra.mxu0 %v2926
        %3586 = vmatprep.subr.bf16.mxu0 %v2925
        %3587 = vmatpush1.bf16.msra.mxu0 %v2924
        %3588 = vmatprep.subr.bf16.mxu0 %v2923
        %3589 = vmatpush1.bf16.msra.mxu0 %v2922
        %3590 = vmatprep.subr.bf16.mxu0 %v2921
        %3591 = vmatpush1.bf16.msra.mxu0 %v2920
        %3592 = vmatprep.subr.bf16.mxu0 %v2919
        %3593 = vmatpush1.bf16.msra.mxu0 %v2918
        %3594 = vmatprep.subr.bf16.mxu0 %v2949
        %3595 = vmatpush2.bf16.msra.mxu0 %v2948
        %3596 = vmatprep.subr.bf16.mxu0 %v2947
        %3597 = vmatpush2.bf16.msra.mxu0 %v2946
        %3598 = vmatprep.subr.bf16.mxu0 %v2945
        %3599 = vmatpush2.bf16.msra.mxu0 %v2944
        %3600 = vmatprep.subr.bf16.mxu0 %v2943
        %3601 = vmatpush2.bf16.msra.mxu0 %v2942
        %3602 = vmatprep.subr.bf16.mxu0 %v2941
        %3603 = vmatpush2.bf16.msra.mxu0 %v2940
        %3604 = vmatprep.subr.bf16.mxu0 %v2939
        %3605 = vmatpush2.bf16.msra.mxu0 %v2938
        %3606 = vmatprep.subr.bf16.mxu0 %v2937
        %3607 = vmatpush2.bf16.msra.mxu0 %v2936
        %3608 = vmatprep.subr.bf16.mxu0 %v2935
        %3609 = vmatpush2.bf16.msra.mxu0 %v2934
        %3610 = vmatprep.mubr.bf16.mxu0 %v1863
        %3611 = vmatmul.mubr.bf16.gmra.mxu0 %v1862
        %v3612 = vpop.f32.mrf.mxu0
        %v3613 = vadd.f32 %v3560, %v3612
        %v3614 = vpop.f32.mrf.mxu0
        %v3615 = vadd.f32 %v3562, %v3614
        %v3616 = vpop.f32.mrf.mxu0
        %v3617 = vadd.f32 %v3564, %v3616
        %v3618 = vpop.f32.mrf.mxu0
        %v3619 = vadd.f32 %v3566, %v3618
        %3620 = vmatprep.mubr.bf16.mxu0 %v1881
        %3621 = vmatmul.mubr.bf16.gmra.mxu0 %v1880
        %v3622 = vpop.f32.mrf.mxu0
        %v3623 = vadd.f32 %v3570, %v3622
        %v3624 = vpop.f32.mrf.mxu0
        %v3625 = vadd.f32 %v3572, %v3624
        %v3626 = vpop.f32.mrf.mxu0
        %v3627 = vadd.f32 %v3574, %v3626
        %v3628 = vpop.f32.mrf.mxu0
        %v3629 = vadd.f32 %v3576, %v3628
        %3630 = vdwg.mxu0
        %3631 = vmatprep.subr.bf16.mxu0 %v2965
        %3632 = vmatpush1.bf16.msra.mxu0 %v2964
        %3633 = vmatprep.subr.bf16.mxu0 %v2963
        %3634 = vmatpush1.bf16.msra.mxu0 %v2962
        %3635 = vmatprep.subr.bf16.mxu0 %v2961
        %3636 = vmatpush1.bf16.msra.mxu0 %v2960
        %3637 = vmatprep.subr.bf16.mxu0 %v2959
        %3638 = vmatpush1.bf16.msra.mxu0 %v2958
        %3639 = vmatprep.subr.bf16.mxu0 %v2957
        %3640 = vmatpush1.bf16.msra.mxu0 %v2956
        %3641 = vmatprep.subr.bf16.mxu0 %v2955
        %3642 = vmatpush1.bf16.msra.mxu0 %v2954
        %3643 = vmatprep.subr.bf16.mxu0 %v2953
        %3644 = vmatpush1.bf16.msra.mxu0 %v2952
        %3645 = vmatprep.subr.bf16.mxu0 %v2951
        %3646 = vmatpush1.bf16.msra.mxu0 %v2950
        %3647 = vmatprep.subr.bf16.mxu0 %v2981
        %3648 = vmatpush2.bf16.msra.mxu0 %v2980
        %3649 = vmatprep.subr.bf16.mxu0 %v2979
        %3650 = vmatpush2.bf16.msra.mxu0 %v2978
        %3651 = vmatprep.subr.bf16.mxu0 %v2977
        %3652 = vmatpush2.bf16.msra.mxu0 %v2976
        %3653 = vmatprep.subr.bf16.mxu0 %v2975
        %3654 = vmatpush2.bf16.msra.mxu0 %v2974
        %3655 = vmatprep.subr.bf16.mxu0 %v2973
        %3656 = vmatpush2.bf16.msra.mxu0 %v2972
        %3657 = vmatprep.subr.bf16.mxu0 %v2971
        %3658 = vmatpush2.bf16.msra.mxu0 %v2970
        %3659 = vmatprep.subr.bf16.mxu0 %v2969
        %3660 = vmatpush2.bf16.msra.mxu0 %v2968
        %3661 = vmatprep.subr.bf16.mxu0 %v2967
        %3662 = vmatpush2.bf16.msra.mxu0 %v2966
        %3663 = vmatprep.mubr.bf16.mxu0 %v1865
        %3664 = vmatmul.mubr.bf16.gmra.mxu0 %v1864
        %v3665 = vpop.f32.mrf.mxu0
        %v3666 = vadd.f32 %v3613, %v3665
        %v3667 = vpop.f32.mrf.mxu0
        %v3668 = vadd.f32 %v3615, %v3667
        %v3669 = vpop.f32.mrf.mxu0
        %v3670 = vadd.f32 %v3617, %v3669
        %v3671 = vpop.f32.mrf.mxu0
        %v3672 = vadd.f32 %v3619, %v3671
        %3673 = vmatprep.mubr.bf16.mxu0 %v1883
        %3674 = vmatmul.mubr.bf16.gmra.mxu0 %v1882
        %v3675 = vpop.f32.mrf.mxu0
        %v3676 = vadd.f32 %v3623, %v3675
        %v3677 = vpop.f32.mrf.mxu0
        %v3678 = vadd.f32 %v3625, %v3677
        %v3679 = vpop.f32.mrf.mxu0
        %v3680 = vadd.f32 %v3627, %v3679
        %v3681 = vpop.f32.mrf.mxu0
        %v3682 = vadd.f32 %v3629, %v3681
        %3683 = vdwg.mxu0
        %3684 = vmatprep.subr.bf16.mxu0 %v2997
        %3685 = vmatpush1.bf16.msra.mxu0 %v2996
        %3686 = vmatprep.subr.bf16.mxu0 %v2995
        %3687 = vmatpush1.bf16.msra.mxu0 %v2994
        %3688 = vmatprep.subr.bf16.mxu0 %v2993
        %3689 = vmatpush1.bf16.msra.mxu0 %v2992
        %3690 = vmatprep.subr.bf16.mxu0 %v2991
        %3691 = vmatpush1.bf16.msra.mxu0 %v2990
        %3692 = vmatprep.subr.bf16.mxu0 %v2989
        %3693 = vmatpush1.bf16.msra.mxu0 %v2988
        %3694 = vmatprep.subr.bf16.mxu0 %v2987
        %3695 = vmatpush1.bf16.msra.mxu0 %v2986
        %3696 = vmatprep.subr.bf16.mxu0 %v2985
        %3697 = vmatpush1.bf16.msra.mxu0 %v2984
        %3698 = vmatprep.subr.bf16.mxu0 %v2983
        %3699 = vmatpush1.bf16.msra.mxu0 %v2982
        %3700 = vmatprep.subr.bf16.mxu0 %v3013
        %3701 = vmatpush2.bf16.msra.mxu0 %v3012
        %3702 = vmatprep.subr.bf16.mxu0 %v3011
        %3703 = vmatpush2.bf16.msra.mxu0 %v3010
        %3704 = vmatprep.subr.bf16.mxu0 %v3009
        %3705 = vmatpush2.bf16.msra.mxu0 %v3008
        %3706 = vmatprep.subr.bf16.mxu0 %v3007
        %3707 = vmatpush2.bf16.msra.mxu0 %v3006
        %3708 = vmatprep.subr.bf16.mxu0 %v3005
        %3709 = vmatpush2.bf16.msra.mxu0 %v3004
        %3710 = vmatprep.subr.bf16.mxu0 %v3003
        %3711 = vmatpush2.bf16.msra.mxu0 %v3002
        %3712 = vmatprep.subr.bf16.mxu0 %v3001
        %3713 = vmatpush2.bf16.msra.mxu0 %v3000
        %3714 = vmatprep.subr.bf16.mxu0 %v2999
        %3715 = vmatpush2.bf16.msra.mxu0 %v2998
        %3716 = vmatprep.mubr.bf16.mxu0 %v1867
        %3717 = vmatmul.mubr.bf16.gmra.mxu0 %v1866
        %v3718 = vpop.f32.mrf.mxu0
        %v3719 = vadd.f32 %v3666, %v3718
        %v3720 = vpop.f32.mrf.mxu0
        %v3721 = vadd.f32 %v3668, %v3720
        %v3722 = vpop.f32.mrf.mxu0
        %v3723 = vadd.f32 %v3670, %v3722
        %v3724 = vpop.f32.mrf.mxu0
        %v3725 = vadd.f32 %v3672, %v3724
        %3726 = vmatprep.mubr.bf16.mxu0 %v1885
        %3727 = vmatmul.mubr.bf16.gmra.mxu0 %v1884
        %v3728 = vpop.f32.mrf.mxu0
        %v3729 = vadd.f32 %v3676, %v3728
        %v3730 = vpop.f32.mrf.mxu0
        %v3731 = vadd.f32 %v3678, %v3730
        %v3732 = vpop.f32.mrf.mxu0
        %v3733 = vadd.f32 %v3680, %v3732
        %v3734 = vpop.f32.mrf.mxu0
        %v3735 = vadd.f32 %v3682, %v3734
        %3736 = vdwg.mxu0
        %3737 = vmatprep.subr.bf16.mxu0 %v3029
        %3738 = vmatpush1.bf16.msra.mxu0 %v3028
        %3739 = vmatprep.subr.bf16.mxu0 %v3027
        %3740 = vmatpush1.bf16.msra.mxu0 %v3026
        %3741 = vmatprep.subr.bf16.mxu0 %v3025
        %3742 = vmatpush1.bf16.msra.mxu0 %v3024
        %3743 = vmatprep.subr.bf16.mxu0 %v3023
        %3744 = vmatpush1.bf16.msra.mxu0 %v3022
        %3745 = vmatprep.subr.bf16.mxu0 %v3021
        %3746 = vmatpush1.bf16.msra.mxu0 %v3020
        %3747 = vmatprep.subr.bf16.mxu0 %v3019
        %3748 = vmatpush1.bf16.msra.mxu0 %v3018
        %3749 = vmatprep.subr.bf16.mxu0 %v3017
        %3750 = vmatpush1.bf16.msra.mxu0 %v3016
        %3751 = vmatprep.subr.bf16.mxu0 %v3015
        %3752 = vmatpush1.bf16.msra.mxu0 %v3014
        %3753 = vmatprep.subr.bf16.mxu0 %v3045
        %3754 = vmatpush2.bf16.msra.mxu0 %v3044
        %3755 = vmatprep.subr.bf16.mxu0 %v3043
        %3756 = vmatpush2.bf16.msra.mxu0 %v3042
        %3757 = vmatprep.subr.bf16.mxu0 %v3041
        %3758 = vmatpush2.bf16.msra.mxu0 %v3040
        %3759 = vmatprep.subr.bf16.mxu0 %v3039
        %3760 = vmatpush2.bf16.msra.mxu0 %v3038
        %3761 = vmatprep.subr.bf16.mxu0 %v3037
        %3762 = vmatpush2.bf16.msra.mxu0 %v3036
        %3763 = vmatprep.subr.bf16.mxu0 %v3035
        %3764 = vmatpush2.bf16.msra.mxu0 %v3034
        %3765 = vmatprep.subr.bf16.mxu0 %v3033
        %3766 = vmatpush2.bf16.msra.mxu0 %v3032
        %3767 = vmatprep.subr.bf16.mxu0 %v3031
        %3768 = vmatpush2.bf16.msra.mxu0 %v3030
        %3769 = vmatprep.mubr.bf16.mxu0 %v1869
        %3770 = vmatmul.mubr.bf16.gmra.mxu0 %v1868
        %v3771 = vpop.f32.mrf.mxu0
        %v3772 = vadd.f32 %v3719, %v3771
        %v3773 = vpop.f32.mrf.mxu0
        %v3774 = vadd.f32 %v3721, %v3773
        %v3775 = vpop.f32.mrf.mxu0
        %v3776 = vadd.f32 %v3723, %v3775
        %v3777 = vpop.f32.mrf.mxu0
        %v3778 = vadd.f32 %v3725, %v3777
        %3779 = vmatprep.mubr.bf16.mxu0 %v1887
        %3780 = vmatmul.mubr.bf16.gmra.mxu0 %v1886
        %v3781 = vpop.f32.mrf.mxu0
        %v3782 = vadd.f32 %v3729, %v3781
        %v3783 = vpop.f32.mrf.mxu0
        %v3784 = vadd.f32 %v3731, %v3783
        %v3785 = vpop.f32.mrf.mxu0
        %v3786 = vadd.f32 %v3733, %v3785
        %v3787 = vpop.f32.mrf.mxu0
        %v3788 = vadd.f32 %v3735, %v3787
        %3789 = vdwg.mxu0
        %3790 = vmatprep.subr.bf16.mxu0 %v3061
        %3791 = vmatpush1.bf16.msra.mxu0 %v3060
        %3792 = vmatprep.subr.bf16.mxu0 %v3059
        %3793 = vmatpush1.bf16.msra.mxu0 %v3058
        %3794 = vmatprep.subr.bf16.mxu0 %v3057
        %3795 = vmatpush1.bf16.msra.mxu0 %v3056
        %3796 = vmatprep.subr.bf16.mxu0 %v3055
        %3797 = vmatpush1.bf16.msra.mxu0 %v3054
        %3798 = vmatprep.subr.bf16.mxu0 %v3053
        %3799 = vmatpush1.bf16.msra.mxu0 %v3052
        %3800 = vmatprep.subr.bf16.mxu0 %v3051
        %3801 = vmatpush1.bf16.msra.mxu0 %v3050
        %3802 = vmatprep.subr.bf16.mxu0 %v3049
        %3803 = vmatpush1.bf16.msra.mxu0 %v3048
        %3804 = vmatprep.subr.bf16.mxu0 %v3047
        %3805 = vmatpush1.bf16.msra.mxu0 %v3046
        %3806 = vmatprep.subr.bf16.mxu0 %v3077
        %3807 = vmatpush2.bf16.msra.mxu0 %v3076
        %3808 = vmatprep.subr.bf16.mxu0 %v3075
        %3809 = vmatpush2.bf16.msra.mxu0 %v3074
        %3810 = vmatprep.subr.bf16.mxu0 %v3073
        %3811 = vmatpush2.bf16.msra.mxu0 %v3072
        %3812 = vmatprep.subr.bf16.mxu0 %v3071
        %3813 = vmatpush2.bf16.msra.mxu0 %v3070
        %3814 = vmatprep.subr.bf16.mxu0 %v3069
        %3815 = vmatpush2.bf16.msra.mxu0 %v3068
        %3816 = vmatprep.subr.bf16.mxu0 %v3067
        %3817 = vmatpush2.bf16.msra.mxu0 %v3066
        %3818 = vmatprep.subr.bf16.mxu0 %v3065
        %3819 = vmatpush2.bf16.msra.mxu0 %v3064
        %3820 = vmatprep.subr.bf16.mxu0 %v3063
        %3821 = vmatpush2.bf16.msra.mxu0 %v3062
        %3822 = vmatprep.mubr.bf16.mxu0 %v1871
        %3823 = vmatmul.mubr.bf16.gmra.mxu0 %v1870
        %v3824 = vpop.f32.mrf.mxu0
        %v3825 = vadd.f32 %v3772, %v3824
        %v3826 = vpop.f32.mrf.mxu0
        %v3827 = vadd.f32 %v3774, %v3826
        %v3828 = vpop.f32.mrf.mxu0
        %v3829 = vadd.f32 %v3776, %v3828
        %v3830 = vpop.f32.mrf.mxu0
        %v3831 = vadd.f32 %v3778, %v3830
        %3832 = vmatprep.mubr.bf16.mxu0 %v1889
        %3833 = vmatmul.mubr.bf16.gmra.mxu0 %v1888
        %v3834 = vpop.f32.mrf.mxu0
        %v3835 = vadd.f32 %v3782, %v3834
        %v3836 = vpop.f32.mrf.mxu0
        %v3837 = vadd.f32 %v3784, %v3836
        %v3838 = vpop.f32.mrf.mxu0
        %v3839 = vadd.f32 %v3786, %v3838
        %v3840 = vpop.f32.mrf.mxu0
        %v3841 = vadd.f32 %v3788, %v3840
        %3842 = vdwg.mxu0
        %vm3843 = vcmp.gt.f32.partialorder %v3825, 0.0
        %vm3844 = vcmp.gt.f32.partialorder %v3827, 0.0
        %vm3845 = vcmp.gt.f32.partialorder %v3829, 0.0
        %vm3846 = vcmp.gt.f32.partialorder %v3831, 0.0
        %vm3847 = vcmp.gt.f32.partialorder %v3835, 0.0
        %vm3848 = vcmp.gt.f32.partialorder %v3837, 0.0
        %vm3849 = vcmp.gt.f32.partialorder %v3839, 0.0
        %vm3850 = vcmp.gt.f32.partialorder %v3841, 0.0
        %v3851 = vmul.f32 %v3825, 0.2
        %v3852 = vmul.f32 %v3827, 0.2
        %v3853 = vmul.f32 %v3829, 0.2
        %v3854 = vmul.f32 %v3831, 0.2
        %v3855 = vmul.f32 %v3835, 0.2
        %v3856 = vmul.f32 %v3837, 0.2
        %v3857 = vmul.f32 %v3839, 0.2
        %v3858 = vmul.f32 %v3841, 0.2
        %v3859 = vsel %vm3843, %v3825, %v3851
        %v3860 = vsel %vm3844, %v3827, %v3852
        %v3861 = vsel %vm3845, %v3829, %v3853
        %v3862 = vsel %vm3846, %v3831, %v3854
        %v3863 = vsel %vm3847, %v3835, %v3855
        %v3864 = vsel %vm3848, %v3837, %v3856
        %v3865 = vsel %vm3849, %v3839, %v3857
        %v3866 = vsel %vm3850, %v3841, %v3858
        %v3867 = vpack.c.bf16 %v3861, %v3859
        %v3868 = vpack.c.bf16 %v3862, %v3860
        %v3869 = vpack.c.bf16 %v3865, %v3863
        %v3870 = vpack.c.bf16 %v3866, %v3864
        %v3875 = vunpack.c.l.b16 %v3867
        %v3876 = vunpack.c.l.b16 %v3868
        %v3877 = vunpack.c.h.b16 %v3867
        %v3878 = vunpack.c.h.b16 %v3868
        %v3879 = vunpack.c.l.b16 %v3869
        %v3880 = vunpack.c.l.b16 %v3870
        %v3881 = vunpack.c.h.b16 %v3869
        %v3882 = vunpack.c.h.b16 %v3870
        %v3883 = vpack.c.b16 %v3876, %v3875
        %v3884 = vpack.c.b16 %v3878, %v3877
        %v3885 = vpack.c.b16 %v3880, %v3879
        %v3886 = vpack.c.b16 %v3882, %v3881
        %3891 = vst [vmem:[%s1394] sm:$0xff] %v3883
        %3892 = vst [vmem:[%s1394 + $0x8] sm:$0xff] %v3884
        %3893 = vst [vmem:[%s1394 + $0x10] sm:$0xff] %v3885
        %3894 = vst [vmem:[%s1394 + $0x18] sm:$0xff] %v3886
        %s3895 = sand.u32 %s114, 1
        %s3896 = sand.u32 %s114, 1
        %s3897 = smul.addr %s3896, 32
        %s3898 = scalar_lea.vmem [#allocation3], %s3897
        // Predicated region
        $region71: #{discriminator_forward.10} parent=65 // pred_check
          %p3899 = pneg %p124
        $region72: #{discriminator_forward.10} parent=65 // pred_check_branch
          %3901 = sbr.rel (%p3899) target = $region74
        $region73: #{discriminator_forward.10} parent=65 // pred_region
          %s3902 = smul.u32 4, %s18
          %s3903 = smul.u32 2, %s19
          %s3904 = smul.addr %s3902, 4
          %s3905 = sadd.s32 %s3903, %s3904
          %s3906 = smul.addr %s3905, 4
          %s3907 = scalar_lea.vmem %s3, %s3906
          // Predicated region
          $region75: #{discriminator_forward.10} parent=73 // pred_check
            _
          $region76: #{discriminator_forward.10} parent=73 // pred_check_branch
            %3909 = sbr.rel (0) target = $region78
          $region77: #{discriminator_forward.10} parent=73 // pred_region
            // Predicated region
            $region79: #{discriminator_forward.10} parent=77 // pred_check
              _
            $region80: #{discriminator_forward.10} parent=77 // pred_check_branch
              %3911 = sbr.rel (0) target = $region82
            $region81: #{discriminator_forward.10} parent=77 // pred_region
              // Predicated region
              $region94: #{discriminator_forward.10} parent=81 // pred_check
                _
              $region95: #{discriminator_forward.10} parent=81 // pred_check_branch
                %3933 = sbr.rel (0) target = $region97
              $region96: #{discriminator_forward.10} parent=81 // pred_region
                loop: start=0, step=1, limit=1
                $region98: #{discriminator_forward.10} parent=96 // loop_pre_header
                  _
                $region99: #{discriminator_forward.10} parent=96 // loop_header
                  %s3935 = sphi 0, %s3939
                  %p3936 = scmp.ge.s32.totalorder %s3935, 1
                  %s3940 = sphi %s3898, %s3898
                  %s3941 = sphi %s3907, %s3907
                $region100: #{discriminator_forward.10} parent=96 // loop_header_branch
                  %3938 = sbr.rel (%p3936) target = $region104
                $region101: #{discriminator_forward.10} parent=96 // loop_body
                  %v3942 = vld [vmem:[%s3940] sm:$0xff]
                  %3943 = vst [vmem:[%s3941] sm:$0xff] %v3942
                  %v3944 = vld [vmem:[%s3940 + $0x8] sm:$0xff]
                  %3945 = vst [vmem:[%s3941 + $0x10] sm:$0xff] %v3944
                  %v3946 = vld [vmem:[%s3940 + $0x10] sm:$0xff]
                  %3947 = vst [vmem:[%s3941 + $0x20] sm:$0xff] %v3946
                  %v3948 = vld [vmem:[%s3940 + $0x18] sm:$0xff]
                  %3949 = vst [vmem:[%s3941 + $0x30] sm:$0xff] %v3948
                $region102: #{discriminator_forward.10} parent=96 // loop_footer
                  %s3939 = sadd.s32 1, %s3935
                $region103: #{discriminator_forward.10} parent=96 // loop_footer_branch
                  %3934 = sbr.rel target = $region99
                $region104: #{discriminator_forward.10} parent=96 // loop_exit
                  _
              $region97: #{discriminator_forward.10} parent=81 // pred_fallthru
                _
              // Predicated region
              $region105: #{discriminator_forward.10} parent=81 // pred_check
                _
              $region106: #{discriminator_forward.10} parent=81 // pred_check_branch
                %3951 = sbr.rel target = $region108
              $region107: #{discriminator_forward.10} parent=81 // pred_region
                _
              $region108: #{discriminator_forward.10} parent=81 // pred_fallthru
                _
            $region82: #{discriminator_forward.10} parent=77 // pred_fallthru
              _
            // Predicated region
            $region83: #{discriminator_forward.10} parent=77 // pred_check
              _
            $region84: #{discriminator_forward.10} parent=77 // pred_check_branch
              %3913 = sbr.rel target = $region86
            $region85: #{discriminator_forward.10} parent=77 // pred_region
              %s3915 = ssub.s32 256, 1
              loop: start=0, step=1, limit=1
              $region87: #{discriminator_forward.10} parent=85 // loop_pre_header
                _
              $region88: #{discriminator_forward.10} parent=85 // loop_header
                %s3917 = sphi 0, %s3921
                %p3918 = scmp.ge.s32.totalorder %s3917, 1
                %s3922 = sphi %s3898, %s3898
                %s3923 = sphi %s3907, %s3907
              $region89: #{discriminator_forward.10} parent=85 // loop_header_branch
                %3920 = sbr.rel (%p3918) target = $region93
              $region90: #{discriminator_forward.10} parent=85 // loop_body
                %v3924 = vld [vmem:[%s3922] sm:%s3915]
                %3925 = vst [vmem:[%s3923] sm:%s3915] %v3924
                %v3926 = vld [vmem:[%s3922 + $0x8] sm:%s3915]
                %3927 = vst [vmem:[%s3923 + $0x10] sm:%s3915] %v3926
                %v3928 = vld [vmem:[%s3922 + $0x10] sm:%s3915]
                %3929 = vst [vmem:[%s3923 + $0x20] sm:%s3915] %v3928
                %v3930 = vld [vmem:[%s3922 + $0x18] sm:%s3915]
                %3931 = vst [vmem:[%s3923 + $0x30] sm:%s3915] %v3930
              $region91: #{discriminator_forward.10} parent=85 // loop_footer
                %s3921 = sadd.s32 1, %s3917
              $region92: #{discriminator_forward.10} parent=85 // loop_footer_branch
                %3916 = sbr.rel target = $region88
              $region93: #{discriminator_forward.10} parent=85 // loop_exit
                _
            $region86: #{discriminator_forward.10} parent=77 // pred_fallthru
              _
          $region78: #{discriminator_forward.10} parent=73 // pred_fallthru
            _
          %3952 = vnop
        $region74: #{discriminator_forward.10} parent=65 // pred_fallthru
          _
      $region66: #{discriminator_forward.10} parent=5 // pred_fallthru
        _
      %p3953 = scmp.le.s32.totalorder 2, %s9
      // Predicated region
      $region109: #{discriminator_forward.10} parent=5 // pred_check
        %p3954 = pneg %p3953
      $region110: #{discriminator_forward.10} parent=5 // pred_check_branch
        %3956 = sbr.rel (%p3954) target = $region112
      $region111: #{discriminator_forward.10} parent=5 // pred_region
        %s3957 = ssub.s32 %s9, 2
        // Predicated region
        $region113: #{discriminator_forward.10} parent=111 // pred_check
          %p3958 = pneg %p130
        $region114: #{discriminator_forward.10} parent=111 // pred_check_branch
          %3960 = sbr.rel (%p3958) target = $region116
        $region115: #{discriminator_forward.10} parent=111 // pred_region
          %s3961 = sand.u32 %s115, 1
          %s3962 = sand.u32 %s115, 1
          %s3963 = smul.addr %s3962, 32
          %s3964 = scalar_lea.vmem [#allocation3], %s3963
        $region116: #{discriminator_forward.10} parent=111 // pred_fallthru
          _
      $region112: #{discriminator_forward.10} parent=5 // pred_fallthru
        _
    $region6: #{discriminator_forward.10} parent=1 // loop_footer
      %s13 = sadd.s32 1, %s9
    $region7: #{discriminator_forward.10} parent=1 // loop_footer_branch
      %8 = sbr.rel target = $region3
    $region8: #{discriminator_forward.10} parent=1 // loop_exit
      _

</llo_original>
